<compile_context>
chip_gen: v6e
topology: v6e:2x2x1
jax: 0.10.0
libtpu: 0.0.40
codegen_flags: <defaults>
</compile_context>

<pallas_src>
import functools
import math

import jax
import jax.numpy as jnp
from jax.experimental import pallas as pl
from jax.experimental.pallas import tpu as pltpu


CP = 128            # lane-dense padded channel width for all activations/weights
NUM_CLS_PAD = 128   # padded class dimension for the FC layer
EPS = 1e-3          # module's batch_norm(): eps=0.001 (batch_norm_fix=True)


# ----------------------------------------------------------------- utilities

def _choose_tm(m):
    """Row-tile size: prefer 256-row tiles (pipelining + dual-TC), otherwise
    the largest even divisor; fall back to the whole extent."""
    for tm in (256, 128, 64, 32, 16, 8):
        if m % tm == 0:
            return tm
    return m


def _pad_lanes(x, target=CP):
    pad = target - x.shape[-1]
    if pad == 0:
        return x
    cfg = [(0, 0)] * (x.ndim - 1) + [(0, pad)]
    return jnp.pad(x, cfg)


# ------------------------------------------------------------ Pallas kernels

def _emit_out_and_stats(y, o_ref, s_ref, q_ref):
    o_ref[...] = y
    s_ref[...] = jnp.broadcast_to(jnp.sum(y, axis=0, keepdims=True), s_ref.shape)
    q_ref[...] = jnp.broadcast_to(jnp.sum(y * y, axis=0, keepdims=True), q_ref.shape)


def _conv_kernel(a_ref, w_ref, o_ref, s_ref, q_ref):
    y = jnp.dot(a_ref[...], w_ref[...], preferred_element_type=jnp.float32)
    _emit_out_and_stats(y, o_ref, s_ref, q_ref)


def _conv_res_kernel(a_ref, w_ref, r_ref, o_ref, s_ref, q_ref):
    y = jnp.dot(a_ref[...], w_ref[...], preferred_element_type=jnp.float32)
    y = y + r_ref[...]
    _emit_out_and_stats(y, o_ref, s_ref, q_ref)


def _conv_res_affine_kernel(a_ref, w_ref, r_ref, rs_ref, rb_ref,
                            o_ref, s_ref, q_ref):
    y = jnp.dot(a_ref[...], w_ref[...], preferred_element_type=jnp.float32)
    y = y + (r_ref[...] * rs_ref[...] + rb_ref[...])
    _emit_out_and_stats(y, o_ref, s_ref, q_ref)


def fused_conv(a, w, res=None, res_scale=None, res_shift=None):
    """Y = A @ W [+ res  or  + (res*res_scale + res_shift)], tiled over rows.

    Also returns the per-channel batch mean / biased variance of Y, computed
    from per-tile partial sums emitted by the kernel (fused stats so the
    following BatchNorm only needs a scale/shift apply pass)."""
    M, K = a.shape
    C = w.shape[1]
    tm = _choose_tm(M)
    nt = M // tm

    in_specs = [pl.BlockSpec((tm, K), lambda i: (i, 0)),
                pl.BlockSpec((K, C), lambda i: (0, 0))]
    args = [a, w]
    if res is None:
        kernel = _conv_kernel
    else:
        in_specs.append(pl.BlockSpec((tm, C), lambda i: (i, 0)))
        args.append(res)
        if res_scale is None:
            kernel = _conv_res_kernel
        else:
            in_specs.append(pl.BlockSpec((1, C), lambda i: (0, 0)))
            in_specs.append(pl.BlockSpec((1, C), lambda i: (0, 0)))
            args.append(res_scale.reshape(1, C))
            args.append(res_shift.reshape(1, C))
            kernel = _conv_res_affine_kernel

    y, s, q = pl.pallas_call(
        kernel,
        grid=(nt,),
        in_specs=in_specs,
        out_specs=(pl.BlockSpec((tm, C), lambda i: (i, 0)),
                   pl.BlockSpec((8, C), lambda i: (i, 0)),
                   pl.BlockSpec((8, C), lambda i: (i, 0))),
        out_shape=(jax.ShapeDtypeStruct((M, C), jnp.float32),
                   jax.ShapeDtypeStruct((nt * 8, C), jnp.float32),
                   jax.ShapeDtypeStruct((nt * 8, C), jnp.float32)),
        compiler_params=pltpu.CompilerParams(dimension_semantics=("parallel",)),
        cost_estimate=pl.CostEstimate(
            flops=2 * M * K * C, transcendentals=0,
            bytes_accessed=4 * (M * K + K * C + 2 * M * C)),
    )(*args)

    mean = jnp.sum(s, axis=0) / (8.0 * M)   # each tile wrote 8 identical rows
    var = jnp.sum(q, axis=0) / (8.0 * M) - mean * mean
    return y, mean, var


def _bn_apply_kernel(x_ref, s_ref, b_ref, o_ref, *, relu):
    y = x_ref[...] * s_ref[...] + b_ref[...]
    if relu:
        y = jnp.maximum(y, 0.0)
    o_ref[...] = y


def bn_apply(x2d, scale, shift, relu):
    """y = relu?(x * scale + shift), tiled over rows of (M, C)."""
    M, C = x2d.shape
    tm = _choose_tm(M)
    nt = M // tm
    return pl.pallas_call(
        functools.partial(_bn_apply_kernel, relu=relu),
        grid=(nt,),
        in_specs=[pl.BlockSpec((tm, C), lambda i: (i, 0)),
                  pl.BlockSpec((1, C), lambda i: (0, 0)),
                  pl.BlockSpec((1, C), lambda i: (0, 0))],
        out_specs=pl.BlockSpec((tm, C), lambda i: (i, 0)),
        out_shape=jax.ShapeDtypeStruct((M, C), jnp.float32),
        compiler_params=pltpu.CompilerParams(dimension_semantics=("parallel",)),
    )(x2d, scale.reshape(1, C), shift.reshape(1, C))


def _stats_kernel(x_ref, s_ref, q_ref):
    x = x_ref[...]
    s_ref[...] = jnp.broadcast_to(jnp.sum(x, axis=0, keepdims=True), s_ref.shape)
    q_ref[...] = jnp.broadcast_to(jnp.sum(x * x, axis=0, keepdims=True), q_ref.shape)


def pallas_stats(x2d):
    """Fallback per-channel batch-stat pass (only used when stats were not
    already emitted by a producing conv kernel)."""
    M, C = x2d.shape
    tm = _choose_tm(M)
    nt = M // tm
    s, q = pl.pallas_call(
        _stats_kernel,
        grid=(nt,),
        in_specs=[pl.BlockSpec((tm, C), lambda i: (i, 0))],
        out_specs=(pl.BlockSpec((8, C), lambda i: (i, 0)),
                   pl.BlockSpec((8, C), lambda i: (i, 0))),
        out_shape=(jax.ShapeDtypeStruct((nt * 8, C), jnp.float32),
                   jax.ShapeDtypeStruct((nt * 8, C), jnp.float32)),
        compiler_params=pltpu.CompilerParams(dimension_semantics=("parallel",)),
    )(x2d)
    mean = jnp.sum(s, axis=0) / (8.0 * M)
    var = jnp.sum(q, axis=0) / (8.0 * M) - mean * mean
    return mean, var


def _head_kernel(x_ref, s_ref, b_ref, w_ref, fb_ref, o_ref):
    y = jnp.maximum(x_ref[...] * s_ref[...] + b_ref[...], 0.0)   # bn_final + ReLU
    pooled = jnp.mean(y, axis=1)                                  # global avg pool
    o_ref[...] = (jnp.dot(pooled, w_ref[...],
                          preferred_element_type=jnp.float32) + fb_ref[...])


def pallas_head(x3d, scale, shift, fc_w, fc_b):
    """Fused bn_final + ReLU + AdaptiveAvgPool(1,1) + Linear."""
    N, HW, C = x3d.shape
    NC = fc_w.shape[1]
    return pl.pallas_call(
        _head_kernel,
        grid=(1,),
        in_specs=[pl.BlockSpec((N, HW, C), lambda i: (0, 0, 0)),
                  pl.BlockSpec((1, 1, C), lambda i: (0, 0, 0)),
                  pl.BlockSpec((1, 1, C), lambda i: (0, 0, 0)),
                  pl.BlockSpec((C, NC), lambda i: (0, 0)),
                  pl.BlockSpec((1, NC), lambda i: (0, 0))],
        out_specs=pl.BlockSpec((N, NC), lambda i: (0, 0)),
        out_shape=jax.ShapeDtypeStruct((N, NC), jnp.float32),
    )(x3d, scale.reshape(1, 1, C), shift.reshape(1, 1, C), fc_w,
      fc_b.reshape(1, NC))


# ---------------------------------------------------------------- conv helpers

def bn_coeffs(mean, var, gamma, beta):
    scale = gamma * jax.lax.rsqrt(var + EPS)
    shift = beta - mean * scale
    return scale, shift


def im2col(x, kh, kw, stride, pad):
    """NHWC (C already lane-padded) -> (N*OH*OW, kh*kw*C) patch matrix (glue)."""
    N, H, W, C = x.shape
    xp = jnp.pad(x, ((0, 0), (pad, pad), (pad, pad), (0, 0)))
    OH = (H + 2 * pad - kh) // stride + 1
    OW = (W + 2 * pad - kw) // stride + 1
    cols = []
    for i in range(kh):
        for j in range(kw):
            cols.append(xp[:, i:i + stride * OH:stride,
                            j:j + stride * OW:stride, :])
    col = jnp.concatenate(cols, axis=-1)          # (N, OH, OW, kh*kw*C)
    return col.reshape(N * OH * OW, kh * kw * C), OH, OW


# -------------------------------------------------------------- param creation

def he_conv(key, cout, cin, kh, kw):
    """torch He init (std over the REAL fan-out); flattened to (kh*kw*CP, CP)
    with zero padding on both the input- and output-channel axes."""
    std = math.sqrt(2.0 / (kh * kw * cout))
    w = std * jax.random.normal(key, (cout, cin, kh, kw), jnp.float32)
    w = jnp.transpose(w, (2, 3, 1, 0))            # (kh, kw, cin, cout)
    w = jnp.pad(w, ((0, 0), (0, 0), (0, CP - cin), (0, CP - cout)))
    return w.reshape(kh * kw * CP, CP)


def bn_params(c):
    gamma = jnp.zeros((CP,), jnp.float32).at[:c].set(1.0)
    beta = jnp.zeros((CP,), jnp.float32)
    return gamma, beta


def init_sub(keys, cin, cout, noact):
    """BasicBlockSub params: [bn1,relu,] conv3x3(cin->cout,s), bn2, relu, conv3x3."""
    p = {}
    if not noact:
        p['bn1_g'], p['bn1_b'] = bn_params(cin)
    p['conv1_w'] = he_conv(next(keys), cout, cin, 3, 3)
    p['bn2_g'], p['bn2_b'] = bn_params(cout)
    p['conv2_w'] = he_conv(next(keys), cout, cout, 3, 3)
    return p


def init_params(key, layers, channels, strides, num_classes, init_k):
    expansion = 1
    assert max(channels) * expansion <= CP, "channel widths must fit in CP lanes"
    keys = iter(jax.random.split(key, 256))
    params = {'c0': channels[0], 'num_classes': num_classes}
    inplanes = channels[0]
    params['conv1_w'] = he_conv(next(keys), inplanes, 3, init_k, init_k)
    params['bn1_g'], params['bn1_b'] = bn_params(inplanes)

    all_layers = []
    for li, nblocks in enumerate(layers):
        planes = channels[li + 1]
        layer_stride = strides[li + 1]
        layer_noact = (li == 0)          # layer1 built with noactivation=True
        blocks = []
        for bi in range(nblocks):
            s = layer_stride if bi == 0 else 1
            na = layer_noact if bi == 0 else False
            downsample = (s != 1 or inplanes != planes * expansion)
            if bi == 0 and downsample:
                ds_g, ds_b = bn_params(planes * expansion)
                blk = {'type': 'plain', 'stride': s, 'noact': na,
                       'planes': planes * expansion,
                       'sub': init_sub(keys, inplanes, planes, na),
                       'ds_conv_w': he_conv(next(keys), planes * expansion,
                                            inplanes, 1, 1),
                       'ds_bn_g': ds_g, 'ds_bn_b': ds_b}
            else:
                blk = {'type': 'rev', 'noact': na,
                       'f': init_sub(keys, inplanes // 2, planes // 2, na),
                       'g': init_sub(keys, inplanes // 2, planes // 2, na)}
            inplanes = planes * expansion
            blocks.append(blk)
        all_layers.append(blocks)
    params['layers'] = all_layers

    params['bnf_g'], params['bnf_b'] = bn_params(inplanes)

    fan_in = channels[-1] * expansion
    bound = 1.0 / math.sqrt(fan_in)
    w = jax.random.uniform(next(keys), (fan_in, num_classes), jnp.float32,
                           -bound, bound)
    b = jax.random.uniform(next(keys), (num_classes,), jnp.float32,
                           -bound, bound)
    params['fc_w'] = (jnp.zeros((CP, NUM_CLS_PAD), jnp.float32)
                      .at[:fan_in, :num_classes].set(w))
    params['fc_b'] = (jnp.zeros((NUM_CLS_PAD,), jnp.float32)
                      .at[:num_classes].set(b))
    return params


# ---------------------------------------------------------------- forward pass

def basic_block_sub(x, in_mean, in_var, p, stride, noact,
                    res=None, res_scale=None, res_shift=None):
    """[BN+ReLU,] conv3x3(stride), BN+ReLU, conv3x3 (+fused residual).
    Returns (flattened output (rows, CP), OH, OW, batch mean, batch var)."""
    N, H, W, _ = x.shape
    if not noact:
        if in_mean is None:
            in_mean, in_var = pallas_stats(x.reshape(N * H * W, CP))
        s1, b1 = bn_coeffs(in_mean, in_var, p['bn1_g'], p['bn1_b'])
        x = bn_apply(x.reshape(N * H * W, CP), s1, b1,
                     relu=True).reshape(N, H, W, CP)
    patches, OH, OW = im2col(x, 3, 3, stride, 1)
    y, m, v = fused_conv(patches, p['conv1_w'])
    s2, b2 = bn_coeffs(m, v, p['bn2_g'], p['bn2_b'])
    ya = bn_apply(y, s2, b2, relu=True).reshape(N, OH, OW, CP)
    patches2, _, _ = im2col(ya, 3, 3, 1, 1)
    out, om, ov = fused_conv(patches2, p['conv2_w'], res=res,
                             res_scale=res_scale, res_shift=res_shift)
    return out, OH, OW, om, ov


def rev_block_forward(x1, x2, m1, v1, m2, v2, blk):
    """Additive coupling: y1 = x1 + F(x2); y2 = x2 + G(y1).  The '+x' adds are
    fused into the epilogue of each sub-block's second conv; the emitted stats
    feed the next block's / layer's BatchNorm."""
    N, H, W, _ = x1.shape
    y1, _, _, my1, vy1 = basic_block_sub(x2, m2, v2, blk['f'], 1, blk['noact'],
                                         res=x1.reshape(N * H * W, CP))
    y1 = y1.reshape(N, H, W, CP)
    y2, _, _, my2, vy2 = basic_block_sub(y1, my1, vy1, blk['g'], 1, blk['noact'],
                                         res=x2.reshape(N * H * W, CP))
    y2 = y2.reshape(N, H, W, CP)
    return y1, y2, my1, vy1, my2, vy2


def plain_block_forward(x, mean, var, blk):
    """Non-reversible block: out = sub(x) + BN(conv1x1(x, stride)).
    The downsample branch's BN scale/shift and the residual add are fused
    into the epilogue of the sub-block's second conv."""
    N, H, W, _ = x.shape
    stride = blk['stride']
    ds_in = x[:, ::stride, ::stride, :] if stride > 1 else x
    ds_y, ds_m, ds_v = fused_conv(ds_in.reshape(-1, CP), blk['ds_conv_w'])
    ds_scale, ds_shift = bn_coeffs(ds_m, ds_v, blk['ds_bn_g'], blk['ds_bn_b'])
    out, OH, OW, om, ov = basic_block_sub(x, mean, var, blk['sub'], stride,
                                          blk['noact'], res=ds_y,
                                          res_scale=ds_scale,
                                          res_shift=ds_shift)
    return out.reshape(N, OH, OW, CP), om, ov


def _repack_channels(x, start, count):
    return _pad_lanes(x[..., start:start + count])


def _slice_stats(mean, var, start, count):
    if mean is None:
        return None, None
    m = jnp.zeros((CP,), jnp.float32).at[:count].set(mean[start:start + count])
    v = jnp.zeros((CP,), jnp.float32).at[:count].set(var[start:start + count])
    return m, v


def _split_full(xf, mf, vf, c):
    h = c // 2
    x1 = _repack_channels(xf, 0, h)
    x2 = _repack_channels(xf, h, h)
    m1, v1 = _slice_stats(mf, vf, 0, h)
    m2, v2 = _slice_stats(mf, vf, h, h)
    return (x1, x2, m1, v1, m2, v2)


def _merge_halves(halves, h):
    x1, x2, m1, v1, m2, v2 = halves
    xf = _pad_lanes(jnp.concatenate([x1[..., :h], x2[..., :h]], axis=-1))
    if m1 is None or m2 is None:
        return xf, None, None
    mean = (jnp.zeros((CP,), jnp.float32)
            .at[:h].set(m1[:h]).at[h:2 * h].set(m2[:h]))
    var = (jnp.zeros((CP,), jnp.float32)
           .at[:h].set(v1[:h]).at[h:2 * h].set(v2[:h]))
    return xf, mean, var


def revnet_forward(params, x_nchw, *, init_k, init_stride):
    x = jnp.transpose(x_nchw, (0, 2, 3, 1)).astype(jnp.float32)  # NCHW -> NHWC
    N = x.shape[0]
    x = _pad_lanes(x)

    # stem: conv1 (padding=1 per nn.Conv2d(..., padding=1)), bn1, relu
    patches, OH, OW = im2col(x, init_k, init_k, init_stride, 1)
    y, m, v = fused_conv(patches, params['conv1_w'])
    s1, b1 = bn_coeffs(m, v, params['bn1_g'], params['bn1_b'])
    x = bn_apply(y, s1, b1, relu=True).reshape(N, OH, OW, CP)

    c = params['c0']
    full = (x, None, None)     # stats of the post-BN/ReLU stem output untracked
    halves = None

    for blocks in params['layers']:
        for blk in blocks:
            if blk['type'] == 'rev':
                if halves is None:
                    halves = _split_full(*full, c)
                    full = None
                halves = rev_block_forward(*halves, blk)
            else:
                if halves is not None:
                    full = _merge_halves(halves, c // 2)
                    halves = None
                xf, mo, vo = plain_block_forward(*full, blk)
                full = (xf, mo, vo)
                c = blk['planes']
    if halves is not None:
        full = _merge_halves(halves, c // 2)

    xf, mf, vf = full
    Nb, Hf, Wf, _ = xf.shape
    if mf is None:
        mf, vf = pallas_stats(xf.reshape(Nb * Hf * Wf, CP))
    sF, bF = bn_coeffs(mf, vf, params['bnf_g'], params['bnf_b'])
    logits = pallas_head(xf.reshape(Nb, Hf * Wf, CP), sF, bF,
                         params['fc_w'], params['fc_b'])
    return logits[:, :params['num_classes']]


# ----------------------------------------------------------------------- main

if __name__ == "__main__":
    LAYERS = [1, 1, 1]                 # blocks per stage
    CHANNELS = [8, 8, 16, 32]          # channels_per_layer (len == len(layers)+1)
    STRIDES = [1, 1, 2, 2]             # one stride per entry of channels_per_layer
    NUM_CLASSES = 10
    INIT_K = 3                         # init_kernel_size

    key = jax.random.PRNGKey(0)
    pkey, xkey = jax.random.split(key)
    params = init_params(pkey, LAYERS, CHANNELS, STRIDES, NUM_CLASSES, INIT_K)

    x = jax.random.normal(xkey, (2, 3, 16, 16), jnp.float32)      # NCHW input

    fwd = jax.jit(lambda inp: revnet_forward(params, inp,
                                             init_k=INIT_K,
                                             init_stride=STRIDES[0]))
    out = jax.block_until_ready(fwd(x))

    assert out.shape == (2, NUM_CLASSES), out.shape
    assert bool(jnp.all(jnp.isfinite(out)))
    print("KERNEL_OK")
</pallas_src>

<mosaic_0001>
module attributes {stable_mosaic.version = 11 : i64} {
  func.func @_conv_kernel(%arg0: i32, %arg1: memref<256x1152xf32, #tpu.memory_space<vmem>>, %arg2: memref<1152x128xf32, #tpu.memory_space<vmem>>, %arg3: memref<256x128xf32, #tpu.memory_space<vmem>>, %arg4: memref<8x128xf32, #tpu.memory_space<vmem>>, %arg5: memref<8x128xf32, #tpu.memory_space<vmem>>) attributes {dimension_semantics = [#tpu.dimension_semantics<parallel>], iteration_bounds = array<i64: 2>, scalar_prefetch = 0 : i64, scratch_operands = 0 : i64, tpu.core_type = #tpu.core_type<tc>, window_params = [{transform_indices = @transform_0, window_bounds = array<i64: 256, 1152>}, {pipeline_mode = #tpu.pipeline_mode<synchronous>, transform_indices = @transform_1, window_bounds = array<i64: 1152, 128>}, {transform_indices = @transform_2, window_bounds = array<i64: 256, 128>}, {transform_indices = @transform_3, window_bounds = array<i64: 8, 128>}, {transform_indices = @transform_4, window_bounds = array<i64: 8, 128>}]} {
    %c0 = arith.constant 0 : index
    %c0_0 = arith.constant 0 : index
    %0 = vector.load %arg1[%c0, %c0_0] : memref<256x1152xf32, #tpu.memory_space<vmem>>, vector<256x1152xf32>
    %c0_1 = arith.constant 0 : index
    %c0_2 = arith.constant 0 : index
    %1 = vector.load %arg2[%c0_1, %c0_2] : memref<1152x128xf32, #tpu.memory_space<vmem>>, vector<1152x128xf32>
    %cst = arith.constant dense<0.000000e+00> : vector<256x128xf32>
    %2 = tpu.matmul %0, %1, %cst {dimension_numbers = #tpu.dot_dimension_numbers<[1], [0], [0], [1], [0, 0, 1, 1], [], []>} : vector<256x1152xf32>, vector<1152x128xf32>, vector<256x128xf32> -> vector<256x128xf32>
    %c0_3 = arith.constant 0 : index
    %c0_4 = arith.constant 0 : index
    %3 = vector.load %arg3[%c0_3, %c0_4] : memref<256x128xf32, #tpu.memory_space<vmem>>, vector<256x128xf32>
    tpu.vector_store %arg3[%c0_3, %c0_4], %2 {strides = array<i32>} : memref<256x128xf32, #tpu.memory_space<vmem>>, vector<256x128xf32>,
    %cst_5 = arith.constant dense<0.000000e+00> : vector<128xf32>
    %4 = vector.multi_reduction <add>, %2, %cst_5 [0] : vector<256x128xf32> to vector<128xf32>
    %5 = vector.shape_cast %4 : vector<128xf32> to vector<1x128xf32>
    %6 = vector.shape_cast %5 : vector<1x128xf32> to vector<1x128xf32>
    %7 = vector.broadcast %6 : vector<1x128xf32> to vector<8x128xf32>
    %c0_6 = arith.constant 0 : index
    %c0_7 = arith.constant 0 : index
    %8 = vector.load %arg4[%c0_6, %c0_7] : memref<8x128xf32, #tpu.memory_space<vmem>>, vector<8x128xf32>
    tpu.vector_store %arg4[%c0_6, %c0_7], %7 {strides = array<i32>} : memref<8x128xf32, #tpu.memory_space<vmem>>, vector<8x128xf32>,
    %9 = arith.mulf %2, %2 : vector<256x128xf32>
    %cst_8 = arith.constant dense<0.000000e+00> : vector<128xf32>
    %10 = vector.multi_reduction <add>, %9, %cst_8 [0] : vector<256x128xf32> to vector<128xf32>
    %11 = vector.shape_cast %10 : vector<128xf32> to vector<1x128xf32>
    %12 = vector.shape_cast %11 : vector<1x128xf32> to vector<1x128xf32>
    %13 = vector.broadcast %12 : vector<1x128xf32> to vector<8x128xf32>
    %c0_9 = arith.constant 0 : index
    %c0_10 = arith.constant 0 : index
    %14 = vector.load %arg5[%c0_9, %c0_10] : memref<8x128xf32, #tpu.memory_space<vmem>>, vector<8x128xf32>
    tpu.vector_store %arg5[%c0_9, %c0_10], %13 {strides = array<i32>} : memref<8x128xf32, #tpu.memory_space<vmem>>, vector<8x128xf32>,
    return
  }
  func.func @transform_0(%arg0: i32) -> (i32, i32) {
    %c0_i32 = arith.constant 0 : i32
    %c0_i32_0 = arith.constant 0 : i32
    return %arg0, %c0_i32 : i32, i32
  }
  func.func @transform_1(%arg0: i32) -> (i32, i32) {
    %c0_i32 = arith.constant 0 : i32
    %c0_i32_0 = arith.constant 0 : i32
    %c0_i32_1 = arith.constant 0 : i32
    return %c0_i32, %c0_i32_0 : i32, i32
  }
  func.func @transform_2(%arg0: i32) -> (i32, i32) {
    %c0_i32 = arith.constant 0 : i32
    %c0_i32_0 = arith.constant 0 : i32
    return %arg0, %c0_i32 : i32, i32
  }
  func.func @transform_3(%arg0: i32) -> (i32, i32) {
    %c0_i32 = arith.constant 0 : i32
    %c0_i32_0 = arith.constant 0 : i32
    return %arg0, %c0_i32 : i32, i32
  }
  func.func @transform_4(%arg0: i32) -> (i32, i32) {
    %c0_i32 = arith.constant 0 : i32
    %c0_i32_0 = arith.constant 0 : i32
    return %arg0, %c0_i32 : i32, i32
  }
}

module attributes {stable_mosaic.version = 11 : i64} {
  func.func @_bn_apply_kernel(%arg0: i32, %arg1: memref<256x128xf32, #tpu.memory_space<vmem>>, %arg2: memref<1x128xf32, #tpu.memory_space<vmem>>, %arg3: memref<1x128xf32, #tpu.memory_space<vmem>>, %arg4: memref<256x128xf32, #tpu.memory_space<vmem>>) attributes {dimension_semantics = [#tpu.dimension_semantics<parallel>], iteration_bounds = array<i64: 2>, scalar_prefetch = 0 : i64, scratch_operands = 0 : i64, tpu.core_type = #tpu.core_type<tc>, window_params = [{transform_indices = @transform_0, window_bounds = array<i64: 256, 128>}, {pipeline_mode = #tpu.pipeline_mode<synchronous>, transform_indices = @transform_1, window_bounds = array<i64: 1, 128>}, {pipeline_mode = #tpu.pipeline_mode<synchronous>, transform_indices = @transform_2, window_bounds = array<i64: 1, 128>}, {transform_indices = @transform_3, window_bounds = array<i64: 256, 128>}]} {
    %c0 = arith.constant 0 : index
    %c0_0 = arith.constant 0 : index
    %0 = vector.load %arg1[%c0, %c0_0] : memref<256x128xf32, #tpu.memory_space<vmem>>, vector<256x128xf32>
    %c0_1 = arith.constant 0 : index
    %c0_2 = arith.constant 0 : index
    %1 = vector.load %arg2[%c0_1, %c0_2] : memref<1x128xf32, #tpu.memory_space<vmem>>, vector<1x128xf32>
    %2 = vector.broadcast %1 : vector<1x128xf32> to vector<256x128xf32>
    %3 = arith.mulf %0, %2 : vector<256x128xf32>
    %c0_3 = arith.constant 0 : index
    %c0_4 = arith.constant 0 : index
    %4 = vector.load %arg3[%c0_3, %c0_4] : memref<1x128xf32, #tpu.memory_space<vmem>>, vector<1x128xf32>
    %5 = vector.broadcast %4 : vector<1x128xf32> to vector<256x128xf32>
    %6 = arith.addf %3, %5 : vector<256x128xf32>
    %cst = arith.constant 0.000000e+00 : f32
    %7 = vector.broadcast %cst : f32 to vector<256x128xf32>
    %8 = arith.maximumf %6, %7 : vector<256x128xf32>
    %c0_5 = arith.constant 0 : index
    %c0_6 = arith.constant 0 : index
    %9 = vector.load %arg4[%c0_5, %c0_6] : memref<256x128xf32, #tpu.memory_space<vmem>>, vector<256x128xf32>
    tpu.vector_store %arg4[%c0_5, %c0_6], %8 {strides = array<i32>} : memref<256x128xf32, #tpu.memory_space<vmem>>, vector<256x128xf32>,
    return
  }
  func.func @transform_0(%arg0: i32) -> (i32, i32) {
    %c0_i32 = arith.constant 0 : i32
    %c0_i32_0 = arith.constant 0 : i32
    return %arg0, %c0_i32 : i32, i32
  }
  func.func @transform_1(%arg0: i32) -> (i32, i32) {
    %c0_i32 = arith.constant 0 : i32
    %c0_i32_0 = arith.constant 0 : i32
    %c0_i32_1 = arith.constant 0 : i32
    return %c0_i32, %c0_i32_0 : i32, i32
  }
  func.func @transform_2(%arg0: i32) -> (i32, i32) {
    %c0_i32 = arith.constant 0 : i32
    %c0_i32_0 = arith.constant 0 : i32
    %c0_i32_1 = arith.constant 0 : i32
    return %c0_i32, %c0_i32_0 : i32, i32
  }
  func.func @transform_3(%arg0: i32) -> (i32, i32) {
    %c0_i32 = arith.constant 0 : i32
    %c0_i32_0 = arith.constant 0 : i32
    return %arg0, %c0_i32 : i32, i32
  }
}

module attributes {stable_mosaic.version = 11 : i64} {
  func.func @_conv_res_kernel(%arg0: i32, %arg1: memref<256x1152xf32, #tpu.memory_space<vmem>>, %arg2: memref<1152x128xf32, #tpu.memory_space<vmem>>, %arg3: memref<256x128xf32, #tpu.memory_space<vmem>>, %arg4: memref<256x128xf32, #tpu.memory_space<vmem>>, %arg5: memref<8x128xf32, #tpu.memory_space<vmem>>, %arg6: memref<8x128xf32, #tpu.memory_space<vmem>>) attributes {dimension_semantics = [#tpu.dimension_semantics<parallel>], iteration_bounds = array<i64: 2>, scalar_prefetch = 0 : i64, scratch_operands = 0 : i64, tpu.core_type = #tpu.core_type<tc>, window_params = [{transform_indices = @transform_0, window_bounds = array<i64: 256, 1152>}, {pipeline_mode = #tpu.pipeline_mode<synchronous>, transform_indices = @transform_1, window_bounds = array<i64: 1152, 128>}, {transform_indices = @transform_2, window_bounds = array<i64: 256, 128>}, {transform_indices = @transform_3, window_bounds = array<i64: 256, 128>}, {transform_indices = @transform_4, window_bounds = array<i64: 8, 128>}, {transform_indices = @transform_5, window_bounds = array<i64: 8, 128>}]} {
    %c0 = arith.constant 0 : index
    %c0_0 = arith.constant 0 : index
    %0 = vector.load %arg1[%c0, %c0_0] : memref<256x1152xf32, #tpu.memory_space<vmem>>, vector<256x1152xf32>
    %c0_1 = arith.constant 0 : index
    %c0_2 = arith.constant 0 : index
    %1 = vector.load %arg2[%c0_1, %c0_2] : memref<1152x128xf32, #tpu.memory_space<vmem>>, vector<1152x128xf32>
    %cst = arith.constant dense<0.000000e+00> : vector<256x128xf32>
    %2 = tpu.matmul %0, %1, %cst {dimension_numbers = #tpu.dot_dimension_numbers<[1], [0], [0], [1], [0, 0, 1, 1], [], []>} : vector<256x1152xf32>, vector<1152x128xf32>, vector<256x128xf32> -> vector<256x128xf32>
    %c0_3 = arith.constant 0 : index
    %c0_4 = arith.constant 0 : index
    %3 = vector.load %arg3[%c0_3, %c0_4] : memref<256x128xf32, #tpu.memory_space<vmem>>, vector<256x128xf32>
    %4 = arith.addf %2, %3 : vector<256x128xf32>
    %c0_5 = arith.constant 0 : index
    %c0_6 = arith.constant 0 : index
    %5 = vector.load %arg4[%c0_5, %c0_6] : memref<256x128xf32, #tpu.memory_space<vmem>>, vector<256x128xf32>
    tpu.vector_store %arg4[%c0_5, %c0_6], %4 {strides = array<i32>} : memref<256x128xf32, #tpu.memory_space<vmem>>, vector<256x128xf32>,
    %cst_7 = arith.constant dense<0.000000e+00> : vector<128xf32>
    %6 = vector.multi_reduction <add>, %4, %cst_7 [0] : vector<256x128xf32> to vector<128xf32>
    %7 = vector.shape_cast %6 : vector<128xf32> to vector<1x128xf32>
    %8 = vector.shape_cast %7 : vector<1x128xf32> to vector<1x128xf32>
    %9 = vector.broadcast %8 : vector<1x128xf32> to vector<8x128xf32>
    %c0_8 = arith.constant 0 : index
    %c0_9 = arith.constant 0 : index
    %10 = vector.load %arg5[%c0_8, %c0_9] : memref<8x128xf32, #tpu.memory_space<vmem>>, vector<8x128xf32>
    tpu.vector_store %arg5[%c0_8, %c0_9], %9 {strides = array<i32>} : memref<8x128xf32, #tpu.memory_space<vmem>>, vector<8x128xf32>,
    %11 = arith.mulf %4, %4 : vector<256x128xf32>
    %cst_10 = arith.constant dense<0.000000e+00> : vector<128xf32>
    %12 = vector.multi_reduction <add>, %11, %cst_10 [0] : vector<256x128xf32> to vector<128xf32>
    %13 = vector.shape_cast %12 : vector<128xf32> to vector<1x128xf32>
    %14 = vector.shape_cast %13 : vector<1x128xf32> to vector<1x128xf32>
    %15 = vector.broadcast %14 : vector<1x128xf32> to vector<8x128xf32>
    %c0_11 = arith.constant 0 : index
    %c0_12 = arith.constant 0 : index
    %16 = vector.load %arg6[%c0_11, %c0_12] : memref<8x128xf32, #tpu.memory_space<vmem>>, vector<8x128xf32>
    tpu.vector_store %arg6[%c0_11, %c0_12], %15 {strides = array<i32>} : memref<8x128xf32, #tpu.memory_space<vmem>>, vector<8x128xf32>,
    return
  }
  func.func @transform_0(%arg0: i32) -> (i32, i32) {
    %c0_i32 = arith.constant 0 : i32
    %c0_i32_0 = arith.constant 0 : i32
    return %arg0, %c0_i32 : i32, i32
  }
  func.func @transform_1(%arg0: i32) -> (i32, i32) {
    %c0_i32 = arith.constant 0 : i32
    %c0_i32_0 = arith.constant 0 : i32
    %c0_i32_1 = arith.constant 0 : i32
    return %c0_i32, %c0_i32_0 : i32, i32
  }
  func.func @transform_2(%arg0: i32) -> (i32, i32) {
    %c0_i32 = arith.constant 0 : i32
    %c0_i32_0 = arith.constant 0 : i32
    return %arg0, %c0_i32 : i32, i32
  }
  func.func @transform_3(%arg0: i32) -> (i32, i32) {
    %c0_i32 = arith.constant 0 : i32
    %c0_i32_0 = arith.constant 0 : i32
    return %arg0, %c0_i32 : i32, i32
  }
  func.func @transform_4(%arg0: i32) -> (i32, i32) {
    %c0_i32 = arith.constant 0 : i32
    %c0_i32_0 = arith.constant 0 : i32
    return %arg0, %c0_i32 : i32, i32
  }
  func.func @transform_5(%arg0: i32) -> (i32, i32) {
    %c0_i32 = arith.constant 0 : i32
    %c0_i32_0 = arith.constant 0 : i32
    return %arg0, %c0_i32 : i32, i32
  }
}

module attributes {stable_mosaic.version = 11 : i64} {
  func.func @_conv_kernel(%arg0: i32, %arg1: memref<128x128xf32, #tpu.memory_space<vmem>>, %arg2: memref<128x128xf32, #tpu.memory_space<vmem>>, %arg3: memref<128x128xf32, #tpu.memory_space<vmem>>, %arg4: memref<8x128xf32, #tpu.memory_space<vmem>>, %arg5: memref<8x128xf32, #tpu.memory_space<vmem>>) attributes {dimension_semantics = [#tpu.dimension_semantics<parallel>], iteration_bounds = array<i64: 1>, scalar_prefetch = 0 : i64, scratch_operands = 0 : i64, tpu.core_type = #tpu.core_type<tc>, window_params = [{transform_indices = @transform_0, window_bounds = array<i64: 128, 128>}, {pipeline_mode = #tpu.pipeline_mode<synchronous>, transform_indices = @transform_1, window_bounds = array<i64: 128, 128>}, {transform_indices = @transform_2, window_bounds = array<i64: 128, 128>}, {transform_indices = @transform_3, window_bounds = array<i64: 8, 128>}, {transform_indices = @transform_4, window_bounds = array<i64: 8, 128>}]} {
    %c0 = arith.constant 0 : index
    %c0_0 = arith.constant 0 : index
    %0 = vector.load %arg1[%c0, %c0_0] : memref<128x128xf32, #tpu.memory_space<vmem>>, vector<128x128xf32>
    %c0_1 = arith.constant 0 : index
    %c0_2 = arith.constant 0 : index
    %1 = vector.load %arg2[%c0_1, %c0_2] : memref<128x128xf32, #tpu.memory_space<vmem>>, vector<128x128xf32>
    %cst = arith.constant dense<0.000000e+00> : vector<128x128xf32>
    %2 = tpu.matmul %0, %1, %cst {dimension_numbers = #tpu.dot_dimension_numbers<[1], [0], [0], [1], [0, 0, 1, 1], [], []>} : vector<128x128xf32>, vector<128x128xf32>, vector<128x128xf32> -> vector<128x128xf32>
    %c0_3 = arith.constant 0 : index
    %c0_4 = arith.constant 0 : index
    %3 = vector.load %arg3[%c0_3, %c0_4] : memref<128x128xf32, #tpu.memory_space<vmem>>, vector<128x128xf32>
    tpu.vector_store %arg3[%c0_3, %c0_4], %2 {strides = array<i32>} : memref<128x128xf32, #tpu.memory_space<vmem>>, vector<128x128xf32>,
    %cst_5 = arith.constant dense<0.000000e+00> : vector<128xf32>
    %4 = vector.multi_reduction <add>, %2, %cst_5 [0] : vector<128x128xf32> to vector<128xf32>
    %5 = vector.shape_cast %4 : vector<128xf32> to vector<1x128xf32>
    %6 = vector.shape_cast %5 : vector<1x128xf32> to vector<1x128xf32>
    %7 = vector.broadcast %6 : vector<1x128xf32> to vector<8x128xf32>
    %c0_6 = arith.constant 0 : index
    %c0_7 = arith.constant 0 : index
    %8 = vector.load %arg4[%c0_6, %c0_7] : memref<8x128xf32, #tpu.memory_space<vmem>>, vector<8x128xf32>
    tpu.vector_store %arg4[%c0_6, %c0_7], %7 {strides = array<i32>} : memref<8x128xf32, #tpu.memory_space<vmem>>, vector<8x128xf32>,
    %9 = arith.mulf %2, %2 : vector<128x128xf32>
    %cst_8 = arith.constant dense<0.000000e+00> : vector<128xf32>
    %10 = vector.multi_reduction <add>, %9, %cst_8 [0] : vector<128x128xf32> to vector<128xf32>
    %11 = vector.shape_cast %10 : vector<128xf32> to vector<1x128xf32>
    %12 = vector.shape_cast %11 : vector<1x128xf32> to vector<1x128xf32>
    %13 = vector.broadcast %12 : vector<1x128xf32> to vector<8x128xf32>
    %c0_9 = arith.constant 0 : index
    %c0_10 = arith.constant 0 : index
    %14 = vector.load %arg5[%c0_9, %c0_10] : memref<8x128xf32, #tpu.memory_space<vmem>>, vector<8x128xf32>
    tpu.vector_store %arg5[%c0_9, %c0_10], %13 {strides = array<i32>} : memref<8x128xf32, #tpu.memory_space<vmem>>, vector<8x128xf32>,
    return
  }
  func.func @transform_0(%arg0: i32) -> (i32, i32) {
    %c0_i32 = arith.constant 0 : i32
    %c0_i32_0 = arith.constant 0 : i32
    return %arg0, %c0_i32 : i32, i32
  }
  func.func @transform_1(%arg0: i32) -> (i32, i32) {
    %c0_i32 = arith.constant 0 : i32
    %c0_i32_0 = arith.constant 0 : i32
    %c0_i32_1 = arith.constant 0 : i32
    return %c0_i32, %c0_i32_0 : i32, i32
  }
  func.func @transform_2(%arg0: i32) -> (i32, i32) {
    %c0_i32 = arith.constant 0 : i32
    %c0_i32_0 = arith.constant 0 : i32
    return %arg0, %c0_i32 : i32, i32
  }
  func.func @transform_3(%arg0: i32) -> (i32, i32) {
    %c0_i32 = arith.constant 0 : i32
    %c0_i32_0 = arith.constant 0 : i32
    return %arg0, %c0_i32 : i32, i32
  }
  func.func @transform_4(%arg0: i32) -> (i32, i32) {
    %c0_i32 = arith.constant 0 : i32
    %c0_i32_0 = arith.constant 0 : i32
    return %arg0, %c0_i32 : i32, i32
  }
}

module attributes {stable_mosaic.version = 11 : i64} {
  func.func @_conv_kernel(%arg0: i32, %arg1: memref<128x1152xf32, #tpu.memory_space<vmem>>, %arg2: memref<1152x128xf32, #tpu.memory_space<vmem>>, %arg3: memref<128x128xf32, #tpu.memory_space<vmem>>, %arg4: memref<8x128xf32, #tpu.memory_space<vmem>>, %arg5: memref<8x128xf32, #tpu.memory_space<vmem>>) attributes {dimension_semantics = [#tpu.dimension_semantics<parallel>], iteration_bounds = array<i64: 1>, scalar_prefetch = 0 : i64, scratch_operands = 0 : i64, tpu.core_type = #tpu.core_type<tc>, window_params = [{transform_indices = @transform_0, window_bounds = array<i64: 128, 1152>}, {pipeline_mode = #tpu.pipeline_mode<synchronous>, transform_indices = @transform_1, window_bounds = array<i64: 1152, 128>}, {transform_indices = @transform_2, window_bounds = array<i64: 128, 128>}, {transform_indices = @transform_3, window_bounds = array<i64: 8, 128>}, {transform_indices = @transform_4, window_bounds = array<i64: 8, 128>}]} {
    %c0 = arith.constant 0 : index
    %c0_0 = arith.constant 0 : index
    %0 = vector.load %arg1[%c0, %c0_0] : memref<128x1152xf32, #tpu.memory_space<vmem>>, vector<128x1152xf32>
    %c0_1 = arith.constant 0 : index
    %c0_2 = arith.constant 0 : index
    %1 = vector.load %arg2[%c0_1, %c0_2] : memref<1152x128xf32, #tpu.memory_space<vmem>>, vector<1152x128xf32>
    %cst = arith.constant dense<0.000000e+00> : vector<128x128xf32>
    %2 = tpu.matmul %0, %1, %cst {dimension_numbers = #tpu.dot_dimension_numbers<[1], [0], [0], [1], [0, 0, 1, 1], [], []>} : vector<128x1152xf32>, vector<1152x128xf32>, vector<128x128xf32> -> vector<128x128xf32>
    %c0_3 = arith.constant 0 : index
    %c0_4 = arith.constant 0 : index
    %3 = vector.load %arg3[%c0_3, %c0_4] : memref<128x128xf32, #tpu.memory_space<vmem>>, vector<128x128xf32>
    tpu.vector_store %arg3[%c0_3, %c0_4], %2 {strides = array<i32>} : memref<128x128xf32, #tpu.memory_space<vmem>>, vector<128x128xf32>,
    %cst_5 = arith.constant dense<0.000000e+00> : vector<128xf32>
    %4 = vector.multi_reduction <add>, %2, %cst_5 [0] : vector<128x128xf32> to vector<128xf32>
    %5 = vector.shape_cast %4 : vector<128xf32> to vector<1x128xf32>
    %6 = vector.shape_cast %5 : vector<1x128xf32> to vector<1x128xf32>
    %7 = vector.broadcast %6 : vector<1x128xf32> to vector<8x128xf32>
    %c0_6 = arith.constant 0 : index
    %c0_7 = arith.constant 0 : index
    %8 = vector.load %arg4[%c0_6, %c0_7] : memref<8x128xf32, #tpu.memory_space<vmem>>, vector<8x128xf32>
    tpu.vector_store %arg4[%c0_6, %c0_7], %7 {strides = array<i32>} : memref<8x128xf32, #tpu.memory_space<vmem>>, vector<8x128xf32>,
    %9 = arith.mulf %2, %2 : vector<128x128xf32>
    %cst_8 = arith.constant dense<0.000000e+00> : vector<128xf32>
    %10 = vector.multi_reduction <add>, %9, %cst_8 [0] : vector<128x128xf32> to vector<128xf32>
    %11 = vector.shape_cast %10 : vector<128xf32> to vector<1x128xf32>
    %12 = vector.shape_cast %11 : vector<1x128xf32> to vector<1x128xf32>
    %13 = vector.broadcast %12 : vector<1x128xf32> to vector<8x128xf32>
    %c0_9 = arith.constant 0 : index
    %c0_10 = arith.constant 0 : index
    %14 = vector.load %arg5[%c0_9, %c0_10] : memref<8x128xf32, #tpu.memory_space<vmem>>, vector<8x128xf32>
    tpu.vector_store %arg5[%c0_9, %c0_10], %13 {strides = array<i32>} : memref<8x128xf32, #tpu.memory_space<vmem>>, vector<8x128xf32>,
    return
  }
  func.func @transform_0(%arg0: i32) -> (i32, i32) {
    %c0_i32 = arith.constant 0 : i32
    %c0_i32_0 = arith.constant 0 : i32
    return %arg0, %c0_i32 : i32, i32
  }
  func.func @transform_1(%arg0: i32) -> (i32, i32) {
    %c0_i32 = arith.constant 0 : i32
    %c0_i32_0 = arith.constant 0 : i32
    %c0_i32_1 = arith.constant 0 : i32
    return %c0_i32, %c0_i32_0 : i32, i32
  }
  func.func @transform_2(%arg0: i32) -> (i32, i32) {
    %c0_i32 = arith.constant 0 : i32
    %c0_i32_0 = arith.constant 0 : i32
    return %arg0, %c0_i32 : i32, i32
  }
  func.func @transform_3(%arg0: i32) -> (i32, i32) {
    %c0_i32 = arith.constant 0 : i32
    %c0_i32_0 = arith.constant 0 : i32
    return %arg0, %c0_i32 : i32, i32
  }
  func.func @transform_4(%arg0: i32) -> (i32, i32) {
    %c0_i32 = arith.constant 0 : i32
    %c0_i32_0 = arith.constant 0 : i32
    return %arg0, %c0_i32 : i32, i32
  }
}

module attributes {stable_mosaic.version = 11 : i64} {
  func.func @_bn_apply_kernel(%arg0: i32, %arg1: memref<128x128xf32, #tpu.memory_space<vmem>>, %arg2: memref<1x128xf32, #tpu.memory_space<vmem>>, %arg3: memref<1x128xf32, #tpu.memory_space<vmem>>, %arg4: memref<128x128xf32, #tpu.memory_space<vmem>>) attributes {dimension_semantics = [#tpu.dimension_semantics<parallel>], iteration_bounds = array<i64: 1>, scalar_prefetch = 0 : i64, scratch_operands = 0 : i64, tpu.core_type = #tpu.core_type<tc>, window_params = [{transform_indices = @transform_0, window_bounds = array<i64: 128, 128>}, {pipeline_mode = #tpu.pipeline_mode<synchronous>, transform_indices = @transform_1, window_bounds = array<i64: 1, 128>}, {pipeline_mode = #tpu.pipeline_mode<synchronous>, transform_indices = @transform_2, window_bounds = array<i64: 1, 128>}, {transform_indices = @transform_3, window_bounds = array<i64: 128, 128>}]} {
    %c0 = arith.constant 0 : index
    %c0_0 = arith.constant 0 : index
    %0 = vector.load %arg1[%c0, %c0_0] : memref<128x128xf32, #tpu.memory_space<vmem>>, vector<128x128xf32>
    %c0_1 = arith.constant 0 : index
    %c0_2 = arith.constant 0 : index
    %1 = vector.load %arg2[%c0_1, %c0_2] : memref<1x128xf32, #tpu.memory_space<vmem>>, vector<1x128xf32>
    %2 = vector.broadcast %1 : vector<1x128xf32> to vector<128x128xf32>
    %3 = arith.mulf %0, %2 : vector<128x128xf32>
    %c0_3 = arith.constant 0 : index
    %c0_4 = arith.constant 0 : index
    %4 = vector.load %arg3[%c0_3, %c0_4] : memref<1x128xf32, #tpu.memory_space<vmem>>, vector<1x128xf32>
    %5 = vector.broadcast %4 : vector<1x128xf32> to vector<128x128xf32>
    %6 = arith.addf %3, %5 : vector<128x128xf32>
    %cst = arith.constant 0.000000e+00 : f32
    %7 = vector.broadcast %cst : f32 to vector<128x128xf32>
    %8 = arith.maximumf %6, %7 : vector<128x128xf32>
    %c0_5 = arith.constant 0 : index
    %c0_6 = arith.constant 0 : index
    %9 = vector.load %arg4[%c0_5, %c0_6] : memref<128x128xf32, #tpu.memory_space<vmem>>, vector<128x128xf32>
    tpu.vector_store %arg4[%c0_5, %c0_6], %8 {strides = array<i32>} : memref<128x128xf32, #tpu.memory_space<vmem>>, vector<128x128xf32>,
    return
  }
  func.func @transform_0(%arg0: i32) -> (i32, i32) {
    %c0_i32 = arith.constant 0 : i32
    %c0_i32_0 = arith.constant 0 : i32
    return %arg0, %c0_i32 : i32, i32
  }
  func.func @transform_1(%arg0: i32) -> (i32, i32) {
    %c0_i32 = arith.constant 0 : i32
    %c0_i32_0 = arith.constant 0 : i32
    %c0_i32_1 = arith.constant 0 : i32
    return %c0_i32, %c0_i32_0 : i32, i32
  }
  func.func @transform_2(%arg0: i32) -> (i32, i32) {
    %c0_i32 = arith.constant 0 : i32
    %c0_i32_0 = arith.constant 0 : i32
    %c0_i32_1 = arith.constant 0 : i32
    return %c0_i32, %c0_i32_0 : i32, i32
  }
  func.func @transform_3(%arg0: i32) -> (i32, i32) {
    %c0_i32 = arith.constant 0 : i32
    %c0_i32_0 = arith.constant 0 : i32
    return %arg0, %c0_i32 : i32, i32
  }
}

module attributes {stable_mosaic.version = 11 : i64} {
  func.func @_conv_res_affine_kernel(%arg0: i32, %arg1: memref<128x1152xf32, #tpu.memory_space<vmem>>, %arg2: memref<1152x128xf32, #tpu.memory_space<vmem>>, %arg3: memref<128x128xf32, #tpu.memory_space<vmem>>, %arg4: memref<1x128xf32, #tpu.memory_space<vmem>>, %arg5: memref<1x128xf32, #tpu.memory_space<vmem>>, %arg6: memref<128x128xf32, #tpu.memory_space<vmem>>, %arg7: memref<8x128xf32, #tpu.memory_space<vmem>>, %arg8: memref<8x128xf32, #tpu.memory_space<vmem>>) attributes {dimension_semantics = [#tpu.dimension_semantics<parallel>], iteration_bounds = array<i64: 1>, scalar_prefetch = 0 : i64, scratch_operands = 0 : i64, tpu.core_type = #tpu.core_type<tc>, window_params = [{transform_indices = @transform_0, window_bounds = array<i64: 128, 1152>}, {pipeline_mode = #tpu.pipeline_mode<synchronous>, transform_indices = @transform_1, window_bounds = array<i64: 1152, 128>}, {transform_indices = @transform_2, window_bounds = array<i64: 128, 128>}, {pipeline_mode = #tpu.pipeline_mode<synchronous>, transform_indices = @transform_3, window_bounds = array<i64: 1, 128>}, {pipeline_mode = #tpu.pipeline_mode<synchronous>, transform_indices = @transform_4, window_bounds = array<i64: 1, 128>}, {transform_indices = @transform_5, window_bounds = array<i64: 128, 128>}, {transform_indices = @transform_6, window_bounds = array<i64: 8, 128>}, {transform_indices = @transform_7, window_bounds = array<i64: 8, 128>}]} {
    %c0 = arith.constant 0 : index
    %c0_0 = arith.constant 0 : index
    %0 = vector.load %arg1[%c0, %c0_0] : memref<128x1152xf32, #tpu.memory_space<vmem>>, vector<128x1152xf32>
    %c0_1 = arith.constant 0 : index
    %c0_2 = arith.constant 0 : index
    %1 = vector.load %arg2[%c0_1, %c0_2] : memref<1152x128xf32, #tpu.memory_space<vmem>>, vector<1152x128xf32>
    %cst = arith.constant dense<0.000000e+00> : vector<128x128xf32>
    %2 = tpu.matmul %0, %1, %cst {dimension_numbers = #tpu.dot_dimension_numbers<[1], [0], [0], [1], [0, 0, 1, 1], [], []>} : vector<128x1152xf32>, vector<1152x128xf32>, vector<128x128xf32> -> vector<128x128xf32>
    %c0_3 = arith.constant 0 : index
    %c0_4 = arith.constant 0 : index
    %3 = vector.load %arg3[%c0_3, %c0_4] : memref<128x128xf32, #tpu.memory_space<vmem>>, vector<128x128xf32>
    %c0_5 = arith.constant 0 : index
    %c0_6 = arith.constant 0 : index
    %4 = vector.load %arg4[%c0_5, %c0_6] : memref<1x128xf32, #tpu.memory_space<vmem>>, vector<1x128xf32>
    %5 = vector.broadcast %4 : vector<1x128xf32> to vector<128x128xf32>
    %6 = arith.mulf %3, %5 : vector<128x128xf32>
    %c0_7 = arith.constant 0 : index
    %c0_8 = arith.constant 0 : index
    %7 = vector.load %arg5[%c0_7, %c0_8] : memref<1x128xf32, #tpu.memory_space<vmem>>, vector<1x128xf32>
    %8 = vector.broadcast %7 : vector<1x128xf32> to vector<128x128xf32>
    %9 = arith.addf %6, %8 : vector<128x128xf32>
    %10 = arith.addf %2, %9 : vector<128x128xf32>
    %c0_9 = arith.constant 0 : index
    %c0_10 = arith.constant 0 : index
    %11 = vector.load %arg6[%c0_9, %c0_10] : memref<128x128xf32, #tpu.memory_space<vmem>>, vector<128x128xf32>
    tpu.vector_store %arg6[%c0_9, %c0_10], %10 {strides = array<i32>} : memref<128x128xf32, #tpu.memory_space<vmem>>, vector<128x128xf32>,
    %cst_11 = arith.constant dense<0.000000e+00> : vector<128xf32>
    %12 = vector.multi_reduction <add>, %10, %cst_11 [0] : vector<128x128xf32> to vector<128xf32>
    %13 = vector.shape_cast %12 : vector<128xf32> to vector<1x128xf32>
    %14 = vector.shape_cast %13 : vector<1x128xf32> to vector<1x128xf32>
    %15 = vector.broadcast %14 : vector<1x128xf32> to vector<8x128xf32>
    %c0_12 = arith.constant 0 : index
    %c0_13 = arith.constant 0 : index
    %16 = vector.load %arg7[%c0_12, %c0_13] : memref<8x128xf32, #tpu.memory_space<vmem>>, vector<8x128xf32>
    tpu.vector_store %arg7[%c0_12, %c0_13], %15 {strides = array<i32>} : memref<8x128xf32, #tpu.memory_space<vmem>>, vector<8x128xf32>,
    %17 = arith.mulf %10, %10 : vector<128x128xf32>
    %cst_14 = arith.constant dense<0.000000e+00> : vector<128xf32>
    %18 = vector.multi_reduction <add>, %17, %cst_14 [0] : vector<128x128xf32> to vector<128xf32>
    %19 = vector.shape_cast %18 : vector<128xf32> to vector<1x128xf32>
    %20 = vector.shape_cast %19 : vector<1x128xf32> to vector<1x128xf32>
    %21 = vector.broadcast %20 : vector<1x128xf32> to vector<8x128xf32>
    %c0_15 = arith.constant 0 : index
    %c0_16 = arith.constant 0 : index
    %22 = vector.load %arg8[%c0_15, %c0_16] : memref<8x128xf32, #tpu.memory_space<vmem>>, vector<8x128xf32>
    tpu.vector_store %arg8[%c0_15, %c0_16], %21 {strides = array<i32>} : memref<8x128xf32, #tpu.memory_space<vmem>>, vector<8x128xf32>,
    return
  }
  func.func @transform_0(%arg0: i32) -> (i32, i32) {
    %c0_i32 = arith.constant 0 : i32
    %c0_i32_0 = arith.constant 0 : i32
    return %arg0, %c0_i32 : i32, i32
  }
  func.func @transform_1(%arg0: i32) -> (i32, i32) {
    %c0_i32 = arith.constant 0 : i32
    %c0_i32_0 = arith.constant 0 : i32
    %c0_i32_1 = arith.constant 0 : i32
    return %c0_i32, %c0_i32_0 : i32, i32
  }
  func.func @transform_2(%arg0: i32) -> (i32, i32) {
    %c0_i32 = arith.constant 0 : i32
    %c0_i32_0 = arith.constant 0 : i32
    return %arg0, %c0_i32 : i32, i32
  }
  func.func @transform_3(%arg0: i32) -> (i32, i32) {
    %c0_i32 = arith.constant 0 : i32
    %c0_i32_0 = arith.constant 0 : i32
    %c0_i32_1 = arith.constant 0 : i32
    return %c0_i32, %c0_i32_0 : i32, i32
  }
  func.func @transform_4(%arg0: i32) -> (i32, i32) {
    %c0_i32 = arith.constant 0 : i32
    %c0_i32_0 = arith.constant 0 : i32
    %c0_i32_1 = arith.constant 0 : i32
    return %c0_i32, %c0_i32_0 : i32, i32
  }
  func.func @transform_5(%arg0: i32) -> (i32, i32) {
    %c0_i32 = arith.constant 0 : i32
    %c0_i32_0 = arith.constant 0 : i32
    return %arg0, %c0_i32 : i32, i32
  }
  func.func @transform_6(%arg0: i32) -> (i32, i32) {
    %c0_i32 = arith.constant 0 : i32
    %c0_i32_0 = arith.constant 0 : i32
    return %arg0, %c0_i32 : i32, i32
  }
  func.func @transform_7(%arg0: i32) -> (i32, i32) {
    %c0_i32 = arith.constant 0 : i32
    %c0_i32_0 = arith.constant 0 : i32
    return %arg0, %c0_i32 : i32, i32
  }
}

module attributes {stable_mosaic.version = 11 : i64} {
  func.func @_conv_kernel(%arg0: i32, %arg1: memref<32x128xf32, #tpu.memory_space<vmem>>, %arg2: memref<128x128xf32, #tpu.memory_space<vmem>>, %arg3: memref<32x128xf32, #tpu.memory_space<vmem>>, %arg4: memref<8x128xf32, #tpu.memory_space<vmem>>, %arg5: memref<8x128xf32, #tpu.memory_space<vmem>>) attributes {dimension_semantics = [#tpu.dimension_semantics<parallel>], iteration_bounds = array<i64: 1>, scalar_prefetch = 0 : i64, scratch_operands = 0 : i64, tpu.core_type = #tpu.core_type<tc>, window_params = [{transform_indices = @transform_0, window_bounds = array<i64: 32, 128>}, {pipeline_mode = #tpu.pipeline_mode<synchronous>, transform_indices = @transform_1, window_bounds = array<i64: 128, 128>}, {transform_indices = @transform_2, window_bounds = array<i64: 32, 128>}, {transform_indices = @transform_3, window_bounds = array<i64: 8, 128>}, {transform_indices = @transform_4, window_bounds = array<i64: 8, 128>}]} {
    %c0 = arith.constant 0 : index
    %c0_0 = arith.constant 0 : index
    %0 = vector.load %arg1[%c0, %c0_0] : memref<32x128xf32, #tpu.memory_space<vmem>>, vector<32x128xf32>
    %c0_1 = arith.constant 0 : index
    %c0_2 = arith.constant 0 : index
    %1 = vector.load %arg2[%c0_1, %c0_2] : memref<128x128xf32, #tpu.memory_space<vmem>>, vector<128x128xf32>
    %cst = arith.constant dense<0.000000e+00> : vector<32x128xf32>
    %2 = tpu.matmul %0, %1, %cst {dimension_numbers = #tpu.dot_dimension_numbers<[1], [0], [0], [1], [0, 0, 1, 1], [], []>} : vector<32x128xf32>, vector<128x128xf32>, vector<32x128xf32> -> vector<32x128xf32>
    %c0_3 = arith.constant 0 : index
    %c0_4 = arith.constant 0 : index
    %3 = vector.load %arg3[%c0_3, %c0_4] : memref<32x128xf32, #tpu.memory_space<vmem>>, vector<32x128xf32>
    tpu.vector_store %arg3[%c0_3, %c0_4], %2 {strides = array<i32>} : memref<32x128xf32, #tpu.memory_space<vmem>>, vector<32x128xf32>,
    %cst_5 = arith.constant dense<0.000000e+00> : vector<128xf32>
    %4 = vector.multi_reduction <add>, %2, %cst_5 [0] : vector<32x128xf32> to vector<128xf32>
    %5 = vector.shape_cast %4 : vector<128xf32> to vector<1x128xf32>
    %6 = vector.shape_cast %5 : vector<1x128xf32> to vector<1x128xf32>
    %7 = vector.broadcast %6 : vector<1x128xf32> to vector<8x128xf32>
    %c0_6 = arith.constant 0 : index
    %c0_7 = arith.constant 0 : index
    %8 = vector.load %arg4[%c0_6, %c0_7] : memref<8x128xf32, #tpu.memory_space<vmem>>, vector<8x128xf32>
    tpu.vector_store %arg4[%c0_6, %c0_7], %7 {strides = array<i32>} : memref<8x128xf32, #tpu.memory_space<vmem>>, vector<8x128xf32>,
    %9 = arith.mulf %2, %2 : vector<32x128xf32>
    %cst_8 = arith.constant dense<0.000000e+00> : vector<128xf32>
    %10 = vector.multi_reduction <add>, %9, %cst_8 [0] : vector<32x128xf32> to vector<128xf32>
    %11 = vector.shape_cast %10 : vector<128xf32> to vector<1x128xf32>
    %12 = vector.shape_cast %11 : vector<1x128xf32> to vector<1x128xf32>
    %13 = vector.broadcast %12 : vector<1x128xf32> to vector<8x128xf32>
    %c0_9 = arith.constant 0 : index
    %c0_10 = arith.constant 0 : index
    %14 = vector.load %arg5[%c0_9, %c0_10] : memref<8x128xf32, #tpu.memory_space<vmem>>, vector<8x128xf32>
    tpu.vector_store %arg5[%c0_9, %c0_10], %13 {strides = array<i32>} : memref<8x128xf32, #tpu.memory_space<vmem>>, vector<8x128xf32>,
    return
  }
  func.func @transform_0(%arg0: i32) -> (i32, i32) {
    %c0_i32 = arith.constant 0 : i32
    %c0_i32_0 = arith.constant 0 : i32
    return %arg0, %c0_i32 : i32, i32
  }
  func.func @transform_1(%arg0: i32) -> (i32, i32) {
    %c0_i32 = arith.constant 0 : i32
    %c0_i32_0 = arith.constant 0 : i32
    %c0_i32_1 = arith.constant 0 : i32
    return %c0_i32, %c0_i32_0 : i32, i32
  }
  func.func @transform_2(%arg0: i32) -> (i32, i32) {
    %c0_i32 = arith.constant 0 : i32
    %c0_i32_0 = arith.constant 0 : i32
    return %arg0, %c0_i32 : i32, i32
  }
  func.func @transform_3(%arg0: i32) -> (i32, i32) {
    %c0_i32 = arith.constant 0 : i32
    %c0_i32_0 = arith.constant 0 : i32
    return %arg0, %c0_i32 : i32, i32
  }
  func.func @transform_4(%arg0: i32) -> (i32, i32) {
    %c0_i32 = arith.constant 0 : i32
    %c0_i32_0 = arith.constant 0 : i32
    return %arg0, %c0_i32 : i32, i32
  }
}

module attributes {stable_mosaic.version = 11 : i64} {
  func.func @_bn_apply_kernel(%arg0: i32, %arg1: memref<32x128xf32, #tpu.memory_space<vmem>>, %arg2: memref<1x128xf32, #tpu.memory_space<vmem>>, %arg3: memref<1x128xf32, #tpu.memory_space<vmem>>, %arg4: memref<32x128xf32, #tpu.memory_space<vmem>>) attributes {dimension_semantics = [#tpu.dimension_semantics<parallel>], iteration_bounds = array<i64: 1>, scalar_prefetch = 0 : i64, scratch_operands = 0 : i64, tpu.core_type = #tpu.core_type<tc>, window_params = [{transform_indices = @transform_0, window_bounds = array<i64: 32, 128>}, {pipeline_mode = #tpu.pipeline_mode<synchronous>, transform_indices = @transform_1, window_bounds = array<i64: 1, 128>}, {pipeline_mode = #tpu.pipeline_mode<synchronous>, transform_indices = @transform_2, window_bounds = array<i64: 1, 128>}, {transform_indices = @transform_3, window_bounds = array<i64: 32, 128>}]} {
    %c0 = arith.constant 0 : index
    %c0_0 = arith.constant 0 : index
    %0 = vector.load %arg1[%c0, %c0_0] : memref<32x128xf32, #tpu.memory_space<vmem>>, vector<32x128xf32>
    %c0_1 = arith.constant 0 : index
    %c0_2 = arith.constant 0 : index
    %1 = vector.load %arg2[%c0_1, %c0_2] : memref<1x128xf32, #tpu.memory_space<vmem>>, vector<1x128xf32>
    %2 = vector.broadcast %1 : vector<1x128xf32> to vector<32x128xf32>
    %3 = arith.mulf %0, %2 : vector<32x128xf32>
    %c0_3 = arith.constant 0 : index
    %c0_4 = arith.constant 0 : index
    %4 = vector.load %arg3[%c0_3, %c0_4] : memref<1x128xf32, #tpu.memory_space<vmem>>, vector<1x128xf32>
    %5 = vector.broadcast %4 : vector<1x128xf32> to vector<32x128xf32>
    %6 = arith.addf %3, %5 : vector<32x128xf32>
    %cst = arith.constant 0.000000e+00 : f32
    %7 = vector.broadcast %cst : f32 to vector<32x128xf32>
    %8 = arith.maximumf %6, %7 : vector<32x128xf32>
    %c0_5 = arith.constant 0 : index
    %c0_6 = arith.constant 0 : index
    %9 = vector.load %arg4[%c0_5, %c0_6] : memref<32x128xf32, #tpu.memory_space<vmem>>, vector<32x128xf32>
    tpu.vector_store %arg4[%c0_5, %c0_6], %8 {strides = array<i32>} : memref<32x128xf32, #tpu.memory_space<vmem>>, vector<32x128xf32>,
    return
  }
  func.func @transform_0(%arg0: i32) -> (i32, i32) {
    %c0_i32 = arith.constant 0 : i32
    %c0_i32_0 = arith.constant 0 : i32
    return %arg0, %c0_i32 : i32, i32
  }
  func.func @transform_1(%arg0: i32) -> (i32, i32) {
    %c0_i32 = arith.constant 0 : i32
    %c0_i32_0 = arith.constant 0 : i32
    %c0_i32_1 = arith.constant 0 : i32
    return %c0_i32, %c0_i32_0 : i32, i32
  }
  func.func @transform_2(%arg0: i32) -> (i32, i32) {
    %c0_i32 = arith.constant 0 : i32
    %c0_i32_0 = arith.constant 0 : i32
    %c0_i32_1 = arith.constant 0 : i32
    return %c0_i32, %c0_i32_0 : i32, i32
  }
  func.func @transform_3(%arg0: i32) -> (i32, i32) {
    %c0_i32 = arith.constant 0 : i32
    %c0_i32_0 = arith.constant 0 : i32
    return %arg0, %c0_i32 : i32, i32
  }
}

module attributes {stable_mosaic.version = 11 : i64} {
  func.func @_conv_kernel(%arg0: i32, %arg1: memref<32x1152xf32, #tpu.memory_space<vmem>>, %arg2: memref<1152x128xf32, #tpu.memory_space<vmem>>, %arg3: memref<32x128xf32, #tpu.memory_space<vmem>>, %arg4: memref<8x128xf32, #tpu.memory_space<vmem>>, %arg5: memref<8x128xf32, #tpu.memory_space<vmem>>) attributes {dimension_semantics = [#tpu.dimension_semantics<parallel>], iteration_bounds = array<i64: 1>, scalar_prefetch = 0 : i64, scratch_operands = 0 : i64, tpu.core_type = #tpu.core_type<tc>, window_params = [{transform_indices = @transform_0, window_bounds = array<i64: 32, 1152>}, {pipeline_mode = #tpu.pipeline_mode<synchronous>, transform_indices = @transform_1, window_bounds = array<i64: 1152, 128>}, {transform_indices = @transform_2, window_bounds = array<i64: 32, 128>}, {transform_indices = @transform_3, window_bounds = array<i64: 8, 128>}, {transform_indices = @transform_4, window_bounds = array<i64: 8, 128>}]} {
    %c0 = arith.constant 0 : index
    %c0_0 = arith.constant 0 : index
    %0 = vector.load %arg1[%c0, %c0_0] : memref<32x1152xf32, #tpu.memory_space<vmem>>, vector<32x1152xf32>
    %c0_1 = arith.constant 0 : index
    %c0_2 = arith.constant 0 : index
    %1 = vector.load %arg2[%c0_1, %c0_2] : memref<1152x128xf32, #tpu.memory_space<vmem>>, vector<1152x128xf32>
    %cst = arith.constant dense<0.000000e+00> : vector<32x128xf32>
    %2 = tpu.matmul %0, %1, %cst {dimension_numbers = #tpu.dot_dimension_numbers<[1], [0], [0], [1], [0, 0, 1, 1], [], []>} : vector<32x1152xf32>, vector<1152x128xf32>, vector<32x128xf32> -> vector<32x128xf32>
    %c0_3 = arith.constant 0 : index
    %c0_4 = arith.constant 0 : index
    %3 = vector.load %arg3[%c0_3, %c0_4] : memref<32x128xf32, #tpu.memory_space<vmem>>, vector<32x128xf32>
    tpu.vector_store %arg3[%c0_3, %c0_4], %2 {strides = array<i32>} : memref<32x128xf32, #tpu.memory_space<vmem>>, vector<32x128xf32>,
    %cst_5 = arith.constant dense<0.000000e+00> : vector<128xf32>
    %4 = vector.multi_reduction <add>, %2, %cst_5 [0] : vector<32x128xf32> to vector<128xf32>
    %5 = vector.shape_cast %4 : vector<128xf32> to vector<1x128xf32>
    %6 = vector.shape_cast %5 : vector<1x128xf32> to vector<1x128xf32>
    %7 = vector.broadcast %6 : vector<1x128xf32> to vector<8x128xf32>
    %c0_6 = arith.constant 0 : index
    %c0_7 = arith.constant 0 : index
    %8 = vector.load %arg4[%c0_6, %c0_7] : memref<8x128xf32, #tpu.memory_space<vmem>>, vector<8x128xf32>
    tpu.vector_store %arg4[%c0_6, %c0_7], %7 {strides = array<i32>} : memref<8x128xf32, #tpu.memory_space<vmem>>, vector<8x128xf32>,
    %9 = arith.mulf %2, %2 : vector<32x128xf32>
    %cst_8 = arith.constant dense<0.000000e+00> : vector<128xf32>
    %10 = vector.multi_reduction <add>, %9, %cst_8 [0] : vector<32x128xf32> to vector<128xf32>
    %11 = vector.shape_cast %10 : vector<128xf32> to vector<1x128xf32>
    %12 = vector.shape_cast %11 : vector<1x128xf32> to vector<1x128xf32>
    %13 = vector.broadcast %12 : vector<1x128xf32> to vector<8x128xf32>
    %c0_9 = arith.constant 0 : index
    %c0_10 = arith.constant 0 : index
    %14 = vector.load %arg5[%c0_9, %c0_10] : memref<8x128xf32, #tpu.memory_space<vmem>>, vector<8x128xf32>
    tpu.vector_store %arg5[%c0_9, %c0_10], %13 {strides = array<i32>} : memref<8x128xf32, #tpu.memory_space<vmem>>, vector<8x128xf32>,
    return
  }
  func.func @transform_0(%arg0: i32) -> (i32, i32) {
    %c0_i32 = arith.constant 0 : i32
    %c0_i32_0 = arith.constant 0 : i32
    return %arg0, %c0_i32 : i32, i32
  }
  func.func @transform_1(%arg0: i32) -> (i32, i32) {
    %c0_i32 = arith.constant 0 : i32
    %c0_i32_0 = arith.constant 0 : i32
    %c0_i32_1 = arith.constant 0 : i32
    return %c0_i32, %c0_i32_0 : i32, i32
  }
  func.func @transform_2(%arg0: i32) -> (i32, i32) {
    %c0_i32 = arith.constant 0 : i32
    %c0_i32_0 = arith.constant 0 : i32
    return %arg0, %c0_i32 : i32, i32
  }
  func.func @transform_3(%arg0: i32) -> (i32, i32) {
    %c0_i32 = arith.constant 0 : i32
    %c0_i32_0 = arith.constant 0 : i32
    return %arg0, %c0_i32 : i32, i32
  }
  func.func @transform_4(%arg0: i32) -> (i32, i32) {
    %c0_i32 = arith.constant 0 : i32
    %c0_i32_0 = arith.constant 0 : i32
    return %arg0, %c0_i32 : i32, i32
  }
}

module attributes {stable_mosaic.version = 11 : i64} {
  func.func @_head_kernel(%arg0: i32, %arg1: memref<2x16x128xf32, #tpu.memory_space<vmem>>, %arg2: memref<1x1x128xf32, #tpu.memory_space<vmem>>, %arg3: memref<1x1x128xf32, #tpu.memory_space<vmem>>, %arg4: memref<128x128xf32, #tpu.memory_space<vmem>>, %arg5: memref<1x128xf32, #tpu.memory_space<vmem>>, %arg6: memref<2x128xf32, #tpu.memory_space<vmem>>) attributes {dimension_semantics = [#tpu.dimension_semantics<arbitrary>], iteration_bounds = array<i64: 1>, scalar_prefetch = 0 : i64, scratch_operands = 0 : i64, tpu.core_type = #tpu.core_type<tc>, window_params = [{pipeline_mode = #tpu.pipeline_mode<synchronous>, transform_indices = @transform_0, window_bounds = array<i64: 2, 16, 128>}, {pipeline_mode = #tpu.pipeline_mode<synchronous>, transform_indices = @transform_1, window_bounds = array<i64: 1, 1, 128>}, {pipeline_mode = #tpu.pipeline_mode<synchronous>, transform_indices = @transform_2, window_bounds = array<i64: 1, 1, 128>}, {pipeline_mode = #tpu.pipeline_mode<synchronous>, transform_indices = @transform_3, window_bounds = array<i64: 128, 128>}, {pipeline_mode = #tpu.pipeline_mode<synchronous>, transform_indices = @transform_4, window_bounds = array<i64: 1, 128>}, {pipeline_mode = #tpu.pipeline_mode<synchronous>, transform_indices = @transform_5, window_bounds = array<i64: 2, 128>}]} {
    %c0 = arith.constant 0 : index
    %c0_0 = arith.constant 0 : index
    %c0_1 = arith.constant 0 : index
    %0 = vector.load %arg1[%c0, %c0_0, %c0_1] : memref<2x16x128xf32, #tpu.memory_space<vmem>>, vector<2x16x128xf32>
    %c0_2 = arith.constant 0 : index
    %c0_3 = arith.constant 0 : index
    %c0_4 = arith.constant 0 : index
    %1 = vector.load %arg2[%c0_2, %c0_3, %c0_4] : memref<1x1x128xf32, #tpu.memory_space<vmem>>, vector<1x1x128xf32>
    %2 = vector.broadcast %1 : vector<1x1x128xf32> to vector<2x16x128xf32>
    %3 = arith.mulf %0, %2 : vector<2x16x128xf32>
    %c0_5 = arith.constant 0 : index
    %c0_6 = arith.constant 0 : index
    %c0_7 = arith.constant 0 : index
    %4 = vector.load %arg3[%c0_5, %c0_6, %c0_7] : memref<1x1x128xf32, #tpu.memory_space<vmem>>, vector<1x1x128xf32>
    %5 = vector.broadcast %4 : vector<1x1x128xf32> to vector<2x16x128xf32>
    %6 = arith.addf %3, %5 : vector<2x16x128xf32>
    %cst = arith.constant 0.000000e+00 : f32
    %7 = vector.broadcast %cst : f32 to vector<2x16x128xf32>
    %8 = arith.maximumf %6, %7 : vector<2x16x128xf32>
    %cst_8 = arith.constant dense<0.000000e+00> : vector<2x128xf32>
    %9 = vector.multi_reduction <add>, %8, %cst_8 [1] : vector<2x16x128xf32> to vector<2x128xf32>
    %cst_9 = arith.constant 1.600000e+01 : f32
    %10 = vector.broadcast %cst_9 : f32 to vector<2x128xf32>
    %11 = arith.divf %9, %10 : vector<2x128xf32>
    %c0_10 = arith.constant 0 : index
    %c0_11 = arith.constant 0 : index
    %12 = vector.load %arg4[%c0_10, %c0_11] : memref<128x128xf32, #tpu.memory_space<vmem>>, vector<128x128xf32>
    %cst_12 = arith.constant dense<0.000000e+00> : vector<2x128xf32>
    %13 = tpu.matmul %11, %12, %cst_12 {dimension_numbers = #tpu.dot_dimension_numbers<[1], [0], [0], [1], [0, 0, 1, 1], [], []>} : vector<2x128xf32>, vector<128x128xf32>, vector<2x128xf32> -> vector<2x128xf32>
    %c0_13 = arith.constant 0 : index
    %c0_14 = arith.constant 0 : index
    %14 = vector.load %arg5[%c0_13, %c0_14] : memref<1x128xf32, #tpu.memory_space<vmem>>, vector<1x128xf32>
    %15 = vector.broadcast %14 : vector<1x128xf32> to vector<2x128xf32>
    %16 = arith.addf %13, %15 : vector<2x128xf32>
    %c0_15 = arith.constant 0 : index
    %c0_16 = arith.constant 0 : index
    %17 = vector.load %arg6[%c0_15, %c0_16] : memref<2x128xf32, #tpu.memory_space<vmem>>, vector<2x128xf32>
    tpu.vector_store %arg6[%c0_15, %c0_16], %16 {strides = array<i32>} : memref<2x128xf32, #tpu.memory_space<vmem>>, vector<2x128xf32>,
    return
  }
  func.func @transform_0(%arg0: i32) -> (i32, i32, i32) {
    %c0_i32 = arith.constant 0 : i32
    %c0_i32_0 = arith.constant 0 : i32
    %c0_i32_1 = arith.constant 0 : i32
    %c0_i32_2 = arith.constant 0 : i32
    return %c0_i32, %c0_i32_0, %c0_i32_1 : i32, i32, i32
  }
  func.func @transform_1(%arg0: i32) -> (i32, i32, i32) {
    %c0_i32 = arith.constant 0 : i32
    %c0_i32_0 = arith.constant 0 : i32
    %c0_i32_1 = arith.constant 0 : i32
    %c0_i32_2 = arith.constant 0 : i32
    return %c0_i32, %c0_i32_0, %c0_i32_1 : i32, i32, i32
  }
  func.func @transform_2(%arg0: i32) -> (i32, i32, i32) {
    %c0_i32 = arith.constant 0 : i32
    %c0_i32_0 = arith.constant 0 : i32
    %c0_i32_1 = arith.constant 0 : i32
    %c0_i32_2 = arith.constant 0 : i32
    return %c0_i32, %c0_i32_0, %c0_i32_1 : i32, i32, i32
  }
  func.func @transform_3(%arg0: i32) -> (i32, i32) {
    %c0_i32 = arith.constant 0 : i32
    %c0_i32_0 = arith.constant 0 : i32
    %c0_i32_1 = arith.constant 0 : i32
    return %c0_i32, %c0_i32_0 : i32, i32
  }
  func.func @transform_4(%arg0: i32) -> (i32, i32) {
    %c0_i32 = arith.constant 0 : i32
    %c0_i32_0 = arith.constant 0 : i32
    %c0_i32_1 = arith.constant 0 : i32
    return %c0_i32, %c0_i32_0 : i32, i32
  }
  func.func @transform_5(%arg0: i32) -> (i32, i32) {
    %c0_i32 = arith.constant 0 : i32
    %c0_i32_0 = arith.constant 0 : i32
    %c0_i32_1 = arith.constant 0 : i32
    return %c0_i32, %c0_i32_0 : i32, i32
  }
}

module attributes {stable_mosaic.version = 11 : i64} {
  func.func @_conv_res_affine_kernel(%arg0: i32, %arg1: memref<32x1152xf32, #tpu.memory_space<vmem>>, %arg2: memref<1152x128xf32, #tpu.memory_space<vmem>>, %arg3: memref<32x128xf32, #tpu.memory_space<vmem>>, %arg4: memref<1x128xf32, #tpu.memory_space<vmem>>, %arg5: memref<1x128xf32, #tpu.memory_space<vmem>>, %arg6: memref<32x128xf32, #tpu.memory_space<vmem>>, %arg7: memref<8x128xf32, #tpu.memory_space<vmem>>, %arg8: memref<8x128xf32, #tpu.memory_space<vmem>>) attributes {dimension_semantics = [#tpu.dimension_semantics<parallel>], iteration_bounds = array<i64: 1>, scalar_prefetch = 0 : i64, scratch_operands = 0 : i64, tpu.core_type = #tpu.core_type<tc>, window_params = [{transform_indices = @transform_0, window_bounds = array<i64: 32, 1152>}, {pipeline_mode = #tpu.pipeline_mode<synchronous>, transform_indices = @transform_1, window_bounds = array<i64: 1152, 128>}, {transform_indices = @transform_2, window_bounds = array<i64: 32, 128>}, {pipeline_mode = #tpu.pipeline_mode<synchronous>, transform_indices = @transform_3, window_bounds = array<i64: 1, 128>}, {pipeline_mode = #tpu.pipeline_mode<synchronous>, transform_indices = @transform_4, window_bounds = array<i64: 1, 128>}, {transform_indices = @transform_5, window_bounds = array<i64: 32, 128>}, {transform_indices = @transform_6, window_bounds = array<i64: 8, 128>}, {transform_indices = @transform_7, window_bounds = array<i64: 8, 128>}]} {
    %c0 = arith.constant 0 : index
    %c0_0 = arith.constant 0 : index
    %0 = vector.load %arg1[%c0, %c0_0] : memref<32x1152xf32, #tpu.memory_space<vmem>>, vector<32x1152xf32>
    %c0_1 = arith.constant 0 : index
    %c0_2 = arith.constant 0 : index
    %1 = vector.load %arg2[%c0_1, %c0_2] : memref<1152x128xf32, #tpu.memory_space<vmem>>, vector<1152x128xf32>
    %cst = arith.constant dense<0.000000e+00> : vector<32x128xf32>
    %2 = tpu.matmul %0, %1, %cst {dimension_numbers = #tpu.dot_dimension_numbers<[1], [0], [0], [1], [0, 0, 1, 1], [], []>} : vector<32x1152xf32>, vector<1152x128xf32>, vector<32x128xf32> -> vector<32x128xf32>
    %c0_3 = arith.constant 0 : index
    %c0_4 = arith.constant 0 : index
    %3 = vector.load %arg3[%c0_3, %c0_4] : memref<32x128xf32, #tpu.memory_space<vmem>>, vector<32x128xf32>
    %c0_5 = arith.constant 0 : index
    %c0_6 = arith.constant 0 : index
    %4 = vector.load %arg4[%c0_5, %c0_6] : memref<1x128xf32, #tpu.memory_space<vmem>>, vector<1x128xf32>
    %5 = vector.broadcast %4 : vector<1x128xf32> to vector<32x128xf32>
    %6 = arith.mulf %3, %5 : vector<32x128xf32>
    %c0_7 = arith.constant 0 : index
    %c0_8 = arith.constant 0 : index
    %7 = vector.load %arg5[%c0_7, %c0_8] : memref<1x128xf32, #tpu.memory_space<vmem>>, vector<1x128xf32>
    %8 = vector.broadcast %7 : vector<1x128xf32> to vector<32x128xf32>
    %9 = arith.addf %6, %8 : vector<32x128xf32>
    %10 = arith.addf %2, %9 : vector<32x128xf32>
    %c0_9 = arith.constant 0 : index
    %c0_10 = arith.constant 0 : index
    %11 = vector.load %arg6[%c0_9, %c0_10] : memref<32x128xf32, #tpu.memory_space<vmem>>, vector<32x128xf32>
    tpu.vector_store %arg6[%c0_9, %c0_10], %10 {strides = array<i32>} : memref<32x128xf32, #tpu.memory_space<vmem>>, vector<32x128xf32>,
    %cst_11 = arith.constant dense<0.000000e+00> : vector<128xf32>
    %12 = vector.multi_reduction <add>, %10, %cst_11 [0] : vector<32x128xf32> to vector<128xf32>
    %13 = vector.shape_cast %12 : vector<128xf32> to vector<1x128xf32>
    %14 = vector.shape_cast %13 : vector<1x128xf32> to vector<1x128xf32>
    %15 = vector.broadcast %14 : vector<1x128xf32> to vector<8x128xf32>
    %c0_12 = arith.constant 0 : index
    %c0_13 = arith.constant 0 : index
    %16 = vector.load %arg7[%c0_12, %c0_13] : memref<8x128xf32, #tpu.memory_space<vmem>>, vector<8x128xf32>
    tpu.vector_store %arg7[%c0_12, %c0_13], %15 {strides = array<i32>} : memref<8x128xf32, #tpu.memory_space<vmem>>, vector<8x128xf32>,
    %17 = arith.mulf %10, %10 : vector<32x128xf32>
    %cst_14 = arith.constant dense<0.000000e+00> : vector<128xf32>
    %18 = vector.multi_reduction <add>, %17, %cst_14 [0] : vector<32x128xf32> to vector<128xf32>
    %19 = vector.shape_cast %18 : vector<128xf32> to vector<1x128xf32>
    %20 = vector.shape_cast %19 : vector<1x128xf32> to vector<1x128xf32>
    %21 = vector.broadcast %20 : vector<1x128xf32> to vector<8x128xf32>
    %c0_15 = arith.constant 0 : index
    %c0_16 = arith.constant 0 : index
    %22 = vector.load %arg8[%c0_15, %c0_16] : memref<8x128xf32, #tpu.memory_space<vmem>>, vector<8x128xf32>
    tpu.vector_store %arg8[%c0_15, %c0_16], %21 {strides = array<i32>} : memref<8x128xf32, #tpu.memory_space<vmem>>, vector<8x128xf32>,
    return
  }
  func.func @transform_0(%arg0: i32) -> (i32, i32) {
    %c0_i32 = arith.constant 0 : i32
    %c0_i32_0 = arith.constant 0 : i32
    return %arg0, %c0_i32 : i32, i32
  }
  func.func @transform_1(%arg0: i32) -> (i32, i32) {
    %c0_i32 = arith.constant 0 : i32
    %c0_i32_0 = arith.constant 0 : i32
    %c0_i32_1 = arith.constant 0 : i32
    return %c0_i32, %c0_i32_0 : i32, i32
  }
  func.func @transform_2(%arg0: i32) -> (i32, i32) {
    %c0_i32 = arith.constant 0 : i32
    %c0_i32_0 = arith.constant 0 : i32
    return %arg0, %c0_i32 : i32, i32
  }
  func.func @transform_3(%arg0: i32) -> (i32, i32) {
    %c0_i32 = arith.constant 0 : i32
    %c0_i32_0 = arith.constant 0 : i32
    %c0_i32_1 = arith.constant 0 : i32
    return %c0_i32, %c0_i32_0 : i32, i32
  }
  func.func @transform_4(%arg0: i32) -> (i32, i32) {
    %c0_i32 = arith.constant 0 : i32
    %c0_i32_0 = arith.constant 0 : i32
    %c0_i32_1 = arith.constant 0 : i32
    return %c0_i32, %c0_i32_0 : i32, i32
  }
  func.func @transform_5(%arg0: i32) -> (i32, i32) {
    %c0_i32 = arith.constant 0 : i32
    %c0_i32_0 = arith.constant 0 : i32
    return %arg0, %c0_i32 : i32, i32
  }
  func.func @transform_6(%arg0: i32) -> (i32, i32) {
    %c0_i32 = arith.constant 0 : i32
    %c0_i32_0 = arith.constant 0 : i32
    return %arg0, %c0_i32 : i32, i32
  }
  func.func @transform_7(%arg0: i32) -> (i32, i32) {
    %c0_i32 = arith.constant 0 : i32
    %c0_i32_0 = arith.constant 0 : i32
    return %arg0, %c0_i32 : i32, i32
  }
}

</mosaic_0001>

<llo_original>
// kernel: _lambda_.20
$region0: #{_lambda_.20}
  #allocation0 [shape = 'u32[]', space=smem, size = 0x4, offset = 0x4, fixed_abs, tag = 'smem constant byte address 0x4 - core index']
  #allocation1 [shape = 'u32[144,128]{1,0:T(1,128)}', space=vmem, size = 0x12000, scoped, tag = 'internal scratch']
  %s0 = inlined_call_operand.vmem [shape: f32[512,128], index: 0, kind: input, shape index: {}]
  %s1 = inlined_call_operand.vmem [shape: f32[1,128], index: 1, kind: input, shape index: {}]
  %s2 = inlined_call_operand.vmem [shape: f32[1,128], index: 2, kind: input, shape index: {}]
  %s3 = inlined_call_operand.vmem [shape: f32[512,128], index: 3, kind: output, shape index: {}]
  %s4 = sld [smem:[#allocation0]]
  $region45: #{_lambda_.20} parent=0
    _
  %s6 = ssub.s32 1, %s4
  %s7 = scalar_select 0, %s6, %s4
  loop: start=0, step=1, limit=4
  $region2: #{_lambda_.20} parent=0 // loop_pre_header
    _
  $region3: #{_lambda_.20} parent=0 // loop_header
    %s9 = sphi 0, %s13
    %p10 = scmp.ge.s32.totalorder %s9, 4
    %s19 = sphi 0, %s21
    %s22 = sphi 0, %s19
    %s23 = sphi 0, %s22
    %s39 = sphi 0, %s23
    %s43 = sphi 0, %s43
    %s45 = sphi 0, %s43
    %s46 = sphi 0, %s45
    %s60 = sphi 0, %s46
    %s64 = sphi 0, %s64
    %s66 = sphi 0, %s64
    %s67 = sphi 0, %s66
    %s81 = sphi 0, %s67
    %s87 = sphi 0, %s89
    %s90 = sphi 0, %s87
    %s91 = sphi 0, %s90
    %s107 = sphi 0, %s91
  $region4: #{_lambda_.20} parent=0 // loop_header_branch
    %12 = sbr.rel (%p10) target = $region8
  $region5: #{_lambda_.20} parent=0 // loop_body
    %s14 = ssub.s32 %s9, 1
    %s15 = ssub.s32 %s9, 2
    %s16 = sadd.s32 %s9, 1
    %s17 = ssub.s32 %s9, %s16
    %p18 = scmp.eq.s32.totalorder %s17, 0
    %s20 = sadd.s32 %s19, 1
    %s21 = scalar_select %p18, %s19, %s20
    %p24 = pneg %p18
    %p25 = scmp.eq.s32.totalorder %s9, 1
    %p26 = por %p24, %p25
    %p27 = scmp.ne.s32.totalorder %s19, %s22
    %p28 = scmp.eq.s32.totalorder %s9, 0
    %p29 = por %p27, %p28
    %p30 = scmp.ne.s32.totalorder %s19, %s22
    %p31 = scmp.eq.s32.totalorder %s14, 1
    %p32 = por %p30, %p31
    %p33 = scmp.ne.s32.totalorder %s22, %s23
    %p34 = scmp.eq.s32.totalorder %s14, 0
    %p35 = por %p33, %p34
    %p36 = scmp.ne.s32.totalorder %s22, %s23
    %p37 = scmp.eq.s32.totalorder %s15, 1
    %p38 = por %p36, %p37
    %p40 = scmp.ne.s32.totalorder %s23, %s39
    %p41 = scmp.eq.s32.totalorder %s15, 0
    %p42 = por %p40, %p41
    %s44 = sadd.s32 %s43, 1
    %p47 = scmp.eq.s32.totalorder %s9, 1
    %p48 = scmp.ne.s32.totalorder %s43, %s45
    %p49 = scmp.eq.s32.totalorder %s9, 0
    %p50 = por %p48, %p49
    %p51 = scmp.ne.s32.totalorder %s43, %s45
    %p52 = scmp.eq.s32.totalorder %s14, 1
    %p53 = por %p51, %p52
    %p54 = scmp.ne.s32.totalorder %s45, %s46
    %p55 = scmp.eq.s32.totalorder %s14, 0
    %p56 = por %p54, %p55
    %p57 = scmp.ne.s32.totalorder %s45, %s46
    %p58 = scmp.eq.s32.totalorder %s15, 1
    %p59 = por %p57, %p58
    %p61 = scmp.ne.s32.totalorder %s46, %s60
    %p62 = scmp.eq.s32.totalorder %s15, 0
    %p63 = por %p61, %p62
    %s65 = sadd.s32 %s64, 1
    %p68 = scmp.eq.s32.totalorder %s9, 1
    %p69 = scmp.ne.s32.totalorder %s64, %s66
    %p70 = scmp.eq.s32.totalorder %s9, 0
    %p71 = por %p69, %p70
    %p72 = scmp.ne.s32.totalorder %s64, %s66
    %p73 = scmp.eq.s32.totalorder %s14, 1
    %p74 = por %p72, %p73
    %p75 = scmp.ne.s32.totalorder %s66, %s67
    %p76 = scmp.eq.s32.totalorder %s14, 0
    %p77 = por %p75, %p76
    %p78 = scmp.ne.s32.totalorder %s66, %s67
    %p79 = scmp.eq.s32.totalorder %s15, 1
    %p80 = por %p78, %p79
    %p82 = scmp.ne.s32.totalorder %s67, %s81
    %p83 = scmp.eq.s32.totalorder %s15, 0
    %p84 = por %p82, %p83
    %s85 = ssub.s32 %s9, %s16
    %p86 = scmp.eq.s32.totalorder %s85, 0
    %s88 = sadd.s32 %s87, 1
    %s89 = scalar_select %p86, %s87, %s88
    %p92 = pneg %p86
    %p93 = scmp.eq.s32.totalorder %s9, 1
    %p94 = por %p92, %p93
    %p95 = scmp.ne.s32.totalorder %s87, %s90
    %p96 = scmp.eq.s32.totalorder %s9, 0
    %p97 = por %p95, %p96
    %p98 = scmp.ne.s32.totalorder %s87, %s90
    %p99 = scmp.eq.s32.totalorder %s14, 1
    %p100 = por %p98, %p99
    %p101 = scmp.ne.s32.totalorder %s90, %s91
    %p102 = scmp.eq.s32.totalorder %s14, 0
    %p103 = por %p101, %p102
    %p104 = scmp.ne.s32.totalorder %s90, %s91
    %p105 = scmp.eq.s32.totalorder %s15, 1
    %p106 = por %p104, %p105
    %p108 = scmp.ne.s32.totalorder %s91, %s107
    %p109 = scmp.eq.s32.totalorder %s15, 0
    %p110 = por %p108, %p109
    %p111 = scmp.le.s32.totalorder 1, %s9
    %p112 = scmp.lt.s32.totalorder %s9, 3
    %p113 = pnand %p111, %p112
    %p114 = pneg %p113
    // Predicated region
    $region9: #{_lambda_.20} parent=5 // pred_check
      _
    $region10: #{_lambda_.20} parent=5 // pred_check_branch
      %116 = sbr.rel (%p113) target = $region12
    $region11: #{_lambda_.20} parent=5 // pred_region
      %s117 = ssub.s32 %s9, 1
      // Predicated region
      $region13: #{_lambda_.20} parent=11 // pred_check
        %p118 = pneg %p56
      $region14: #{_lambda_.20} parent=11 // pred_check_branch
        %120 = sbr.rel (%p118) target = $region16
      $region15: #{_lambda_.20} parent=11 // pred_region
        _
      $region16: #{_lambda_.20} parent=11 // pred_fallthru
        _
      // Predicated region
      $region17: #{_lambda_.20} parent=11 // pred_check
        %p121 = pneg %p77
      $region18: #{_lambda_.20} parent=11 // pred_check_branch
        %123 = sbr.rel (%p121) target = $region20
      $region19: #{_lambda_.20} parent=11 // pred_region
        _
      $region20: #{_lambda_.20} parent=11 // pred_fallthru
        _
    $region12: #{_lambda_.20} parent=5 // pred_fallthru
      _
    %p124 = scmp.lt.s32.totalorder %s9, 2
    // Predicated region
    $region21: #{_lambda_.20} parent=5 // pred_check
      %p125 = pneg %p124
    $region22: #{_lambda_.20} parent=5 // pred_check_branch
      %127 = sbr.rel (%p125) target = $region24
    $region23: #{_lambda_.20} parent=5 // pred_region
      // Predicated region
      $region25: #{_lambda_.20} parent=23 // pred_check
        %p128 = pneg %p29
      $region26: #{_lambda_.20} parent=23 // pred_check_branch
        %130 = sbr.rel (%p128) target = $region28
      $region27: #{_lambda_.20} parent=23 // pred_region
        %s131 = smul.u32 32, %s9
        %p132 = scmp.lt.s32.totalorder %s131, 63
        %s133 = scalar_select %p132, %s131, 63
        %s134 = smul.addr %s133, 8
        %s135 = scalar_lea.vmem %s0, %s134
        %s136 = smul.u32 32, %s9
      $region28: #{_lambda_.20} parent=23 // pred_fallthru
        _
    $region24: #{_lambda_.20} parent=5 // pred_fallthru
      _
    %p137 = scmp.le.s32.totalorder 1, %s9
    %p138 = scmp.lt.s32.totalorder %s9, 3
    %p139 = pnand %p137, %p138
    %p140 = pneg %p139
    // Predicated region
    $region29: #{_lambda_.20} parent=5 // pred_check
      _
    $region30: #{_lambda_.20} parent=5 // pred_check_branch
      %142 = sbr.rel (%p139) target = $region32
    $region31: #{_lambda_.20} parent=5 // pred_region
      %s143 = ssub.s32 %s9, 1
      %s144 = smul.u32 32, %s14
      %p145 = scmp.lt.s32.totalorder %s144, 63
      %s146 = scalar_select %p145, %s144, 63
      %s147 = smul.addr %s146, 8
      %s148 = scalar_lea.vmem %s0, %s147
      %p149 = pneg %p35
      %p150 = pneg %p32
      %p151 = pneg %p56
      %p152 = pneg %p53
      %p153 = pneg %p77
      %p154 = pneg %p74
      %p155 = pneg %p103
      %p156 = pneg %p100
      %s157 = smul.u32 32, %s14
      %p158 = scmp.lt.s32.totalorder %s157, 63
      %s159 = scalar_select %p158, %s157, 63
      %s160 = smul.addr %s159, 8
      %s161 = scalar_lea.vmem %s3, %s160
      %s162 = smul.u32 32, %s14
      %p163 = scmp.lt.s32.totalorder %s162, 63
      %s164 = scalar_select %p163, %s162, 63
      %s165 = smul.addr %s164, 8
      %s166 = scalar_lea.vmem %s0, %s165
      %s167 = smul.u32 32, %s14
      %s168 = smul.u32 32, %s14
      %p169 = scmp.lt.s32.totalorder %s168, 63
      %s170 = scalar_select %p169, %s168, 63
      %s171 = smul.addr %s170, 8
      %s172 = scalar_lea.vmem %s3, %s171
      %s173 = smul.u32 32, %s14
      %v174 = vld [vmem:[%s166] sm:$0xff]
      %v175 = vld [vmem:[%s166 + $0x8] sm:$0xff]
      %v176 = vld [vmem:[%s166 + $0x10] sm:$0xff]
      %v177 = vld [vmem:[%s166 + $0x18] sm:$0xff]
      %v178 = vld [vmem:[%s166 + $0x20] sm:$0xff]
      %v179 = vld [vmem:[%s166 + $0x28] sm:$0xff]
      %v180 = vld [vmem:[%s166 + $0x30] sm:$0xff]
      %v181 = vld [vmem:[%s166 + $0x38] sm:$0xff]
      %v182 = vld [vmem:[%s166 + $0x40] sm:$0xff]
      %v183 = vld [vmem:[%s166 + $0x48] sm:$0xff]
      %v184 = vld [vmem:[%s166 + $0x50] sm:$0xff]
      %v185 = vld [vmem:[%s166 + $0x58] sm:$0xff]
      %v186 = vld [vmem:[%s166 + $0x60] sm:$0xff]
      %v187 = vld [vmem:[%s166 + $0x68] sm:$0xff]
      %v188 = vld [vmem:[%s166 + $0x70] sm:$0xff]
      %v189 = vld [vmem:[%s166 + $0x78] sm:$0xff]
      %v190 = vld [vmem:[%s166 + $0x80] sm:$0xff]
      %v191 = vld [vmem:[%s166 + $0x88] sm:$0xff]
      %v192 = vld [vmem:[%s166 + $0x90] sm:$0xff]
      %v193 = vld [vmem:[%s166 + $0x98] sm:$0xff]
      %v194 = vld [vmem:[%s166 + $0xa0] sm:$0xff]
      %v195 = vld [vmem:[%s166 + $0xa8] sm:$0xff]
      %v196 = vld [vmem:[%s166 + $0xb0] sm:$0xff]
      %v197 = vld [vmem:[%s166 + $0xb8] sm:$0xff]
      %v198 = vld [vmem:[%s166 + $0xc0] sm:$0xff]
      %v199 = vld [vmem:[%s166 + $0xc8] sm:$0xff]
      %v200 = vld [vmem:[%s166 + $0xd0] sm:$0xff]
      %v201 = vld [vmem:[%s166 + $0xd8] sm:$0xff]
      %v202 = vld [vmem:[%s166 + $0xe0] sm:$0xff]
      %v203 = vld [vmem:[%s166 + $0xe8] sm:$0xff]
      %v204 = vld [vmem:[%s166 + $0xf0] sm:$0xff]
      %v205 = vld [vmem:[%s166 + $0xf8] sm:$0xff]
      %v206 = vld [vmem:[%s1] sm:$0x1]
      %v208 = vlaneseq
      %v209 = vshrl.u32 %v208, 7
      %v210 = vsub.s32 0, %v209
      %v211 = vrot.slane %v206, %v210
      %v213 = vmul.f32 %v174, %v211
      %v214 = vmul.f32 %v175, %v211
      %v215 = vmul.f32 %v176, %v211
      %v216 = vmul.f32 %v177, %v211
      %v217 = vmul.f32 %v178, %v211
      %v218 = vmul.f32 %v179, %v211
      %v219 = vmul.f32 %v180, %v211
      %v220 = vmul.f32 %v181, %v211
      %v221 = vmul.f32 %v182, %v211
      %v222 = vmul.f32 %v183, %v211
      %v223 = vmul.f32 %v184, %v211
      %v224 = vmul.f32 %v185, %v211
      %v225 = vmul.f32 %v186, %v211
      %v226 = vmul.f32 %v187, %v211
      %v227 = vmul.f32 %v188, %v211
      %v228 = vmul.f32 %v189, %v211
      %v229 = vmul.f32 %v190, %v211
      %v230 = vmul.f32 %v191, %v211
      %v231 = vmul.f32 %v192, %v211
      %v232 = vmul.f32 %v193, %v211
      %v233 = vmul.f32 %v194, %v211
      %v234 = vmul.f32 %v195, %v211
      %v235 = vmul.f32 %v196, %v211
      %v236 = vmul.f32 %v197, %v211
      %v237 = vmul.f32 %v198, %v211
      %v238 = vmul.f32 %v199, %v211
      %v239 = vmul.f32 %v200, %v211
      %v240 = vmul.f32 %v201, %v211
      %v241 = vmul.f32 %v202, %v211
      %v242 = vmul.f32 %v203, %v211
      %v243 = vmul.f32 %v204, %v211
      %v244 = vmul.f32 %v205, %v211
      %v245 = vld [vmem:[%s2] sm:$0x1]
      %v247 = vlaneseq
      %v248 = vshrl.u32 %v247, 7
      %v249 = vsub.s32 0, %v248
      %v250 = vrot.slane %v245, %v249
      %v252 = vadd.f32 %v213, %v250
      %v253 = vadd.f32 %v214, %v250
      %v254 = vadd.f32 %v215, %v250
      %v255 = vadd.f32 %v216, %v250
      %v256 = vadd.f32 %v217, %v250
      %v257 = vadd.f32 %v218, %v250
      %v258 = vadd.f32 %v219, %v250
      %v259 = vadd.f32 %v220, %v250
      %v260 = vadd.f32 %v221, %v250
      %v261 = vadd.f32 %v222, %v250
      %v262 = vadd.f32 %v223, %v250
      %v263 = vadd.f32 %v224, %v250
      %v264 = vadd.f32 %v225, %v250
      %v265 = vadd.f32 %v226, %v250
      %v266 = vadd.f32 %v227, %v250
      %v267 = vadd.f32 %v228, %v250
      %v268 = vadd.f32 %v229, %v250
      %v269 = vadd.f32 %v230, %v250
      %v270 = vadd.f32 %v231, %v250
      %v271 = vadd.f32 %v232, %v250
      %v272 = vadd.f32 %v233, %v250
      %v273 = vadd.f32 %v234, %v250
      %v274 = vadd.f32 %v235, %v250
      %v275 = vadd.f32 %v236, %v250
      %v276 = vadd.f32 %v237, %v250
      %v277 = vadd.f32 %v238, %v250
      %v278 = vadd.f32 %v239, %v250
      %v279 = vadd.f32 %v240, %v250
      %v280 = vadd.f32 %v241, %v250
      %v281 = vadd.f32 %v242, %v250
      %v282 = vadd.f32 %v243, %v250
      %v283 = vadd.f32 %v244, %v250
      %v284 = vmax.f32 %v252, 0.0
      %v285 = vmax.f32 %v253, 0.0
      %v286 = vmax.f32 %v254, 0.0
      %v287 = vmax.f32 %v255, 0.0
      %v288 = vmax.f32 %v256, 0.0
      %v289 = vmax.f32 %v257, 0.0
      %v290 = vmax.f32 %v258, 0.0
      %v291 = vmax.f32 %v259, 0.0
      %v292 = vmax.f32 %v260, 0.0
      %v293 = vmax.f32 %v261, 0.0
      %v294 = vmax.f32 %v262, 0.0
      %v295 = vmax.f32 %v263, 0.0
      %v296 = vmax.f32 %v264, 0.0
      %v297 = vmax.f32 %v265, 0.0
      %v298 = vmax.f32 %v266, 0.0
      %v299 = vmax.f32 %v267, 0.0
      %v300 = vmax.f32 %v268, 0.0
      %v301 = vmax.f32 %v269, 0.0
      %v302 = vmax.f32 %v270, 0.0
      %v303 = vmax.f32 %v271, 0.0
      %v304 = vmax.f32 %v272, 0.0
      %v305 = vmax.f32 %v273, 0.0
      %v306 = vmax.f32 %v274, 0.0
      %v307 = vmax.f32 %v275, 0.0
      %v308 = vmax.f32 %v276, 0.0
      %v309 = vmax.f32 %v277, 0.0
      %v310 = vmax.f32 %v278, 0.0
      %v311 = vmax.f32 %v279, 0.0
      %v312 = vmax.f32 %v280, 0.0
      %v313 = vmax.f32 %v281, 0.0
      %v314 = vmax.f32 %v282, 0.0
      %v315 = vmax.f32 %v283, 0.0
      %316 = vst [vmem:[%s172] sm:$0xff] %v284
      %317 = vst [vmem:[%s172 + $0x8] sm:$0xff] %v285
      %318 = vst [vmem:[%s172 + $0x10] sm:$0xff] %v286
      %319 = vst [vmem:[%s172 + $0x18] sm:$0xff] %v287
      %320 = vst [vmem:[%s172 + $0x20] sm:$0xff] %v288
      %321 = vst [vmem:[%s172 + $0x28] sm:$0xff] %v289
      %322 = vst [vmem:[%s172 + $0x30] sm:$0xff] %v290
      %323 = vst [vmem:[%s172 + $0x38] sm:$0xff] %v291
      %324 = vst [vmem:[%s172 + $0x40] sm:$0xff] %v292
      %325 = vst [vmem:[%s172 + $0x48] sm:$0xff] %v293
      %326 = vst [vmem:[%s172 + $0x50] sm:$0xff] %v294
      %327 = vst [vmem:[%s172 + $0x58] sm:$0xff] %v295
      %328 = vst [vmem:[%s172 + $0x60] sm:$0xff] %v296
      %329 = vst [vmem:[%s172 + $0x68] sm:$0xff] %v297
      %330 = vst [vmem:[%s172 + $0x70] sm:$0xff] %v298
      %331 = vst [vmem:[%s172 + $0x78] sm:$0xff] %v299
      %332 = vst [vmem:[%s172 + $0x80] sm:$0xff] %v300
      %333 = vst [vmem:[%s172 + $0x88] sm:$0xff] %v301
      %334 = vst [vmem:[%s172 + $0x90] sm:$0xff] %v302
      %335 = vst [vmem:[%s172 + $0x98] sm:$0xff] %v303
      %336 = vst [vmem:[%s172 + $0xa0] sm:$0xff] %v304
      %337 = vst [vmem:[%s172 + $0xa8] sm:$0xff] %v305
      %338 = vst [vmem:[%s172 + $0xb0] sm:$0xff] %v306
      %339 = vst [vmem:[%s172 + $0xb8] sm:$0xff] %v307
      %340 = vst [vmem:[%s172 + $0xc0] sm:$0xff] %v308
      %341 = vst [vmem:[%s172 + $0xc8] sm:$0xff] %v309
      %342 = vst [vmem:[%s172 + $0xd0] sm:$0xff] %v310
      %343 = vst [vmem:[%s172 + $0xd8] sm:$0xff] %v311
      %344 = vst [vmem:[%s172 + $0xe0] sm:$0xff] %v312
      %345 = vst [vmem:[%s172 + $0xe8] sm:$0xff] %v313
      %346 = vst [vmem:[%s172 + $0xf0] sm:$0xff] %v314
      %347 = vst [vmem:[%s172 + $0xf8] sm:$0xff] %v315
      %s348 = smul.u32 32, %s14
      %p349 = scmp.lt.s32.totalorder %s348, 63
      %s350 = scalar_select %p349, %s348, 63
      %s351 = smul.addr %s350, 8
      %s352 = scalar_lea.vmem %s3, %s351
      // Predicated region
      $region33: #{_lambda_.20} parent=31 // pred_check
        %p353 = pneg %p100
      $region34: #{_lambda_.20} parent=31 // pred_check_branch
        %355 = sbr.rel (%p353) target = $region36
      $region35: #{_lambda_.20} parent=31 // pred_region
        %s356 = smul.u32 32, %s14
      $region36: #{_lambda_.20} parent=31 // pred_fallthru
        _
    $region32: #{_lambda_.20} parent=5 // pred_fallthru
      _
    %p357 = scmp.le.s32.totalorder 2, %s9
    // Predicated region
    $region37: #{_lambda_.20} parent=5 // pred_check
      %p358 = pneg %p357
    $region38: #{_lambda_.20} parent=5 // pred_check_branch
      %360 = sbr.rel (%p358) target = $region40
    $region39: #{_lambda_.20} parent=5 // pred_region
      %s361 = ssub.s32 %s9, 2
      // Predicated region
      $region41: #{_lambda_.20} parent=39 // pred_check
        %p362 = pneg %p106
      $region42: #{_lambda_.20} parent=39 // pred_check_branch
        %364 = sbr.rel (%p362) target = $region44
      $region43: #{_lambda_.20} parent=39 // pred_region
        %s365 = smul.u32 32, %s15
        %p366 = scmp.lt.s32.totalorder %s365, 63
        %s367 = scalar_select %p366, %s365, 63
        %s368 = smul.addr %s367, 8
        %s369 = scalar_lea.vmem %s3, %s368
      $region44: #{_lambda_.20} parent=39 // pred_fallthru
        _
    $region40: #{_lambda_.20} parent=5 // pred_fallthru
      _
  $region6: #{_lambda_.20} parent=0 // loop_footer
    %s13 = sadd.s32 1, %s9
  $region7: #{_lambda_.20} parent=0 // loop_footer_branch
    %8 = sbr.rel target = $region3
  $region8: #{_lambda_.20} parent=0 // loop_exit
    _

// kernel: _lambda_.19
$region0: #{_lambda_.19}
  #allocation0 [shape = 'u32[]', space=smem, size = 0x4, offset = 0x4, fixed_abs, tag = 'smem constant byte address 0x4 - core index']
  #allocation1 [shape = 'u32[144,128]{1,0:T(1,128)}', space=vmem, size = 0x12000, scoped, tag = 'internal scratch']
  %s0 = inlined_call_operand.vmem [shape: f32[512,1152], index: 0, kind: input, shape index: {}]
  %s1 = inlined_call_operand.vmem [shape: f32[1152,128], index: 1, kind: input, shape index: {}]
  %s2 = inlined_call_operand.vmem [shape: f32[512,128], index: 2, kind: output, shape index: {0}]
  %s3 = inlined_call_operand.vmem [shape: f32[16,128], index: 3, kind: output, shape index: {1}]
  %s4 = inlined_call_operand.vmem [shape: f32[16,128], index: 4, kind: output, shape index: {2}]
  %5 = xla_tuple %s2, %s3, %s4
  %s6 = sld [smem:[#allocation0]]
  $region57: #{_lambda_.19} parent=0
    _
  %s8 = ssub.s32 1, %s6
  %s9 = scalar_select 0, %s8, %s6
  loop: start=0, step=1, limit=4
  $region2: #{_lambda_.19} parent=0 // loop_pre_header
    _
  $region3: #{_lambda_.19} parent=0 // loop_header
    %s11 = sphi 0, %s15
    %p12 = scmp.ge.s32.totalorder %s11, 4
    %s21 = sphi 0, %s23
    %s24 = sphi 0, %s21
    %s25 = sphi 0, %s24
    %s41 = sphi 0, %s25
    %s45 = sphi 0, %s45
    %s47 = sphi 0, %s45
    %s48 = sphi 0, %s47
    %s62 = sphi 0, %s48
    %s68 = sphi 0, %s70
    %s71 = sphi 0, %s68
    %s72 = sphi 0, %s71
    %s88 = sphi 0, %s72
    %s94 = sphi 0, %s96
    %s97 = sphi 0, %s94
    %s98 = sphi 0, %s97
    %s114 = sphi 0, %s98
    %s120 = sphi 0, %s122
    %s123 = sphi 0, %s120
    %s124 = sphi 0, %s123
    %s140 = sphi 0, %s124
  $region4: #{_lambda_.19} parent=0 // loop_header_branch
    %14 = sbr.rel (%p12) target = $region8
  $region5: #{_lambda_.19} parent=0 // loop_body
    %s16 = ssub.s32 %s11, 1
    %s17 = ssub.s32 %s11, 2
    %s18 = sadd.s32 %s11, 1
    %s19 = ssub.s32 %s11, %s18
    %p20 = scmp.eq.s32.totalorder %s19, 0
    %s22 = sadd.s32 %s21, 1
    %s23 = scalar_select %p20, %s21, %s22
    %p26 = pneg %p20
    %p27 = scmp.eq.s32.totalorder %s11, 1
    %p28 = por %p26, %p27
    %p29 = scmp.ne.s32.totalorder %s21, %s24
    %p30 = scmp.eq.s32.totalorder %s11, 0
    %p31 = por %p29, %p30
    %p32 = scmp.ne.s32.totalorder %s21, %s24
    %p33 = scmp.eq.s32.totalorder %s16, 1
    %p34 = por %p32, %p33
    %p35 = scmp.ne.s32.totalorder %s24, %s25
    %p36 = scmp.eq.s32.totalorder %s16, 0
    %p37 = por %p35, %p36
    %p38 = scmp.ne.s32.totalorder %s24, %s25
    %p39 = scmp.eq.s32.totalorder %s17, 1
    %p40 = por %p38, %p39
    %p42 = scmp.ne.s32.totalorder %s25, %s41
    %p43 = scmp.eq.s32.totalorder %s17, 0
    %p44 = por %p42, %p43
    %s46 = sadd.s32 %s45, 1
    %p49 = scmp.eq.s32.totalorder %s11, 1
    %p50 = scmp.ne.s32.totalorder %s45, %s47
    %p51 = scmp.eq.s32.totalorder %s11, 0
    %p52 = por %p50, %p51
    %p53 = scmp.ne.s32.totalorder %s45, %s47
    %p54 = scmp.eq.s32.totalorder %s16, 1
    %p55 = por %p53, %p54
    %p56 = scmp.ne.s32.totalorder %s47, %s48
    %p57 = scmp.eq.s32.totalorder %s16, 0
    %p58 = por %p56, %p57
    %p59 = scmp.ne.s32.totalorder %s47, %s48
    %p60 = scmp.eq.s32.totalorder %s17, 1
    %p61 = por %p59, %p60
    %p63 = scmp.ne.s32.totalorder %s48, %s62
    %p64 = scmp.eq.s32.totalorder %s17, 0
    %p65 = por %p63, %p64
    %s66 = ssub.s32 %s11, %s18
    %p67 = scmp.eq.s32.totalorder %s66, 0
    %s69 = sadd.s32 %s68, 1
    %s70 = scalar_select %p67, %s68, %s69
    %p73 = pneg %p67
    %p74 = scmp.eq.s32.totalorder %s11, 1
    %p75 = por %p73, %p74
    %p76 = scmp.ne.s32.totalorder %s68, %s71
    %p77 = scmp.eq.s32.totalorder %s11, 0
    %p78 = por %p76, %p77
    %p79 = scmp.ne.s32.totalorder %s68, %s71
    %p80 = scmp.eq.s32.totalorder %s16, 1
    %p81 = por %p79, %p80
    %p82 = scmp.ne.s32.totalorder %s71, %s72
    %p83 = scmp.eq.s32.totalorder %s16, 0
    %p84 = por %p82, %p83
    %p85 = scmp.ne.s32.totalorder %s71, %s72
    %p86 = scmp.eq.s32.totalorder %s17, 1
    %p87 = por %p85, %p86
    %p89 = scmp.ne.s32.totalorder %s72, %s88
    %p90 = scmp.eq.s32.totalorder %s17, 0
    %p91 = por %p89, %p90
    %s92 = ssub.s32 %s11, %s18
    %p93 = scmp.eq.s32.totalorder %s92, 0
    %s95 = sadd.s32 %s94, 1
    %s96 = scalar_select %p93, %s94, %s95
    %p99 = pneg %p93
    %p100 = scmp.eq.s32.totalorder %s11, 1
    %p101 = por %p99, %p100
    %p102 = scmp.ne.s32.totalorder %s94, %s97
    %p103 = scmp.eq.s32.totalorder %s11, 0
    %p104 = por %p102, %p103
    %p105 = scmp.ne.s32.totalorder %s94, %s97
    %p106 = scmp.eq.s32.totalorder %s16, 1
    %p107 = por %p105, %p106
    %p108 = scmp.ne.s32.totalorder %s97, %s98
    %p109 = scmp.eq.s32.totalorder %s16, 0
    %p110 = por %p108, %p109
    %p111 = scmp.ne.s32.totalorder %s97, %s98
    %p112 = scmp.eq.s32.totalorder %s17, 1
    %p113 = por %p111, %p112
    %p115 = scmp.ne.s32.totalorder %s98, %s114
    %p116 = scmp.eq.s32.totalorder %s17, 0
    %p117 = por %p115, %p116
    %s118 = ssub.s32 %s11, %s18
    %p119 = scmp.eq.s32.totalorder %s118, 0
    %s121 = sadd.s32 %s120, 1
    %s122 = scalar_select %p119, %s120, %s121
    %p125 = pneg %p119
    %p126 = scmp.eq.s32.totalorder %s11, 1
    %p127 = por %p125, %p126
    %p128 = scmp.ne.s32.totalorder %s120, %s123
    %p129 = scmp.eq.s32.totalorder %s11, 0
    %p130 = por %p128, %p129
    %p131 = scmp.ne.s32.totalorder %s120, %s123
    %p132 = scmp.eq.s32.totalorder %s16, 1
    %p133 = por %p131, %p132
    %p134 = scmp.ne.s32.totalorder %s123, %s124
    %p135 = scmp.eq.s32.totalorder %s16, 0
    %p136 = por %p134, %p135
    %p137 = scmp.ne.s32.totalorder %s123, %s124
    %p138 = scmp.eq.s32.totalorder %s17, 1
    %p139 = por %p137, %p138
    %p141 = scmp.ne.s32.totalorder %s124, %s140
    %p142 = scmp.eq.s32.totalorder %s17, 0
    %p143 = por %p141, %p142
    %p144 = scmp.le.s32.totalorder 1, %s11
    %p145 = scmp.lt.s32.totalorder %s11, 3
    %p146 = pnand %p144, %p145
    %p147 = pneg %p146
    // Predicated region
    $region9: #{_lambda_.19} parent=5 // pred_check
      _
    $region10: #{_lambda_.19} parent=5 // pred_check_branch
      %149 = sbr.rel (%p146) target = $region12
    $region11: #{_lambda_.19} parent=5 // pred_region
      %s150 = ssub.s32 %s11, 1
      // Predicated region
      $region13: #{_lambda_.19} parent=11 // pred_check
        %p151 = pneg %p58
      $region14: #{_lambda_.19} parent=11 // pred_check_branch
        %153 = sbr.rel (%p151) target = $region16
      $region15: #{_lambda_.19} parent=11 // pred_region
        _
      $region16: #{_lambda_.19} parent=11 // pred_fallthru
        _
    $region12: #{_lambda_.19} parent=5 // pred_fallthru
      _
    %p154 = scmp.lt.s32.totalorder %s11, 2
    // Predicated region
    $region17: #{_lambda_.19} parent=5 // pred_check
      %p155 = pneg %p154
    $region18: #{_lambda_.19} parent=5 // pred_check_branch
      %157 = sbr.rel (%p155) target = $region20
    $region19: #{_lambda_.19} parent=5 // pred_region
      // Predicated region
      $region21: #{_lambda_.19} parent=19 // pred_check
        %p158 = pneg %p31
      $region22: #{_lambda_.19} parent=19 // pred_check_branch
        %160 = sbr.rel (%p158) target = $region24
      $region23: #{_lambda_.19} parent=19 // pred_region
        %s161 = smul.u32 32, %s11
        %p162 = scmp.lt.s32.totalorder %s161, 63
        %s163 = scalar_select %p162, %s161, 63
        %s164 = smul.addr %s163, 9
        %s165 = smul.addr %s164, 8
        %s166 = scalar_lea.vmem %s0, %s165
        %s167 = smul.u32 32, %s11
      $region24: #{_lambda_.19} parent=19 // pred_fallthru
        _
    $region20: #{_lambda_.19} parent=5 // pred_fallthru
      _
    %p168 = scmp.le.s32.totalorder 1, %s11
    %p169 = scmp.lt.s32.totalorder %s11, 3
    %p170 = pnand %p168, %p169
    %p171 = pneg %p170
    // Predicated region
    $region25: #{_lambda_.19} parent=5 // pred_check
      _
    $region26: #{_lambda_.19} parent=5 // pred_check_branch
      %173 = sbr.rel (%p170) target = $region28
    $region27: #{_lambda_.19} parent=5 // pred_region
      %s174 = ssub.s32 %s11, 1
      %s175 = smul.u32 32, %s16
      %p176 = scmp.lt.s32.totalorder %s175, 63
      %s177 = scalar_select %p176, %s175, 63
      %s178 = smul.addr %s177, 9
      %s179 = smul.addr %s178, 8
      %s180 = scalar_lea.vmem %s0, %s179
      %p181 = pneg %p37
      %p182 = pneg %p34
      %p183 = pneg %p58
      %p184 = pneg %p55
      %p185 = pneg %p84
      %p186 = pneg %p81
      %s187 = smul.u32 32, %s16
      %p188 = scmp.lt.s32.totalorder %s187, 63
      %s189 = scalar_select %p188, %s187, 63
      %s190 = smul.addr %s189, 8
      %s191 = scalar_lea.vmem %s2, %s190
      %p192 = pneg %p110
      %p193 = pneg %p107
      %p194 = scmp.lt.s32.totalorder %s16, 1
      %s195 = scalar_select %p194, %s16, 1
      %s196 = smul.addr %s195, 8
      %s197 = scalar_lea.vmem %s3, %s196
      %p198 = pneg %p136
      %p199 = pneg %p133
      %p200 = scmp.lt.s32.totalorder %s16, 1
      %s201 = scalar_select %p200, %s16, 1
      %s202 = smul.addr %s201, 8
      %s203 = scalar_lea.vmem %s4, %s202
      %s204 = smul.u32 32, %s16
      %p205 = scmp.lt.s32.totalorder %s204, 63
      %s206 = scalar_select %p205, %s204, 63
      %s207 = smul.addr %s206, 9
      %s208 = smul.addr %s207, 8
      %s209 = scalar_lea.vmem %s0, %s208
      %s210 = smul.u32 32, %s16
      %s211 = smul.u32 32, %s16
      %p212 = scmp.lt.s32.totalorder %s211, 63
      %s213 = scalar_select %p212, %s211, 63
      %s214 = smul.addr %s213, 8
      %s215 = scalar_lea.vmem %s2, %s214
      %s216 = smul.u32 32, %s16
      %p217 = scmp.lt.s32.totalorder %s16, 1
      %s218 = scalar_select %p217, %s16, 1
      %s219 = smul.addr %s218, 8
      %s220 = scalar_lea.vmem %s3, %s219
      %p221 = scmp.lt.s32.totalorder %s16, 1
      %s222 = scalar_select %p221, %s16, 1
      %s223 = smul.addr %s222, 8
      %s224 = scalar_lea.vmem %s4, %s223
      %v225 = vld [vmem:[%s209] sm:$0xff]
      %v226 = vld [vmem:[%s209 + $0x8] sm:$0xff]
      %v227 = vld [vmem:[%s209 + $0x10] sm:$0xff]
      %v228 = vld [vmem:[%s209 + $0x18] sm:$0xff]
      %v229 = vld [vmem:[%s209 + $0x20] sm:$0xff]
      %v230 = vld [vmem:[%s209 + $0x28] sm:$0xff]
      %v231 = vld [vmem:[%s209 + $0x30] sm:$0xff]
      %v232 = vld [vmem:[%s209 + $0x38] sm:$0xff]
      %v233 = vld [vmem:[%s209 + $0x40] sm:$0xff]
      %v234 = vld [vmem:[%s209 + $0x48] sm:$0xff]
      %v235 = vld [vmem:[%s209 + $0x50] sm:$0xff]
      %v236 = vld [vmem:[%s209 + $0x58] sm:$0xff]
      %v237 = vld [vmem:[%s209 + $0x60] sm:$0xff]
      %v238 = vld [vmem:[%s209 + $0x68] sm:$0xff]
      %v239 = vld [vmem:[%s209 + $0x70] sm:$0xff]
      %v240 = vld [vmem:[%s209 + $0x78] sm:$0xff]
      %v241 = vld [vmem:[%s209 + $0x80] sm:$0xff]
      %v242 = vld [vmem:[%s209 + $0x88] sm:$0xff]
      %v243 = vld [vmem:[%s209 + $0x90] sm:$0xff]
      %v244 = vld [vmem:[%s209 + $0x98] sm:$0xff]
      %v245 = vld [vmem:[%s209 + $0xa0] sm:$0xff]
      %v246 = vld [vmem:[%s209 + $0xa8] sm:$0xff]
      %v247 = vld [vmem:[%s209 + $0xb0] sm:$0xff]
      %v248 = vld [vmem:[%s209 + $0xb8] sm:$0xff]
      %v249 = vld [vmem:[%s209 + $0xc0] sm:$0xff]
      %v250 = vld [vmem:[%s209 + $0xc8] sm:$0xff]
      %v251 = vld [vmem:[%s209 + $0xd0] sm:$0xff]
      %v252 = vld [vmem:[%s209 + $0xd8] sm:$0xff]
      %v253 = vld [vmem:[%s209 + $0xe0] sm:$0xff]
      %v254 = vld [vmem:[%s209 + $0xe8] sm:$0xff]
      %v255 = vld [vmem:[%s209 + $0xf0] sm:$0xff]
      %v256 = vld [vmem:[%s209 + $0xf8] sm:$0xff]
      %v257 = vld [vmem:[%s209 + $0x100] sm:$0xff]
      %v258 = vld [vmem:[%s209 + $0x108] sm:$0xff]
      %v259 = vld [vmem:[%s209 + $0x110] sm:$0xff]
      %v260 = vld [vmem:[%s209 + $0x118] sm:$0xff]
      %v261 = vld [vmem:[%s209 + $0x120] sm:$0xff]
      %v262 = vld [vmem:[%s209 + $0x128] sm:$0xff]
      %v263 = vld [vmem:[%s209 + $0x130] sm:$0xff]
      %v264 = vld [vmem:[%s209 + $0x138] sm:$0xff]
      %v265 = vld [vmem:[%s209 + $0x140] sm:$0xff]
      %v266 = vld [vmem:[%s209 + $0x148] sm:$0xff]
      %v267 = vld [vmem:[%s209 + $0x150] sm:$0xff]
      %v268 = vld [vmem:[%s209 + $0x158] sm:$0xff]
      %v269 = vld [vmem:[%s209 + $0x160] sm:$0xff]
      %v270 = vld [vmem:[%s209 + $0x168] sm:$0xff]
      %v271 = vld [vmem:[%s209 + $0x170] sm:$0xff]
      %v272 = vld [vmem:[%s209 + $0x178] sm:$0xff]
      %v273 = vld [vmem:[%s209 + $0x180] sm:$0xff]
      %v274 = vld [vmem:[%s209 + $0x188] sm:$0xff]
      %v275 = vld [vmem:[%s209 + $0x190] sm:$0xff]
      %v276 = vld [vmem:[%s209 + $0x198] sm:$0xff]
      %v277 = vld [vmem:[%s209 + $0x1a0] sm:$0xff]
      %v278 = vld [vmem:[%s209 + $0x1a8] sm:$0xff]
      %v279 = vld [vmem:[%s209 + $0x1b0] sm:$0xff]
      %v280 = vld [vmem:[%s209 + $0x1b8] sm:$0xff]
      %v281 = vld [vmem:[%s209 + $0x1c0] sm:$0xff]
      %v282 = vld [vmem:[%s209 + $0x1c8] sm:$0xff]
      %v283 = vld [vmem:[%s209 + $0x1d0] sm:$0xff]
      %v284 = vld [vmem:[%s209 + $0x1d8] sm:$0xff]
      %v285 = vld [vmem:[%s209 + $0x1e0] sm:$0xff]
      %v286 = vld [vmem:[%s209 + $0x1e8] sm:$0xff]
      %v287 = vld [vmem:[%s209 + $0x1f0] sm:$0xff]
      %v288 = vld [vmem:[%s209 + $0x1f8] sm:$0xff]
      %v289 = vld [vmem:[%s209 + $0x200] sm:$0xff]
      %v290 = vld [vmem:[%s209 + $0x208] sm:$0xff]
      %v291 = vld [vmem:[%s209 + $0x210] sm:$0xff]
      %v292 = vld [vmem:[%s209 + $0x218] sm:$0xff]
      %v293 = vld [vmem:[%s209 + $0x220] sm:$0xff]
      %v294 = vld [vmem:[%s209 + $0x228] sm:$0xff]
      %v295 = vld [vmem:[%s209 + $0x230] sm:$0xff]
      %v296 = vld [vmem:[%s209 + $0x238] sm:$0xff]
      %v297 = vld [vmem:[%s209 + $0x240] sm:$0xff]
      %v298 = vld [vmem:[%s209 + $0x248] sm:$0xff]
      %v299 = vld [vmem:[%s209 + $0x250] sm:$0xff]
      %v300 = vld [vmem:[%s209 + $0x258] sm:$0xff]
      %v301 = vld [vmem:[%s209 + $0x260] sm:$0xff]
      %v302 = vld [vmem:[%s209 + $0x268] sm:$0xff]
      %v303 = vld [vmem:[%s209 + $0x270] sm:$0xff]
      %v304 = vld [vmem:[%s209 + $0x278] sm:$0xff]
      %v305 = vld [vmem:[%s209 + $0x280] sm:$0xff]
      %v306 = vld [vmem:[%s209 + $0x288] sm:$0xff]
      %v307 = vld [vmem:[%s209 + $0x290] sm:$0xff]
      %v308 = vld [vmem:[%s209 + $0x298] sm:$0xff]
      %v309 = vld [vmem:[%s209 + $0x2a0] sm:$0xff]
      %v310 = vld [vmem:[%s209 + $0x2a8] sm:$0xff]
      %v311 = vld [vmem:[%s209 + $0x2b0] sm:$0xff]
      %v312 = vld [vmem:[%s209 + $0x2b8] sm:$0xff]
      %v313 = vld [vmem:[%s209 + $0x2c0] sm:$0xff]
      %v314 = vld [vmem:[%s209 + $0x2c8] sm:$0xff]
      %v315 = vld [vmem:[%s209 + $0x2d0] sm:$0xff]
      %v316 = vld [vmem:[%s209 + $0x2d8] sm:$0xff]
      %v317 = vld [vmem:[%s209 + $0x2e0] sm:$0xff]
      %v318 = vld [vmem:[%s209 + $0x2e8] sm:$0xff]
      %v319 = vld [vmem:[%s209 + $0x2f0] sm:$0xff]
      %v320 = vld [vmem:[%s209 + $0x2f8] sm:$0xff]
      %v321 = vld [vmem:[%s209 + $0x300] sm:$0xff]
      %v322 = vld [vmem:[%s209 + $0x308] sm:$0xff]
      %v323 = vld [vmem:[%s209 + $0x310] sm:$0xff]
      %v324 = vld [vmem:[%s209 + $0x318] sm:$0xff]
      %v325 = vld [vmem:[%s209 + $0x320] sm:$0xff]
      %v326 = vld [vmem:[%s209 + $0x328] sm:$0xff]
      %v327 = vld [vmem:[%s209 + $0x330] sm:$0xff]
      %v328 = vld [vmem:[%s209 + $0x338] sm:$0xff]
      %v329 = vld [vmem:[%s209 + $0x340] sm:$0xff]
      %v330 = vld [vmem:[%s209 + $0x348] sm:$0xff]
      %v331 = vld [vmem:[%s209 + $0x350] sm:$0xff]
      %v332 = vld [vmem:[%s209 + $0x358] sm:$0xff]
      %v333 = vld [vmem:[%s209 + $0x360] sm:$0xff]
      %v334 = vld [vmem:[%s209 + $0x368] sm:$0xff]
      %v335 = vld [vmem:[%s209 + $0x370] sm:$0xff]
      %v336 = vld [vmem:[%s209 + $0x378] sm:$0xff]
      %v337 = vld [vmem:[%s209 + $0x380] sm:$0xff]
      %v338 = vld [vmem:[%s209 + $0x388] sm:$0xff]
      %v339 = vld [vmem:[%s209 + $0x390] sm:$0xff]
      %v340 = vld [vmem:[%s209 + $0x398] sm:$0xff]
      %v341 = vld [vmem:[%s209 + $0x3a0] sm:$0xff]
      %v342 = vld [vmem:[%s209 + $0x3a8] sm:$0xff]
      %v343 = vld [vmem:[%s209 + $0x3b0] sm:$0xff]
      %v344 = vld [vmem:[%s209 + $0x3b8] sm:$0xff]
      %v345 = vld [vmem:[%s209 + $0x3c0] sm:$0xff]
      %v346 = vld [vmem:[%s209 + $0x3c8] sm:$0xff]
      %v347 = vld [vmem:[%s209 + $0x3d0] sm:$0xff]
      %v348 = vld [vmem:[%s209 + $0x3d8] sm:$0xff]
      %v349 = vld [vmem:[%s209 + $0x3e0] sm:$0xff]
      %v350 = vld [vmem:[%s209 + $0x3e8] sm:$0xff]
      %v351 = vld [vmem:[%s209 + $0x3f0] sm:$0xff]
      %v352 = vld [vmem:[%s209 + $0x3f8] sm:$0xff]
      %v353 = vld [vmem:[%s209 + $0x400] sm:$0xff]
      %v354 = vld [vmem:[%s209 + $0x408] sm:$0xff]
      %v355 = vld [vmem:[%s209 + $0x410] sm:$0xff]
      %v356 = vld [vmem:[%s209 + $0x418] sm:$0xff]
      %v357 = vld [vmem:[%s209 + $0x420] sm:$0xff]
      %v358 = vld [vmem:[%s209 + $0x428] sm:$0xff]
      %v359 = vld [vmem:[%s209 + $0x430] sm:$0xff]
      %v360 = vld [vmem:[%s209 + $0x438] sm:$0xff]
      %v361 = vld [vmem:[%s209 + $0x440] sm:$0xff]
      %v362 = vld [vmem:[%s209 + $0x448] sm:$0xff]
      %v363 = vld [vmem:[%s209 + $0x450] sm:$0xff]
      %v364 = vld [vmem:[%s209 + $0x458] sm:$0xff]
      %v365 = vld [vmem:[%s209 + $0x460] sm:$0xff]
      %v366 = vld [vmem:[%s209 + $0x468] sm:$0xff]
      %v367 = vld [vmem:[%s209 + $0x470] sm:$0xff]
      %v368 = vld [vmem:[%s209 + $0x478] sm:$0xff]
      %v369 = vld [vmem:[%s209 + $0x480] sm:$0xff]
      %v370 = vld [vmem:[%s209 + $0x488] sm:$0xff]
      %v371 = vld [vmem:[%s209 + $0x490] sm:$0xff]
      %v372 = vld [vmem:[%s209 + $0x498] sm:$0xff]
      %v373 = vld [vmem:[%s209 + $0x4a0] sm:$0xff]
      %v374 = vld [vmem:[%s209 + $0x4a8] sm:$0xff]
      %v375 = vld [vmem:[%s209 + $0x4b0] sm:$0xff]
      %v376 = vld [vmem:[%s209 + $0x4b8] sm:$0xff]
      %v377 = vld [vmem:[%s209 + $0x4c0] sm:$0xff]
      %v378 = vld [vmem:[%s209 + $0x4c8] sm:$0xff]
      %v379 = vld [vmem:[%s209 + $0x4d0] sm:$0xff]
      %v380 = vld [vmem:[%s209 + $0x4d8] sm:$0xff]
      %v381 = vld [vmem:[%s209 + $0x4e0] sm:$0xff]
      %v382 = vld [vmem:[%s209 + $0x4e8] sm:$0xff]
      %v383 = vld [vmem:[%s209 + $0x4f0] sm:$0xff]
      %v384 = vld [vmem:[%s209 + $0x4f8] sm:$0xff]
      %v385 = vld [vmem:[%s209 + $0x500] sm:$0xff]
      %v386 = vld [vmem:[%s209 + $0x508] sm:$0xff]
      %v387 = vld [vmem:[%s209 + $0x510] sm:$0xff]
      %v388 = vld [vmem:[%s209 + $0x518] sm:$0xff]
      %v389 = vld [vmem:[%s209 + $0x520] sm:$0xff]
      %v390 = vld [vmem:[%s209 + $0x528] sm:$0xff]
      %v391 = vld [vmem:[%s209 + $0x530] sm:$0xff]
      %v392 = vld [vmem:[%s209 + $0x538] sm:$0xff]
      %v393 = vld [vmem:[%s209 + $0x540] sm:$0xff]
      %v394 = vld [vmem:[%s209 + $0x548] sm:$0xff]
      %v395 = vld [vmem:[%s209 + $0x550] sm:$0xff]
      %v396 = vld [vmem:[%s209 + $0x558] sm:$0xff]
      %v397 = vld [vmem:[%s209 + $0x560] sm:$0xff]
      %v398 = vld [vmem:[%s209 + $0x568] sm:$0xff]
      %v399 = vld [vmem:[%s209 + $0x570] sm:$0xff]
      %v400 = vld [vmem:[%s209 + $0x578] sm:$0xff]
      %v401 = vld [vmem:[%s209 + $0x580] sm:$0xff]
      %v402 = vld [vmem:[%s209 + $0x588] sm:$0xff]
      %v403 = vld [vmem:[%s209 + $0x590] sm:$0xff]
      %v404 = vld [vmem:[%s209 + $0x598] sm:$0xff]
      %v405 = vld [vmem:[%s209 + $0x5a0] sm:$0xff]
      %v406 = vld [vmem:[%s209 + $0x5a8] sm:$0xff]
      %v407 = vld [vmem:[%s209 + $0x5b0] sm:$0xff]
      %v408 = vld [vmem:[%s209 + $0x5b8] sm:$0xff]
      %v409 = vld [vmem:[%s209 + $0x5c0] sm:$0xff]
      %v410 = vld [vmem:[%s209 + $0x5c8] sm:$0xff]
      %v411 = vld [vmem:[%s209 + $0x5d0] sm:$0xff]
      %v412 = vld [vmem:[%s209 + $0x5d8] sm:$0xff]
      %v413 = vld [vmem:[%s209 + $0x5e0] sm:$0xff]
      %v414 = vld [vmem:[%s209 + $0x5e8] sm:$0xff]
      %v415 = vld [vmem:[%s209 + $0x5f0] sm:$0xff]
      %v416 = vld [vmem:[%s209 + $0x5f8] sm:$0xff]
      %v417 = vld [vmem:[%s209 + $0x600] sm:$0xff]
      %v418 = vld [vmem:[%s209 + $0x608] sm:$0xff]
      %v419 = vld [vmem:[%s209 + $0x610] sm:$0xff]
      %v420 = vld [vmem:[%s209 + $0x618] sm:$0xff]
      %v421 = vld [vmem:[%s209 + $0x620] sm:$0xff]
      %v422 = vld [vmem:[%s209 + $0x628] sm:$0xff]
      %v423 = vld [vmem:[%s209 + $0x630] sm:$0xff]
      %v424 = vld [vmem:[%s209 + $0x638] sm:$0xff]
      %v425 = vld [vmem:[%s209 + $0x640] sm:$0xff]
      %v426 = vld [vmem:[%s209 + $0x648] sm:$0xff]
      %v427 = vld [vmem:[%s209 + $0x650] sm:$0xff]
      %v428 = vld [vmem:[%s209 + $0x658] sm:$0xff]
      %v429 = vld [vmem:[%s209 + $0x660] sm:$0xff]
      %v430 = vld [vmem:[%s209 + $0x668] sm:$0xff]
      %v431 = vld [vmem:[%s209 + $0x670] sm:$0xff]
      %v432 = vld [vmem:[%s209 + $0x678] sm:$0xff]
      %v433 = vld [vmem:[%s209 + $0x680] sm:$0xff]
      %v434 = vld [vmem:[%s209 + $0x688] sm:$0xff]
      %v435 = vld [vmem:[%s209 + $0x690] sm:$0xff]
      %v436 = vld [vmem:[%s209 + $0x698] sm:$0xff]
      %v437 = vld [vmem:[%s209 + $0x6a0] sm:$0xff]
      %v438 = vld [vmem:[%s209 + $0x6a8] sm:$0xff]
      %v439 = vld [vmem:[%s209 + $0x6b0] sm:$0xff]
      %v440 = vld [vmem:[%s209 + $0x6b8] sm:$0xff]
      %v441 = vld [vmem:[%s209 + $0x6c0] sm:$0xff]
      %v442 = vld [vmem:[%s209 + $0x6c8] sm:$0xff]
      %v443 = vld [vmem:[%s209 + $0x6d0] sm:$0xff]
      %v444 = vld [vmem:[%s209 + $0x6d8] sm:$0xff]
      %v445 = vld [vmem:[%s209 + $0x6e0] sm:$0xff]
      %v446 = vld [vmem:[%s209 + $0x6e8] sm:$0xff]
      %v447 = vld [vmem:[%s209 + $0x6f0] sm:$0xff]
      %v448 = vld [vmem:[%s209 + $0x6f8] sm:$0xff]
      %v449 = vld [vmem:[%s209 + $0x700] sm:$0xff]
      %v450 = vld [vmem:[%s209 + $0x708] sm:$0xff]
      %v451 = vld [vmem:[%s209 + $0x710] sm:$0xff]
      %v452 = vld [vmem:[%s209 + $0x718] sm:$0xff]
      %v453 = vld [vmem:[%s209 + $0x720] sm:$0xff]
      %v454 = vld [vmem:[%s209 + $0x728] sm:$0xff]
      %v455 = vld [vmem:[%s209 + $0x730] sm:$0xff]
      %v456 = vld [vmem:[%s209 + $0x738] sm:$0xff]
      %v457 = vld [vmem:[%s209 + $0x740] sm:$0xff]
      %v458 = vld [vmem:[%s209 + $0x748] sm:$0xff]
      %v459 = vld [vmem:[%s209 + $0x750] sm:$0xff]
      %v460 = vld [vmem:[%s209 + $0x758] sm:$0xff]
      %v461 = vld [vmem:[%s209 + $0x760] sm:$0xff]
      %v462 = vld [vmem:[%s209 + $0x768] sm:$0xff]
      %v463 = vld [vmem:[%s209 + $0x770] sm:$0xff]
      %v464 = vld [vmem:[%s209 + $0x778] sm:$0xff]
      %v465 = vld [vmem:[%s209 + $0x780] sm:$0xff]
      %v466 = vld [vmem:[%s209 + $0x788] sm:$0xff]
      %v467 = vld [vmem:[%s209 + $0x790] sm:$0xff]
      %v468 = vld [vmem:[%s209 + $0x798] sm:$0xff]
      %v469 = vld [vmem:[%s209 + $0x7a0] sm:$0xff]
      %v470 = vld [vmem:[%s209 + $0x7a8] sm:$0xff]
      %v471 = vld [vmem:[%s209 + $0x7b0] sm:$0xff]
      %v472 = vld [vmem:[%s209 + $0x7b8] sm:$0xff]
      %v473 = vld [vmem:[%s209 + $0x7c0] sm:$0xff]
      %v474 = vld [vmem:[%s209 + $0x7c8] sm:$0xff]
      %v475 = vld [vmem:[%s209 + $0x7d0] sm:$0xff]
      %v476 = vld [vmem:[%s209 + $0x7d8] sm:$0xff]
      %v477 = vld [vmem:[%s209 + $0x7e0] sm:$0xff]
      %v478 = vld [vmem:[%s209 + $0x7e8] sm:$0xff]
      %v479 = vld [vmem:[%s209 + $0x7f0] sm:$0xff]
      %v480 = vld [vmem:[%s209 + $0x7f8] sm:$0xff]
      %v481 = vld [vmem:[%s209 + $0x800] sm:$0xff]
      %v482 = vld [vmem:[%s209 + $0x808] sm:$0xff]
      %v483 = vld [vmem:[%s209 + $0x810] sm:$0xff]
      %v484 = vld [vmem:[%s209 + $0x818] sm:$0xff]
      %v485 = vld [vmem:[%s209 + $0x820] sm:$0xff]
      %v486 = vld [vmem:[%s209 + $0x828] sm:$0xff]
      %v487 = vld [vmem:[%s209 + $0x830] sm:$0xff]
      %v488 = vld [vmem:[%s209 + $0x838] sm:$0xff]
      %v489 = vld [vmem:[%s209 + $0x840] sm:$0xff]
      %v490 = vld [vmem:[%s209 + $0x848] sm:$0xff]
      %v491 = vld [vmem:[%s209 + $0x850] sm:$0xff]
      %v492 = vld [vmem:[%s209 + $0x858] sm:$0xff]
      %v493 = vld [vmem:[%s209 + $0x860] sm:$0xff]
      %v494 = vld [vmem:[%s209 + $0x868] sm:$0xff]
      %v495 = vld [vmem:[%s209 + $0x870] sm:$0xff]
      %v496 = vld [vmem:[%s209 + $0x878] sm:$0xff]
      %v497 = vld [vmem:[%s209 + $0x880] sm:$0xff]
      %v498 = vld [vmem:[%s209 + $0x888] sm:$0xff]
      %v499 = vld [vmem:[%s209 + $0x890] sm:$0xff]
      %v500 = vld [vmem:[%s209 + $0x898] sm:$0xff]
      %v501 = vld [vmem:[%s209 + $0x8a0] sm:$0xff]
      %v502 = vld [vmem:[%s209 + $0x8a8] sm:$0xff]
      %v503 = vld [vmem:[%s209 + $0x8b0] sm:$0xff]
      %v504 = vld [vmem:[%s209 + $0x8b8] sm:$0xff]
      %v505 = vld [vmem:[%s209 + $0x8c0] sm:$0xff]
      %v506 = vld [vmem:[%s209 + $0x8c8] sm:$0xff]
      %v507 = vld [vmem:[%s209 + $0x8d0] sm:$0xff]
      %v508 = vld [vmem:[%s209 + $0x8d8] sm:$0xff]
      %v509 = vld [vmem:[%s209 + $0x8e0] sm:$0xff]
      %v510 = vld [vmem:[%s209 + $0x8e8] sm:$0xff]
      %v511 = vld [vmem:[%s209 + $0x8f0] sm:$0xff]
      %v512 = vld [vmem:[%s209 + $0x8f8] sm:$0xff]
      %v513 = vld [vmem:[%s1] sm:$0xff]
      %v514 = vld [vmem:[%s1 + $0x8] sm:$0xff]
      %v515 = vld [vmem:[%s1 + $0x10] sm:$0xff]
      %v516 = vld [vmem:[%s1 + $0x18] sm:$0xff]
      %v517 = vld [vmem:[%s1 + $0x20] sm:$0xff]
      %v518 = vld [vmem:[%s1 + $0x28] sm:$0xff]
      %v519 = vld [vmem:[%s1 + $0x30] sm:$0xff]
      %v520 = vld [vmem:[%s1 + $0x38] sm:$0xff]
      %v521 = vld [vmem:[%s1 + $0x40] sm:$0xff]
      %v522 = vld [vmem:[%s1 + $0x48] sm:$0xff]
      %v523 = vld [vmem:[%s1 + $0x50] sm:$0xff]
      %v524 = vld [vmem:[%s1 + $0x58] sm:$0xff]
      %v525 = vld [vmem:[%s1 + $0x60] sm:$0xff]
      %v526 = vld [vmem:[%s1 + $0x68] sm:$0xff]
      %v527 = vld [vmem:[%s1 + $0x70] sm:$0xff]
      %v528 = vld [vmem:[%s1 + $0x78] sm:$0xff]
      %v529 = vld [vmem:[%s1 + $0x80] sm:$0xff]
      %v530 = vld [vmem:[%s1 + $0x88] sm:$0xff]
      %v531 = vld [vmem:[%s1 + $0x90] sm:$0xff]
      %v532 = vld [vmem:[%s1 + $0x98] sm:$0xff]
      %v533 = vld [vmem:[%s1 + $0xa0] sm:$0xff]
      %v534 = vld [vmem:[%s1 + $0xa8] sm:$0xff]
      %v535 = vld [vmem:[%s1 + $0xb0] sm:$0xff]
      %v536 = vld [vmem:[%s1 + $0xb8] sm:$0xff]
      %v537 = vld [vmem:[%s1 + $0xc0] sm:$0xff]
      %v538 = vld [vmem:[%s1 + $0xc8] sm:$0xff]
      %v539 = vld [vmem:[%s1 + $0xd0] sm:$0xff]
      %v540 = vld [vmem:[%s1 + $0xd8] sm:$0xff]
      %v541 = vld [vmem:[%s1 + $0xe0] sm:$0xff]
      %v542 = vld [vmem:[%s1 + $0xe8] sm:$0xff]
      %v543 = vld [vmem:[%s1 + $0xf0] sm:$0xff]
      %v544 = vld [vmem:[%s1 + $0xf8] sm:$0xff]
      %v545 = vld [vmem:[%s1 + $0x100] sm:$0xff]
      %v546 = vld [vmem:[%s1 + $0x108] sm:$0xff]
      %v547 = vld [vmem:[%s1 + $0x110] sm:$0xff]
      %v548 = vld [vmem:[%s1 + $0x118] sm:$0xff]
      %v549 = vld [vmem:[%s1 + $0x120] sm:$0xff]
      %v550 = vld [vmem:[%s1 + $0x128] sm:$0xff]
      %v551 = vld [vmem:[%s1 + $0x130] sm:$0xff]
      %v552 = vld [vmem:[%s1 + $0x138] sm:$0xff]
      %v553 = vld [vmem:[%s1 + $0x140] sm:$0xff]
      %v554 = vld [vmem:[%s1 + $0x148] sm:$0xff]
      %v555 = vld [vmem:[%s1 + $0x150] sm:$0xff]
      %v556 = vld [vmem:[%s1 + $0x158] sm:$0xff]
      %v557 = vld [vmem:[%s1 + $0x160] sm:$0xff]
      %v558 = vld [vmem:[%s1 + $0x168] sm:$0xff]
      %v559 = vld [vmem:[%s1 + $0x170] sm:$0xff]
      %v560 = vld [vmem:[%s1 + $0x178] sm:$0xff]
      %v561 = vld [vmem:[%s1 + $0x180] sm:$0xff]
      %v562 = vld [vmem:[%s1 + $0x188] sm:$0xff]
      %v563 = vld [vmem:[%s1 + $0x190] sm:$0xff]
      %v564 = vld [vmem:[%s1 + $0x198] sm:$0xff]
      %v565 = vld [vmem:[%s1 + $0x1a0] sm:$0xff]
      %v566 = vld [vmem:[%s1 + $0x1a8] sm:$0xff]
      %v567 = vld [vmem:[%s1 + $0x1b0] sm:$0xff]
      %v568 = vld [vmem:[%s1 + $0x1b8] sm:$0xff]
      %v569 = vld [vmem:[%s1 + $0x1c0] sm:$0xff]
      %v570 = vld [vmem:[%s1 + $0x1c8] sm:$0xff]
      %v571 = vld [vmem:[%s1 + $0x1d0] sm:$0xff]
      %v572 = vld [vmem:[%s1 + $0x1d8] sm:$0xff]
      %v573 = vld [vmem:[%s1 + $0x1e0] sm:$0xff]
      %v574 = vld [vmem:[%s1 + $0x1e8] sm:$0xff]
      %v575 = vld [vmem:[%s1 + $0x1f0] sm:$0xff]
      %v576 = vld [vmem:[%s1 + $0x1f8] sm:$0xff]
      %v577 = vld [vmem:[%s1 + $0x200] sm:$0xff]
      %v578 = vld [vmem:[%s1 + $0x208] sm:$0xff]
      %v579 = vld [vmem:[%s1 + $0x210] sm:$0xff]
      %v580 = vld [vmem:[%s1 + $0x218] sm:$0xff]
      %v581 = vld [vmem:[%s1 + $0x220] sm:$0xff]
      %v582 = vld [vmem:[%s1 + $0x228] sm:$0xff]
      %v583 = vld [vmem:[%s1 + $0x230] sm:$0xff]
      %v584 = vld [vmem:[%s1 + $0x238] sm:$0xff]
      %v585 = vld [vmem:[%s1 + $0x240] sm:$0xff]
      %v586 = vld [vmem:[%s1 + $0x248] sm:$0xff]
      %v587 = vld [vmem:[%s1 + $0x250] sm:$0xff]
      %v588 = vld [vmem:[%s1 + $0x258] sm:$0xff]
      %v589 = vld [vmem:[%s1 + $0x260] sm:$0xff]
      %v590 = vld [vmem:[%s1 + $0x268] sm:$0xff]
      %v591 = vld [vmem:[%s1 + $0x270] sm:$0xff]
      %v592 = vld [vmem:[%s1 + $0x278] sm:$0xff]
      %v593 = vld [vmem:[%s1 + $0x280] sm:$0xff]
      %v594 = vld [vmem:[%s1 + $0x288] sm:$0xff]
      %v595 = vld [vmem:[%s1 + $0x290] sm:$0xff]
      %v596 = vld [vmem:[%s1 + $0x298] sm:$0xff]
      %v597 = vld [vmem:[%s1 + $0x2a0] sm:$0xff]
      %v598 = vld [vmem:[%s1 + $0x2a8] sm:$0xff]
      %v599 = vld [vmem:[%s1 + $0x2b0] sm:$0xff]
      %v600 = vld [vmem:[%s1 + $0x2b8] sm:$0xff]
      %v601 = vld [vmem:[%s1 + $0x2c0] sm:$0xff]
      %v602 = vld [vmem:[%s1 + $0x2c8] sm:$0xff]
      %v603 = vld [vmem:[%s1 + $0x2d0] sm:$0xff]
      %v604 = vld [vmem:[%s1 + $0x2d8] sm:$0xff]
      %v605 = vld [vmem:[%s1 + $0x2e0] sm:$0xff]
      %v606 = vld [vmem:[%s1 + $0x2e8] sm:$0xff]
      %v607 = vld [vmem:[%s1 + $0x2f0] sm:$0xff]
      %v608 = vld [vmem:[%s1 + $0x2f8] sm:$0xff]
      %v609 = vld [vmem:[%s1 + $0x300] sm:$0xff]
      %v610 = vld [vmem:[%s1 + $0x308] sm:$0xff]
      %v611 = vld [vmem:[%s1 + $0x310] sm:$0xff]
      %v612 = vld [vmem:[%s1 + $0x318] sm:$0xff]
      %v613 = vld [vmem:[%s1 + $0x320] sm:$0xff]
      %v614 = vld [vmem:[%s1 + $0x328] sm:$0xff]
      %v615 = vld [vmem:[%s1 + $0x330] sm:$0xff]
      %v616 = vld [vmem:[%s1 + $0x338] sm:$0xff]
      %v617 = vld [vmem:[%s1 + $0x340] sm:$0xff]
      %v618 = vld [vmem:[%s1 + $0x348] sm:$0xff]
      %v619 = vld [vmem:[%s1 + $0x350] sm:$0xff]
      %v620 = vld [vmem:[%s1 + $0x358] sm:$0xff]
      %v621 = vld [vmem:[%s1 + $0x360] sm:$0xff]
      %v622 = vld [vmem:[%s1 + $0x368] sm:$0xff]
      %v623 = vld [vmem:[%s1 + $0x370] sm:$0xff]
      %v624 = vld [vmem:[%s1 + $0x378] sm:$0xff]
      %v625 = vld [vmem:[%s1 + $0x380] sm:$0xff]
      %v626 = vld [vmem:[%s1 + $0x388] sm:$0xff]
      %v627 = vld [vmem:[%s1 + $0x390] sm:$0xff]
      %v628 = vld [vmem:[%s1 + $0x398] sm:$0xff]
      %v629 = vld [vmem:[%s1 + $0x3a0] sm:$0xff]
      %v630 = vld [vmem:[%s1 + $0x3a8] sm:$0xff]
      %v631 = vld [vmem:[%s1 + $0x3b0] sm:$0xff]
      %v632 = vld [vmem:[%s1 + $0x3b8] sm:$0xff]
      %v633 = vld [vmem:[%s1 + $0x3c0] sm:$0xff]
      %v634 = vld [vmem:[%s1 + $0x3c8] sm:$0xff]
      %v635 = vld [vmem:[%s1 + $0x3d0] sm:$0xff]
      %v636 = vld [vmem:[%s1 + $0x3d8] sm:$0xff]
      %v637 = vld [vmem:[%s1 + $0x3e0] sm:$0xff]
      %v638 = vld [vmem:[%s1 + $0x3e8] sm:$0xff]
      %v639 = vld [vmem:[%s1 + $0x3f0] sm:$0xff]
      %v640 = vld [vmem:[%s1 + $0x3f8] sm:$0xff]
      %v641 = vld [vmem:[%s1 + $0x400] sm:$0xff]
      %v642 = vld [vmem:[%s1 + $0x408] sm:$0xff]
      %v643 = vld [vmem:[%s1 + $0x410] sm:$0xff]
      %v644 = vld [vmem:[%s1 + $0x418] sm:$0xff]
      %v645 = vld [vmem:[%s1 + $0x420] sm:$0xff]
      %v646 = vld [vmem:[%s1 + $0x428] sm:$0xff]
      %v647 = vld [vmem:[%s1 + $0x430] sm:$0xff]
      %v648 = vld [vmem:[%s1 + $0x438] sm:$0xff]
      %v649 = vld [vmem:[%s1 + $0x440] sm:$0xff]
      %v650 = vld [vmem:[%s1 + $0x448] sm:$0xff]
      %v651 = vld [vmem:[%s1 + $0x450] sm:$0xff]
      %v652 = vld [vmem:[%s1 + $0x458] sm:$0xff]
      %v653 = vld [vmem:[%s1 + $0x460] sm:$0xff]
      %v654 = vld [vmem:[%s1 + $0x468] sm:$0xff]
      %v655 = vld [vmem:[%s1 + $0x470] sm:$0xff]
      %v656 = vld [vmem:[%s1 + $0x478] sm:$0xff]
      %657 = vmatprep.subr.mxu0 0.0
      %658 = vmatpush1.msra.mxu0 %v528
      %659 = vmatprep.subr.mxu0 0.0
      %660 = vmatpush1.msra.mxu0 %v527
      %661 = vmatprep.subr.mxu0 0.0
      %662 = vmatpush1.msra.mxu0 %v526
      %663 = vmatprep.subr.mxu0 0.0
      %664 = vmatpush1.msra.mxu0 %v525
      %665 = vmatprep.subr.mxu0 0.0
      %666 = vmatpush1.msra.mxu0 %v524
      %667 = vmatprep.subr.mxu0 0.0
      %668 = vmatpush1.msra.mxu0 %v523
      %669 = vmatprep.subr.mxu0 0.0
      %670 = vmatpush1.msra.mxu0 %v522
      %671 = vmatprep.subr.mxu0 0.0
      %672 = vmatpush1.msra.mxu0 %v521
      %673 = vmatprep.subr.mxu0 0.0
      %674 = vmatpush1.msra.mxu0 %v520
      %675 = vmatprep.subr.mxu0 0.0
      %676 = vmatpush1.msra.mxu0 %v519
      %677 = vmatprep.subr.mxu0 0.0
      %678 = vmatpush1.msra.mxu0 %v518
      %679 = vmatprep.subr.mxu0 0.0
      %680 = vmatpush1.msra.mxu0 %v517
      %681 = vmatprep.subr.mxu0 0.0
      %682 = vmatpush1.msra.mxu0 %v516
      %683 = vmatprep.subr.mxu0 0.0
      %684 = vmatpush1.msra.mxu0 %v515
      %685 = vmatprep.subr.mxu0 0.0
      %686 = vmatpush1.msra.mxu0 %v514
      %687 = vmatprep.subr.mxu0 0.0
      %688 = vmatpush1.msra.mxu0 %v513
      %689 = vmatprep.subr.mxu0 0.0
      %690 = vmatpush2.msra.mxu0 %v544
      %691 = vmatprep.subr.mxu0 0.0
      %692 = vmatpush2.msra.mxu0 %v543
      %693 = vmatprep.subr.mxu0 0.0
      %694 = vmatpush2.msra.mxu0 %v542
      %695 = vmatprep.subr.mxu0 0.0
      %696 = vmatpush2.msra.mxu0 %v541
      %697 = vmatprep.subr.mxu0 0.0
      %698 = vmatpush2.msra.mxu0 %v540
      %699 = vmatprep.subr.mxu0 0.0
      %700 = vmatpush2.msra.mxu0 %v539
      %701 = vmatprep.subr.mxu0 0.0
      %702 = vmatpush2.msra.mxu0 %v538
      %703 = vmatprep.subr.mxu0 0.0
      %704 = vmatpush2.msra.mxu0 %v537
      %705 = vmatprep.subr.mxu0 0.0
      %706 = vmatpush2.msra.mxu0 %v536
      %707 = vmatprep.subr.mxu0 0.0
      %708 = vmatpush2.msra.mxu0 %v535
      %709 = vmatprep.subr.mxu0 0.0
      %710 = vmatpush2.msra.mxu0 %v534
      %711 = vmatprep.subr.mxu0 0.0
      %712 = vmatpush2.msra.mxu0 %v533
      %713 = vmatprep.subr.mxu0 0.0
      %714 = vmatpush2.msra.mxu0 %v532
      %715 = vmatprep.subr.mxu0 0.0
      %716 = vmatpush2.msra.mxu0 %v531
      %717 = vmatprep.subr.mxu0 0.0
      %718 = vmatpush2.msra.mxu0 %v530
      %719 = vmatprep.subr.mxu0 0.0
      %720 = vmatpush2.msra.mxu0 %v529
      %721 = vmatprep.mubr.f32.mxu0 %v226
      %722 = vmatmul.mubr.f32.gmra.mxu0 %v225
      %v723 = vpop.f32.mrf.mxu0
      %v724 = vadd.f32 0.0, %v723
      %v725 = vpop.f32.mrf.mxu0
      %726 = vmatprep.mubr.f32.mxu0 %v235
      %727 = vmatmul.mubr.f32.gmra.mxu0 %v234
      %v728 = vpop.f32.mrf.mxu0
      %v729 = vadd.f32 0.0, %v728
      %v730 = vpop.f32.mrf.mxu0
      %731 = vmatprep.mubr.f32.mxu0 %v244
      %732 = vmatmul.mubr.f32.gmra.mxu0 %v243
      %v733 = vpop.f32.mrf.mxu0
      %v734 = vadd.f32 0.0, %v733
      %v735 = vpop.f32.mrf.mxu0
      %736 = vmatprep.mubr.f32.mxu0 %v253
      %737 = vmatmul.mubr.f32.gmra.mxu0 %v252
      %v738 = vpop.f32.mrf.mxu0
      %v739 = vadd.f32 0.0, %v738
      %v740 = vpop.f32.mrf.mxu0
      %741 = vmatprep.mubr.f32.mxu0 %v262
      %742 = vmatmul.mubr.f32.gmra.mxu0 %v261
      %v743 = vpop.f32.mrf.mxu0
      %v744 = vadd.f32 0.0, %v743
      %v745 = vpop.f32.mrf.mxu0
      %746 = vmatprep.mubr.f32.mxu0 %v271
      %747 = vmatmul.mubr.f32.gmra.mxu0 %v270
      %v748 = vpop.f32.mrf.mxu0
      %v749 = vadd.f32 0.0, %v748
      %v750 = vpop.f32.mrf.mxu0
      %751 = vmatprep.mubr.f32.mxu0 %v280
      %752 = vmatmul.mubr.f32.gmra.mxu0 %v279
      %v753 = vpop.f32.mrf.mxu0
      %v754 = vadd.f32 0.0, %v753
      %v755 = vpop.f32.mrf.mxu0
      %756 = vmatprep.mubr.f32.mxu0 %v289
      %757 = vmatmul.mubr.f32.gmra.mxu0 %v288
      %v758 = vpop.f32.mrf.mxu0
      %v759 = vadd.f32 0.0, %v758
      %v760 = vpop.f32.mrf.mxu0
      %761 = vmatprep.mubr.f32.mxu0 %v298
      %762 = vmatmul.mubr.f32.gmra.mxu0 %v297
      %v763 = vpop.f32.mrf.mxu0
      %v764 = vadd.f32 0.0, %v763
      %v765 = vpop.f32.mrf.mxu0
      %766 = vmatprep.mubr.f32.mxu0 %v307
      %767 = vmatmul.mubr.f32.gmra.mxu0 %v306
      %v768 = vpop.f32.mrf.mxu0
      %v769 = vadd.f32 0.0, %v768
      %v770 = vpop.f32.mrf.mxu0
      %771 = vmatprep.mubr.f32.mxu0 %v316
      %772 = vmatmul.mubr.f32.gmra.mxu0 %v315
      %v773 = vpop.f32.mrf.mxu0
      %v774 = vadd.f32 0.0, %v773
      %v775 = vpop.f32.mrf.mxu0
      %776 = vmatprep.mubr.f32.mxu0 %v325
      %777 = vmatmul.mubr.f32.gmra.mxu0 %v324
      %v778 = vpop.f32.mrf.mxu0
      %v779 = vadd.f32 0.0, %v778
      %v780 = vpop.f32.mrf.mxu0
      %781 = vmatprep.mubr.f32.mxu0 %v334
      %782 = vmatmul.mubr.f32.gmra.mxu0 %v333
      %v783 = vpop.f32.mrf.mxu0
      %v784 = vadd.f32 0.0, %v783
      %v785 = vpop.f32.mrf.mxu0
      %786 = vmatprep.mubr.f32.mxu0 %v343
      %787 = vmatmul.mubr.f32.gmra.mxu0 %v342
      %v788 = vpop.f32.mrf.mxu0
      %v789 = vadd.f32 0.0, %v788
      %v790 = vpop.f32.mrf.mxu0
      %791 = vmatprep.mubr.f32.mxu0 %v352
      %792 = vmatmul.mubr.f32.gmra.mxu0 %v351
      %v793 = vpop.f32.mrf.mxu0
      %v794 = vadd.f32 0.0, %v793
      %v795 = vpop.f32.mrf.mxu0
      %796 = vmatprep.mubr.f32.mxu0 %v361
      %797 = vmatmul.mubr.f32.gmra.mxu0 %v360
      %v798 = vpop.f32.mrf.mxu0
      %v799 = vadd.f32 0.0, %v798
      %v800 = vpop.f32.mrf.mxu0
      %801 = vmatprep.mubr.f32.mxu0 %v370
      %802 = vmatmul.mubr.f32.gmra.mxu0 %v369
      %v803 = vpop.f32.mrf.mxu0
      %v804 = vadd.f32 0.0, %v803
      %v805 = vpop.f32.mrf.mxu0
      %806 = vmatprep.mubr.f32.mxu0 %v379
      %807 = vmatmul.mubr.f32.gmra.mxu0 %v378
      %v808 = vpop.f32.mrf.mxu0
      %v809 = vadd.f32 0.0, %v808
      %v810 = vpop.f32.mrf.mxu0
      %811 = vmatprep.mubr.f32.mxu0 %v388
      %812 = vmatmul.mubr.f32.gmra.mxu0 %v387
      %v813 = vpop.f32.mrf.mxu0
      %v814 = vadd.f32 0.0, %v813
      %v815 = vpop.f32.mrf.mxu0
      %816 = vmatprep.mubr.f32.mxu0 %v397
      %817 = vmatmul.mubr.f32.gmra.mxu0 %v396
      %v818 = vpop.f32.mrf.mxu0
      %v819 = vadd.f32 0.0, %v818
      %v820 = vpop.f32.mrf.mxu0
      %821 = vmatprep.mubr.f32.mxu0 %v406
      %822 = vmatmul.mubr.f32.gmra.mxu0 %v405
      %v823 = vpop.f32.mrf.mxu0
      %v824 = vadd.f32 0.0, %v823
      %v825 = vpop.f32.mrf.mxu0
      %826 = vmatprep.mubr.f32.mxu0 %v415
      %827 = vmatmul.mubr.f32.gmra.mxu0 %v414
      %v828 = vpop.f32.mrf.mxu0
      %v829 = vadd.f32 0.0, %v828
      %v830 = vpop.f32.mrf.mxu0
      %831 = vmatprep.mubr.f32.mxu0 %v424
      %832 = vmatmul.mubr.f32.gmra.mxu0 %v423
      %v833 = vpop.f32.mrf.mxu0
      %v834 = vadd.f32 0.0, %v833
      %v835 = vpop.f32.mrf.mxu0
      %836 = vmatprep.mubr.f32.mxu0 %v433
      %837 = vmatmul.mubr.f32.gmra.mxu0 %v432
      %v838 = vpop.f32.mrf.mxu0
      %v839 = vadd.f32 0.0, %v838
      %v840 = vpop.f32.mrf.mxu0
      %841 = vmatprep.mubr.f32.mxu0 %v442
      %842 = vmatmul.mubr.f32.gmra.mxu0 %v441
      %v843 = vpop.f32.mrf.mxu0
      %v844 = vadd.f32 0.0, %v843
      %v845 = vpop.f32.mrf.mxu0
      %846 = vmatprep.mubr.f32.mxu0 %v451
      %847 = vmatmul.mubr.f32.gmra.mxu0 %v450
      %v848 = vpop.f32.mrf.mxu0
      %v849 = vadd.f32 0.0, %v848
      %v850 = vpop.f32.mrf.mxu0
      %851 = vmatprep.mubr.f32.mxu0 %v460
      %852 = vmatmul.mubr.f32.gmra.mxu0 %v459
      %v853 = vpop.f32.mrf.mxu0
      %v854 = vadd.f32 0.0, %v853
      %v855 = vpop.f32.mrf.mxu0
      %856 = vmatprep.mubr.f32.mxu0 %v469
      %857 = vmatmul.mubr.f32.gmra.mxu0 %v468
      %v858 = vpop.f32.mrf.mxu0
      %v859 = vadd.f32 0.0, %v858
      %v860 = vpop.f32.mrf.mxu0
      %861 = vmatprep.mubr.f32.mxu0 %v478
      %862 = vmatmul.mubr.f32.gmra.mxu0 %v477
      %v863 = vpop.f32.mrf.mxu0
      %v864 = vadd.f32 0.0, %v863
      %v865 = vpop.f32.mrf.mxu0
      %866 = vmatprep.mubr.f32.mxu0 %v487
      %867 = vmatmul.mubr.f32.gmra.mxu0 %v486
      %v868 = vpop.f32.mrf.mxu0
      %v869 = vadd.f32 0.0, %v868
      %v870 = vpop.f32.mrf.mxu0
      %871 = vmatprep.mubr.f32.mxu0 %v496
      %872 = vmatmul.mubr.f32.gmra.mxu0 %v495
      %v873 = vpop.f32.mrf.mxu0
      %v874 = vadd.f32 0.0, %v873
      %v875 = vpop.f32.mrf.mxu0
      %876 = vmatprep.mubr.f32.mxu0 %v505
      %877 = vmatmul.mubr.f32.gmra.mxu0 %v504
      %v878 = vpop.f32.mrf.mxu0
      %v879 = vadd.f32 0.0, %v878
      %v880 = vpop.f32.mrf.mxu0
      %881 = vdwg.mxu0
      %882 = vmatprep.subr.mxu0 0.0
      %883 = vmatpush1.msra.mxu0 %v560
      %884 = vmatprep.subr.mxu0 0.0
      %885 = vmatpush1.msra.mxu0 %v559
      %886 = vmatprep.subr.mxu0 0.0
      %887 = vmatpush1.msra.mxu0 %v558
      %888 = vmatprep.subr.mxu0 0.0
      %889 = vmatpush1.msra.mxu0 %v557
      %890 = vmatprep.subr.mxu0 0.0
      %891 = vmatpush1.msra.mxu0 %v556
      %892 = vmatprep.subr.mxu0 0.0
      %893 = vmatpush1.msra.mxu0 %v555
      %894 = vmatprep.subr.mxu0 0.0
      %895 = vmatpush1.msra.mxu0 %v554
      %896 = vmatprep.subr.mxu0 0.0
      %897 = vmatpush1.msra.mxu0 %v553
      %898 = vmatprep.subr.mxu0 0.0
      %899 = vmatpush1.msra.mxu0 %v552
      %900 = vmatprep.subr.mxu0 0.0
      %901 = vmatpush1.msra.mxu0 %v551
      %902 = vmatprep.subr.mxu0 0.0
      %903 = vmatpush1.msra.mxu0 %v550
      %904 = vmatprep.subr.mxu0 0.0
      %905 = vmatpush1.msra.mxu0 %v549
      %906 = vmatprep.subr.mxu0 0.0
      %907 = vmatpush1.msra.mxu0 %v548
      %908 = vmatprep.subr.mxu0 0.0
      %909 = vmatpush1.msra.mxu0 %v547
      %910 = vmatprep.subr.mxu0 0.0
      %911 = vmatpush1.msra.mxu0 %v546
      %912 = vmatprep.subr.mxu0 0.0
      %913 = vmatpush1.msra.mxu0 %v545
      %914 = vmatprep.subr.mxu0 0.0
      %915 = vmatpush2.msra.mxu0 %v576
      %916 = vmatprep.subr.mxu0 0.0
      %917 = vmatpush2.msra.mxu0 %v575
      %918 = vmatprep.subr.mxu0 0.0
      %919 = vmatpush2.msra.mxu0 %v574
      %920 = vmatprep.subr.mxu0 0.0
      %921 = vmatpush2.msra.mxu0 %v573
      %922 = vmatprep.subr.mxu0 0.0
      %923 = vmatpush2.msra.mxu0 %v572
      %924 = vmatprep.subr.mxu0 0.0
      %925 = vmatpush2.msra.mxu0 %v571
      %926 = vmatprep.subr.mxu0 0.0
      %927 = vmatpush2.msra.mxu0 %v570
      %928 = vmatprep.subr.mxu0 0.0
      %929 = vmatpush2.msra.mxu0 %v569
      %930 = vmatprep.subr.mxu0 0.0
      %931 = vmatpush2.msra.mxu0 %v568
      %932 = vmatprep.subr.mxu0 0.0
      %933 = vmatpush2.msra.mxu0 %v567
      %934 = vmatprep.subr.mxu0 0.0
      %935 = vmatpush2.msra.mxu0 %v566
      %936 = vmatprep.subr.mxu0 0.0
      %937 = vmatpush2.msra.mxu0 %v565
      %938 = vmatprep.subr.mxu0 0.0
      %939 = vmatpush2.msra.mxu0 %v564
      %940 = vmatprep.subr.mxu0 0.0
      %941 = vmatpush2.msra.mxu0 %v563
      %942 = vmatprep.subr.mxu0 0.0
      %943 = vmatpush2.msra.mxu0 %v562
      %944 = vmatprep.subr.mxu0 0.0
      %945 = vmatpush2.msra.mxu0 %v561
      %946 = vmatprep.mubr.f32.mxu0 %v228
      %947 = vmatmul.mubr.f32.gmra.mxu0 %v227
      %v948 = vpop.f32.mrf.mxu0
      %v949 = vadd.f32 %v724, %v948
      %v950 = vpop.f32.mrf.mxu0
      %951 = vmatprep.mubr.f32.mxu0 %v237
      %952 = vmatmul.mubr.f32.gmra.mxu0 %v236
      %v953 = vpop.f32.mrf.mxu0
      %v954 = vadd.f32 %v729, %v953
      %v955 = vpop.f32.mrf.mxu0
      %956 = vmatprep.mubr.f32.mxu0 %v246
      %957 = vmatmul.mubr.f32.gmra.mxu0 %v245
      %v958 = vpop.f32.mrf.mxu0
      %v959 = vadd.f32 %v734, %v958
      %v960 = vpop.f32.mrf.mxu0
      %961 = vmatprep.mubr.f32.mxu0 %v255
      %962 = vmatmul.mubr.f32.gmra.mxu0 %v254
      %v963 = vpop.f32.mrf.mxu0
      %v964 = vadd.f32 %v739, %v963
      %v965 = vpop.f32.mrf.mxu0
      %966 = vmatprep.mubr.f32.mxu0 %v264
      %967 = vmatmul.mubr.f32.gmra.mxu0 %v263
      %v968 = vpop.f32.mrf.mxu0
      %v969 = vadd.f32 %v744, %v968
      %v970 = vpop.f32.mrf.mxu0
      %971 = vmatprep.mubr.f32.mxu0 %v273
      %972 = vmatmul.mubr.f32.gmra.mxu0 %v272
      %v973 = vpop.f32.mrf.mxu0
      %v974 = vadd.f32 %v749, %v973
      %v975 = vpop.f32.mrf.mxu0
      %976 = vmatprep.mubr.f32.mxu0 %v282
      %977 = vmatmul.mubr.f32.gmra.mxu0 %v281
      %v978 = vpop.f32.mrf.mxu0
      %v979 = vadd.f32 %v754, %v978
      %v980 = vpop.f32.mrf.mxu0
      %981 = vmatprep.mubr.f32.mxu0 %v291
      %982 = vmatmul.mubr.f32.gmra.mxu0 %v290
      %v983 = vpop.f32.mrf.mxu0
      %v984 = vadd.f32 %v759, %v983
      %v985 = vpop.f32.mrf.mxu0
      %986 = vmatprep.mubr.f32.mxu0 %v300
      %987 = vmatmul.mubr.f32.gmra.mxu0 %v299
      %v988 = vpop.f32.mrf.mxu0
      %v989 = vadd.f32 %v764, %v988
      %v990 = vpop.f32.mrf.mxu0
      %991 = vmatprep.mubr.f32.mxu0 %v309
      %992 = vmatmul.mubr.f32.gmra.mxu0 %v308
      %v993 = vpop.f32.mrf.mxu0
      %v994 = vadd.f32 %v769, %v993
      %v995 = vpop.f32.mrf.mxu0
      %996 = vmatprep.mubr.f32.mxu0 %v318
      %997 = vmatmul.mubr.f32.gmra.mxu0 %v317
      %v998 = vpop.f32.mrf.mxu0
      %v999 = vadd.f32 %v774, %v998
      %v1000 = vpop.f32.mrf.mxu0
      %1001 = vmatprep.mubr.f32.mxu0 %v327
      %1002 = vmatmul.mubr.f32.gmra.mxu0 %v326
      %v1003 = vpop.f32.mrf.mxu0
      %v1004 = vadd.f32 %v779, %v1003
      %v1005 = vpop.f32.mrf.mxu0
      %1006 = vmatprep.mubr.f32.mxu0 %v336
      %1007 = vmatmul.mubr.f32.gmra.mxu0 %v335
      %v1008 = vpop.f32.mrf.mxu0
      %v1009 = vadd.f32 %v784, %v1008
      %v1010 = vpop.f32.mrf.mxu0
      %1011 = vmatprep.mubr.f32.mxu0 %v345
      %1012 = vmatmul.mubr.f32.gmra.mxu0 %v344
      %v1013 = vpop.f32.mrf.mxu0
      %v1014 = vadd.f32 %v789, %v1013
      %v1015 = vpop.f32.mrf.mxu0
      %1016 = vmatprep.mubr.f32.mxu0 %v354
      %1017 = vmatmul.mubr.f32.gmra.mxu0 %v353
      %v1018 = vpop.f32.mrf.mxu0
      %v1019 = vadd.f32 %v794, %v1018
      %v1020 = vpop.f32.mrf.mxu0
      %1021 = vmatprep.mubr.f32.mxu0 %v363
      %1022 = vmatmul.mubr.f32.gmra.mxu0 %v362
      %v1023 = vpop.f32.mrf.mxu0
      %v1024 = vadd.f32 %v799, %v1023
      %v1025 = vpop.f32.mrf.mxu0
      %1026 = vmatprep.mubr.f32.mxu0 %v372
      %1027 = vmatmul.mubr.f32.gmra.mxu0 %v371
      %v1028 = vpop.f32.mrf.mxu0
      %v1029 = vadd.f32 %v804, %v1028
      %v1030 = vpop.f32.mrf.mxu0
      %1031 = vmatprep.mubr.f32.mxu0 %v381
      %1032 = vmatmul.mubr.f32.gmra.mxu0 %v380
      %v1033 = vpop.f32.mrf.mxu0
      %v1034 = vadd.f32 %v809, %v1033
      %v1035 = vpop.f32.mrf.mxu0
      %1036 = vmatprep.mubr.f32.mxu0 %v390
      %1037 = vmatmul.mubr.f32.gmra.mxu0 %v389
      %v1038 = vpop.f32.mrf.mxu0
      %v1039 = vadd.f32 %v814, %v1038
      %v1040 = vpop.f32.mrf.mxu0
      %1041 = vmatprep.mubr.f32.mxu0 %v399
      %1042 = vmatmul.mubr.f32.gmra.mxu0 %v398
      %v1043 = vpop.f32.mrf.mxu0
      %v1044 = vadd.f32 %v819, %v1043
      %v1045 = vpop.f32.mrf.mxu0
      %1046 = vmatprep.mubr.f32.mxu0 %v408
      %1047 = vmatmul.mubr.f32.gmra.mxu0 %v407
      %v1048 = vpop.f32.mrf.mxu0
      %v1049 = vadd.f32 %v824, %v1048
      %v1050 = vpop.f32.mrf.mxu0
      %1051 = vmatprep.mubr.f32.mxu0 %v417
      %1052 = vmatmul.mubr.f32.gmra.mxu0 %v416
      %v1053 = vpop.f32.mrf.mxu0
      %v1054 = vadd.f32 %v829, %v1053
      %v1055 = vpop.f32.mrf.mxu0
      %1056 = vmatprep.mubr.f32.mxu0 %v426
      %1057 = vmatmul.mubr.f32.gmra.mxu0 %v425
      %v1058 = vpop.f32.mrf.mxu0
      %v1059 = vadd.f32 %v834, %v1058
      %v1060 = vpop.f32.mrf.mxu0
      %1061 = vmatprep.mubr.f32.mxu0 %v435
      %1062 = vmatmul.mubr.f32.gmra.mxu0 %v434
      %v1063 = vpop.f32.mrf.mxu0
      %v1064 = vadd.f32 %v839, %v1063
      %v1065 = vpop.f32.mrf.mxu0
      %1066 = vmatprep.mubr.f32.mxu0 %v444
      %1067 = vmatmul.mubr.f32.gmra.mxu0 %v443
      %v1068 = vpop.f32.mrf.mxu0
      %v1069 = vadd.f32 %v844, %v1068
      %v1070 = vpop.f32.mrf.mxu0
      %1071 = vmatprep.mubr.f32.mxu0 %v453
      %1072 = vmatmul.mubr.f32.gmra.mxu0 %v452
      %v1073 = vpop.f32.mrf.mxu0
      %v1074 = vadd.f32 %v849, %v1073
      %v1075 = vpop.f32.mrf.mxu0
      %1076 = vmatprep.mubr.f32.mxu0 %v462
      %1077 = vmatmul.mubr.f32.gmra.mxu0 %v461
      %v1078 = vpop.f32.mrf.mxu0
      %v1079 = vadd.f32 %v854, %v1078
      %v1080 = vpop.f32.mrf.mxu0
      %1081 = vmatprep.mubr.f32.mxu0 %v471
      %1082 = vmatmul.mubr.f32.gmra.mxu0 %v470
      %v1083 = vpop.f32.mrf.mxu0
      %v1084 = vadd.f32 %v859, %v1083
      %v1085 = vpop.f32.mrf.mxu0
      %1086 = vmatprep.mubr.f32.mxu0 %v480
      %1087 = vmatmul.mubr.f32.gmra.mxu0 %v479
      %v1088 = vpop.f32.mrf.mxu0
      %v1089 = vadd.f32 %v864, %v1088
      %v1090 = vpop.f32.mrf.mxu0
      %1091 = vmatprep.mubr.f32.mxu0 %v489
      %1092 = vmatmul.mubr.f32.gmra.mxu0 %v488
      %v1093 = vpop.f32.mrf.mxu0
      %v1094 = vadd.f32 %v869, %v1093
      %v1095 = vpop.f32.mrf.mxu0
      %1096 = vmatprep.mubr.f32.mxu0 %v498
      %1097 = vmatmul.mubr.f32.gmra.mxu0 %v497
      %v1098 = vpop.f32.mrf.mxu0
      %v1099 = vadd.f32 %v874, %v1098
      %v1100 = vpop.f32.mrf.mxu0
      %1101 = vmatprep.mubr.f32.mxu0 %v507
      %1102 = vmatmul.mubr.f32.gmra.mxu0 %v506
      %v1103 = vpop.f32.mrf.mxu0
      %v1104 = vadd.f32 %v879, %v1103
      %v1105 = vpop.f32.mrf.mxu0
      %1106 = vdwg.mxu0
      %1107 = vmatprep.subr.mxu0 0.0
      %1108 = vmatpush1.msra.mxu0 %v592
      %1109 = vmatprep.subr.mxu0 0.0
      %1110 = vmatpush1.msra.mxu0 %v591
      %1111 = vmatprep.subr.mxu0 0.0
      %1112 = vmatpush1.msra.mxu0 %v590
      %1113 = vmatprep.subr.mxu0 0.0
      %1114 = vmatpush1.msra.mxu0 %v589
      %1115 = vmatprep.subr.mxu0 0.0
      %1116 = vmatpush1.msra.mxu0 %v588
      %1117 = vmatprep.subr.mxu0 0.0
      %1118 = vmatpush1.msra.mxu0 %v587
      %1119 = vmatprep.subr.mxu0 0.0
      %1120 = vmatpush1.msra.mxu0 %v586
      %1121 = vmatprep.subr.mxu0 0.0
      %1122 = vmatpush1.msra.mxu0 %v585
      %1123 = vmatprep.subr.mxu0 0.0
      %1124 = vmatpush1.msra.mxu0 %v584
      %1125 = vmatprep.subr.mxu0 0.0
      %1126 = vmatpush1.msra.mxu0 %v583
      %1127 = vmatprep.subr.mxu0 0.0
      %1128 = vmatpush1.msra.mxu0 %v582
      %1129 = vmatprep.subr.mxu0 0.0
      %1130 = vmatpush1.msra.mxu0 %v581
      %1131 = vmatprep.subr.mxu0 0.0
      %1132 = vmatpush1.msra.mxu0 %v580
      %1133 = vmatprep.subr.mxu0 0.0
      %1134 = vmatpush1.msra.mxu0 %v579
      %1135 = vmatprep.subr.mxu0 0.0
      %1136 = vmatpush1.msra.mxu0 %v578
      %1137 = vmatprep.subr.mxu0 0.0
      %1138 = vmatpush1.msra.mxu0 %v577
      %1139 = vmatprep.subr.mxu0 0.0
      %1140 = vmatpush2.msra.mxu0 %v608
      %1141 = vmatprep.subr.mxu0 0.0
      %1142 = vmatpush2.msra.mxu0 %v607
      %1143 = vmatprep.subr.mxu0 0.0
      %1144 = vmatpush2.msra.mxu0 %v606
      %1145 = vmatprep.subr.mxu0 0.0
      %1146 = vmatpush2.msra.mxu0 %v605
      %1147 = vmatprep.subr.mxu0 0.0
      %1148 = vmatpush2.msra.mxu0 %v604
      %1149 = vmatprep.subr.mxu0 0.0
      %1150 = vmatpush2.msra.mxu0 %v603
      %1151 = vmatprep.subr.mxu0 0.0
      %1152 = vmatpush2.msra.mxu0 %v602
      %1153 = vmatprep.subr.mxu0 0.0
      %1154 = vmatpush2.msra.mxu0 %v601
      %1155 = vmatprep.subr.mxu0 0.0
      %1156 = vmatpush2.msra.mxu0 %v600
      %1157 = vmatprep.subr.mxu0 0.0
      %1158 = vmatpush2.msra.mxu0 %v599
      %1159 = vmatprep.subr.mxu0 0.0
      %1160 = vmatpush2.msra.mxu0 %v598
      %1161 = vmatprep.subr.mxu0 0.0
      %1162 = vmatpush2.msra.mxu0 %v597
      %1163 = vmatprep.subr.mxu0 0.0
      %1164 = vmatpush2.msra.mxu0 %v596
      %1165 = vmatprep.subr.mxu0 0.0
      %1166 = vmatpush2.msra.mxu0 %v595
      %1167 = vmatprep.subr.mxu0 0.0
      %1168 = vmatpush2.msra.mxu0 %v594
      %1169 = vmatprep.subr.mxu0 0.0
      %1170 = vmatpush2.msra.mxu0 %v593
      %1171 = vmatprep.mubr.f32.mxu0 %v230
      %1172 = vmatmul.mubr.f32.gmra.mxu0 %v229
      %v1173 = vpop.f32.mrf.mxu0
      %v1174 = vadd.f32 %v949, %v1173
      %v1175 = vpop.f32.mrf.mxu0
      %1176 = vmatprep.mubr.f32.mxu0 %v239
      %1177 = vmatmul.mubr.f32.gmra.mxu0 %v238
      %v1178 = vpop.f32.mrf.mxu0
      %v1179 = vadd.f32 %v954, %v1178
      %v1180 = vpop.f32.mrf.mxu0
      %1181 = vmatprep.mubr.f32.mxu0 %v248
      %1182 = vmatmul.mubr.f32.gmra.mxu0 %v247
      %v1183 = vpop.f32.mrf.mxu0
      %v1184 = vadd.f32 %v959, %v1183
      %v1185 = vpop.f32.mrf.mxu0
      %1186 = vmatprep.mubr.f32.mxu0 %v257
      %1187 = vmatmul.mubr.f32.gmra.mxu0 %v256
      %v1188 = vpop.f32.mrf.mxu0
      %v1189 = vadd.f32 %v964, %v1188
      %v1190 = vpop.f32.mrf.mxu0
      %1191 = vmatprep.mubr.f32.mxu0 %v266
      %1192 = vmatmul.mubr.f32.gmra.mxu0 %v265
      %v1193 = vpop.f32.mrf.mxu0
      %v1194 = vadd.f32 %v969, %v1193
      %v1195 = vpop.f32.mrf.mxu0
      %1196 = vmatprep.mubr.f32.mxu0 %v275
      %1197 = vmatmul.mubr.f32.gmra.mxu0 %v274
      %v1198 = vpop.f32.mrf.mxu0
      %v1199 = vadd.f32 %v974, %v1198
      %v1200 = vpop.f32.mrf.mxu0
      %1201 = vmatprep.mubr.f32.mxu0 %v284
      %1202 = vmatmul.mubr.f32.gmra.mxu0 %v283
      %v1203 = vpop.f32.mrf.mxu0
      %v1204 = vadd.f32 %v979, %v1203
      %v1205 = vpop.f32.mrf.mxu0
      %1206 = vmatprep.mubr.f32.mxu0 %v293
      %1207 = vmatmul.mubr.f32.gmra.mxu0 %v292
      %v1208 = vpop.f32.mrf.mxu0
      %v1209 = vadd.f32 %v984, %v1208
      %v1210 = vpop.f32.mrf.mxu0
      %1211 = vmatprep.mubr.f32.mxu0 %v302
      %1212 = vmatmul.mubr.f32.gmra.mxu0 %v301
      %v1213 = vpop.f32.mrf.mxu0
      %v1214 = vadd.f32 %v989, %v1213
      %v1215 = vpop.f32.mrf.mxu0
      %1216 = vmatprep.mubr.f32.mxu0 %v311
      %1217 = vmatmul.mubr.f32.gmra.mxu0 %v310
      %v1218 = vpop.f32.mrf.mxu0
      %v1219 = vadd.f32 %v994, %v1218
      %v1220 = vpop.f32.mrf.mxu0
      %1221 = vmatprep.mubr.f32.mxu0 %v320
      %1222 = vmatmul.mubr.f32.gmra.mxu0 %v319
      %v1223 = vpop.f32.mrf.mxu0
      %v1224 = vadd.f32 %v999, %v1223
      %v1225 = vpop.f32.mrf.mxu0
      %1226 = vmatprep.mubr.f32.mxu0 %v329
      %1227 = vmatmul.mubr.f32.gmra.mxu0 %v328
      %v1228 = vpop.f32.mrf.mxu0
      %v1229 = vadd.f32 %v1004, %v1228
      %v1230 = vpop.f32.mrf.mxu0
      %1231 = vmatprep.mubr.f32.mxu0 %v338
      %1232 = vmatmul.mubr.f32.gmra.mxu0 %v337
      %v1233 = vpop.f32.mrf.mxu0
      %v1234 = vadd.f32 %v1009, %v1233
      %v1235 = vpop.f32.mrf.mxu0
      %1236 = vmatprep.mubr.f32.mxu0 %v347
      %1237 = vmatmul.mubr.f32.gmra.mxu0 %v346
      %v1238 = vpop.f32.mrf.mxu0
      %v1239 = vadd.f32 %v1014, %v1238
      %v1240 = vpop.f32.mrf.mxu0
      %1241 = vmatprep.mubr.f32.mxu0 %v356
      %1242 = vmatmul.mubr.f32.gmra.mxu0 %v355
      %v1243 = vpop.f32.mrf.mxu0
      %v1244 = vadd.f32 %v1019, %v1243
      %v1245 = vpop.f32.mrf.mxu0
      %1246 = vmatprep.mubr.f32.mxu0 %v365
      %1247 = vmatmul.mubr.f32.gmra.mxu0 %v364
      %v1248 = vpop.f32.mrf.mxu0
      %v1249 = vadd.f32 %v1024, %v1248
      %v1250 = vpop.f32.mrf.mxu0
      %1251 = vmatprep.mubr.f32.mxu0 %v374
      %1252 = vmatmul.mubr.f32.gmra.mxu0 %v373
      %v1253 = vpop.f32.mrf.mxu0
      %v1254 = vadd.f32 %v1029, %v1253
      %v1255 = vpop.f32.mrf.mxu0
      %1256 = vmatprep.mubr.f32.mxu0 %v383
      %1257 = vmatmul.mubr.f32.gmra.mxu0 %v382
      %v1258 = vpop.f32.mrf.mxu0
      %v1259 = vadd.f32 %v1034, %v1258
      %v1260 = vpop.f32.mrf.mxu0
      %1261 = vmatprep.mubr.f32.mxu0 %v392
      %1262 = vmatmul.mubr.f32.gmra.mxu0 %v391
      %v1263 = vpop.f32.mrf.mxu0
      %v1264 = vadd.f32 %v1039, %v1263
      %v1265 = vpop.f32.mrf.mxu0
      %1266 = vmatprep.mubr.f32.mxu0 %v401
      %1267 = vmatmul.mubr.f32.gmra.mxu0 %v400
      %v1268 = vpop.f32.mrf.mxu0
      %v1269 = vadd.f32 %v1044, %v1268
      %v1270 = vpop.f32.mrf.mxu0
      %1271 = vmatprep.mubr.f32.mxu0 %v410
      %1272 = vmatmul.mubr.f32.gmra.mxu0 %v409
      %v1273 = vpop.f32.mrf.mxu0
      %v1274 = vadd.f32 %v1049, %v1273
      %v1275 = vpop.f32.mrf.mxu0
      %1276 = vmatprep.mubr.f32.mxu0 %v419
      %1277 = vmatmul.mubr.f32.gmra.mxu0 %v418
      %v1278 = vpop.f32.mrf.mxu0
      %v1279 = vadd.f32 %v1054, %v1278
      %v1280 = vpop.f32.mrf.mxu0
      %1281 = vmatprep.mubr.f32.mxu0 %v428
      %1282 = vmatmul.mubr.f32.gmra.mxu0 %v427
      %v1283 = vpop.f32.mrf.mxu0
      %v1284 = vadd.f32 %v1059, %v1283
      %v1285 = vpop.f32.mrf.mxu0
      %1286 = vmatprep.mubr.f32.mxu0 %v437
      %1287 = vmatmul.mubr.f32.gmra.mxu0 %v436
      %v1288 = vpop.f32.mrf.mxu0
      %v1289 = vadd.f32 %v1064, %v1288
      %v1290 = vpop.f32.mrf.mxu0
      %1291 = vmatprep.mubr.f32.mxu0 %v446
      %1292 = vmatmul.mubr.f32.gmra.mxu0 %v445
      %v1293 = vpop.f32.mrf.mxu0
      %v1294 = vadd.f32 %v1069, %v1293
      %v1295 = vpop.f32.mrf.mxu0
      %1296 = vmatprep.mubr.f32.mxu0 %v455
      %1297 = vmatmul.mubr.f32.gmra.mxu0 %v454
      %v1298 = vpop.f32.mrf.mxu0
      %v1299 = vadd.f32 %v1074, %v1298
      %v1300 = vpop.f32.mrf.mxu0
      %1301 = vmatprep.mubr.f32.mxu0 %v464
      %1302 = vmatmul.mubr.f32.gmra.mxu0 %v463
      %v1303 = vpop.f32.mrf.mxu0
      %v1304 = vadd.f32 %v1079, %v1303
      %v1305 = vpop.f32.mrf.mxu0
      %1306 = vmatprep.mubr.f32.mxu0 %v473
      %1307 = vmatmul.mubr.f32.gmra.mxu0 %v472
      %v1308 = vpop.f32.mrf.mxu0
      %v1309 = vadd.f32 %v1084, %v1308
      %v1310 = vpop.f32.mrf.mxu0
      %1311 = vmatprep.mubr.f32.mxu0 %v482
      %1312 = vmatmul.mubr.f32.gmra.mxu0 %v481
      %v1313 = vpop.f32.mrf.mxu0
      %v1314 = vadd.f32 %v1089, %v1313
      %v1315 = vpop.f32.mrf.mxu0
      %1316 = vmatprep.mubr.f32.mxu0 %v491
      %1317 = vmatmul.mubr.f32.gmra.mxu0 %v490
      %v1318 = vpop.f32.mrf.mxu0
      %v1319 = vadd.f32 %v1094, %v1318
      %v1320 = vpop.f32.mrf.mxu0
      %1321 = vmatprep.mubr.f32.mxu0 %v500
      %1322 = vmatmul.mubr.f32.gmra.mxu0 %v499
      %v1323 = vpop.f32.mrf.mxu0
      %v1324 = vadd.f32 %v1099, %v1323
      %v1325 = vpop.f32.mrf.mxu0
      %1326 = vmatprep.mubr.f32.mxu0 %v509
      %1327 = vmatmul.mubr.f32.gmra.mxu0 %v508
      %v1328 = vpop.f32.mrf.mxu0
      %v1329 = vadd.f32 %v1104, %v1328
      %v1330 = vpop.f32.mrf.mxu0
      %1331 = vdwg.mxu0
      %1332 = vmatprep.subr.mxu0 0.0
      %1333 = vmatpush1.msra.mxu0 %v624
      %1334 = vmatprep.subr.mxu0 0.0
      %1335 = vmatpush1.msra.mxu0 %v623
      %1336 = vmatprep.subr.mxu0 0.0
      %1337 = vmatpush1.msra.mxu0 %v622
      %1338 = vmatprep.subr.mxu0 0.0
      %1339 = vmatpush1.msra.mxu0 %v621
      %1340 = vmatprep.subr.mxu0 0.0
      %1341 = vmatpush1.msra.mxu0 %v620
      %1342 = vmatprep.subr.mxu0 0.0
      %1343 = vmatpush1.msra.mxu0 %v619
      %1344 = vmatprep.subr.mxu0 0.0
      %1345 = vmatpush1.msra.mxu0 %v618
      %1346 = vmatprep.subr.mxu0 0.0
      %1347 = vmatpush1.msra.mxu0 %v617
      %1348 = vmatprep.subr.mxu0 0.0
      %1349 = vmatpush1.msra.mxu0 %v616
      %1350 = vmatprep.subr.mxu0 0.0
      %1351 = vmatpush1.msra.mxu0 %v615
      %1352 = vmatprep.subr.mxu0 0.0
      %1353 = vmatpush1.msra.mxu0 %v614
      %1354 = vmatprep.subr.mxu0 0.0
      %1355 = vmatpush1.msra.mxu0 %v613
      %1356 = vmatprep.subr.mxu0 0.0
      %1357 = vmatpush1.msra.mxu0 %v612
      %1358 = vmatprep.subr.mxu0 0.0
      %1359 = vmatpush1.msra.mxu0 %v611
      %1360 = vmatprep.subr.mxu0 0.0
      %1361 = vmatpush1.msra.mxu0 %v610
      %1362 = vmatprep.subr.mxu0 0.0
      %1363 = vmatpush1.msra.mxu0 %v609
      %1364 = vmatprep.subr.mxu0 0.0
      %1365 = vmatpush2.msra.mxu0 %v640
      %1366 = vmatprep.subr.mxu0 0.0
      %1367 = vmatpush2.msra.mxu0 %v639
      %1368 = vmatprep.subr.mxu0 0.0
      %1369 = vmatpush2.msra.mxu0 %v638
      %1370 = vmatprep.subr.mxu0 0.0
      %1371 = vmatpush2.msra.mxu0 %v637
      %1372 = vmatprep.subr.mxu0 0.0
      %1373 = vmatpush2.msra.mxu0 %v636
      %1374 = vmatprep.subr.mxu0 0.0
      %1375 = vmatpush2.msra.mxu0 %v635
      %1376 = vmatprep.subr.mxu0 0.0
      %1377 = vmatpush2.msra.mxu0 %v634
      %1378 = vmatprep.subr.mxu0 0.0
      %1379 = vmatpush2.msra.mxu0 %v633
      %1380 = vmatprep.subr.mxu0 0.0
      %1381 = vmatpush2.msra.mxu0 %v632
      %1382 = vmatprep.subr.mxu0 0.0
      %1383 = vmatpush2.msra.mxu0 %v631
      %1384 = vmatprep.subr.mxu0 0.0
      %1385 = vmatpush2.msra.mxu0 %v630
      %1386 = vmatprep.subr.mxu0 0.0
      %1387 = vmatpush2.msra.mxu0 %v629
      %1388 = vmatprep.subr.mxu0 0.0
      %1389 = vmatpush2.msra.mxu0 %v628
      %1390 = vmatprep.subr.mxu0 0.0
      %1391 = vmatpush2.msra.mxu0 %v627
      %1392 = vmatprep.subr.mxu0 0.0
      %1393 = vmatpush2.msra.mxu0 %v626
      %1394 = vmatprep.subr.mxu0 0.0
      %1395 = vmatpush2.msra.mxu0 %v625
      %1396 = vmatprep.mubr.f32.mxu0 %v232
      %1397 = vmatmul.mubr.f32.gmra.mxu0 %v231
      %v1398 = vpop.f32.mrf.mxu0
      %v1399 = vadd.f32 %v1174, %v1398
      %v1400 = vpop.f32.mrf.mxu0
      %1401 = vmatprep.mubr.f32.mxu0 %v241
      %1402 = vmatmul.mubr.f32.gmra.mxu0 %v240
      %v1403 = vpop.f32.mrf.mxu0
      %v1404 = vadd.f32 %v1179, %v1403
      %v1405 = vpop.f32.mrf.mxu0
      %1406 = vmatprep.mubr.f32.mxu0 %v250
      %1407 = vmatmul.mubr.f32.gmra.mxu0 %v249
      %v1408 = vpop.f32.mrf.mxu0
      %v1409 = vadd.f32 %v1184, %v1408
      %v1410 = vpop.f32.mrf.mxu0
      %1411 = vmatprep.mubr.f32.mxu0 %v259
      %1412 = vmatmul.mubr.f32.gmra.mxu0 %v258
      %v1413 = vpop.f32.mrf.mxu0
      %v1414 = vadd.f32 %v1189, %v1413
      %v1415 = vpop.f32.mrf.mxu0
      %1416 = vmatprep.mubr.f32.mxu0 %v268
      %1417 = vmatmul.mubr.f32.gmra.mxu0 %v267
      %v1418 = vpop.f32.mrf.mxu0
      %v1419 = vadd.f32 %v1194, %v1418
      %v1420 = vpop.f32.mrf.mxu0
      %1421 = vmatprep.mubr.f32.mxu0 %v277
      %1422 = vmatmul.mubr.f32.gmra.mxu0 %v276
      %v1423 = vpop.f32.mrf.mxu0
      %v1424 = vadd.f32 %v1199, %v1423
      %v1425 = vpop.f32.mrf.mxu0
      %1426 = vmatprep.mubr.f32.mxu0 %v286
      %1427 = vmatmul.mubr.f32.gmra.mxu0 %v285
      %v1428 = vpop.f32.mrf.mxu0
      %v1429 = vadd.f32 %v1204, %v1428
      %v1430 = vpop.f32.mrf.mxu0
      %1431 = vmatprep.mubr.f32.mxu0 %v295
      %1432 = vmatmul.mubr.f32.gmra.mxu0 %v294
      %v1433 = vpop.f32.mrf.mxu0
      %v1434 = vadd.f32 %v1209, %v1433
      %v1435 = vpop.f32.mrf.mxu0
      %1436 = vmatprep.mubr.f32.mxu0 %v304
      %1437 = vmatmul.mubr.f32.gmra.mxu0 %v303
      %v1438 = vpop.f32.mrf.mxu0
      %v1439 = vadd.f32 %v1214, %v1438
      %v1440 = vpop.f32.mrf.mxu0
      %1441 = vmatprep.mubr.f32.mxu0 %v313
      %1442 = vmatmul.mubr.f32.gmra.mxu0 %v312
      %v1443 = vpop.f32.mrf.mxu0
      %v1444 = vadd.f32 %v1219, %v1443
      %v1445 = vpop.f32.mrf.mxu0
      %1446 = vmatprep.mubr.f32.mxu0 %v322
      %1447 = vmatmul.mubr.f32.gmra.mxu0 %v321
      %v1448 = vpop.f32.mrf.mxu0
      %v1449 = vadd.f32 %v1224, %v1448
      %v1450 = vpop.f32.mrf.mxu0
      %1451 = vmatprep.mubr.f32.mxu0 %v331
      %1452 = vmatmul.mubr.f32.gmra.mxu0 %v330
      %v1453 = vpop.f32.mrf.mxu0
      %v1454 = vadd.f32 %v1229, %v1453
      %v1455 = vpop.f32.mrf.mxu0
      %1456 = vmatprep.mubr.f32.mxu0 %v340
      %1457 = vmatmul.mubr.f32.gmra.mxu0 %v339
      %v1458 = vpop.f32.mrf.mxu0
      %v1459 = vadd.f32 %v1234, %v1458
      %v1460 = vpop.f32.mrf.mxu0
      %1461 = vmatprep.mubr.f32.mxu0 %v349
      %1462 = vmatmul.mubr.f32.gmra.mxu0 %v348
      %v1463 = vpop.f32.mrf.mxu0
      %v1464 = vadd.f32 %v1239, %v1463
      %v1465 = vpop.f32.mrf.mxu0
      %1466 = vmatprep.mubr.f32.mxu0 %v358
      %1467 = vmatmul.mubr.f32.gmra.mxu0 %v357
      %v1468 = vpop.f32.mrf.mxu0
      %v1469 = vadd.f32 %v1244, %v1468
      %v1470 = vpop.f32.mrf.mxu0
      %1471 = vmatprep.mubr.f32.mxu0 %v367
      %1472 = vmatmul.mubr.f32.gmra.mxu0 %v366
      %v1473 = vpop.f32.mrf.mxu0
      %v1474 = vadd.f32 %v1249, %v1473
      %v1475 = vpop.f32.mrf.mxu0
      %1476 = vmatprep.mubr.f32.mxu0 %v376
      %1477 = vmatmul.mubr.f32.gmra.mxu0 %v375
      %v1478 = vpop.f32.mrf.mxu0
      %v1479 = vadd.f32 %v1254, %v1478
      %v1480 = vpop.f32.mrf.mxu0
      %1481 = vmatprep.mubr.f32.mxu0 %v385
      %1482 = vmatmul.mubr.f32.gmra.mxu0 %v384
      %v1483 = vpop.f32.mrf.mxu0
      %v1484 = vadd.f32 %v1259, %v1483
      %v1485 = vpop.f32.mrf.mxu0
      %1486 = vmatprep.mubr.f32.mxu0 %v394
      %1487 = vmatmul.mubr.f32.gmra.mxu0 %v393
      %v1488 = vpop.f32.mrf.mxu0
      %v1489 = vadd.f32 %v1264, %v1488
      %v1490 = vpop.f32.mrf.mxu0
      %1491 = vmatprep.mubr.f32.mxu0 %v403
      %1492 = vmatmul.mubr.f32.gmra.mxu0 %v402
      %v1493 = vpop.f32.mrf.mxu0
      %v1494 = vadd.f32 %v1269, %v1493
      %v1495 = vpop.f32.mrf.mxu0
      %1496 = vmatprep.mubr.f32.mxu0 %v412
      %1497 = vmatmul.mubr.f32.gmra.mxu0 %v411
      %v1498 = vpop.f32.mrf.mxu0
      %v1499 = vadd.f32 %v1274, %v1498
      %v1500 = vpop.f32.mrf.mxu0
      %1501 = vmatprep.mubr.f32.mxu0 %v421
      %1502 = vmatmul.mubr.f32.gmra.mxu0 %v420
      %v1503 = vpop.f32.mrf.mxu0
      %v1504 = vadd.f32 %v1279, %v1503
      %v1505 = vpop.f32.mrf.mxu0
      %1506 = vmatprep.mubr.f32.mxu0 %v430
      %1507 = vmatmul.mubr.f32.gmra.mxu0 %v429
      %v1508 = vpop.f32.mrf.mxu0
      %v1509 = vadd.f32 %v1284, %v1508
      %v1510 = vpop.f32.mrf.mxu0
      %1511 = vmatprep.mubr.f32.mxu0 %v439
      %1512 = vmatmul.mubr.f32.gmra.mxu0 %v438
      %v1513 = vpop.f32.mrf.mxu0
      %v1514 = vadd.f32 %v1289, %v1513
      %v1515 = vpop.f32.mrf.mxu0
      %1516 = vmatprep.mubr.f32.mxu0 %v448
      %1517 = vmatmul.mubr.f32.gmra.mxu0 %v447
      %v1518 = vpop.f32.mrf.mxu0
      %v1519 = vadd.f32 %v1294, %v1518
      %v1520 = vpop.f32.mrf.mxu0
      %1521 = vmatprep.mubr.f32.mxu0 %v457
      %1522 = vmatmul.mubr.f32.gmra.mxu0 %v456
      %v1523 = vpop.f32.mrf.mxu0
      %v1524 = vadd.f32 %v1299, %v1523
      %v1525 = vpop.f32.mrf.mxu0
      %1526 = vmatprep.mubr.f32.mxu0 %v466
      %1527 = vmatmul.mubr.f32.gmra.mxu0 %v465
      %v1528 = vpop.f32.mrf.mxu0
      %v1529 = vadd.f32 %v1304, %v1528
      %v1530 = vpop.f32.mrf.mxu0
      %1531 = vmatprep.mubr.f32.mxu0 %v475
      %1532 = vmatmul.mubr.f32.gmra.mxu0 %v474
      %v1533 = vpop.f32.mrf.mxu0
      %v1534 = vadd.f32 %v1309, %v1533
      %v1535 = vpop.f32.mrf.mxu0
      %1536 = vmatprep.mubr.f32.mxu0 %v484
      %1537 = vmatmul.mubr.f32.gmra.mxu0 %v483
      %v1538 = vpop.f32.mrf.mxu0
      %v1539 = vadd.f32 %v1314, %v1538
      %v1540 = vpop.f32.mrf.mxu0
      %1541 = vmatprep.mubr.f32.mxu0 %v493
      %1542 = vmatmul.mubr.f32.gmra.mxu0 %v492
      %v1543 = vpop.f32.mrf.mxu0
      %v1544 = vadd.f32 %v1319, %v1543
      %v1545 = vpop.f32.mrf.mxu0
      %1546 = vmatprep.mubr.f32.mxu0 %v502
      %1547 = vmatmul.mubr.f32.gmra.mxu0 %v501
      %v1548 = vpop.f32.mrf.mxu0
      %v1549 = vadd.f32 %v1324, %v1548
      %v1550 = vpop.f32.mrf.mxu0
      %1551 = vmatprep.mubr.f32.mxu0 %v511
      %1552 = vmatmul.mubr.f32.gmra.mxu0 %v510
      %v1553 = vpop.f32.mrf.mxu0
      %v1554 = vadd.f32 %v1329, %v1553
      %v1555 = vpop.f32.mrf.mxu0
      %1556 = vdwg.mxu0
      %1557 = vmatprep.subr.mxu0 0.0
      %1558 = vmatpush1.msra.mxu0 %v656
      %1559 = vmatprep.subr.mxu0 0.0
      %1560 = vmatpush1.msra.mxu0 %v655
      %1561 = vmatprep.subr.mxu0 0.0
      %1562 = vmatpush1.msra.mxu0 %v654
      %1563 = vmatprep.subr.mxu0 0.0
      %1564 = vmatpush1.msra.mxu0 %v653
      %1565 = vmatprep.subr.mxu0 0.0
      %1566 = vmatpush1.msra.mxu0 %v652
      %1567 = vmatprep.subr.mxu0 0.0
      %1568 = vmatpush1.msra.mxu0 %v651
      %1569 = vmatprep.subr.mxu0 0.0
      %1570 = vmatpush1.msra.mxu0 %v650
      %1571 = vmatprep.subr.mxu0 0.0
      %1572 = vmatpush1.msra.mxu0 %v649
      %1573 = vmatprep.subr.mxu0 0.0
      %1574 = vmatpush1.msra.mxu0 %v648
      %1575 = vmatprep.subr.mxu0 0.0
      %1576 = vmatpush1.msra.mxu0 %v647
      %1577 = vmatprep.subr.mxu0 0.0
      %1578 = vmatpush1.msra.mxu0 %v646
      %1579 = vmatprep.subr.mxu0 0.0
      %1580 = vmatpush1.msra.mxu0 %v645
      %1581 = vmatprep.subr.mxu0 0.0
      %1582 = vmatpush1.msra.mxu0 %v644
      %1583 = vmatprep.subr.mxu0 0.0
      %1584 = vmatpush1.msra.mxu0 %v643
      %1585 = vmatprep.subr.mxu0 0.0
      %1586 = vmatpush1.msra.mxu0 %v642
      %1587 = vmatprep.subr.mxu0 0.0
      %1588 = vmatpush1.msra.mxu0 %v641
      %1589 = vmatprep.subr.mxu0 0.0
      %1590 = vmatpush2.msra.mxu0 0.0
      %1591 = vmatprep.subr.mxu0 0.0
      %1592 = vmatpush2.msra.mxu0 0.0
      %1593 = vmatprep.subr.mxu0 0.0
      %1594 = vmatpush2.msra.mxu0 0.0
      %1595 = vmatprep.subr.mxu0 0.0
      %1596 = vmatpush2.msra.mxu0 0.0
      %1597 = vmatprep.subr.mxu0 0.0
      %1598 = vmatpush2.msra.mxu0 0.0
      %1599 = vmatprep.subr.mxu0 0.0
      %1600 = vmatpush2.msra.mxu0 0.0
      %1601 = vmatprep.subr.mxu0 0.0
      %1602 = vmatpush2.msra.mxu0 0.0
      %1603 = vmatprep.subr.mxu0 0.0
      %1604 = vmatpush2.msra.mxu0 0.0
      %1605 = vmatprep.subr.mxu0 0.0
      %1606 = vmatpush2.msra.mxu0 0.0
      %1607 = vmatprep.subr.mxu0 0.0
      %1608 = vmatpush2.msra.mxu0 0.0
      %1609 = vmatprep.subr.mxu0 0.0
      %1610 = vmatpush2.msra.mxu0 0.0
      %1611 = vmatprep.subr.mxu0 0.0
      %1612 = vmatpush2.msra.mxu0 0.0
      %1613 = vmatprep.subr.mxu0 0.0
      %1614 = vmatpush2.msra.mxu0 0.0
      %1615 = vmatprep.subr.mxu0 0.0
      %1616 = vmatpush2.msra.mxu0 0.0
      %1617 = vmatprep.subr.mxu0 0.0
      %1618 = vmatpush2.msra.mxu0 0.0
      %1619 = vmatprep.subr.mxu0 0.0
      %1620 = vmatpush2.msra.mxu0 0.0
      %1621 = vmatprep.mubr.f32.mxu0 0.0
      %1622 = vmatmul.mubr.f32.gmra.mxu0 %v233
      %v1623 = vpop.f32.mrf.mxu0
      %v1624 = vadd.f32 %v1399, %v1623
      %v1625 = vpop.f32.mrf.mxu0
      %1626 = vmatprep.mubr.f32.mxu0 0.0
      %1627 = vmatmul.mubr.f32.gmra.mxu0 %v242
      %v1628 = vpop.f32.mrf.mxu0
      %v1629 = vadd.f32 %v1404, %v1628
      %v1630 = vpop.f32.mrf.mxu0
      %1631 = vmatprep.mubr.f32.mxu0 0.0
      %1632 = vmatmul.mubr.f32.gmra.mxu0 %v251
      %v1633 = vpop.f32.mrf.mxu0
      %v1634 = vadd.f32 %v1409, %v1633
      %v1635 = vpop.f32.mrf.mxu0
      %1636 = vmatprep.mubr.f32.mxu0 0.0
      %1637 = vmatmul.mubr.f32.gmra.mxu0 %v260
      %v1638 = vpop.f32.mrf.mxu0
      %v1639 = vadd.f32 %v1414, %v1638
      %v1640 = vpop.f32.mrf.mxu0
      %1641 = vmatprep.mubr.f32.mxu0 0.0
      %1642 = vmatmul.mubr.f32.gmra.mxu0 %v269
      %v1643 = vpop.f32.mrf.mxu0
      %v1644 = vadd.f32 %v1419, %v1643
      %v1645 = vpop.f32.mrf.mxu0
      %1646 = vmatprep.mubr.f32.mxu0 0.0
      %1647 = vmatmul.mubr.f32.gmra.mxu0 %v278
      %v1648 = vpop.f32.mrf.mxu0
      %v1649 = vadd.f32 %v1424, %v1648
      %v1650 = vpop.f32.mrf.mxu0
      %1651 = vmatprep.mubr.f32.mxu0 0.0
      %1652 = vmatmul.mubr.f32.gmra.mxu0 %v287
      %v1653 = vpop.f32.mrf.mxu0
      %v1654 = vadd.f32 %v1429, %v1653
      %v1655 = vpop.f32.mrf.mxu0
      %1656 = vmatprep.mubr.f32.mxu0 0.0
      %1657 = vmatmul.mubr.f32.gmra.mxu0 %v296
      %v1658 = vpop.f32.mrf.mxu0
      %v1659 = vadd.f32 %v1434, %v1658
      %v1660 = vpop.f32.mrf.mxu0
      %1661 = vmatprep.mubr.f32.mxu0 0.0
      %1662 = vmatmul.mubr.f32.gmra.mxu0 %v305
      %v1663 = vpop.f32.mrf.mxu0
      %v1664 = vadd.f32 %v1439, %v1663
      %v1665 = vpop.f32.mrf.mxu0
      %1666 = vmatprep.mubr.f32.mxu0 0.0
      %1667 = vmatmul.mubr.f32.gmra.mxu0 %v314
      %v1668 = vpop.f32.mrf.mxu0
      %v1669 = vadd.f32 %v1444, %v1668
      %v1670 = vpop.f32.mrf.mxu0
      %1671 = vmatprep.mubr.f32.mxu0 0.0
      %1672 = vmatmul.mubr.f32.gmra.mxu0 %v323
      %v1673 = vpop.f32.mrf.mxu0
      %v1674 = vadd.f32 %v1449, %v1673
      %v1675 = vpop.f32.mrf.mxu0
      %1676 = vmatprep.mubr.f32.mxu0 0.0
      %1677 = vmatmul.mubr.f32.gmra.mxu0 %v332
      %v1678 = vpop.f32.mrf.mxu0
      %v1679 = vadd.f32 %v1454, %v1678
      %v1680 = vpop.f32.mrf.mxu0
      %1681 = vmatprep.mubr.f32.mxu0 0.0
      %1682 = vmatmul.mubr.f32.gmra.mxu0 %v341
      %v1683 = vpop.f32.mrf.mxu0
      %v1684 = vadd.f32 %v1459, %v1683
      %v1685 = vpop.f32.mrf.mxu0
      %1686 = vmatprep.mubr.f32.mxu0 0.0
      %1687 = vmatmul.mubr.f32.gmra.mxu0 %v350
      %v1688 = vpop.f32.mrf.mxu0
      %v1689 = vadd.f32 %v1464, %v1688
      %v1690 = vpop.f32.mrf.mxu0
      %1691 = vmatprep.mubr.f32.mxu0 0.0
      %1692 = vmatmul.mubr.f32.gmra.mxu0 %v359
      %v1693 = vpop.f32.mrf.mxu0
      %v1694 = vadd.f32 %v1469, %v1693
      %v1695 = vpop.f32.mrf.mxu0
      %1696 = vmatprep.mubr.f32.mxu0 0.0
      %1697 = vmatmul.mubr.f32.gmra.mxu0 %v368
      %v1698 = vpop.f32.mrf.mxu0
      %v1699 = vadd.f32 %v1474, %v1698
      %v1700 = vpop.f32.mrf.mxu0
      %1701 = vmatprep.mubr.f32.mxu0 0.0
      %1702 = vmatmul.mubr.f32.gmra.mxu0 %v377
      %v1703 = vpop.f32.mrf.mxu0
      %v1704 = vadd.f32 %v1479, %v1703
      %v1705 = vpop.f32.mrf.mxu0
      %1706 = vmatprep.mubr.f32.mxu0 0.0
      %1707 = vmatmul.mubr.f32.gmra.mxu0 %v386
      %v1708 = vpop.f32.mrf.mxu0
      %v1709 = vadd.f32 %v1484, %v1708
      %v1710 = vpop.f32.mrf.mxu0
      %1711 = vmatprep.mubr.f32.mxu0 0.0
      %1712 = vmatmul.mubr.f32.gmra.mxu0 %v395
      %v1713 = vpop.f32.mrf.mxu0
      %v1714 = vadd.f32 %v1489, %v1713
      %v1715 = vpop.f32.mrf.mxu0
      %1716 = vmatprep.mubr.f32.mxu0 0.0
      %1717 = vmatmul.mubr.f32.gmra.mxu0 %v404
      %v1718 = vpop.f32.mrf.mxu0
      %v1719 = vadd.f32 %v1494, %v1718
      %v1720 = vpop.f32.mrf.mxu0
      %1721 = vmatprep.mubr.f32.mxu0 0.0
      %1722 = vmatmul.mubr.f32.gmra.mxu0 %v413
      %v1723 = vpop.f32.mrf.mxu0
      %v1724 = vadd.f32 %v1499, %v1723
      %v1725 = vpop.f32.mrf.mxu0
      %1726 = vmatprep.mubr.f32.mxu0 0.0
      %1727 = vmatmul.mubr.f32.gmra.mxu0 %v422
      %v1728 = vpop.f32.mrf.mxu0
      %v1729 = vadd.f32 %v1504, %v1728
      %v1730 = vpop.f32.mrf.mxu0
      %1731 = vmatprep.mubr.f32.mxu0 0.0
      %1732 = vmatmul.mubr.f32.gmra.mxu0 %v431
      %v1733 = vpop.f32.mrf.mxu0
      %v1734 = vadd.f32 %v1509, %v1733
      %v1735 = vpop.f32.mrf.mxu0
      %1736 = vmatprep.mubr.f32.mxu0 0.0
      %1737 = vmatmul.mubr.f32.gmra.mxu0 %v440
      %v1738 = vpop.f32.mrf.mxu0
      %v1739 = vadd.f32 %v1514, %v1738
      %v1740 = vpop.f32.mrf.mxu0
      %1741 = vmatprep.mubr.f32.mxu0 0.0
      %1742 = vmatmul.mubr.f32.gmra.mxu0 %v449
      %v1743 = vpop.f32.mrf.mxu0
      %v1744 = vadd.f32 %v1519, %v1743
      %v1745 = vpop.f32.mrf.mxu0
      %1746 = vmatprep.mubr.f32.mxu0 0.0
      %1747 = vmatmul.mubr.f32.gmra.mxu0 %v458
      %v1748 = vpop.f32.mrf.mxu0
      %v1749 = vadd.f32 %v1524, %v1748
      %v1750 = vpop.f32.mrf.mxu0
      %1751 = vmatprep.mubr.f32.mxu0 0.0
      %1752 = vmatmul.mubr.f32.gmra.mxu0 %v467
      %v1753 = vpop.f32.mrf.mxu0
      %v1754 = vadd.f32 %v1529, %v1753
      %v1755 = vpop.f32.mrf.mxu0
      %1756 = vmatprep.mubr.f32.mxu0 0.0
      %1757 = vmatmul.mubr.f32.gmra.mxu0 %v476
      %v1758 = vpop.f32.mrf.mxu0
      %v1759 = vadd.f32 %v1534, %v1758
      %v1760 = vpop.f32.mrf.mxu0
      %1761 = vmatprep.mubr.f32.mxu0 0.0
      %1762 = vmatmul.mubr.f32.gmra.mxu0 %v485
      %v1763 = vpop.f32.mrf.mxu0
      %v1764 = vadd.f32 %v1539, %v1763
      %v1765 = vpop.f32.mrf.mxu0
      %1766 = vmatprep.mubr.f32.mxu0 0.0
      %1767 = vmatmul.mubr.f32.gmra.mxu0 %v494
      %v1768 = vpop.f32.mrf.mxu0
      %v1769 = vadd.f32 %v1544, %v1768
      %v1770 = vpop.f32.mrf.mxu0
      %1771 = vmatprep.mubr.f32.mxu0 0.0
      %1772 = vmatmul.mubr.f32.gmra.mxu0 %v503
      %v1773 = vpop.f32.mrf.mxu0
      %v1774 = vadd.f32 %v1549, %v1773
      %v1775 = vpop.f32.mrf.mxu0
      %1776 = vmatprep.mubr.f32.mxu0 0.0
      %1777 = vmatmul.mubr.f32.gmra.mxu0 %v512
      %v1778 = vpop.f32.mrf.mxu0
      %v1779 = vadd.f32 %v1554, %v1778
      %v1780 = vpop.f32.mrf.mxu0
      %1781 = vdwg.mxu0
      %1782 = vst [vmem:[%s215] sm:$0xff] %v1624
      %1783 = vst [vmem:[%s215 + $0x8] sm:$0xff] %v1629
      %1784 = vst [vmem:[%s215 + $0x10] sm:$0xff] %v1634
      %1785 = vst [vmem:[%s215 + $0x18] sm:$0xff] %v1639
      %1786 = vst [vmem:[%s215 + $0x20] sm:$0xff] %v1644
      %1787 = vst [vmem:[%s215 + $0x28] sm:$0xff] %v1649
      %1788 = vst [vmem:[%s215 + $0x30] sm:$0xff] %v1654
      %1789 = vst [vmem:[%s215 + $0x38] sm:$0xff] %v1659
      %1790 = vst [vmem:[%s215 + $0x40] sm:$0xff] %v1664
      %1791 = vst [vmem:[%s215 + $0x48] sm:$0xff] %v1669
      %1792 = vst [vmem:[%s215 + $0x50] sm:$0xff] %v1674
      %1793 = vst [vmem:[%s215 + $0x58] sm:$0xff] %v1679
      %1794 = vst [vmem:[%s215 + $0x60] sm:$0xff] %v1684
      %1795 = vst [vmem:[%s215 + $0x68] sm:$0xff] %v1689
      %1796 = vst [vmem:[%s215 + $0x70] sm:$0xff] %v1694
      %1797 = vst [vmem:[%s215 + $0x78] sm:$0xff] %v1699
      %1798 = vst [vmem:[%s215 + $0x80] sm:$0xff] %v1704
      %1799 = vst [vmem:[%s215 + $0x88] sm:$0xff] %v1709
      %1800 = vst [vmem:[%s215 + $0x90] sm:$0xff] %v1714
      %1801 = vst [vmem:[%s215 + $0x98] sm:$0xff] %v1719
      %1802 = vst [vmem:[%s215 + $0xa0] sm:$0xff] %v1724
      %1803 = vst [vmem:[%s215 + $0xa8] sm:$0xff] %v1729
      %1804 = vst [vmem:[%s215 + $0xb0] sm:$0xff] %v1734
      %1805 = vst [vmem:[%s215 + $0xb8] sm:$0xff] %v1739
      %1806 = vst [vmem:[%s215 + $0xc0] sm:$0xff] %v1744
      %1807 = vst [vmem:[%s215 + $0xc8] sm:$0xff] %v1749
      %1808 = vst [vmem:[%s215 + $0xd0] sm:$0xff] %v1754
      %1809 = vst [vmem:[%s215 + $0xd8] sm:$0xff] %v1759
      %1810 = vst [vmem:[%s215 + $0xe0] sm:$0xff] %v1764
      %1811 = vst [vmem:[%s215 + $0xe8] sm:$0xff] %v1769
      %1812 = vst [vmem:[%s215 + $0xf0] sm:$0xff] %v1774
      %1813 = vst [vmem:[%s215 + $0xf8] sm:$0xff] %v1779
      %v1814 = vadd.f32 %v1624, %v1629
      %v1815 = vadd.f32 %v1814, %v1634
      %v1816 = vadd.f32 %v1815, %v1639
      %v1817 = vadd.f32 %v1816, %v1644
      %v1818 = vadd.f32 %v1817, %v1649
      %v1819 = vadd.f32 %v1818, %v1654
      %v1820 = vadd.f32 %v1819, %v1659
      %v1821 = vadd.f32 %v1820, %v1664
      %v1822 = vadd.f32 %v1821, %v1669
      %v1823 = vadd.f32 %v1822, %v1674
      %v1824 = vadd.f32 %v1823, %v1679
      %v1825 = vadd.f32 %v1824, %v1684
      %v1826 = vadd.f32 %v1825, %v1689
      %v1827 = vadd.f32 %v1826, %v1694
      %v1828 = vadd.f32 %v1827, %v1699
      %v1829 = vadd.f32 %v1828, %v1704
      %v1830 = vadd.f32 %v1829, %v1709
      %v1831 = vadd.f32 %v1830, %v1714
      %v1832 = vadd.f32 %v1831, %v1719
      %v1833 = vadd.f32 %v1832, %v1724
      %v1834 = vadd.f32 %v1833, %v1729
      %v1835 = vadd.f32 %v1834, %v1734
      %v1836 = vadd.f32 %v1835, %v1739
      %v1837 = vadd.f32 %v1836, %v1744
      %v1838 = vadd.f32 %v1837, %v1749
      %v1839 = vadd.f32 %v1838, %v1754
      %v1840 = vadd.f32 %v1839, %v1759
      %v1841 = vadd.f32 %v1840, %v1764
      %v1842 = vadd.f32 %v1841, %v1769
      %v1843 = vadd.f32 %v1842, %v1774
      %v1844 = vadd.f32 %v1843, %v1779
      %v1845 = vrot.slane %v1844, 4
      %v1846 = vadd.f32 %v1844, %v1845
      %v1847 = vrot.slane %v1846, 2
      %v1848 = vadd.f32 %v1846, %v1847
      %v1849 = vrot.slane %v1848, 1
      %v1850 = vadd.f32 %v1848, %v1849
      %1851 = vst [vmem:[%s220] sm:$0xff] %v1850
      %v1852 = vmul.f32 %v1624, %v1624
      %v1853 = vmul.f32 %v1629, %v1629
      %v1854 = vmul.f32 %v1634, %v1634
      %v1855 = vmul.f32 %v1639, %v1639
      %v1856 = vmul.f32 %v1644, %v1644
      %v1857 = vmul.f32 %v1649, %v1649
      %v1858 = vmul.f32 %v1654, %v1654
      %v1859 = vmul.f32 %v1659, %v1659
      %v1860 = vmul.f32 %v1664, %v1664
      %v1861 = vmul.f32 %v1669, %v1669
      %v1862 = vmul.f32 %v1674, %v1674
      %v1863 = vmul.f32 %v1679, %v1679
      %v1864 = vmul.f32 %v1684, %v1684
      %v1865 = vmul.f32 %v1689, %v1689
      %v1866 = vmul.f32 %v1694, %v1694
      %v1867 = vmul.f32 %v1699, %v1699
      %v1868 = vmul.f32 %v1704, %v1704
      %v1869 = vmul.f32 %v1709, %v1709
      %v1870 = vmul.f32 %v1714, %v1714
      %v1871 = vmul.f32 %v1719, %v1719
      %v1872 = vmul.f32 %v1724, %v1724
      %v1873 = vmul.f32 %v1729, %v1729
      %v1874 = vmul.f32 %v1734, %v1734
      %v1875 = vmul.f32 %v1739, %v1739
      %v1876 = vmul.f32 %v1744, %v1744
      %v1877 = vmul.f32 %v1749, %v1749
      %v1878 = vmul.f32 %v1754, %v1754
      %v1879 = vmul.f32 %v1759, %v1759
      %v1880 = vmul.f32 %v1764, %v1764
      %v1881 = vmul.f32 %v1769, %v1769
      %v1882 = vmul.f32 %v1774, %v1774
      %v1883 = vmul.f32 %v1779, %v1779
      %v1884 = vadd.f32 %v1852, %v1853
      %v1885 = vadd.f32 %v1884, %v1854
      %v1886 = vadd.f32 %v1885, %v1855
      %v1887 = vadd.f32 %v1886, %v1856
      %v1888 = vadd.f32 %v1887, %v1857
      %v1889 = vadd.f32 %v1888, %v1858
      %v1890 = vadd.f32 %v1889, %v1859
      %v1891 = vadd.f32 %v1890, %v1860
      %v1892 = vadd.f32 %v1891, %v1861
      %v1893 = vadd.f32 %v1892, %v1862
      %v1894 = vadd.f32 %v1893, %v1863
      %v1895 = vadd.f32 %v1894, %v1864
      %v1896 = vadd.f32 %v1895, %v1865
      %v1897 = vadd.f32 %v1896, %v1866
      %v1898 = vadd.f32 %v1897, %v1867
      %v1899 = vadd.f32 %v1898, %v1868
      %v1900 = vadd.f32 %v1899, %v1869
      %v1901 = vadd.f32 %v1900, %v1870
      %v1902 = vadd.f32 %v1901, %v1871
      %v1903 = vadd.f32 %v1902, %v1872
      %v1904 = vadd.f32 %v1903, %v1873
      %v1905 = vadd.f32 %v1904, %v1874
      %v1906 = vadd.f32 %v1905, %v1875
      %v1907 = vadd.f32 %v1906, %v1876
      %v1908 = vadd.f32 %v1907, %v1877
      %v1909 = vadd.f32 %v1908, %v1878
      %v1910 = vadd.f32 %v1909, %v1879
      %v1911 = vadd.f32 %v1910, %v1880
      %v1912 = vadd.f32 %v1911, %v1881
      %v1913 = vadd.f32 %v1912, %v1882
      %v1914 = vadd.f32 %v1913, %v1883
      %v1915 = vrot.slane %v1914, 4
      %v1916 = vadd.f32 %v1914, %v1915
      %v1917 = vrot.slane %v1916, 2
      %v1918 = vadd.f32 %v1916, %v1917
      %v1919 = vrot.slane %v1918, 1
      %v1920 = vadd.f32 %v1918, %v1919
      %1921 = vst [vmem:[%s224] sm:$0xff] %v1920
      %s1922 = smul.u32 32, %s16
      %p1923 = scmp.lt.s32.totalorder %s1922, 63
      %s1924 = scalar_select %p1923, %s1922, 63
      %s1925 = smul.addr %s1924, 8
      %s1926 = scalar_lea.vmem %s2, %s1925
      %p1927 = scmp.lt.s32.totalorder %s16, 1
      %s1928 = scalar_select %p1927, %s16, 1
      %s1929 = smul.addr %s1928, 8
      %s1930 = scalar_lea.vmem %s3, %s1929
      %p1931 = scmp.lt.s32.totalorder %s16, 1
      %s1932 = scalar_select %p1931, %s16, 1
      %s1933 = smul.addr %s1932, 8
      %s1934 = scalar_lea.vmem %s4, %s1933
      // Predicated region
      $region29: #{_lambda_.19} parent=27 // pred_check
        %p1935 = pneg %p81
      $region30: #{_lambda_.19} parent=27 // pred_check_branch
        %1937 = sbr.rel (%p1935) target = $region32
      $region31: #{_lambda_.19} parent=27 // pred_region
        %s1938 = smul.u32 32, %s16
      $region32: #{_lambda_.19} parent=27 // pred_fallthru
        _
      // Predicated region
      $region33: #{_lambda_.19} parent=27 // pred_check
        %p1939 = pneg %p107
      $region34: #{_lambda_.19} parent=27 // pred_check_branch
        %1941 = sbr.rel (%p1939) target = $region36
      $region35: #{_lambda_.19} parent=27 // pred_region
        _
      $region36: #{_lambda_.19} parent=27 // pred_fallthru
        _
      // Predicated region
      $region37: #{_lambda_.19} parent=27 // pred_check
        %p1942 = pneg %p133
      $region38: #{_lambda_.19} parent=27 // pred_check_branch
        %1944 = sbr.rel (%p1942) target = $region40
      $region39: #{_lambda_.19} parent=27 // pred_region
        _
      $region40: #{_lambda_.19} parent=27 // pred_fallthru
        _
    $region28: #{_lambda_.19} parent=5 // pred_fallthru
      _
    %p1945 = scmp.le.s32.totalorder 2, %s11
    // Predicated region
    $region41: #{_lambda_.19} parent=5 // pred_check
      %p1946 = pneg %p1945
    $region42: #{_lambda_.19} parent=5 // pred_check_branch
      %1948 = sbr.rel (%p1946) target = $region44
    $region43: #{_lambda_.19} parent=5 // pred_region
      %s1949 = ssub.s32 %s11, 2
      // Predicated region
      $region45: #{_lambda_.19} parent=43 // pred_check
        %p1950 = pneg %p87
      $region46: #{_lambda_.19} parent=43 // pred_check_branch
        %1952 = sbr.rel (%p1950) target = $region48
      $region47: #{_lambda_.19} parent=43 // pred_region
        %s1953 = smul.u32 32, %s17
        %p1954 = scmp.lt.s32.totalorder %s1953, 63
        %s1955 = scalar_select %p1954, %s1953, 63
        %s1956 = smul.addr %s1955, 8
        %s1957 = scalar_lea.vmem %s2, %s1956
      $region48: #{_lambda_.19} parent=43 // pred_fallthru
        _
      // Predicated region
      $region49: #{_lambda_.19} parent=43 // pred_check
        %p1958 = pneg %p113
      $region50: #{_lambda_.19} parent=43 // pred_check_branch
        %1960 = sbr.rel (%p1958) target = $region52
      $region51: #{_lambda_.19} parent=43 // pred_region
        %p1961 = scmp.lt.s32.totalorder %s17, 1
        %s1962 = scalar_select %p1961, %s17, 1
        %s1963 = smul.addr %s1962, 8
        %s1964 = scalar_lea.vmem %s3, %s1963
      $region52: #{_lambda_.19} parent=43 // pred_fallthru
        _
      // Predicated region
      $region53: #{_lambda_.19} parent=43 // pred_check
        %p1965 = pneg %p139
      $region54: #{_lambda_.19} parent=43 // pred_check_branch
        %1967 = sbr.rel (%p1965) target = $region56
      $region55: #{_lambda_.19} parent=43 // pred_region
        %p1968 = scmp.lt.s32.totalorder %s17, 1
        %s1969 = scalar_select %p1968, %s17, 1
        %s1970 = smul.addr %s1969, 8
        %s1971 = scalar_lea.vmem %s4, %s1970
      $region56: #{_lambda_.19} parent=43 // pred_fallthru
        _
    $region44: #{_lambda_.19} parent=5 // pred_fallthru
      _
  $region6: #{_lambda_.19} parent=0 // loop_footer
    %s15 = sadd.s32 1, %s11
  $region7: #{_lambda_.19} parent=0 // loop_footer_branch
    %10 = sbr.rel target = $region3
  $region8: #{_lambda_.19} parent=0 // loop_exit
    _

// kernel: _lambda_.27
$region0: #{_lambda_.27}
  #allocation0 [shape = 'u32[]', space=smem, size = 0x4, offset = 0x4, fixed_abs, tag = 'smem constant byte address 0x4 - core index']
  #allocation1 [shape = 'u32[144,128]{1,0:T(1,128)}', space=vmem, size = 0x12000, scoped, tag = 'internal scratch']
  %s0 = inlined_call_operand.vmem [shape: f32[128,128], index: 0, kind: input, shape index: {}]
  %s1 = inlined_call_operand.vmem [shape: f32[128,128], index: 1, kind: input, shape index: {}]
  %s2 = inlined_call_operand.vmem [shape: f32[128,128], index: 2, kind: output, shape index: {0}]
  %s3 = inlined_call_operand.vmem [shape: f32[8,128], index: 3, kind: output, shape index: {1}]
  %s4 = inlined_call_operand.vmem [shape: f32[8,128], index: 4, kind: output, shape index: {2}]
  %5 = xla_tuple %s2, %s3, %s4
  %s6 = sld [smem:[#allocation0]]
  $region34: #{_lambda_.27} parent=0
    _
  %s8 = ssub.s32 1, %s6
  %s9 = scalar_select 0, %s8, %s6
  // Predicated region
  $region2: #{_lambda_.27} parent=0 // pred_check
    _
  $region3: #{_lambda_.27} parent=0 // pred_check_branch
    %11 = sbr.rel (0) target = $region5
  $region4: #{_lambda_.27} parent=0 // pred_region
    _
  $region5: #{_lambda_.27} parent=0 // pred_fallthru
    _
  // Predicated region
  $region6: #{_lambda_.27} parent=0 // pred_check
    _
  $region7: #{_lambda_.27} parent=0 // pred_check_branch
    %13 = sbr.rel (0) target = $region9
  $region8: #{_lambda_.27} parent=0 // pred_region
    _
  $region9: #{_lambda_.27} parent=0 // pred_fallthru
    _
  %v14 = vld [vmem:[%s0] sm:$0xff]
  %v15 = vld [vmem:[%s0 + $0x8] sm:$0xff]
  %v16 = vld [vmem:[%s0 + $0x10] sm:$0xff]
  %v17 = vld [vmem:[%s0 + $0x18] sm:$0xff]
  %v18 = vld [vmem:[%s0 + $0x20] sm:$0xff]
  %v19 = vld [vmem:[%s0 + $0x28] sm:$0xff]
  %v20 = vld [vmem:[%s0 + $0x30] sm:$0xff]
  %v21 = vld [vmem:[%s0 + $0x38] sm:$0xff]
  %v22 = vld [vmem:[%s0 + $0x40] sm:$0xff]
  %v23 = vld [vmem:[%s0 + $0x48] sm:$0xff]
  %v24 = vld [vmem:[%s0 + $0x50] sm:$0xff]
  %v25 = vld [vmem:[%s0 + $0x58] sm:$0xff]
  %v26 = vld [vmem:[%s0 + $0x60] sm:$0xff]
  %v27 = vld [vmem:[%s0 + $0x68] sm:$0xff]
  %v28 = vld [vmem:[%s0 + $0x70] sm:$0xff]
  %v29 = vld [vmem:[%s0 + $0x78] sm:$0xff]
  %v30 = vld [vmem:[%s1] sm:$0xff]
  %v31 = vld [vmem:[%s1 + $0x8] sm:$0xff]
  %v32 = vld [vmem:[%s1 + $0x10] sm:$0xff]
  %v33 = vld [vmem:[%s1 + $0x18] sm:$0xff]
  %v34 = vld [vmem:[%s1 + $0x20] sm:$0xff]
  %v35 = vld [vmem:[%s1 + $0x28] sm:$0xff]
  %v36 = vld [vmem:[%s1 + $0x30] sm:$0xff]
  %v37 = vld [vmem:[%s1 + $0x38] sm:$0xff]
  %v38 = vld [vmem:[%s1 + $0x40] sm:$0xff]
  %v39 = vld [vmem:[%s1 + $0x48] sm:$0xff]
  %v40 = vld [vmem:[%s1 + $0x50] sm:$0xff]
  %v41 = vld [vmem:[%s1 + $0x58] sm:$0xff]
  %v42 = vld [vmem:[%s1 + $0x60] sm:$0xff]
  %v43 = vld [vmem:[%s1 + $0x68] sm:$0xff]
  %v44 = vld [vmem:[%s1 + $0x70] sm:$0xff]
  %v45 = vld [vmem:[%s1 + $0x78] sm:$0xff]
  %46 = vmatprep.subr.mxu0 0.0
  %47 = vmatpush1.msra.mxu0 %v45
  %48 = vmatprep.subr.mxu0 0.0
  %49 = vmatpush1.msra.mxu0 %v44
  %50 = vmatprep.subr.mxu0 0.0
  %51 = vmatpush1.msra.mxu0 %v43
  %52 = vmatprep.subr.mxu0 0.0
  %53 = vmatpush1.msra.mxu0 %v42
  %54 = vmatprep.subr.mxu0 0.0
  %55 = vmatpush1.msra.mxu0 %v41
  %56 = vmatprep.subr.mxu0 0.0
  %57 = vmatpush1.msra.mxu0 %v40
  %58 = vmatprep.subr.mxu0 0.0
  %59 = vmatpush1.msra.mxu0 %v39
  %60 = vmatprep.subr.mxu0 0.0
  %61 = vmatpush1.msra.mxu0 %v38
  %62 = vmatprep.subr.mxu0 0.0
  %63 = vmatpush1.msra.mxu0 %v37
  %64 = vmatprep.subr.mxu0 0.0
  %65 = vmatpush1.msra.mxu0 %v36
  %66 = vmatprep.subr.mxu0 0.0
  %67 = vmatpush1.msra.mxu0 %v35
  %68 = vmatprep.subr.mxu0 0.0
  %69 = vmatpush1.msra.mxu0 %v34
  %70 = vmatprep.subr.mxu0 0.0
  %71 = vmatpush1.msra.mxu0 %v33
  %72 = vmatprep.subr.mxu0 0.0
  %73 = vmatpush1.msra.mxu0 %v32
  %74 = vmatprep.subr.mxu0 0.0
  %75 = vmatpush1.msra.mxu0 %v31
  %76 = vmatprep.subr.mxu0 0.0
  %77 = vmatpush1.msra.mxu0 %v30
  %78 = vmatprep.subr.mxu0 0.0
  %79 = vmatpush2.msra.mxu0 0.0
  %80 = vmatprep.subr.mxu0 0.0
  %81 = vmatpush2.msra.mxu0 0.0
  %82 = vmatprep.subr.mxu0 0.0
  %83 = vmatpush2.msra.mxu0 0.0
  %84 = vmatprep.subr.mxu0 0.0
  %85 = vmatpush2.msra.mxu0 0.0
  %86 = vmatprep.subr.mxu0 0.0
  %87 = vmatpush2.msra.mxu0 0.0
  %88 = vmatprep.subr.mxu0 0.0
  %89 = vmatpush2.msra.mxu0 0.0
  %90 = vmatprep.subr.mxu0 0.0
  %91 = vmatpush2.msra.mxu0 0.0
  %92 = vmatprep.subr.mxu0 0.0
  %93 = vmatpush2.msra.mxu0 0.0
  %94 = vmatprep.subr.mxu0 0.0
  %95 = vmatpush2.msra.mxu0 0.0
  %96 = vmatprep.subr.mxu0 0.0
  %97 = vmatpush2.msra.mxu0 0.0
  %98 = vmatprep.subr.mxu0 0.0
  %99 = vmatpush2.msra.mxu0 0.0
  %100 = vmatprep.subr.mxu0 0.0
  %101 = vmatpush2.msra.mxu0 0.0
  %102 = vmatprep.subr.mxu0 0.0
  %103 = vmatpush2.msra.mxu0 0.0
  %104 = vmatprep.subr.mxu0 0.0
  %105 = vmatpush2.msra.mxu0 0.0
  %106 = vmatprep.subr.mxu0 0.0
  %107 = vmatpush2.msra.mxu0 0.0
  %108 = vmatprep.subr.mxu0 0.0
  %109 = vmatpush2.msra.mxu0 0.0
  %110 = vmatprep.mubr.f32.mxu0 0.0
  %111 = vmatmul.mubr.f32.gmra.mxu0 %v14
  %v112 = vpop.f32.mrf.mxu0
  %v113 = vadd.f32 0.0, %v112
  %v114 = vpop.f32.mrf.mxu0
  %115 = vmatprep.mubr.f32.mxu0 0.0
  %116 = vmatmul.mubr.f32.gmra.mxu0 %v15
  %v117 = vpop.f32.mrf.mxu0
  %v118 = vadd.f32 0.0, %v117
  %v119 = vpop.f32.mrf.mxu0
  %120 = vmatprep.mubr.f32.mxu0 0.0
  %121 = vmatmul.mubr.f32.gmra.mxu0 %v16
  %v122 = vpop.f32.mrf.mxu0
  %v123 = vadd.f32 0.0, %v122
  %v124 = vpop.f32.mrf.mxu0
  %125 = vmatprep.mubr.f32.mxu0 0.0
  %126 = vmatmul.mubr.f32.gmra.mxu0 %v17
  %v127 = vpop.f32.mrf.mxu0
  %v128 = vadd.f32 0.0, %v127
  %v129 = vpop.f32.mrf.mxu0
  %130 = vmatprep.mubr.f32.mxu0 0.0
  %131 = vmatmul.mubr.f32.gmra.mxu0 %v18
  %v132 = vpop.f32.mrf.mxu0
  %v133 = vadd.f32 0.0, %v132
  %v134 = vpop.f32.mrf.mxu0
  %135 = vmatprep.mubr.f32.mxu0 0.0
  %136 = vmatmul.mubr.f32.gmra.mxu0 %v19
  %v137 = vpop.f32.mrf.mxu0
  %v138 = vadd.f32 0.0, %v137
  %v139 = vpop.f32.mrf.mxu0
  %140 = vmatprep.mubr.f32.mxu0 0.0
  %141 = vmatmul.mubr.f32.gmra.mxu0 %v20
  %v142 = vpop.f32.mrf.mxu0
  %v143 = vadd.f32 0.0, %v142
  %v144 = vpop.f32.mrf.mxu0
  %145 = vmatprep.mubr.f32.mxu0 0.0
  %146 = vmatmul.mubr.f32.gmra.mxu0 %v21
  %v147 = vpop.f32.mrf.mxu0
  %v148 = vadd.f32 0.0, %v147
  %v149 = vpop.f32.mrf.mxu0
  %150 = vmatprep.mubr.f32.mxu0 0.0
  %151 = vmatmul.mubr.f32.gmra.mxu0 %v22
  %v152 = vpop.f32.mrf.mxu0
  %v153 = vadd.f32 0.0, %v152
  %v154 = vpop.f32.mrf.mxu0
  %155 = vmatprep.mubr.f32.mxu0 0.0
  %156 = vmatmul.mubr.f32.gmra.mxu0 %v23
  %v157 = vpop.f32.mrf.mxu0
  %v158 = vadd.f32 0.0, %v157
  %v159 = vpop.f32.mrf.mxu0
  %160 = vmatprep.mubr.f32.mxu0 0.0
  %161 = vmatmul.mubr.f32.gmra.mxu0 %v24
  %v162 = vpop.f32.mrf.mxu0
  %v163 = vadd.f32 0.0, %v162
  %v164 = vpop.f32.mrf.mxu0
  %165 = vmatprep.mubr.f32.mxu0 0.0
  %166 = vmatmul.mubr.f32.gmra.mxu0 %v25
  %v167 = vpop.f32.mrf.mxu0
  %v168 = vadd.f32 0.0, %v167
  %v169 = vpop.f32.mrf.mxu0
  %170 = vmatprep.mubr.f32.mxu0 0.0
  %171 = vmatmul.mubr.f32.gmra.mxu0 %v26
  %v172 = vpop.f32.mrf.mxu0
  %v173 = vadd.f32 0.0, %v172
  %v174 = vpop.f32.mrf.mxu0
  %175 = vmatprep.mubr.f32.mxu0 0.0
  %176 = vmatmul.mubr.f32.gmra.mxu0 %v27
  %v177 = vpop.f32.mrf.mxu0
  %v178 = vadd.f32 0.0, %v177
  %v179 = vpop.f32.mrf.mxu0
  %180 = vmatprep.mubr.f32.mxu0 0.0
  %181 = vmatmul.mubr.f32.gmra.mxu0 %v28
  %v182 = vpop.f32.mrf.mxu0
  %v183 = vadd.f32 0.0, %v182
  %v184 = vpop.f32.mrf.mxu0
  %185 = vmatprep.mubr.f32.mxu0 0.0
  %186 = vmatmul.mubr.f32.gmra.mxu0 %v29
  %v187 = vpop.f32.mrf.mxu0
  %v188 = vadd.f32 0.0, %v187
  %v189 = vpop.f32.mrf.mxu0
  %190 = vdwg.mxu0
  %191 = vst [vmem:[%s2] sm:$0xff] %v113
  %192 = vst [vmem:[%s2 + $0x8] sm:$0xff] %v118
  %193 = vst [vmem:[%s2 + $0x10] sm:$0xff] %v123
  %194 = vst [vmem:[%s2 + $0x18] sm:$0xff] %v128
  %195 = vst [vmem:[%s2 + $0x20] sm:$0xff] %v133
  %196 = vst [vmem:[%s2 + $0x28] sm:$0xff] %v138
  %197 = vst [vmem:[%s2 + $0x30] sm:$0xff] %v143
  %198 = vst [vmem:[%s2 + $0x38] sm:$0xff] %v148
  %199 = vst [vmem:[%s2 + $0x40] sm:$0xff] %v153
  %200 = vst [vmem:[%s2 + $0x48] sm:$0xff] %v158
  %201 = vst [vmem:[%s2 + $0x50] sm:$0xff] %v163
  %202 = vst [vmem:[%s2 + $0x58] sm:$0xff] %v168
  %203 = vst [vmem:[%s2 + $0x60] sm:$0xff] %v173
  %204 = vst [vmem:[%s2 + $0x68] sm:$0xff] %v178
  %205 = vst [vmem:[%s2 + $0x70] sm:$0xff] %v183
  %206 = vst [vmem:[%s2 + $0x78] sm:$0xff] %v188
  %v207 = vadd.f32 %v113, %v118
  %v208 = vadd.f32 %v207, %v123
  %v209 = vadd.f32 %v208, %v128
  %v210 = vadd.f32 %v209, %v133
  %v211 = vadd.f32 %v210, %v138
  %v212 = vadd.f32 %v211, %v143
  %v213 = vadd.f32 %v212, %v148
  %v214 = vadd.f32 %v213, %v153
  %v215 = vadd.f32 %v214, %v158
  %v216 = vadd.f32 %v215, %v163
  %v217 = vadd.f32 %v216, %v168
  %v218 = vadd.f32 %v217, %v173
  %v219 = vadd.f32 %v218, %v178
  %v220 = vadd.f32 %v219, %v183
  %v221 = vadd.f32 %v220, %v188
  %v222 = vrot.slane %v221, 4
  %v223 = vadd.f32 %v221, %v222
  %v224 = vrot.slane %v223, 2
  %v225 = vadd.f32 %v223, %v224
  %v226 = vrot.slane %v225, 1
  %v227 = vadd.f32 %v225, %v226
  %228 = vst [vmem:[%s3] sm:$0xff] %v227
  %v229 = vmul.f32 %v113, %v113
  %v230 = vmul.f32 %v118, %v118
  %v231 = vmul.f32 %v123, %v123
  %v232 = vmul.f32 %v128, %v128
  %v233 = vmul.f32 %v133, %v133
  %v234 = vmul.f32 %v138, %v138
  %v235 = vmul.f32 %v143, %v143
  %v236 = vmul.f32 %v148, %v148
  %v237 = vmul.f32 %v153, %v153
  %v238 = vmul.f32 %v158, %v158
  %v239 = vmul.f32 %v163, %v163
  %v240 = vmul.f32 %v168, %v168
  %v241 = vmul.f32 %v173, %v173
  %v242 = vmul.f32 %v178, %v178
  %v243 = vmul.f32 %v183, %v183
  %v244 = vmul.f32 %v188, %v188
  %v245 = vadd.f32 %v229, %v230
  %v246 = vadd.f32 %v245, %v231
  %v247 = vadd.f32 %v246, %v232
  %v248 = vadd.f32 %v247, %v233
  %v249 = vadd.f32 %v248, %v234
  %v250 = vadd.f32 %v249, %v235
  %v251 = vadd.f32 %v250, %v236
  %v252 = vadd.f32 %v251, %v237
  %v253 = vadd.f32 %v252, %v238
  %v254 = vadd.f32 %v253, %v239
  %v255 = vadd.f32 %v254, %v240
  %v256 = vadd.f32 %v255, %v241
  %v257 = vadd.f32 %v256, %v242
  %v258 = vadd.f32 %v257, %v243
  %v259 = vadd.f32 %v258, %v244
  %v260 = vrot.slane %v259, 4
  %v261 = vadd.f32 %v259, %v260
  %v262 = vrot.slane %v261, 2
  %v263 = vadd.f32 %v261, %v262
  %v264 = vrot.slane %v263, 1
  %v265 = vadd.f32 %v263, %v264
  %266 = vst [vmem:[%s4] sm:$0xff] %v265
  // Predicated region
  $region10: #{_lambda_.27} parent=0 // pred_check
    _
  $region11: #{_lambda_.27} parent=0 // pred_check_branch
    %268 = sbr.rel (0) target = $region13
  $region12: #{_lambda_.27} parent=0 // pred_region
    _
  $region13: #{_lambda_.27} parent=0 // pred_fallthru
    _
  // Predicated region
  $region14: #{_lambda_.27} parent=0 // pred_check
    _
  $region15: #{_lambda_.27} parent=0 // pred_check_branch
    %270 = sbr.rel (0) target = $region17
  $region16: #{_lambda_.27} parent=0 // pred_region
    _
  $region17: #{_lambda_.27} parent=0 // pred_fallthru
    _
  // Predicated region
  $region18: #{_lambda_.27} parent=0 // pred_check
    _
  $region19: #{_lambda_.27} parent=0 // pred_check_branch
    %272 = sbr.rel (0) target = $region21
  $region20: #{_lambda_.27} parent=0 // pred_region
    _
  $region21: #{_lambda_.27} parent=0 // pred_fallthru
    _
  // Predicated region
  $region22: #{_lambda_.27} parent=0 // pred_check
    _
  $region23: #{_lambda_.27} parent=0 // pred_check_branch
    %274 = sbr.rel (0) target = $region25
  $region24: #{_lambda_.27} parent=0 // pred_region
    _
  $region25: #{_lambda_.27} parent=0 // pred_fallthru
    _
  // Predicated region
  $region26: #{_lambda_.27} parent=0 // pred_check
    _
  $region27: #{_lambda_.27} parent=0 // pred_check_branch
    %276 = sbr.rel (0) target = $region29
  $region28: #{_lambda_.27} parent=0 // pred_region
    _
  $region29: #{_lambda_.27} parent=0 // pred_fallthru
    _
  // Predicated region
  $region30: #{_lambda_.27} parent=0 // pred_check
    _
  $region31: #{_lambda_.27} parent=0 // pred_check_branch
    %278 = sbr.rel (0) target = $region33
  $region32: #{_lambda_.27} parent=0 // pred_region
    _
  $region33: #{_lambda_.27} parent=0 // pred_fallthru
    _

// kernel: _lambda_.23
$region0: #{_lambda_.23}
  #allocation0 [shape = 'u32[]', space=smem, size = 0x4, offset = 0x4, fixed_abs, tag = 'smem constant byte address 0x4 - core index']
  #allocation1 [shape = 'u32[144,128]{1,0:T(1,128)}', space=vmem, size = 0x12000, scoped, tag = 'internal scratch']
  %s0 = inlined_call_operand.vmem [shape: f32[512,1152], index: 0, kind: input, shape index: {}]
  %s1 = inlined_call_operand.vmem [shape: f32[1152,128], index: 1, kind: input, shape index: {}]
  %s2 = inlined_call_operand.vmem [shape: f32[512,128], index: 2, kind: input, shape index: {}]
  %s3 = inlined_call_operand.vmem [shape: f32[512,128], index: 3, kind: output, shape index: {0}]
  %s4 = inlined_call_operand.vmem [shape: f32[16,128], index: 4, kind: output, shape index: {1}]
  %s5 = inlined_call_operand.vmem [shape: f32[16,128], index: 5, kind: output, shape index: {2}]
  %6 = xla_tuple %s3, %s4, %s5
  %s7 = sld [smem:[#allocation0]]
  $region61: #{_lambda_.23} parent=0
    _
  %s9 = ssub.s32 1, %s7
  %s10 = scalar_select 0, %s9, %s7
  loop: start=0, step=1, limit=4
  $region2: #{_lambda_.23} parent=0 // loop_pre_header
    _
  $region3: #{_lambda_.23} parent=0 // loop_header
    %s12 = sphi 0, %s16
    %p13 = scmp.ge.s32.totalorder %s12, 4
    %s22 = sphi 0, %s24
    %s25 = sphi 0, %s22
    %s26 = sphi 0, %s25
    %s42 = sphi 0, %s26
    %s46 = sphi 0, %s46
    %s48 = sphi 0, %s46
    %s49 = sphi 0, %s48
    %s63 = sphi 0, %s49
    %s69 = sphi 0, %s71
    %s72 = sphi 0, %s69
    %s73 = sphi 0, %s72
    %s89 = sphi 0, %s73
    %s95 = sphi 0, %s97
    %s98 = sphi 0, %s95
    %s99 = sphi 0, %s98
    %s115 = sphi 0, %s99
    %s121 = sphi 0, %s123
    %s124 = sphi 0, %s121
    %s125 = sphi 0, %s124
    %s141 = sphi 0, %s125
    %s147 = sphi 0, %s149
    %s150 = sphi 0, %s147
    %s151 = sphi 0, %s150
    %s167 = sphi 0, %s151
  $region4: #{_lambda_.23} parent=0 // loop_header_branch
    %15 = sbr.rel (%p13) target = $region8
  $region5: #{_lambda_.23} parent=0 // loop_body
    %s17 = ssub.s32 %s12, 1
    %s18 = ssub.s32 %s12, 2
    %s19 = sadd.s32 %s12, 1
    %s20 = ssub.s32 %s12, %s19
    %p21 = scmp.eq.s32.totalorder %s20, 0
    %s23 = sadd.s32 %s22, 1
    %s24 = scalar_select %p21, %s22, %s23
    %p27 = pneg %p21
    %p28 = scmp.eq.s32.totalorder %s12, 1
    %p29 = por %p27, %p28
    %p30 = scmp.ne.s32.totalorder %s22, %s25
    %p31 = scmp.eq.s32.totalorder %s12, 0
    %p32 = por %p30, %p31
    %p33 = scmp.ne.s32.totalorder %s22, %s25
    %p34 = scmp.eq.s32.totalorder %s17, 1
    %p35 = por %p33, %p34
    %p36 = scmp.ne.s32.totalorder %s25, %s26
    %p37 = scmp.eq.s32.totalorder %s17, 0
    %p38 = por %p36, %p37
    %p39 = scmp.ne.s32.totalorder %s25, %s26
    %p40 = scmp.eq.s32.totalorder %s18, 1
    %p41 = por %p39, %p40
    %p43 = scmp.ne.s32.totalorder %s26, %s42
    %p44 = scmp.eq.s32.totalorder %s18, 0
    %p45 = por %p43, %p44
    %s47 = sadd.s32 %s46, 1
    %p50 = scmp.eq.s32.totalorder %s12, 1
    %p51 = scmp.ne.s32.totalorder %s46, %s48
    %p52 = scmp.eq.s32.totalorder %s12, 0
    %p53 = por %p51, %p52
    %p54 = scmp.ne.s32.totalorder %s46, %s48
    %p55 = scmp.eq.s32.totalorder %s17, 1
    %p56 = por %p54, %p55
    %p57 = scmp.ne.s32.totalorder %s48, %s49
    %p58 = scmp.eq.s32.totalorder %s17, 0
    %p59 = por %p57, %p58
    %p60 = scmp.ne.s32.totalorder %s48, %s49
    %p61 = scmp.eq.s32.totalorder %s18, 1
    %p62 = por %p60, %p61
    %p64 = scmp.ne.s32.totalorder %s49, %s63
    %p65 = scmp.eq.s32.totalorder %s18, 0
    %p66 = por %p64, %p65
    %s67 = ssub.s32 %s12, %s19
    %p68 = scmp.eq.s32.totalorder %s67, 0
    %s70 = sadd.s32 %s69, 1
    %s71 = scalar_select %p68, %s69, %s70
    %p74 = pneg %p68
    %p75 = scmp.eq.s32.totalorder %s12, 1
    %p76 = por %p74, %p75
    %p77 = scmp.ne.s32.totalorder %s69, %s72
    %p78 = scmp.eq.s32.totalorder %s12, 0
    %p79 = por %p77, %p78
    %p80 = scmp.ne.s32.totalorder %s69, %s72
    %p81 = scmp.eq.s32.totalorder %s17, 1
    %p82 = por %p80, %p81
    %p83 = scmp.ne.s32.totalorder %s72, %s73
    %p84 = scmp.eq.s32.totalorder %s17, 0
    %p85 = por %p83, %p84
    %p86 = scmp.ne.s32.totalorder %s72, %s73
    %p87 = scmp.eq.s32.totalorder %s18, 1
    %p88 = por %p86, %p87
    %p90 = scmp.ne.s32.totalorder %s73, %s89
    %p91 = scmp.eq.s32.totalorder %s18, 0
    %p92 = por %p90, %p91
    %s93 = ssub.s32 %s12, %s19
    %p94 = scmp.eq.s32.totalorder %s93, 0
    %s96 = sadd.s32 %s95, 1
    %s97 = scalar_select %p94, %s95, %s96
    %p100 = pneg %p94
    %p101 = scmp.eq.s32.totalorder %s12, 1
    %p102 = por %p100, %p101
    %p103 = scmp.ne.s32.totalorder %s95, %s98
    %p104 = scmp.eq.s32.totalorder %s12, 0
    %p105 = por %p103, %p104
    %p106 = scmp.ne.s32.totalorder %s95, %s98
    %p107 = scmp.eq.s32.totalorder %s17, 1
    %p108 = por %p106, %p107
    %p109 = scmp.ne.s32.totalorder %s98, %s99
    %p110 = scmp.eq.s32.totalorder %s17, 0
    %p111 = por %p109, %p110
    %p112 = scmp.ne.s32.totalorder %s98, %s99
    %p113 = scmp.eq.s32.totalorder %s18, 1
    %p114 = por %p112, %p113
    %p116 = scmp.ne.s32.totalorder %s99, %s115
    %p117 = scmp.eq.s32.totalorder %s18, 0
    %p118 = por %p116, %p117
    %s119 = ssub.s32 %s12, %s19
    %p120 = scmp.eq.s32.totalorder %s119, 0
    %s122 = sadd.s32 %s121, 1
    %s123 = scalar_select %p120, %s121, %s122
    %p126 = pneg %p120
    %p127 = scmp.eq.s32.totalorder %s12, 1
    %p128 = por %p126, %p127
    %p129 = scmp.ne.s32.totalorder %s121, %s124
    %p130 = scmp.eq.s32.totalorder %s12, 0
    %p131 = por %p129, %p130
    %p132 = scmp.ne.s32.totalorder %s121, %s124
    %p133 = scmp.eq.s32.totalorder %s17, 1
    %p134 = por %p132, %p133
    %p135 = scmp.ne.s32.totalorder %s124, %s125
    %p136 = scmp.eq.s32.totalorder %s17, 0
    %p137 = por %p135, %p136
    %p138 = scmp.ne.s32.totalorder %s124, %s125
    %p139 = scmp.eq.s32.totalorder %s18, 1
    %p140 = por %p138, %p139
    %p142 = scmp.ne.s32.totalorder %s125, %s141
    %p143 = scmp.eq.s32.totalorder %s18, 0
    %p144 = por %p142, %p143
    %s145 = ssub.s32 %s12, %s19
    %p146 = scmp.eq.s32.totalorder %s145, 0
    %s148 = sadd.s32 %s147, 1
    %s149 = scalar_select %p146, %s147, %s148
    %p152 = pneg %p146
    %p153 = scmp.eq.s32.totalorder %s12, 1
    %p154 = por %p152, %p153
    %p155 = scmp.ne.s32.totalorder %s147, %s150
    %p156 = scmp.eq.s32.totalorder %s12, 0
    %p157 = por %p155, %p156
    %p158 = scmp.ne.s32.totalorder %s147, %s150
    %p159 = scmp.eq.s32.totalorder %s17, 1
    %p160 = por %p158, %p159
    %p161 = scmp.ne.s32.totalorder %s150, %s151
    %p162 = scmp.eq.s32.totalorder %s17, 0
    %p163 = por %p161, %p162
    %p164 = scmp.ne.s32.totalorder %s150, %s151
    %p165 = scmp.eq.s32.totalorder %s18, 1
    %p166 = por %p164, %p165
    %p168 = scmp.ne.s32.totalorder %s151, %s167
    %p169 = scmp.eq.s32.totalorder %s18, 0
    %p170 = por %p168, %p169
    %p171 = scmp.le.s32.totalorder 1, %s12
    %p172 = scmp.lt.s32.totalorder %s12, 3
    %p173 = pnand %p171, %p172
    %p174 = pneg %p173
    // Predicated region
    $region9: #{_lambda_.23} parent=5 // pred_check
      _
    $region10: #{_lambda_.23} parent=5 // pred_check_branch
      %176 = sbr.rel (%p173) target = $region12
    $region11: #{_lambda_.23} parent=5 // pred_region
      %s177 = ssub.s32 %s12, 1
      // Predicated region
      $region13: #{_lambda_.23} parent=11 // pred_check
        %p178 = pneg %p59
      $region14: #{_lambda_.23} parent=11 // pred_check_branch
        %180 = sbr.rel (%p178) target = $region16
      $region15: #{_lambda_.23} parent=11 // pred_region
        _
      $region16: #{_lambda_.23} parent=11 // pred_fallthru
        _
    $region12: #{_lambda_.23} parent=5 // pred_fallthru
      _
    %p181 = scmp.lt.s32.totalorder %s12, 2
    // Predicated region
    $region17: #{_lambda_.23} parent=5 // pred_check
      %p182 = pneg %p181
    $region18: #{_lambda_.23} parent=5 // pred_check_branch
      %184 = sbr.rel (%p182) target = $region20
    $region19: #{_lambda_.23} parent=5 // pred_region
      // Predicated region
      $region21: #{_lambda_.23} parent=19 // pred_check
        %p185 = pneg %p32
      $region22: #{_lambda_.23} parent=19 // pred_check_branch
        %187 = sbr.rel (%p185) target = $region24
      $region23: #{_lambda_.23} parent=19 // pred_region
        %s188 = smul.u32 32, %s12
        %p189 = scmp.lt.s32.totalorder %s188, 63
        %s190 = scalar_select %p189, %s188, 63
        %s191 = smul.addr %s190, 9
        %s192 = smul.addr %s191, 8
        %s193 = scalar_lea.vmem %s0, %s192
        %s194 = smul.u32 32, %s12
      $region24: #{_lambda_.23} parent=19 // pred_fallthru
        _
      // Predicated region
      $region25: #{_lambda_.23} parent=19 // pred_check
        %p195 = pneg %p79
      $region26: #{_lambda_.23} parent=19 // pred_check_branch
        %197 = sbr.rel (%p195) target = $region28
      $region27: #{_lambda_.23} parent=19 // pred_region
        %s198 = smul.u32 32, %s12
        %p199 = scmp.lt.s32.totalorder %s198, 63
        %s200 = scalar_select %p199, %s198, 63
        %s201 = smul.addr %s200, 8
        %s202 = scalar_lea.vmem %s2, %s201
        %s203 = smul.u32 32, %s12
      $region28: #{_lambda_.23} parent=19 // pred_fallthru
        _
    $region20: #{_lambda_.23} parent=5 // pred_fallthru
      _
    %p204 = scmp.le.s32.totalorder 1, %s12
    %p205 = scmp.lt.s32.totalorder %s12, 3
    %p206 = pnand %p204, %p205
    %p207 = pneg %p206
    // Predicated region
    $region29: #{_lambda_.23} parent=5 // pred_check
      _
    $region30: #{_lambda_.23} parent=5 // pred_check_branch
      %209 = sbr.rel (%p206) target = $region32
    $region31: #{_lambda_.23} parent=5 // pred_region
      %s210 = ssub.s32 %s12, 1
      %s211 = smul.u32 32, %s17
      %p212 = scmp.lt.s32.totalorder %s211, 63
      %s213 = scalar_select %p212, %s211, 63
      %s214 = smul.addr %s213, 9
      %s215 = smul.addr %s214, 8
      %s216 = scalar_lea.vmem %s0, %s215
      %p217 = pneg %p38
      %p218 = pneg %p35
      %p219 = pneg %p59
      %p220 = pneg %p56
      %s221 = smul.u32 32, %s17
      %p222 = scmp.lt.s32.totalorder %s221, 63
      %s223 = scalar_select %p222, %s221, 63
      %s224 = smul.addr %s223, 8
      %s225 = scalar_lea.vmem %s2, %s224
      %p226 = pneg %p85
      %p227 = pneg %p82
      %p228 = pneg %p111
      %p229 = pneg %p108
      %s230 = smul.u32 32, %s17
      %p231 = scmp.lt.s32.totalorder %s230, 63
      %s232 = scalar_select %p231, %s230, 63
      %s233 = smul.addr %s232, 8
      %s234 = scalar_lea.vmem %s3, %s233
      %p235 = pneg %p137
      %p236 = pneg %p134
      %p237 = scmp.lt.s32.totalorder %s17, 1
      %s238 = scalar_select %p237, %s17, 1
      %s239 = smul.addr %s238, 8
      %s240 = scalar_lea.vmem %s4, %s239
      %p241 = pneg %p163
      %p242 = pneg %p160
      %p243 = scmp.lt.s32.totalorder %s17, 1
      %s244 = scalar_select %p243, %s17, 1
      %s245 = smul.addr %s244, 8
      %s246 = scalar_lea.vmem %s5, %s245
      %s247 = smul.u32 32, %s17
      %p248 = scmp.lt.s32.totalorder %s247, 63
      %s249 = scalar_select %p248, %s247, 63
      %s250 = smul.addr %s249, 9
      %s251 = smul.addr %s250, 8
      %s252 = scalar_lea.vmem %s0, %s251
      %s253 = smul.u32 32, %s17
      %s254 = smul.u32 32, %s17
      %p255 = scmp.lt.s32.totalorder %s254, 63
      %s256 = scalar_select %p255, %s254, 63
      %s257 = smul.addr %s256, 8
      %s258 = scalar_lea.vmem %s2, %s257
      %s259 = smul.u32 32, %s17
      %s260 = smul.u32 32, %s17
      %p261 = scmp.lt.s32.totalorder %s260, 63
      %s262 = scalar_select %p261, %s260, 63
      %s263 = smul.addr %s262, 8
      %s264 = scalar_lea.vmem %s3, %s263
      %s265 = smul.u32 32, %s17
      %p266 = scmp.lt.s32.totalorder %s17, 1
      %s267 = scalar_select %p266, %s17, 1
      %s268 = smul.addr %s267, 8
      %s269 = scalar_lea.vmem %s4, %s268
      %p270 = scmp.lt.s32.totalorder %s17, 1
      %s271 = scalar_select %p270, %s17, 1
      %s272 = smul.addr %s271, 8
      %s273 = scalar_lea.vmem %s5, %s272
      %v274 = vld [vmem:[%s252] sm:$0xff]
      %v275 = vld [vmem:[%s252 + $0x8] sm:$0xff]
      %v276 = vld [vmem:[%s252 + $0x10] sm:$0xff]
      %v277 = vld [vmem:[%s252 + $0x18] sm:$0xff]
      %v278 = vld [vmem:[%s252 + $0x20] sm:$0xff]
      %v279 = vld [vmem:[%s252 + $0x28] sm:$0xff]
      %v280 = vld [vmem:[%s252 + $0x30] sm:$0xff]
      %v281 = vld [vmem:[%s252 + $0x38] sm:$0xff]
      %v282 = vld [vmem:[%s252 + $0x40] sm:$0xff]
      %v283 = vld [vmem:[%s252 + $0x48] sm:$0xff]
      %v284 = vld [vmem:[%s252 + $0x50] sm:$0xff]
      %v285 = vld [vmem:[%s252 + $0x58] sm:$0xff]
      %v286 = vld [vmem:[%s252 + $0x60] sm:$0xff]
      %v287 = vld [vmem:[%s252 + $0x68] sm:$0xff]
      %v288 = vld [vmem:[%s252 + $0x70] sm:$0xff]
      %v289 = vld [vmem:[%s252 + $0x78] sm:$0xff]
      %v290 = vld [vmem:[%s252 + $0x80] sm:$0xff]
      %v291 = vld [vmem:[%s252 + $0x88] sm:$0xff]
      %v292 = vld [vmem:[%s252 + $0x90] sm:$0xff]
      %v293 = vld [vmem:[%s252 + $0x98] sm:$0xff]
      %v294 = vld [vmem:[%s252 + $0xa0] sm:$0xff]
      %v295 = vld [vmem:[%s252 + $0xa8] sm:$0xff]
      %v296 = vld [vmem:[%s252 + $0xb0] sm:$0xff]
      %v297 = vld [vmem:[%s252 + $0xb8] sm:$0xff]
      %v298 = vld [vmem:[%s252 + $0xc0] sm:$0xff]
      %v299 = vld [vmem:[%s252 + $0xc8] sm:$0xff]
      %v300 = vld [vmem:[%s252 + $0xd0] sm:$0xff]
      %v301 = vld [vmem:[%s252 + $0xd8] sm:$0xff]
      %v302 = vld [vmem:[%s252 + $0xe0] sm:$0xff]
      %v303 = vld [vmem:[%s252 + $0xe8] sm:$0xff]
      %v304 = vld [vmem:[%s252 + $0xf0] sm:$0xff]
      %v305 = vld [vmem:[%s252 + $0xf8] sm:$0xff]
      %v306 = vld [vmem:[%s252 + $0x100] sm:$0xff]
      %v307 = vld [vmem:[%s252 + $0x108] sm:$0xff]
      %v308 = vld [vmem:[%s252 + $0x110] sm:$0xff]
      %v309 = vld [vmem:[%s252 + $0x118] sm:$0xff]
      %v310 = vld [vmem:[%s252 + $0x120] sm:$0xff]
      %v311 = vld [vmem:[%s252 + $0x128] sm:$0xff]
      %v312 = vld [vmem:[%s252 + $0x130] sm:$0xff]
      %v313 = vld [vmem:[%s252 + $0x138] sm:$0xff]
      %v314 = vld [vmem:[%s252 + $0x140] sm:$0xff]
      %v315 = vld [vmem:[%s252 + $0x148] sm:$0xff]
      %v316 = vld [vmem:[%s252 + $0x150] sm:$0xff]
      %v317 = vld [vmem:[%s252 + $0x158] sm:$0xff]
      %v318 = vld [vmem:[%s252 + $0x160] sm:$0xff]
      %v319 = vld [vmem:[%s252 + $0x168] sm:$0xff]
      %v320 = vld [vmem:[%s252 + $0x170] sm:$0xff]
      %v321 = vld [vmem:[%s252 + $0x178] sm:$0xff]
      %v322 = vld [vmem:[%s252 + $0x180] sm:$0xff]
      %v323 = vld [vmem:[%s252 + $0x188] sm:$0xff]
      %v324 = vld [vmem:[%s252 + $0x190] sm:$0xff]
      %v325 = vld [vmem:[%s252 + $0x198] sm:$0xff]
      %v326 = vld [vmem:[%s252 + $0x1a0] sm:$0xff]
      %v327 = vld [vmem:[%s252 + $0x1a8] sm:$0xff]
      %v328 = vld [vmem:[%s252 + $0x1b0] sm:$0xff]
      %v329 = vld [vmem:[%s252 + $0x1b8] sm:$0xff]
      %v330 = vld [vmem:[%s252 + $0x1c0] sm:$0xff]
      %v331 = vld [vmem:[%s252 + $0x1c8] sm:$0xff]
      %v332 = vld [vmem:[%s252 + $0x1d0] sm:$0xff]
      %v333 = vld [vmem:[%s252 + $0x1d8] sm:$0xff]
      %v334 = vld [vmem:[%s252 + $0x1e0] sm:$0xff]
      %v335 = vld [vmem:[%s252 + $0x1e8] sm:$0xff]
      %v336 = vld [vmem:[%s252 + $0x1f0] sm:$0xff]
      %v337 = vld [vmem:[%s252 + $0x1f8] sm:$0xff]
      %v338 = vld [vmem:[%s252 + $0x200] sm:$0xff]
      %v339 = vld [vmem:[%s252 + $0x208] sm:$0xff]
      %v340 = vld [vmem:[%s252 + $0x210] sm:$0xff]
      %v341 = vld [vmem:[%s252 + $0x218] sm:$0xff]
      %v342 = vld [vmem:[%s252 + $0x220] sm:$0xff]
      %v343 = vld [vmem:[%s252 + $0x228] sm:$0xff]
      %v344 = vld [vmem:[%s252 + $0x230] sm:$0xff]
      %v345 = vld [vmem:[%s252 + $0x238] sm:$0xff]
      %v346 = vld [vmem:[%s252 + $0x240] sm:$0xff]
      %v347 = vld [vmem:[%s252 + $0x248] sm:$0xff]
      %v348 = vld [vmem:[%s252 + $0x250] sm:$0xff]
      %v349 = vld [vmem:[%s252 + $0x258] sm:$0xff]
      %v350 = vld [vmem:[%s252 + $0x260] sm:$0xff]
      %v351 = vld [vmem:[%s252 + $0x268] sm:$0xff]
      %v352 = vld [vmem:[%s252 + $0x270] sm:$0xff]
      %v353 = vld [vmem:[%s252 + $0x278] sm:$0xff]
      %v354 = vld [vmem:[%s252 + $0x280] sm:$0xff]
      %v355 = vld [vmem:[%s252 + $0x288] sm:$0xff]
      %v356 = vld [vmem:[%s252 + $0x290] sm:$0xff]
      %v357 = vld [vmem:[%s252 + $0x298] sm:$0xff]
      %v358 = vld [vmem:[%s252 + $0x2a0] sm:$0xff]
      %v359 = vld [vmem:[%s252 + $0x2a8] sm:$0xff]
      %v360 = vld [vmem:[%s252 + $0x2b0] sm:$0xff]
      %v361 = vld [vmem:[%s252 + $0x2b8] sm:$0xff]
      %v362 = vld [vmem:[%s252 + $0x2c0] sm:$0xff]
      %v363 = vld [vmem:[%s252 + $0x2c8] sm:$0xff]
      %v364 = vld [vmem:[%s252 + $0x2d0] sm:$0xff]
      %v365 = vld [vmem:[%s252 + $0x2d8] sm:$0xff]
      %v366 = vld [vmem:[%s252 + $0x2e0] sm:$0xff]
      %v367 = vld [vmem:[%s252 + $0x2e8] sm:$0xff]
      %v368 = vld [vmem:[%s252 + $0x2f0] sm:$0xff]
      %v369 = vld [vmem:[%s252 + $0x2f8] sm:$0xff]
      %v370 = vld [vmem:[%s252 + $0x300] sm:$0xff]
      %v371 = vld [vmem:[%s252 + $0x308] sm:$0xff]
      %v372 = vld [vmem:[%s252 + $0x310] sm:$0xff]
      %v373 = vld [vmem:[%s252 + $0x318] sm:$0xff]
      %v374 = vld [vmem:[%s252 + $0x320] sm:$0xff]
      %v375 = vld [vmem:[%s252 + $0x328] sm:$0xff]
      %v376 = vld [vmem:[%s252 + $0x330] sm:$0xff]
      %v377 = vld [vmem:[%s252 + $0x338] sm:$0xff]
      %v378 = vld [vmem:[%s252 + $0x340] sm:$0xff]
      %v379 = vld [vmem:[%s252 + $0x348] sm:$0xff]
      %v380 = vld [vmem:[%s252 + $0x350] sm:$0xff]
      %v381 = vld [vmem:[%s252 + $0x358] sm:$0xff]
      %v382 = vld [vmem:[%s252 + $0x360] sm:$0xff]
      %v383 = vld [vmem:[%s252 + $0x368] sm:$0xff]
      %v384 = vld [vmem:[%s252 + $0x370] sm:$0xff]
      %v385 = vld [vmem:[%s252 + $0x378] sm:$0xff]
      %v386 = vld [vmem:[%s252 + $0x380] sm:$0xff]
      %v387 = vld [vmem:[%s252 + $0x388] sm:$0xff]
      %v388 = vld [vmem:[%s252 + $0x390] sm:$0xff]
      %v389 = vld [vmem:[%s252 + $0x398] sm:$0xff]
      %v390 = vld [vmem:[%s252 + $0x3a0] sm:$0xff]
      %v391 = vld [vmem:[%s252 + $0x3a8] sm:$0xff]
      %v392 = vld [vmem:[%s252 + $0x3b0] sm:$0xff]
      %v393 = vld [vmem:[%s252 + $0x3b8] sm:$0xff]
      %v394 = vld [vmem:[%s252 + $0x3c0] sm:$0xff]
      %v395 = vld [vmem:[%s252 + $0x3c8] sm:$0xff]
      %v396 = vld [vmem:[%s252 + $0x3d0] sm:$0xff]
      %v397 = vld [vmem:[%s252 + $0x3d8] sm:$0xff]
      %v398 = vld [vmem:[%s252 + $0x3e0] sm:$0xff]
      %v399 = vld [vmem:[%s252 + $0x3e8] sm:$0xff]
      %v400 = vld [vmem:[%s252 + $0x3f0] sm:$0xff]
      %v401 = vld [vmem:[%s252 + $0x3f8] sm:$0xff]
      %v402 = vld [vmem:[%s252 + $0x400] sm:$0xff]
      %v403 = vld [vmem:[%s252 + $0x408] sm:$0xff]
      %v404 = vld [vmem:[%s252 + $0x410] sm:$0xff]
      %v405 = vld [vmem:[%s252 + $0x418] sm:$0xff]
      %v406 = vld [vmem:[%s252 + $0x420] sm:$0xff]
      %v407 = vld [vmem:[%s252 + $0x428] sm:$0xff]
      %v408 = vld [vmem:[%s252 + $0x430] sm:$0xff]
      %v409 = vld [vmem:[%s252 + $0x438] sm:$0xff]
      %v410 = vld [vmem:[%s252 + $0x440] sm:$0xff]
      %v411 = vld [vmem:[%s252 + $0x448] sm:$0xff]
      %v412 = vld [vmem:[%s252 + $0x450] sm:$0xff]
      %v413 = vld [vmem:[%s252 + $0x458] sm:$0xff]
      %v414 = vld [vmem:[%s252 + $0x460] sm:$0xff]
      %v415 = vld [vmem:[%s252 + $0x468] sm:$0xff]
      %v416 = vld [vmem:[%s252 + $0x470] sm:$0xff]
      %v417 = vld [vmem:[%s252 + $0x478] sm:$0xff]
      %v418 = vld [vmem:[%s252 + $0x480] sm:$0xff]
      %v419 = vld [vmem:[%s252 + $0x488] sm:$0xff]
      %v420 = vld [vmem:[%s252 + $0x490] sm:$0xff]
      %v421 = vld [vmem:[%s252 + $0x498] sm:$0xff]
      %v422 = vld [vmem:[%s252 + $0x4a0] sm:$0xff]
      %v423 = vld [vmem:[%s252 + $0x4a8] sm:$0xff]
      %v424 = vld [vmem:[%s252 + $0x4b0] sm:$0xff]
      %v425 = vld [vmem:[%s252 + $0x4b8] sm:$0xff]
      %v426 = vld [vmem:[%s252 + $0x4c0] sm:$0xff]
      %v427 = vld [vmem:[%s252 + $0x4c8] sm:$0xff]
      %v428 = vld [vmem:[%s252 + $0x4d0] sm:$0xff]
      %v429 = vld [vmem:[%s252 + $0x4d8] sm:$0xff]
      %v430 = vld [vmem:[%s252 + $0x4e0] sm:$0xff]
      %v431 = vld [vmem:[%s252 + $0x4e8] sm:$0xff]
      %v432 = vld [vmem:[%s252 + $0x4f0] sm:$0xff]
      %v433 = vld [vmem:[%s252 + $0x4f8] sm:$0xff]
      %v434 = vld [vmem:[%s252 + $0x500] sm:$0xff]
      %v435 = vld [vmem:[%s252 + $0x508] sm:$0xff]
      %v436 = vld [vmem:[%s252 + $0x510] sm:$0xff]
      %v437 = vld [vmem:[%s252 + $0x518] sm:$0xff]
      %v438 = vld [vmem:[%s252 + $0x520] sm:$0xff]
      %v439 = vld [vmem:[%s252 + $0x528] sm:$0xff]
      %v440 = vld [vmem:[%s252 + $0x530] sm:$0xff]
      %v441 = vld [vmem:[%s252 + $0x538] sm:$0xff]
      %v442 = vld [vmem:[%s252 + $0x540] sm:$0xff]
      %v443 = vld [vmem:[%s252 + $0x548] sm:$0xff]
      %v444 = vld [vmem:[%s252 + $0x550] sm:$0xff]
      %v445 = vld [vmem:[%s252 + $0x558] sm:$0xff]
      %v446 = vld [vmem:[%s252 + $0x560] sm:$0xff]
      %v447 = vld [vmem:[%s252 + $0x568] sm:$0xff]
      %v448 = vld [vmem:[%s252 + $0x570] sm:$0xff]
      %v449 = vld [vmem:[%s252 + $0x578] sm:$0xff]
      %v450 = vld [vmem:[%s252 + $0x580] sm:$0xff]
      %v451 = vld [vmem:[%s252 + $0x588] sm:$0xff]
      %v452 = vld [vmem:[%s252 + $0x590] sm:$0xff]
      %v453 = vld [vmem:[%s252 + $0x598] sm:$0xff]
      %v454 = vld [vmem:[%s252 + $0x5a0] sm:$0xff]
      %v455 = vld [vmem:[%s252 + $0x5a8] sm:$0xff]
      %v456 = vld [vmem:[%s252 + $0x5b0] sm:$0xff]
      %v457 = vld [vmem:[%s252 + $0x5b8] sm:$0xff]
      %v458 = vld [vmem:[%s252 + $0x5c0] sm:$0xff]
      %v459 = vld [vmem:[%s252 + $0x5c8] sm:$0xff]
      %v460 = vld [vmem:[%s252 + $0x5d0] sm:$0xff]
      %v461 = vld [vmem:[%s252 + $0x5d8] sm:$0xff]
      %v462 = vld [vmem:[%s252 + $0x5e0] sm:$0xff]
      %v463 = vld [vmem:[%s252 + $0x5e8] sm:$0xff]
      %v464 = vld [vmem:[%s252 + $0x5f0] sm:$0xff]
      %v465 = vld [vmem:[%s252 + $0x5f8] sm:$0xff]
      %v466 = vld [vmem:[%s252 + $0x600] sm:$0xff]
      %v467 = vld [vmem:[%s252 + $0x608] sm:$0xff]
      %v468 = vld [vmem:[%s252 + $0x610] sm:$0xff]
      %v469 = vld [vmem:[%s252 + $0x618] sm:$0xff]
      %v470 = vld [vmem:[%s252 + $0x620] sm:$0xff]
      %v471 = vld [vmem:[%s252 + $0x628] sm:$0xff]
      %v472 = vld [vmem:[%s252 + $0x630] sm:$0xff]
      %v473 = vld [vmem:[%s252 + $0x638] sm:$0xff]
      %v474 = vld [vmem:[%s252 + $0x640] sm:$0xff]
      %v475 = vld [vmem:[%s252 + $0x648] sm:$0xff]
      %v476 = vld [vmem:[%s252 + $0x650] sm:$0xff]
      %v477 = vld [vmem:[%s252 + $0x658] sm:$0xff]
      %v478 = vld [vmem:[%s252 + $0x660] sm:$0xff]
      %v479 = vld [vmem:[%s252 + $0x668] sm:$0xff]
      %v480 = vld [vmem:[%s252 + $0x670] sm:$0xff]
      %v481 = vld [vmem:[%s252 + $0x678] sm:$0xff]
      %v482 = vld [vmem:[%s252 + $0x680] sm:$0xff]
      %v483 = vld [vmem:[%s252 + $0x688] sm:$0xff]
      %v484 = vld [vmem:[%s252 + $0x690] sm:$0xff]
      %v485 = vld [vmem:[%s252 + $0x698] sm:$0xff]
      %v486 = vld [vmem:[%s252 + $0x6a0] sm:$0xff]
      %v487 = vld [vmem:[%s252 + $0x6a8] sm:$0xff]
      %v488 = vld [vmem:[%s252 + $0x6b0] sm:$0xff]
      %v489 = vld [vmem:[%s252 + $0x6b8] sm:$0xff]
      %v490 = vld [vmem:[%s252 + $0x6c0] sm:$0xff]
      %v491 = vld [vmem:[%s252 + $0x6c8] sm:$0xff]
      %v492 = vld [vmem:[%s252 + $0x6d0] sm:$0xff]
      %v493 = vld [vmem:[%s252 + $0x6d8] sm:$0xff]
      %v494 = vld [vmem:[%s252 + $0x6e0] sm:$0xff]
      %v495 = vld [vmem:[%s252 + $0x6e8] sm:$0xff]
      %v496 = vld [vmem:[%s252 + $0x6f0] sm:$0xff]
      %v497 = vld [vmem:[%s252 + $0x6f8] sm:$0xff]
      %v498 = vld [vmem:[%s252 + $0x700] sm:$0xff]
      %v499 = vld [vmem:[%s252 + $0x708] sm:$0xff]
      %v500 = vld [vmem:[%s252 + $0x710] sm:$0xff]
      %v501 = vld [vmem:[%s252 + $0x718] sm:$0xff]
      %v502 = vld [vmem:[%s252 + $0x720] sm:$0xff]
      %v503 = vld [vmem:[%s252 + $0x728] sm:$0xff]
      %v504 = vld [vmem:[%s252 + $0x730] sm:$0xff]
      %v505 = vld [vmem:[%s252 + $0x738] sm:$0xff]
      %v506 = vld [vmem:[%s252 + $0x740] sm:$0xff]
      %v507 = vld [vmem:[%s252 + $0x748] sm:$0xff]
      %v508 = vld [vmem:[%s252 + $0x750] sm:$0xff]
      %v509 = vld [vmem:[%s252 + $0x758] sm:$0xff]
      %v510 = vld [vmem:[%s252 + $0x760] sm:$0xff]
      %v511 = vld [vmem:[%s252 + $0x768] sm:$0xff]
      %v512 = vld [vmem:[%s252 + $0x770] sm:$0xff]
      %v513 = vld [vmem:[%s252 + $0x778] sm:$0xff]
      %v514 = vld [vmem:[%s252 + $0x780] sm:$0xff]
      %v515 = vld [vmem:[%s252 + $0x788] sm:$0xff]
      %v516 = vld [vmem:[%s252 + $0x790] sm:$0xff]
      %v517 = vld [vmem:[%s252 + $0x798] sm:$0xff]
      %v518 = vld [vmem:[%s252 + $0x7a0] sm:$0xff]
      %v519 = vld [vmem:[%s252 + $0x7a8] sm:$0xff]
      %v520 = vld [vmem:[%s252 + $0x7b0] sm:$0xff]
      %v521 = vld [vmem:[%s252 + $0x7b8] sm:$0xff]
      %v522 = vld [vmem:[%s252 + $0x7c0] sm:$0xff]
      %v523 = vld [vmem:[%s252 + $0x7c8] sm:$0xff]
      %v524 = vld [vmem:[%s252 + $0x7d0] sm:$0xff]
      %v525 = vld [vmem:[%s252 + $0x7d8] sm:$0xff]
      %v526 = vld [vmem:[%s252 + $0x7e0] sm:$0xff]
      %v527 = vld [vmem:[%s252 + $0x7e8] sm:$0xff]
      %v528 = vld [vmem:[%s252 + $0x7f0] sm:$0xff]
      %v529 = vld [vmem:[%s252 + $0x7f8] sm:$0xff]
      %v530 = vld [vmem:[%s252 + $0x800] sm:$0xff]
      %v531 = vld [vmem:[%s252 + $0x808] sm:$0xff]
      %v532 = vld [vmem:[%s252 + $0x810] sm:$0xff]
      %v533 = vld [vmem:[%s252 + $0x818] sm:$0xff]
      %v534 = vld [vmem:[%s252 + $0x820] sm:$0xff]
      %v535 = vld [vmem:[%s252 + $0x828] sm:$0xff]
      %v536 = vld [vmem:[%s252 + $0x830] sm:$0xff]
      %v537 = vld [vmem:[%s252 + $0x838] sm:$0xff]
      %v538 = vld [vmem:[%s252 + $0x840] sm:$0xff]
      %v539 = vld [vmem:[%s252 + $0x848] sm:$0xff]
      %v540 = vld [vmem:[%s252 + $0x850] sm:$0xff]
      %v541 = vld [vmem:[%s252 + $0x858] sm:$0xff]
      %v542 = vld [vmem:[%s252 + $0x860] sm:$0xff]
      %v543 = vld [vmem:[%s252 + $0x868] sm:$0xff]
      %v544 = vld [vmem:[%s252 + $0x870] sm:$0xff]
      %v545 = vld [vmem:[%s252 + $0x878] sm:$0xff]
      %v546 = vld [vmem:[%s252 + $0x880] sm:$0xff]
      %v547 = vld [vmem:[%s252 + $0x888] sm:$0xff]
      %v548 = vld [vmem:[%s252 + $0x890] sm:$0xff]
      %v549 = vld [vmem:[%s252 + $0x898] sm:$0xff]
      %v550 = vld [vmem:[%s252 + $0x8a0] sm:$0xff]
      %v551 = vld [vmem:[%s252 + $0x8a8] sm:$0xff]
      %v552 = vld [vmem:[%s252 + $0x8b0] sm:$0xff]
      %v553 = vld [vmem:[%s252 + $0x8b8] sm:$0xff]
      %v554 = vld [vmem:[%s252 + $0x8c0] sm:$0xff]
      %v555 = vld [vmem:[%s252 + $0x8c8] sm:$0xff]
      %v556 = vld [vmem:[%s252 + $0x8d0] sm:$0xff]
      %v557 = vld [vmem:[%s252 + $0x8d8] sm:$0xff]
      %v558 = vld [vmem:[%s252 + $0x8e0] sm:$0xff]
      %v559 = vld [vmem:[%s252 + $0x8e8] sm:$0xff]
      %v560 = vld [vmem:[%s252 + $0x8f0] sm:$0xff]
      %v561 = vld [vmem:[%s252 + $0x8f8] sm:$0xff]
      %v562 = vld [vmem:[%s1] sm:$0xff]
      %v563 = vld [vmem:[%s1 + $0x8] sm:$0xff]
      %v564 = vld [vmem:[%s1 + $0x10] sm:$0xff]
      %v565 = vld [vmem:[%s1 + $0x18] sm:$0xff]
      %v566 = vld [vmem:[%s1 + $0x20] sm:$0xff]
      %v567 = vld [vmem:[%s1 + $0x28] sm:$0xff]
      %v568 = vld [vmem:[%s1 + $0x30] sm:$0xff]
      %v569 = vld [vmem:[%s1 + $0x38] sm:$0xff]
      %v570 = vld [vmem:[%s1 + $0x40] sm:$0xff]
      %v571 = vld [vmem:[%s1 + $0x48] sm:$0xff]
      %v572 = vld [vmem:[%s1 + $0x50] sm:$0xff]
      %v573 = vld [vmem:[%s1 + $0x58] sm:$0xff]
      %v574 = vld [vmem:[%s1 + $0x60] sm:$0xff]
      %v575 = vld [vmem:[%s1 + $0x68] sm:$0xff]
      %v576 = vld [vmem:[%s1 + $0x70] sm:$0xff]
      %v577 = vld [vmem:[%s1 + $0x78] sm:$0xff]
      %v578 = vld [vmem:[%s1 + $0x80] sm:$0xff]
      %v579 = vld [vmem:[%s1 + $0x88] sm:$0xff]
      %v580 = vld [vmem:[%s1 + $0x90] sm:$0xff]
      %v581 = vld [vmem:[%s1 + $0x98] sm:$0xff]
      %v582 = vld [vmem:[%s1 + $0xa0] sm:$0xff]
      %v583 = vld [vmem:[%s1 + $0xa8] sm:$0xff]
      %v584 = vld [vmem:[%s1 + $0xb0] sm:$0xff]
      %v585 = vld [vmem:[%s1 + $0xb8] sm:$0xff]
      %v586 = vld [vmem:[%s1 + $0xc0] sm:$0xff]
      %v587 = vld [vmem:[%s1 + $0xc8] sm:$0xff]
      %v588 = vld [vmem:[%s1 + $0xd0] sm:$0xff]
      %v589 = vld [vmem:[%s1 + $0xd8] sm:$0xff]
      %v590 = vld [vmem:[%s1 + $0xe0] sm:$0xff]
      %v591 = vld [vmem:[%s1 + $0xe8] sm:$0xff]
      %v592 = vld [vmem:[%s1 + $0xf0] sm:$0xff]
      %v593 = vld [vmem:[%s1 + $0xf8] sm:$0xff]
      %v594 = vld [vmem:[%s1 + $0x100] sm:$0xff]
      %v595 = vld [vmem:[%s1 + $0x108] sm:$0xff]
      %v596 = vld [vmem:[%s1 + $0x110] sm:$0xff]
      %v597 = vld [vmem:[%s1 + $0x118] sm:$0xff]
      %v598 = vld [vmem:[%s1 + $0x120] sm:$0xff]
      %v599 = vld [vmem:[%s1 + $0x128] sm:$0xff]
      %v600 = vld [vmem:[%s1 + $0x130] sm:$0xff]
      %v601 = vld [vmem:[%s1 + $0x138] sm:$0xff]
      %v602 = vld [vmem:[%s1 + $0x140] sm:$0xff]
      %v603 = vld [vmem:[%s1 + $0x148] sm:$0xff]
      %v604 = vld [vmem:[%s1 + $0x150] sm:$0xff]
      %v605 = vld [vmem:[%s1 + $0x158] sm:$0xff]
      %v606 = vld [vmem:[%s1 + $0x160] sm:$0xff]
      %v607 = vld [vmem:[%s1 + $0x168] sm:$0xff]
      %v608 = vld [vmem:[%s1 + $0x170] sm:$0xff]
      %v609 = vld [vmem:[%s1 + $0x178] sm:$0xff]
      %v610 = vld [vmem:[%s1 + $0x180] sm:$0xff]
      %v611 = vld [vmem:[%s1 + $0x188] sm:$0xff]
      %v612 = vld [vmem:[%s1 + $0x190] sm:$0xff]
      %v613 = vld [vmem:[%s1 + $0x198] sm:$0xff]
      %v614 = vld [vmem:[%s1 + $0x1a0] sm:$0xff]
      %v615 = vld [vmem:[%s1 + $0x1a8] sm:$0xff]
      %v616 = vld [vmem:[%s1 + $0x1b0] sm:$0xff]
      %v617 = vld [vmem:[%s1 + $0x1b8] sm:$0xff]
      %v618 = vld [vmem:[%s1 + $0x1c0] sm:$0xff]
      %v619 = vld [vmem:[%s1 + $0x1c8] sm:$0xff]
      %v620 = vld [vmem:[%s1 + $0x1d0] sm:$0xff]
      %v621 = vld [vmem:[%s1 + $0x1d8] sm:$0xff]
      %v622 = vld [vmem:[%s1 + $0x1e0] sm:$0xff]
      %v623 = vld [vmem:[%s1 + $0x1e8] sm:$0xff]
      %v624 = vld [vmem:[%s1 + $0x1f0] sm:$0xff]
      %v625 = vld [vmem:[%s1 + $0x1f8] sm:$0xff]
      %v626 = vld [vmem:[%s1 + $0x200] sm:$0xff]
      %v627 = vld [vmem:[%s1 + $0x208] sm:$0xff]
      %v628 = vld [vmem:[%s1 + $0x210] sm:$0xff]
      %v629 = vld [vmem:[%s1 + $0x218] sm:$0xff]
      %v630 = vld [vmem:[%s1 + $0x220] sm:$0xff]
      %v631 = vld [vmem:[%s1 + $0x228] sm:$0xff]
      %v632 = vld [vmem:[%s1 + $0x230] sm:$0xff]
      %v633 = vld [vmem:[%s1 + $0x238] sm:$0xff]
      %v634 = vld [vmem:[%s1 + $0x240] sm:$0xff]
      %v635 = vld [vmem:[%s1 + $0x248] sm:$0xff]
      %v636 = vld [vmem:[%s1 + $0x250] sm:$0xff]
      %v637 = vld [vmem:[%s1 + $0x258] sm:$0xff]
      %v638 = vld [vmem:[%s1 + $0x260] sm:$0xff]
      %v639 = vld [vmem:[%s1 + $0x268] sm:$0xff]
      %v640 = vld [vmem:[%s1 + $0x270] sm:$0xff]
      %v641 = vld [vmem:[%s1 + $0x278] sm:$0xff]
      %v642 = vld [vmem:[%s1 + $0x280] sm:$0xff]
      %v643 = vld [vmem:[%s1 + $0x288] sm:$0xff]
      %v644 = vld [vmem:[%s1 + $0x290] sm:$0xff]
      %v645 = vld [vmem:[%s1 + $0x298] sm:$0xff]
      %v646 = vld [vmem:[%s1 + $0x2a0] sm:$0xff]
      %v647 = vld [vmem:[%s1 + $0x2a8] sm:$0xff]
      %v648 = vld [vmem:[%s1 + $0x2b0] sm:$0xff]
      %v649 = vld [vmem:[%s1 + $0x2b8] sm:$0xff]
      %v650 = vld [vmem:[%s1 + $0x2c0] sm:$0xff]
      %v651 = vld [vmem:[%s1 + $0x2c8] sm:$0xff]
      %v652 = vld [vmem:[%s1 + $0x2d0] sm:$0xff]
      %v653 = vld [vmem:[%s1 + $0x2d8] sm:$0xff]
      %v654 = vld [vmem:[%s1 + $0x2e0] sm:$0xff]
      %v655 = vld [vmem:[%s1 + $0x2e8] sm:$0xff]
      %v656 = vld [vmem:[%s1 + $0x2f0] sm:$0xff]
      %v657 = vld [vmem:[%s1 + $0x2f8] sm:$0xff]
      %v658 = vld [vmem:[%s1 + $0x300] sm:$0xff]
      %v659 = vld [vmem:[%s1 + $0x308] sm:$0xff]
      %v660 = vld [vmem:[%s1 + $0x310] sm:$0xff]
      %v661 = vld [vmem:[%s1 + $0x318] sm:$0xff]
      %v662 = vld [vmem:[%s1 + $0x320] sm:$0xff]
      %v663 = vld [vmem:[%s1 + $0x328] sm:$0xff]
      %v664 = vld [vmem:[%s1 + $0x330] sm:$0xff]
      %v665 = vld [vmem:[%s1 + $0x338] sm:$0xff]
      %v666 = vld [vmem:[%s1 + $0x340] sm:$0xff]
      %v667 = vld [vmem:[%s1 + $0x348] sm:$0xff]
      %v668 = vld [vmem:[%s1 + $0x350] sm:$0xff]
      %v669 = vld [vmem:[%s1 + $0x358] sm:$0xff]
      %v670 = vld [vmem:[%s1 + $0x360] sm:$0xff]
      %v671 = vld [vmem:[%s1 + $0x368] sm:$0xff]
      %v672 = vld [vmem:[%s1 + $0x370] sm:$0xff]
      %v673 = vld [vmem:[%s1 + $0x378] sm:$0xff]
      %v674 = vld [vmem:[%s1 + $0x380] sm:$0xff]
      %v675 = vld [vmem:[%s1 + $0x388] sm:$0xff]
      %v676 = vld [vmem:[%s1 + $0x390] sm:$0xff]
      %v677 = vld [vmem:[%s1 + $0x398] sm:$0xff]
      %v678 = vld [vmem:[%s1 + $0x3a0] sm:$0xff]
      %v679 = vld [vmem:[%s1 + $0x3a8] sm:$0xff]
      %v680 = vld [vmem:[%s1 + $0x3b0] sm:$0xff]
      %v681 = vld [vmem:[%s1 + $0x3b8] sm:$0xff]
      %v682 = vld [vmem:[%s1 + $0x3c0] sm:$0xff]
      %v683 = vld [vmem:[%s1 + $0x3c8] sm:$0xff]
      %v684 = vld [vmem:[%s1 + $0x3d0] sm:$0xff]
      %v685 = vld [vmem:[%s1 + $0x3d8] sm:$0xff]
      %v686 = vld [vmem:[%s1 + $0x3e0] sm:$0xff]
      %v687 = vld [vmem:[%s1 + $0x3e8] sm:$0xff]
      %v688 = vld [vmem:[%s1 + $0x3f0] sm:$0xff]
      %v689 = vld [vmem:[%s1 + $0x3f8] sm:$0xff]
      %v690 = vld [vmem:[%s1 + $0x400] sm:$0xff]
      %v691 = vld [vmem:[%s1 + $0x408] sm:$0xff]
      %v692 = vld [vmem:[%s1 + $0x410] sm:$0xff]
      %v693 = vld [vmem:[%s1 + $0x418] sm:$0xff]
      %v694 = vld [vmem:[%s1 + $0x420] sm:$0xff]
      %v695 = vld [vmem:[%s1 + $0x428] sm:$0xff]
      %v696 = vld [vmem:[%s1 + $0x430] sm:$0xff]
      %v697 = vld [vmem:[%s1 + $0x438] sm:$0xff]
      %v698 = vld [vmem:[%s1 + $0x440] sm:$0xff]
      %v699 = vld [vmem:[%s1 + $0x448] sm:$0xff]
      %v700 = vld [vmem:[%s1 + $0x450] sm:$0xff]
      %v701 = vld [vmem:[%s1 + $0x458] sm:$0xff]
      %v702 = vld [vmem:[%s1 + $0x460] sm:$0xff]
      %v703 = vld [vmem:[%s1 + $0x468] sm:$0xff]
      %v704 = vld [vmem:[%s1 + $0x470] sm:$0xff]
      %v705 = vld [vmem:[%s1 + $0x478] sm:$0xff]
      %v706 = vld [vmem:[%s258] sm:$0xff]
      %v707 = vld [vmem:[%s258 + $0x8] sm:$0xff]
      %v708 = vld [vmem:[%s258 + $0x10] sm:$0xff]
      %v709 = vld [vmem:[%s258 + $0x18] sm:$0xff]
      %v710 = vld [vmem:[%s258 + $0x20] sm:$0xff]
      %v711 = vld [vmem:[%s258 + $0x28] sm:$0xff]
      %v712 = vld [vmem:[%s258 + $0x30] sm:$0xff]
      %v713 = vld [vmem:[%s258 + $0x38] sm:$0xff]
      %v714 = vld [vmem:[%s258 + $0x40] sm:$0xff]
      %v715 = vld [vmem:[%s258 + $0x48] sm:$0xff]
      %v716 = vld [vmem:[%s258 + $0x50] sm:$0xff]
      %v717 = vld [vmem:[%s258 + $0x58] sm:$0xff]
      %v718 = vld [vmem:[%s258 + $0x60] sm:$0xff]
      %v719 = vld [vmem:[%s258 + $0x68] sm:$0xff]
      %v720 = vld [vmem:[%s258 + $0x70] sm:$0xff]
      %v721 = vld [vmem:[%s258 + $0x78] sm:$0xff]
      %v722 = vld [vmem:[%s258 + $0x80] sm:$0xff]
      %v723 = vld [vmem:[%s258 + $0x88] sm:$0xff]
      %v724 = vld [vmem:[%s258 + $0x90] sm:$0xff]
      %v725 = vld [vmem:[%s258 + $0x98] sm:$0xff]
      %v726 = vld [vmem:[%s258 + $0xa0] sm:$0xff]
      %v727 = vld [vmem:[%s258 + $0xa8] sm:$0xff]
      %v728 = vld [vmem:[%s258 + $0xb0] sm:$0xff]
      %v729 = vld [vmem:[%s258 + $0xb8] sm:$0xff]
      %v730 = vld [vmem:[%s258 + $0xc0] sm:$0xff]
      %v731 = vld [vmem:[%s258 + $0xc8] sm:$0xff]
      %v732 = vld [vmem:[%s258 + $0xd0] sm:$0xff]
      %v733 = vld [vmem:[%s258 + $0xd8] sm:$0xff]
      %v734 = vld [vmem:[%s258 + $0xe0] sm:$0xff]
      %v735 = vld [vmem:[%s258 + $0xe8] sm:$0xff]
      %v736 = vld [vmem:[%s258 + $0xf0] sm:$0xff]
      %v737 = vld [vmem:[%s258 + $0xf8] sm:$0xff]
      %738 = vmatprep.subr.mxu0 0.0
      %739 = vmatpush1.msra.mxu0 %v577
      %740 = vmatprep.subr.mxu0 0.0
      %741 = vmatpush1.msra.mxu0 %v576
      %742 = vmatprep.subr.mxu0 0.0
      %743 = vmatpush1.msra.mxu0 %v575
      %744 = vmatprep.subr.mxu0 0.0
      %745 = vmatpush1.msra.mxu0 %v574
      %746 = vmatprep.subr.mxu0 0.0
      %747 = vmatpush1.msra.mxu0 %v573
      %748 = vmatprep.subr.mxu0 0.0
      %749 = vmatpush1.msra.mxu0 %v572
      %750 = vmatprep.subr.mxu0 0.0
      %751 = vmatpush1.msra.mxu0 %v571
      %752 = vmatprep.subr.mxu0 0.0
      %753 = vmatpush1.msra.mxu0 %v570
      %754 = vmatprep.subr.mxu0 0.0
      %755 = vmatpush1.msra.mxu0 %v569
      %756 = vmatprep.subr.mxu0 0.0
      %757 = vmatpush1.msra.mxu0 %v568
      %758 = vmatprep.subr.mxu0 0.0
      %759 = vmatpush1.msra.mxu0 %v567
      %760 = vmatprep.subr.mxu0 0.0
      %761 = vmatpush1.msra.mxu0 %v566
      %762 = vmatprep.subr.mxu0 0.0
      %763 = vmatpush1.msra.mxu0 %v565
      %764 = vmatprep.subr.mxu0 0.0
      %765 = vmatpush1.msra.mxu0 %v564
      %766 = vmatprep.subr.mxu0 0.0
      %767 = vmatpush1.msra.mxu0 %v563
      %768 = vmatprep.subr.mxu0 0.0
      %769 = vmatpush1.msra.mxu0 %v562
      %770 = vmatprep.subr.mxu0 0.0
      %771 = vmatpush2.msra.mxu0 %v593
      %772 = vmatprep.subr.mxu0 0.0
      %773 = vmatpush2.msra.mxu0 %v592
      %774 = vmatprep.subr.mxu0 0.0
      %775 = vmatpush2.msra.mxu0 %v591
      %776 = vmatprep.subr.mxu0 0.0
      %777 = vmatpush2.msra.mxu0 %v590
      %778 = vmatprep.subr.mxu0 0.0
      %779 = vmatpush2.msra.mxu0 %v589
      %780 = vmatprep.subr.mxu0 0.0
      %781 = vmatpush2.msra.mxu0 %v588
      %782 = vmatprep.subr.mxu0 0.0
      %783 = vmatpush2.msra.mxu0 %v587
      %784 = vmatprep.subr.mxu0 0.0
      %785 = vmatpush2.msra.mxu0 %v586
      %786 = vmatprep.subr.mxu0 0.0
      %787 = vmatpush2.msra.mxu0 %v585
      %788 = vmatprep.subr.mxu0 0.0
      %789 = vmatpush2.msra.mxu0 %v584
      %790 = vmatprep.subr.mxu0 0.0
      %791 = vmatpush2.msra.mxu0 %v583
      %792 = vmatprep.subr.mxu0 0.0
      %793 = vmatpush2.msra.mxu0 %v582
      %794 = vmatprep.subr.mxu0 0.0
      %795 = vmatpush2.msra.mxu0 %v581
      %796 = vmatprep.subr.mxu0 0.0
      %797 = vmatpush2.msra.mxu0 %v580
      %798 = vmatprep.subr.mxu0 0.0
      %799 = vmatpush2.msra.mxu0 %v579
      %800 = vmatprep.subr.mxu0 0.0
      %801 = vmatpush2.msra.mxu0 %v578
      %802 = vmatprep.mubr.f32.mxu0 %v275
      %803 = vmatmul.mubr.f32.gmra.mxu0 %v274
      %v804 = vpop.f32.mrf.mxu0
      %v805 = vadd.f32 %v706, %v804
      %v806 = vpop.f32.mrf.mxu0
      %807 = vmatprep.mubr.f32.mxu0 %v284
      %808 = vmatmul.mubr.f32.gmra.mxu0 %v283
      %v809 = vpop.f32.mrf.mxu0
      %v810 = vadd.f32 %v707, %v809
      %v811 = vpop.f32.mrf.mxu0
      %812 = vmatprep.mubr.f32.mxu0 %v293
      %813 = vmatmul.mubr.f32.gmra.mxu0 %v292
      %v814 = vpop.f32.mrf.mxu0
      %v815 = vadd.f32 %v708, %v814
      %v816 = vpop.f32.mrf.mxu0
      %817 = vmatprep.mubr.f32.mxu0 %v302
      %818 = vmatmul.mubr.f32.gmra.mxu0 %v301
      %v819 = vpop.f32.mrf.mxu0
      %v820 = vadd.f32 %v709, %v819
      %v821 = vpop.f32.mrf.mxu0
      %822 = vmatprep.mubr.f32.mxu0 %v311
      %823 = vmatmul.mubr.f32.gmra.mxu0 %v310
      %v824 = vpop.f32.mrf.mxu0
      %v825 = vadd.f32 %v710, %v824
      %v826 = vpop.f32.mrf.mxu0
      %827 = vmatprep.mubr.f32.mxu0 %v320
      %828 = vmatmul.mubr.f32.gmra.mxu0 %v319
      %v829 = vpop.f32.mrf.mxu0
      %v830 = vadd.f32 %v711, %v829
      %v831 = vpop.f32.mrf.mxu0
      %832 = vmatprep.mubr.f32.mxu0 %v329
      %833 = vmatmul.mubr.f32.gmra.mxu0 %v328
      %v834 = vpop.f32.mrf.mxu0
      %v835 = vadd.f32 %v712, %v834
      %v836 = vpop.f32.mrf.mxu0
      %837 = vmatprep.mubr.f32.mxu0 %v338
      %838 = vmatmul.mubr.f32.gmra.mxu0 %v337
      %v839 = vpop.f32.mrf.mxu0
      %v840 = vadd.f32 %v713, %v839
      %v841 = vpop.f32.mrf.mxu0
      %842 = vmatprep.mubr.f32.mxu0 %v347
      %843 = vmatmul.mubr.f32.gmra.mxu0 %v346
      %v844 = vpop.f32.mrf.mxu0
      %v845 = vadd.f32 %v714, %v844
      %v846 = vpop.f32.mrf.mxu0
      %847 = vmatprep.mubr.f32.mxu0 %v356
      %848 = vmatmul.mubr.f32.gmra.mxu0 %v355
      %v849 = vpop.f32.mrf.mxu0
      %v850 = vadd.f32 %v715, %v849
      %v851 = vpop.f32.mrf.mxu0
      %852 = vmatprep.mubr.f32.mxu0 %v365
      %853 = vmatmul.mubr.f32.gmra.mxu0 %v364
      %v854 = vpop.f32.mrf.mxu0
      %v855 = vadd.f32 %v716, %v854
      %v856 = vpop.f32.mrf.mxu0
      %857 = vmatprep.mubr.f32.mxu0 %v374
      %858 = vmatmul.mubr.f32.gmra.mxu0 %v373
      %v859 = vpop.f32.mrf.mxu0
      %v860 = vadd.f32 %v717, %v859
      %v861 = vpop.f32.mrf.mxu0
      %862 = vmatprep.mubr.f32.mxu0 %v383
      %863 = vmatmul.mubr.f32.gmra.mxu0 %v382
      %v864 = vpop.f32.mrf.mxu0
      %v865 = vadd.f32 %v718, %v864
      %v866 = vpop.f32.mrf.mxu0
      %867 = vmatprep.mubr.f32.mxu0 %v392
      %868 = vmatmul.mubr.f32.gmra.mxu0 %v391
      %v869 = vpop.f32.mrf.mxu0
      %v870 = vadd.f32 %v719, %v869
      %v871 = vpop.f32.mrf.mxu0
      %872 = vmatprep.mubr.f32.mxu0 %v401
      %873 = vmatmul.mubr.f32.gmra.mxu0 %v400
      %v874 = vpop.f32.mrf.mxu0
      %v875 = vadd.f32 %v720, %v874
      %v876 = vpop.f32.mrf.mxu0
      %877 = vmatprep.mubr.f32.mxu0 %v410
      %878 = vmatmul.mubr.f32.gmra.mxu0 %v409
      %v879 = vpop.f32.mrf.mxu0
      %v880 = vadd.f32 %v721, %v879
      %v881 = vpop.f32.mrf.mxu0
      %882 = vmatprep.mubr.f32.mxu0 %v419
      %883 = vmatmul.mubr.f32.gmra.mxu0 %v418
      %v884 = vpop.f32.mrf.mxu0
      %v885 = vadd.f32 %v722, %v884
      %v886 = vpop.f32.mrf.mxu0
      %887 = vmatprep.mubr.f32.mxu0 %v428
      %888 = vmatmul.mubr.f32.gmra.mxu0 %v427
      %v889 = vpop.f32.mrf.mxu0
      %v890 = vadd.f32 %v723, %v889
      %v891 = vpop.f32.mrf.mxu0
      %892 = vmatprep.mubr.f32.mxu0 %v437
      %893 = vmatmul.mubr.f32.gmra.mxu0 %v436
      %v894 = vpop.f32.mrf.mxu0
      %v895 = vadd.f32 %v724, %v894
      %v896 = vpop.f32.mrf.mxu0
      %897 = vmatprep.mubr.f32.mxu0 %v446
      %898 = vmatmul.mubr.f32.gmra.mxu0 %v445
      %v899 = vpop.f32.mrf.mxu0
      %v900 = vadd.f32 %v725, %v899
      %v901 = vpop.f32.mrf.mxu0
      %902 = vmatprep.mubr.f32.mxu0 %v455
      %903 = vmatmul.mubr.f32.gmra.mxu0 %v454
      %v904 = vpop.f32.mrf.mxu0
      %v905 = vadd.f32 %v726, %v904
      %v906 = vpop.f32.mrf.mxu0
      %907 = vmatprep.mubr.f32.mxu0 %v464
      %908 = vmatmul.mubr.f32.gmra.mxu0 %v463
      %v909 = vpop.f32.mrf.mxu0
      %v910 = vadd.f32 %v727, %v909
      %v911 = vpop.f32.mrf.mxu0
      %912 = vmatprep.mubr.f32.mxu0 %v473
      %913 = vmatmul.mubr.f32.gmra.mxu0 %v472
      %v914 = vpop.f32.mrf.mxu0
      %v915 = vadd.f32 %v728, %v914
      %v916 = vpop.f32.mrf.mxu0
      %917 = vmatprep.mubr.f32.mxu0 %v482
      %918 = vmatmul.mubr.f32.gmra.mxu0 %v481
      %v919 = vpop.f32.mrf.mxu0
      %v920 = vadd.f32 %v729, %v919
      %v921 = vpop.f32.mrf.mxu0
      %922 = vmatprep.mubr.f32.mxu0 %v491
      %923 = vmatmul.mubr.f32.gmra.mxu0 %v490
      %v924 = vpop.f32.mrf.mxu0
      %v925 = vadd.f32 %v730, %v924
      %v926 = vpop.f32.mrf.mxu0
      %927 = vmatprep.mubr.f32.mxu0 %v500
      %928 = vmatmul.mubr.f32.gmra.mxu0 %v499
      %v929 = vpop.f32.mrf.mxu0
      %v930 = vadd.f32 %v731, %v929
      %v931 = vpop.f32.mrf.mxu0
      %932 = vmatprep.mubr.f32.mxu0 %v509
      %933 = vmatmul.mubr.f32.gmra.mxu0 %v508
      %v934 = vpop.f32.mrf.mxu0
      %v935 = vadd.f32 %v732, %v934
      %v936 = vpop.f32.mrf.mxu0
      %937 = vmatprep.mubr.f32.mxu0 %v518
      %938 = vmatmul.mubr.f32.gmra.mxu0 %v517
      %v939 = vpop.f32.mrf.mxu0
      %v940 = vadd.f32 %v733, %v939
      %v941 = vpop.f32.mrf.mxu0
      %942 = vmatprep.mubr.f32.mxu0 %v527
      %943 = vmatmul.mubr.f32.gmra.mxu0 %v526
      %v944 = vpop.f32.mrf.mxu0
      %v945 = vadd.f32 %v734, %v944
      %v946 = vpop.f32.mrf.mxu0
      %947 = vmatprep.mubr.f32.mxu0 %v536
      %948 = vmatmul.mubr.f32.gmra.mxu0 %v535
      %v949 = vpop.f32.mrf.mxu0
      %v950 = vadd.f32 %v735, %v949
      %v951 = vpop.f32.mrf.mxu0
      %952 = vmatprep.mubr.f32.mxu0 %v545
      %953 = vmatmul.mubr.f32.gmra.mxu0 %v544
      %v954 = vpop.f32.mrf.mxu0
      %v955 = vadd.f32 %v736, %v954
      %v956 = vpop.f32.mrf.mxu0
      %957 = vmatprep.mubr.f32.mxu0 %v554
      %958 = vmatmul.mubr.f32.gmra.mxu0 %v553
      %v959 = vpop.f32.mrf.mxu0
      %v960 = vadd.f32 %v737, %v959
      %v961 = vpop.f32.mrf.mxu0
      %962 = vdwg.mxu0
      %963 = vmatprep.subr.mxu0 0.0
      %964 = vmatpush1.msra.mxu0 %v609
      %965 = vmatprep.subr.mxu0 0.0
      %966 = vmatpush1.msra.mxu0 %v608
      %967 = vmatprep.subr.mxu0 0.0
      %968 = vmatpush1.msra.mxu0 %v607
      %969 = vmatprep.subr.mxu0 0.0
      %970 = vmatpush1.msra.mxu0 %v606
      %971 = vmatprep.subr.mxu0 0.0
      %972 = vmatpush1.msra.mxu0 %v605
      %973 = vmatprep.subr.mxu0 0.0
      %974 = vmatpush1.msra.mxu0 %v604
      %975 = vmatprep.subr.mxu0 0.0
      %976 = vmatpush1.msra.mxu0 %v603
      %977 = vmatprep.subr.mxu0 0.0
      %978 = vmatpush1.msra.mxu0 %v602
      %979 = vmatprep.subr.mxu0 0.0
      %980 = vmatpush1.msra.mxu0 %v601
      %981 = vmatprep.subr.mxu0 0.0
      %982 = vmatpush1.msra.mxu0 %v600
      %983 = vmatprep.subr.mxu0 0.0
      %984 = vmatpush1.msra.mxu0 %v599
      %985 = vmatprep.subr.mxu0 0.0
      %986 = vmatpush1.msra.mxu0 %v598
      %987 = vmatprep.subr.mxu0 0.0
      %988 = vmatpush1.msra.mxu0 %v597
      %989 = vmatprep.subr.mxu0 0.0
      %990 = vmatpush1.msra.mxu0 %v596
      %991 = vmatprep.subr.mxu0 0.0
      %992 = vmatpush1.msra.mxu0 %v595
      %993 = vmatprep.subr.mxu0 0.0
      %994 = vmatpush1.msra.mxu0 %v594
      %995 = vmatprep.subr.mxu0 0.0
      %996 = vmatpush2.msra.mxu0 %v625
      %997 = vmatprep.subr.mxu0 0.0
      %998 = vmatpush2.msra.mxu0 %v624
      %999 = vmatprep.subr.mxu0 0.0
      %1000 = vmatpush2.msra.mxu0 %v623
      %1001 = vmatprep.subr.mxu0 0.0
      %1002 = vmatpush2.msra.mxu0 %v622
      %1003 = vmatprep.subr.mxu0 0.0
      %1004 = vmatpush2.msra.mxu0 %v621
      %1005 = vmatprep.subr.mxu0 0.0
      %1006 = vmatpush2.msra.mxu0 %v620
      %1007 = vmatprep.subr.mxu0 0.0
      %1008 = vmatpush2.msra.mxu0 %v619
      %1009 = vmatprep.subr.mxu0 0.0
      %1010 = vmatpush2.msra.mxu0 %v618
      %1011 = vmatprep.subr.mxu0 0.0
      %1012 = vmatpush2.msra.mxu0 %v617
      %1013 = vmatprep.subr.mxu0 0.0
      %1014 = vmatpush2.msra.mxu0 %v616
      %1015 = vmatprep.subr.mxu0 0.0
      %1016 = vmatpush2.msra.mxu0 %v615
      %1017 = vmatprep.subr.mxu0 0.0
      %1018 = vmatpush2.msra.mxu0 %v614
      %1019 = vmatprep.subr.mxu0 0.0
      %1020 = vmatpush2.msra.mxu0 %v613
      %1021 = vmatprep.subr.mxu0 0.0
      %1022 = vmatpush2.msra.mxu0 %v612
      %1023 = vmatprep.subr.mxu0 0.0
      %1024 = vmatpush2.msra.mxu0 %v611
      %1025 = vmatprep.subr.mxu0 0.0
      %1026 = vmatpush2.msra.mxu0 %v610
      %1027 = vmatprep.mubr.f32.mxu0 %v277
      %1028 = vmatmul.mubr.f32.gmra.mxu0 %v276
      %v1029 = vpop.f32.mrf.mxu0
      %v1030 = vadd.f32 %v805, %v1029
      %v1031 = vpop.f32.mrf.mxu0
      %1032 = vmatprep.mubr.f32.mxu0 %v286
      %1033 = vmatmul.mubr.f32.gmra.mxu0 %v285
      %v1034 = vpop.f32.mrf.mxu0
      %v1035 = vadd.f32 %v810, %v1034
      %v1036 = vpop.f32.mrf.mxu0
      %1037 = vmatprep.mubr.f32.mxu0 %v295
      %1038 = vmatmul.mubr.f32.gmra.mxu0 %v294
      %v1039 = vpop.f32.mrf.mxu0
      %v1040 = vadd.f32 %v815, %v1039
      %v1041 = vpop.f32.mrf.mxu0
      %1042 = vmatprep.mubr.f32.mxu0 %v304
      %1043 = vmatmul.mubr.f32.gmra.mxu0 %v303
      %v1044 = vpop.f32.mrf.mxu0
      %v1045 = vadd.f32 %v820, %v1044
      %v1046 = vpop.f32.mrf.mxu0
      %1047 = vmatprep.mubr.f32.mxu0 %v313
      %1048 = vmatmul.mubr.f32.gmra.mxu0 %v312
      %v1049 = vpop.f32.mrf.mxu0
      %v1050 = vadd.f32 %v825, %v1049
      %v1051 = vpop.f32.mrf.mxu0
      %1052 = vmatprep.mubr.f32.mxu0 %v322
      %1053 = vmatmul.mubr.f32.gmra.mxu0 %v321
      %v1054 = vpop.f32.mrf.mxu0
      %v1055 = vadd.f32 %v830, %v1054
      %v1056 = vpop.f32.mrf.mxu0
      %1057 = vmatprep.mubr.f32.mxu0 %v331
      %1058 = vmatmul.mubr.f32.gmra.mxu0 %v330
      %v1059 = vpop.f32.mrf.mxu0
      %v1060 = vadd.f32 %v835, %v1059
      %v1061 = vpop.f32.mrf.mxu0
      %1062 = vmatprep.mubr.f32.mxu0 %v340
      %1063 = vmatmul.mubr.f32.gmra.mxu0 %v339
      %v1064 = vpop.f32.mrf.mxu0
      %v1065 = vadd.f32 %v840, %v1064
      %v1066 = vpop.f32.mrf.mxu0
      %1067 = vmatprep.mubr.f32.mxu0 %v349
      %1068 = vmatmul.mubr.f32.gmra.mxu0 %v348
      %v1069 = vpop.f32.mrf.mxu0
      %v1070 = vadd.f32 %v845, %v1069
      %v1071 = vpop.f32.mrf.mxu0
      %1072 = vmatprep.mubr.f32.mxu0 %v358
      %1073 = vmatmul.mubr.f32.gmra.mxu0 %v357
      %v1074 = vpop.f32.mrf.mxu0
      %v1075 = vadd.f32 %v850, %v1074
      %v1076 = vpop.f32.mrf.mxu0
      %1077 = vmatprep.mubr.f32.mxu0 %v367
      %1078 = vmatmul.mubr.f32.gmra.mxu0 %v366
      %v1079 = vpop.f32.mrf.mxu0
      %v1080 = vadd.f32 %v855, %v1079
      %v1081 = vpop.f32.mrf.mxu0
      %1082 = vmatprep.mubr.f32.mxu0 %v376
      %1083 = vmatmul.mubr.f32.gmra.mxu0 %v375
      %v1084 = vpop.f32.mrf.mxu0
      %v1085 = vadd.f32 %v860, %v1084
      %v1086 = vpop.f32.mrf.mxu0
      %1087 = vmatprep.mubr.f32.mxu0 %v385
      %1088 = vmatmul.mubr.f32.gmra.mxu0 %v384
      %v1089 = vpop.f32.mrf.mxu0
      %v1090 = vadd.f32 %v865, %v1089
      %v1091 = vpop.f32.mrf.mxu0
      %1092 = vmatprep.mubr.f32.mxu0 %v394
      %1093 = vmatmul.mubr.f32.gmra.mxu0 %v393
      %v1094 = vpop.f32.mrf.mxu0
      %v1095 = vadd.f32 %v870, %v1094
      %v1096 = vpop.f32.mrf.mxu0
      %1097 = vmatprep.mubr.f32.mxu0 %v403
      %1098 = vmatmul.mubr.f32.gmra.mxu0 %v402
      %v1099 = vpop.f32.mrf.mxu0
      %v1100 = vadd.f32 %v875, %v1099
      %v1101 = vpop.f32.mrf.mxu0
      %1102 = vmatprep.mubr.f32.mxu0 %v412
      %1103 = vmatmul.mubr.f32.gmra.mxu0 %v411
      %v1104 = vpop.f32.mrf.mxu0
      %v1105 = vadd.f32 %v880, %v1104
      %v1106 = vpop.f32.mrf.mxu0
      %1107 = vmatprep.mubr.f32.mxu0 %v421
      %1108 = vmatmul.mubr.f32.gmra.mxu0 %v420
      %v1109 = vpop.f32.mrf.mxu0
      %v1110 = vadd.f32 %v885, %v1109
      %v1111 = vpop.f32.mrf.mxu0
      %1112 = vmatprep.mubr.f32.mxu0 %v430
      %1113 = vmatmul.mubr.f32.gmra.mxu0 %v429
      %v1114 = vpop.f32.mrf.mxu0
      %v1115 = vadd.f32 %v890, %v1114
      %v1116 = vpop.f32.mrf.mxu0
      %1117 = vmatprep.mubr.f32.mxu0 %v439
      %1118 = vmatmul.mubr.f32.gmra.mxu0 %v438
      %v1119 = vpop.f32.mrf.mxu0
      %v1120 = vadd.f32 %v895, %v1119
      %v1121 = vpop.f32.mrf.mxu0
      %1122 = vmatprep.mubr.f32.mxu0 %v448
      %1123 = vmatmul.mubr.f32.gmra.mxu0 %v447
      %v1124 = vpop.f32.mrf.mxu0
      %v1125 = vadd.f32 %v900, %v1124
      %v1126 = vpop.f32.mrf.mxu0
      %1127 = vmatprep.mubr.f32.mxu0 %v457
      %1128 = vmatmul.mubr.f32.gmra.mxu0 %v456
      %v1129 = vpop.f32.mrf.mxu0
      %v1130 = vadd.f32 %v905, %v1129
      %v1131 = vpop.f32.mrf.mxu0
      %1132 = vmatprep.mubr.f32.mxu0 %v466
      %1133 = vmatmul.mubr.f32.gmra.mxu0 %v465
      %v1134 = vpop.f32.mrf.mxu0
      %v1135 = vadd.f32 %v910, %v1134
      %v1136 = vpop.f32.mrf.mxu0
      %1137 = vmatprep.mubr.f32.mxu0 %v475
      %1138 = vmatmul.mubr.f32.gmra.mxu0 %v474
      %v1139 = vpop.f32.mrf.mxu0
      %v1140 = vadd.f32 %v915, %v1139
      %v1141 = vpop.f32.mrf.mxu0
      %1142 = vmatprep.mubr.f32.mxu0 %v484
      %1143 = vmatmul.mubr.f32.gmra.mxu0 %v483
      %v1144 = vpop.f32.mrf.mxu0
      %v1145 = vadd.f32 %v920, %v1144
      %v1146 = vpop.f32.mrf.mxu0
      %1147 = vmatprep.mubr.f32.mxu0 %v493
      %1148 = vmatmul.mubr.f32.gmra.mxu0 %v492
      %v1149 = vpop.f32.mrf.mxu0
      %v1150 = vadd.f32 %v925, %v1149
      %v1151 = vpop.f32.mrf.mxu0
      %1152 = vmatprep.mubr.f32.mxu0 %v502
      %1153 = vmatmul.mubr.f32.gmra.mxu0 %v501
      %v1154 = vpop.f32.mrf.mxu0
      %v1155 = vadd.f32 %v930, %v1154
      %v1156 = vpop.f32.mrf.mxu0
      %1157 = vmatprep.mubr.f32.mxu0 %v511
      %1158 = vmatmul.mubr.f32.gmra.mxu0 %v510
      %v1159 = vpop.f32.mrf.mxu0
      %v1160 = vadd.f32 %v935, %v1159
      %v1161 = vpop.f32.mrf.mxu0
      %1162 = vmatprep.mubr.f32.mxu0 %v520
      %1163 = vmatmul.mubr.f32.gmra.mxu0 %v519
      %v1164 = vpop.f32.mrf.mxu0
      %v1165 = vadd.f32 %v940, %v1164
      %v1166 = vpop.f32.mrf.mxu0
      %1167 = vmatprep.mubr.f32.mxu0 %v529
      %1168 = vmatmul.mubr.f32.gmra.mxu0 %v528
      %v1169 = vpop.f32.mrf.mxu0
      %v1170 = vadd.f32 %v945, %v1169
      %v1171 = vpop.f32.mrf.mxu0
      %1172 = vmatprep.mubr.f32.mxu0 %v538
      %1173 = vmatmul.mubr.f32.gmra.mxu0 %v537
      %v1174 = vpop.f32.mrf.mxu0
      %v1175 = vadd.f32 %v950, %v1174
      %v1176 = vpop.f32.mrf.mxu0
      %1177 = vmatprep.mubr.f32.mxu0 %v547
      %1178 = vmatmul.mubr.f32.gmra.mxu0 %v546
      %v1179 = vpop.f32.mrf.mxu0
      %v1180 = vadd.f32 %v955, %v1179
      %v1181 = vpop.f32.mrf.mxu0
      %1182 = vmatprep.mubr.f32.mxu0 %v556
      %1183 = vmatmul.mubr.f32.gmra.mxu0 %v555
      %v1184 = vpop.f32.mrf.mxu0
      %v1185 = vadd.f32 %v960, %v1184
      %v1186 = vpop.f32.mrf.mxu0
      %1187 = vdwg.mxu0
      %1188 = vmatprep.subr.mxu0 0.0
      %1189 = vmatpush1.msra.mxu0 %v641
      %1190 = vmatprep.subr.mxu0 0.0
      %1191 = vmatpush1.msra.mxu0 %v640
      %1192 = vmatprep.subr.mxu0 0.0
      %1193 = vmatpush1.msra.mxu0 %v639
      %1194 = vmatprep.subr.mxu0 0.0
      %1195 = vmatpush1.msra.mxu0 %v638
      %1196 = vmatprep.subr.mxu0 0.0
      %1197 = vmatpush1.msra.mxu0 %v637
      %1198 = vmatprep.subr.mxu0 0.0
      %1199 = vmatpush1.msra.mxu0 %v636
      %1200 = vmatprep.subr.mxu0 0.0
      %1201 = vmatpush1.msra.mxu0 %v635
      %1202 = vmatprep.subr.mxu0 0.0
      %1203 = vmatpush1.msra.mxu0 %v634
      %1204 = vmatprep.subr.mxu0 0.0
      %1205 = vmatpush1.msra.mxu0 %v633
      %1206 = vmatprep.subr.mxu0 0.0
      %1207 = vmatpush1.msra.mxu0 %v632
      %1208 = vmatprep.subr.mxu0 0.0
      %1209 = vmatpush1.msra.mxu0 %v631
      %1210 = vmatprep.subr.mxu0 0.0
      %1211 = vmatpush1.msra.mxu0 %v630
      %1212 = vmatprep.subr.mxu0 0.0
      %1213 = vmatpush1.msra.mxu0 %v629
      %1214 = vmatprep.subr.mxu0 0.0
      %1215 = vmatpush1.msra.mxu0 %v628
      %1216 = vmatprep.subr.mxu0 0.0
      %1217 = vmatpush1.msra.mxu0 %v627
      %1218 = vmatprep.subr.mxu0 0.0
      %1219 = vmatpush1.msra.mxu0 %v626
      %1220 = vmatprep.subr.mxu0 0.0
      %1221 = vmatpush2.msra.mxu0 %v657
      %1222 = vmatprep.subr.mxu0 0.0
      %1223 = vmatpush2.msra.mxu0 %v656
      %1224 = vmatprep.subr.mxu0 0.0
      %1225 = vmatpush2.msra.mxu0 %v655
      %1226 = vmatprep.subr.mxu0 0.0
      %1227 = vmatpush2.msra.mxu0 %v654
      %1228 = vmatprep.subr.mxu0 0.0
      %1229 = vmatpush2.msra.mxu0 %v653
      %1230 = vmatprep.subr.mxu0 0.0
      %1231 = vmatpush2.msra.mxu0 %v652
      %1232 = vmatprep.subr.mxu0 0.0
      %1233 = vmatpush2.msra.mxu0 %v651
      %1234 = vmatprep.subr.mxu0 0.0
      %1235 = vmatpush2.msra.mxu0 %v650
      %1236 = vmatprep.subr.mxu0 0.0
      %1237 = vmatpush2.msra.mxu0 %v649
      %1238 = vmatprep.subr.mxu0 0.0
      %1239 = vmatpush2.msra.mxu0 %v648
      %1240 = vmatprep.subr.mxu0 0.0
      %1241 = vmatpush2.msra.mxu0 %v647
      %1242 = vmatprep.subr.mxu0 0.0
      %1243 = vmatpush2.msra.mxu0 %v646
      %1244 = vmatprep.subr.mxu0 0.0
      %1245 = vmatpush2.msra.mxu0 %v645
      %1246 = vmatprep.subr.mxu0 0.0
      %1247 = vmatpush2.msra.mxu0 %v644
      %1248 = vmatprep.subr.mxu0 0.0
      %1249 = vmatpush2.msra.mxu0 %v643
      %1250 = vmatprep.subr.mxu0 0.0
      %1251 = vmatpush2.msra.mxu0 %v642
      %1252 = vmatprep.mubr.f32.mxu0 %v279
      %1253 = vmatmul.mubr.f32.gmra.mxu0 %v278
      %v1254 = vpop.f32.mrf.mxu0
      %v1255 = vadd.f32 %v1030, %v1254
      %v1256 = vpop.f32.mrf.mxu0
      %1257 = vmatprep.mubr.f32.mxu0 %v288
      %1258 = vmatmul.mubr.f32.gmra.mxu0 %v287
      %v1259 = vpop.f32.mrf.mxu0
      %v1260 = vadd.f32 %v1035, %v1259
      %v1261 = vpop.f32.mrf.mxu0
      %1262 = vmatprep.mubr.f32.mxu0 %v297
      %1263 = vmatmul.mubr.f32.gmra.mxu0 %v296
      %v1264 = vpop.f32.mrf.mxu0
      %v1265 = vadd.f32 %v1040, %v1264
      %v1266 = vpop.f32.mrf.mxu0
      %1267 = vmatprep.mubr.f32.mxu0 %v306
      %1268 = vmatmul.mubr.f32.gmra.mxu0 %v305
      %v1269 = vpop.f32.mrf.mxu0
      %v1270 = vadd.f32 %v1045, %v1269
      %v1271 = vpop.f32.mrf.mxu0
      %1272 = vmatprep.mubr.f32.mxu0 %v315
      %1273 = vmatmul.mubr.f32.gmra.mxu0 %v314
      %v1274 = vpop.f32.mrf.mxu0
      %v1275 = vadd.f32 %v1050, %v1274
      %v1276 = vpop.f32.mrf.mxu0
      %1277 = vmatprep.mubr.f32.mxu0 %v324
      %1278 = vmatmul.mubr.f32.gmra.mxu0 %v323
      %v1279 = vpop.f32.mrf.mxu0
      %v1280 = vadd.f32 %v1055, %v1279
      %v1281 = vpop.f32.mrf.mxu0
      %1282 = vmatprep.mubr.f32.mxu0 %v333
      %1283 = vmatmul.mubr.f32.gmra.mxu0 %v332
      %v1284 = vpop.f32.mrf.mxu0
      %v1285 = vadd.f32 %v1060, %v1284
      %v1286 = vpop.f32.mrf.mxu0
      %1287 = vmatprep.mubr.f32.mxu0 %v342
      %1288 = vmatmul.mubr.f32.gmra.mxu0 %v341
      %v1289 = vpop.f32.mrf.mxu0
      %v1290 = vadd.f32 %v1065, %v1289
      %v1291 = vpop.f32.mrf.mxu0
      %1292 = vmatprep.mubr.f32.mxu0 %v351
      %1293 = vmatmul.mubr.f32.gmra.mxu0 %v350
      %v1294 = vpop.f32.mrf.mxu0
      %v1295 = vadd.f32 %v1070, %v1294
      %v1296 = vpop.f32.mrf.mxu0
      %1297 = vmatprep.mubr.f32.mxu0 %v360
      %1298 = vmatmul.mubr.f32.gmra.mxu0 %v359
      %v1299 = vpop.f32.mrf.mxu0
      %v1300 = vadd.f32 %v1075, %v1299
      %v1301 = vpop.f32.mrf.mxu0
      %1302 = vmatprep.mubr.f32.mxu0 %v369
      %1303 = vmatmul.mubr.f32.gmra.mxu0 %v368
      %v1304 = vpop.f32.mrf.mxu0
      %v1305 = vadd.f32 %v1080, %v1304
      %v1306 = vpop.f32.mrf.mxu0
      %1307 = vmatprep.mubr.f32.mxu0 %v378
      %1308 = vmatmul.mubr.f32.gmra.mxu0 %v377
      %v1309 = vpop.f32.mrf.mxu0
      %v1310 = vadd.f32 %v1085, %v1309
      %v1311 = vpop.f32.mrf.mxu0
      %1312 = vmatprep.mubr.f32.mxu0 %v387
      %1313 = vmatmul.mubr.f32.gmra.mxu0 %v386
      %v1314 = vpop.f32.mrf.mxu0
      %v1315 = vadd.f32 %v1090, %v1314
      %v1316 = vpop.f32.mrf.mxu0
      %1317 = vmatprep.mubr.f32.mxu0 %v396
      %1318 = vmatmul.mubr.f32.gmra.mxu0 %v395
      %v1319 = vpop.f32.mrf.mxu0
      %v1320 = vadd.f32 %v1095, %v1319
      %v1321 = vpop.f32.mrf.mxu0
      %1322 = vmatprep.mubr.f32.mxu0 %v405
      %1323 = vmatmul.mubr.f32.gmra.mxu0 %v404
      %v1324 = vpop.f32.mrf.mxu0
      %v1325 = vadd.f32 %v1100, %v1324
      %v1326 = vpop.f32.mrf.mxu0
      %1327 = vmatprep.mubr.f32.mxu0 %v414
      %1328 = vmatmul.mubr.f32.gmra.mxu0 %v413
      %v1329 = vpop.f32.mrf.mxu0
      %v1330 = vadd.f32 %v1105, %v1329
      %v1331 = vpop.f32.mrf.mxu0
      %1332 = vmatprep.mubr.f32.mxu0 %v423
      %1333 = vmatmul.mubr.f32.gmra.mxu0 %v422
      %v1334 = vpop.f32.mrf.mxu0
      %v1335 = vadd.f32 %v1110, %v1334
      %v1336 = vpop.f32.mrf.mxu0
      %1337 = vmatprep.mubr.f32.mxu0 %v432
      %1338 = vmatmul.mubr.f32.gmra.mxu0 %v431
      %v1339 = vpop.f32.mrf.mxu0
      %v1340 = vadd.f32 %v1115, %v1339
      %v1341 = vpop.f32.mrf.mxu0
      %1342 = vmatprep.mubr.f32.mxu0 %v441
      %1343 = vmatmul.mubr.f32.gmra.mxu0 %v440
      %v1344 = vpop.f32.mrf.mxu0
      %v1345 = vadd.f32 %v1120, %v1344
      %v1346 = vpop.f32.mrf.mxu0
      %1347 = vmatprep.mubr.f32.mxu0 %v450
      %1348 = vmatmul.mubr.f32.gmra.mxu0 %v449
      %v1349 = vpop.f32.mrf.mxu0
      %v1350 = vadd.f32 %v1125, %v1349
      %v1351 = vpop.f32.mrf.mxu0
      %1352 = vmatprep.mubr.f32.mxu0 %v459
      %1353 = vmatmul.mubr.f32.gmra.mxu0 %v458
      %v1354 = vpop.f32.mrf.mxu0
      %v1355 = vadd.f32 %v1130, %v1354
      %v1356 = vpop.f32.mrf.mxu0
      %1357 = vmatprep.mubr.f32.mxu0 %v468
      %1358 = vmatmul.mubr.f32.gmra.mxu0 %v467
      %v1359 = vpop.f32.mrf.mxu0
      %v1360 = vadd.f32 %v1135, %v1359
      %v1361 = vpop.f32.mrf.mxu0
      %1362 = vmatprep.mubr.f32.mxu0 %v477
      %1363 = vmatmul.mubr.f32.gmra.mxu0 %v476
      %v1364 = vpop.f32.mrf.mxu0
      %v1365 = vadd.f32 %v1140, %v1364
      %v1366 = vpop.f32.mrf.mxu0
      %1367 = vmatprep.mubr.f32.mxu0 %v486
      %1368 = vmatmul.mubr.f32.gmra.mxu0 %v485
      %v1369 = vpop.f32.mrf.mxu0
      %v1370 = vadd.f32 %v1145, %v1369
      %v1371 = vpop.f32.mrf.mxu0
      %1372 = vmatprep.mubr.f32.mxu0 %v495
      %1373 = vmatmul.mubr.f32.gmra.mxu0 %v494
      %v1374 = vpop.f32.mrf.mxu0
      %v1375 = vadd.f32 %v1150, %v1374
      %v1376 = vpop.f32.mrf.mxu0
      %1377 = vmatprep.mubr.f32.mxu0 %v504
      %1378 = vmatmul.mubr.f32.gmra.mxu0 %v503
      %v1379 = vpop.f32.mrf.mxu0
      %v1380 = vadd.f32 %v1155, %v1379
      %v1381 = vpop.f32.mrf.mxu0
      %1382 = vmatprep.mubr.f32.mxu0 %v513
      %1383 = vmatmul.mubr.f32.gmra.mxu0 %v512
      %v1384 = vpop.f32.mrf.mxu0
      %v1385 = vadd.f32 %v1160, %v1384
      %v1386 = vpop.f32.mrf.mxu0
      %1387 = vmatprep.mubr.f32.mxu0 %v522
      %1388 = vmatmul.mubr.f32.gmra.mxu0 %v521
      %v1389 = vpop.f32.mrf.mxu0
      %v1390 = vadd.f32 %v1165, %v1389
      %v1391 = vpop.f32.mrf.mxu0
      %1392 = vmatprep.mubr.f32.mxu0 %v531
      %1393 = vmatmul.mubr.f32.gmra.mxu0 %v530
      %v1394 = vpop.f32.mrf.mxu0
      %v1395 = vadd.f32 %v1170, %v1394
      %v1396 = vpop.f32.mrf.mxu0
      %1397 = vmatprep.mubr.f32.mxu0 %v540
      %1398 = vmatmul.mubr.f32.gmra.mxu0 %v539
      %v1399 = vpop.f32.mrf.mxu0
      %v1400 = vadd.f32 %v1175, %v1399
      %v1401 = vpop.f32.mrf.mxu0
      %1402 = vmatprep.mubr.f32.mxu0 %v549
      %1403 = vmatmul.mubr.f32.gmra.mxu0 %v548
      %v1404 = vpop.f32.mrf.mxu0
      %v1405 = vadd.f32 %v1180, %v1404
      %v1406 = vpop.f32.mrf.mxu0
      %1407 = vmatprep.mubr.f32.mxu0 %v558
      %1408 = vmatmul.mubr.f32.gmra.mxu0 %v557
      %v1409 = vpop.f32.mrf.mxu0
      %v1410 = vadd.f32 %v1185, %v1409
      %v1411 = vpop.f32.mrf.mxu0
      %1412 = vdwg.mxu0
      %1413 = vmatprep.subr.mxu0 0.0
      %1414 = vmatpush1.msra.mxu0 %v673
      %1415 = vmatprep.subr.mxu0 0.0
      %1416 = vmatpush1.msra.mxu0 %v672
      %1417 = vmatprep.subr.mxu0 0.0
      %1418 = vmatpush1.msra.mxu0 %v671
      %1419 = vmatprep.subr.mxu0 0.0
      %1420 = vmatpush1.msra.mxu0 %v670
      %1421 = vmatprep.subr.mxu0 0.0
      %1422 = vmatpush1.msra.mxu0 %v669
      %1423 = vmatprep.subr.mxu0 0.0
      %1424 = vmatpush1.msra.mxu0 %v668
      %1425 = vmatprep.subr.mxu0 0.0
      %1426 = vmatpush1.msra.mxu0 %v667
      %1427 = vmatprep.subr.mxu0 0.0
      %1428 = vmatpush1.msra.mxu0 %v666
      %1429 = vmatprep.subr.mxu0 0.0
      %1430 = vmatpush1.msra.mxu0 %v665
      %1431 = vmatprep.subr.mxu0 0.0
      %1432 = vmatpush1.msra.mxu0 %v664
      %1433 = vmatprep.subr.mxu0 0.0
      %1434 = vmatpush1.msra.mxu0 %v663
      %1435 = vmatprep.subr.mxu0 0.0
      %1436 = vmatpush1.msra.mxu0 %v662
      %1437 = vmatprep.subr.mxu0 0.0
      %1438 = vmatpush1.msra.mxu0 %v661
      %1439 = vmatprep.subr.mxu0 0.0
      %1440 = vmatpush1.msra.mxu0 %v660
      %1441 = vmatprep.subr.mxu0 0.0
      %1442 = vmatpush1.msra.mxu0 %v659
      %1443 = vmatprep.subr.mxu0 0.0
      %1444 = vmatpush1.msra.mxu0 %v658
      %1445 = vmatprep.subr.mxu0 0.0
      %1446 = vmatpush2.msra.mxu0 %v689
      %1447 = vmatprep.subr.mxu0 0.0
      %1448 = vmatpush2.msra.mxu0 %v688
      %1449 = vmatprep.subr.mxu0 0.0
      %1450 = vmatpush2.msra.mxu0 %v687
      %1451 = vmatprep.subr.mxu0 0.0
      %1452 = vmatpush2.msra.mxu0 %v686
      %1453 = vmatprep.subr.mxu0 0.0
      %1454 = vmatpush2.msra.mxu0 %v685
      %1455 = vmatprep.subr.mxu0 0.0
      %1456 = vmatpush2.msra.mxu0 %v684
      %1457 = vmatprep.subr.mxu0 0.0
      %1458 = vmatpush2.msra.mxu0 %v683
      %1459 = vmatprep.subr.mxu0 0.0
      %1460 = vmatpush2.msra.mxu0 %v682
      %1461 = vmatprep.subr.mxu0 0.0
      %1462 = vmatpush2.msra.mxu0 %v681
      %1463 = vmatprep.subr.mxu0 0.0
      %1464 = vmatpush2.msra.mxu0 %v680
      %1465 = vmatprep.subr.mxu0 0.0
      %1466 = vmatpush2.msra.mxu0 %v679
      %1467 = vmatprep.subr.mxu0 0.0
      %1468 = vmatpush2.msra.mxu0 %v678
      %1469 = vmatprep.subr.mxu0 0.0
      %1470 = vmatpush2.msra.mxu0 %v677
      %1471 = vmatprep.subr.mxu0 0.0
      %1472 = vmatpush2.msra.mxu0 %v676
      %1473 = vmatprep.subr.mxu0 0.0
      %1474 = vmatpush2.msra.mxu0 %v675
      %1475 = vmatprep.subr.mxu0 0.0
      %1476 = vmatpush2.msra.mxu0 %v674
      %1477 = vmatprep.mubr.f32.mxu0 %v281
      %1478 = vmatmul.mubr.f32.gmra.mxu0 %v280
      %v1479 = vpop.f32.mrf.mxu0
      %v1480 = vadd.f32 %v1255, %v1479
      %v1481 = vpop.f32.mrf.mxu0
      %1482 = vmatprep.mubr.f32.mxu0 %v290
      %1483 = vmatmul.mubr.f32.gmra.mxu0 %v289
      %v1484 = vpop.f32.mrf.mxu0
      %v1485 = vadd.f32 %v1260, %v1484
      %v1486 = vpop.f32.mrf.mxu0
      %1487 = vmatprep.mubr.f32.mxu0 %v299
      %1488 = vmatmul.mubr.f32.gmra.mxu0 %v298
      %v1489 = vpop.f32.mrf.mxu0
      %v1490 = vadd.f32 %v1265, %v1489
      %v1491 = vpop.f32.mrf.mxu0
      %1492 = vmatprep.mubr.f32.mxu0 %v308
      %1493 = vmatmul.mubr.f32.gmra.mxu0 %v307
      %v1494 = vpop.f32.mrf.mxu0
      %v1495 = vadd.f32 %v1270, %v1494
      %v1496 = vpop.f32.mrf.mxu0
      %1497 = vmatprep.mubr.f32.mxu0 %v317
      %1498 = vmatmul.mubr.f32.gmra.mxu0 %v316
      %v1499 = vpop.f32.mrf.mxu0
      %v1500 = vadd.f32 %v1275, %v1499
      %v1501 = vpop.f32.mrf.mxu0
      %1502 = vmatprep.mubr.f32.mxu0 %v326
      %1503 = vmatmul.mubr.f32.gmra.mxu0 %v325
      %v1504 = vpop.f32.mrf.mxu0
      %v1505 = vadd.f32 %v1280, %v1504
      %v1506 = vpop.f32.mrf.mxu0
      %1507 = vmatprep.mubr.f32.mxu0 %v335
      %1508 = vmatmul.mubr.f32.gmra.mxu0 %v334
      %v1509 = vpop.f32.mrf.mxu0
      %v1510 = vadd.f32 %v1285, %v1509
      %v1511 = vpop.f32.mrf.mxu0
      %1512 = vmatprep.mubr.f32.mxu0 %v344
      %1513 = vmatmul.mubr.f32.gmra.mxu0 %v343
      %v1514 = vpop.f32.mrf.mxu0
      %v1515 = vadd.f32 %v1290, %v1514
      %v1516 = vpop.f32.mrf.mxu0
      %1517 = vmatprep.mubr.f32.mxu0 %v353
      %1518 = vmatmul.mubr.f32.gmra.mxu0 %v352
      %v1519 = vpop.f32.mrf.mxu0
      %v1520 = vadd.f32 %v1295, %v1519
      %v1521 = vpop.f32.mrf.mxu0
      %1522 = vmatprep.mubr.f32.mxu0 %v362
      %1523 = vmatmul.mubr.f32.gmra.mxu0 %v361
      %v1524 = vpop.f32.mrf.mxu0
      %v1525 = vadd.f32 %v1300, %v1524
      %v1526 = vpop.f32.mrf.mxu0
      %1527 = vmatprep.mubr.f32.mxu0 %v371
      %1528 = vmatmul.mubr.f32.gmra.mxu0 %v370
      %v1529 = vpop.f32.mrf.mxu0
      %v1530 = vadd.f32 %v1305, %v1529
      %v1531 = vpop.f32.mrf.mxu0
      %1532 = vmatprep.mubr.f32.mxu0 %v380
      %1533 = vmatmul.mubr.f32.gmra.mxu0 %v379
      %v1534 = vpop.f32.mrf.mxu0
      %v1535 = vadd.f32 %v1310, %v1534
      %v1536 = vpop.f32.mrf.mxu0
      %1537 = vmatprep.mubr.f32.mxu0 %v389
      %1538 = vmatmul.mubr.f32.gmra.mxu0 %v388
      %v1539 = vpop.f32.mrf.mxu0
      %v1540 = vadd.f32 %v1315, %v1539
      %v1541 = vpop.f32.mrf.mxu0
      %1542 = vmatprep.mubr.f32.mxu0 %v398
      %1543 = vmatmul.mubr.f32.gmra.mxu0 %v397
      %v1544 = vpop.f32.mrf.mxu0
      %v1545 = vadd.f32 %v1320, %v1544
      %v1546 = vpop.f32.mrf.mxu0
      %1547 = vmatprep.mubr.f32.mxu0 %v407
      %1548 = vmatmul.mubr.f32.gmra.mxu0 %v406
      %v1549 = vpop.f32.mrf.mxu0
      %v1550 = vadd.f32 %v1325, %v1549
      %v1551 = vpop.f32.mrf.mxu0
      %1552 = vmatprep.mubr.f32.mxu0 %v416
      %1553 = vmatmul.mubr.f32.gmra.mxu0 %v415
      %v1554 = vpop.f32.mrf.mxu0
      %v1555 = vadd.f32 %v1330, %v1554
      %v1556 = vpop.f32.mrf.mxu0
      %1557 = vmatprep.mubr.f32.mxu0 %v425
      %1558 = vmatmul.mubr.f32.gmra.mxu0 %v424
      %v1559 = vpop.f32.mrf.mxu0
      %v1560 = vadd.f32 %v1335, %v1559
      %v1561 = vpop.f32.mrf.mxu0
      %1562 = vmatprep.mubr.f32.mxu0 %v434
      %1563 = vmatmul.mubr.f32.gmra.mxu0 %v433
      %v1564 = vpop.f32.mrf.mxu0
      %v1565 = vadd.f32 %v1340, %v1564
      %v1566 = vpop.f32.mrf.mxu0
      %1567 = vmatprep.mubr.f32.mxu0 %v443
      %1568 = vmatmul.mubr.f32.gmra.mxu0 %v442
      %v1569 = vpop.f32.mrf.mxu0
      %v1570 = vadd.f32 %v1345, %v1569
      %v1571 = vpop.f32.mrf.mxu0
      %1572 = vmatprep.mubr.f32.mxu0 %v452
      %1573 = vmatmul.mubr.f32.gmra.mxu0 %v451
      %v1574 = vpop.f32.mrf.mxu0
      %v1575 = vadd.f32 %v1350, %v1574
      %v1576 = vpop.f32.mrf.mxu0
      %1577 = vmatprep.mubr.f32.mxu0 %v461
      %1578 = vmatmul.mubr.f32.gmra.mxu0 %v460
      %v1579 = vpop.f32.mrf.mxu0
      %v1580 = vadd.f32 %v1355, %v1579
      %v1581 = vpop.f32.mrf.mxu0
      %1582 = vmatprep.mubr.f32.mxu0 %v470
      %1583 = vmatmul.mubr.f32.gmra.mxu0 %v469
      %v1584 = vpop.f32.mrf.mxu0
      %v1585 = vadd.f32 %v1360, %v1584
      %v1586 = vpop.f32.mrf.mxu0
      %1587 = vmatprep.mubr.f32.mxu0 %v479
      %1588 = vmatmul.mubr.f32.gmra.mxu0 %v478
      %v1589 = vpop.f32.mrf.mxu0
      %v1590 = vadd.f32 %v1365, %v1589
      %v1591 = vpop.f32.mrf.mxu0
      %1592 = vmatprep.mubr.f32.mxu0 %v488
      %1593 = vmatmul.mubr.f32.gmra.mxu0 %v487
      %v1594 = vpop.f32.mrf.mxu0
      %v1595 = vadd.f32 %v1370, %v1594
      %v1596 = vpop.f32.mrf.mxu0
      %1597 = vmatprep.mubr.f32.mxu0 %v497
      %1598 = vmatmul.mubr.f32.gmra.mxu0 %v496
      %v1599 = vpop.f32.mrf.mxu0
      %v1600 = vadd.f32 %v1375, %v1599
      %v1601 = vpop.f32.mrf.mxu0
      %1602 = vmatprep.mubr.f32.mxu0 %v506
      %1603 = vmatmul.mubr.f32.gmra.mxu0 %v505
      %v1604 = vpop.f32.mrf.mxu0
      %v1605 = vadd.f32 %v1380, %v1604
      %v1606 = vpop.f32.mrf.mxu0
      %1607 = vmatprep.mubr.f32.mxu0 %v515
      %1608 = vmatmul.mubr.f32.gmra.mxu0 %v514
      %v1609 = vpop.f32.mrf.mxu0
      %v1610 = vadd.f32 %v1385, %v1609
      %v1611 = vpop.f32.mrf.mxu0
      %1612 = vmatprep.mubr.f32.mxu0 %v524
      %1613 = vmatmul.mubr.f32.gmra.mxu0 %v523
      %v1614 = vpop.f32.mrf.mxu0
      %v1615 = vadd.f32 %v1390, %v1614
      %v1616 = vpop.f32.mrf.mxu0
      %1617 = vmatprep.mubr.f32.mxu0 %v533
      %1618 = vmatmul.mubr.f32.gmra.mxu0 %v532
      %v1619 = vpop.f32.mrf.mxu0
      %v1620 = vadd.f32 %v1395, %v1619
      %v1621 = vpop.f32.mrf.mxu0
      %1622 = vmatprep.mubr.f32.mxu0 %v542
      %1623 = vmatmul.mubr.f32.gmra.mxu0 %v541
      %v1624 = vpop.f32.mrf.mxu0
      %v1625 = vadd.f32 %v1400, %v1624
      %v1626 = vpop.f32.mrf.mxu0
      %1627 = vmatprep.mubr.f32.mxu0 %v551
      %1628 = vmatmul.mubr.f32.gmra.mxu0 %v550
      %v1629 = vpop.f32.mrf.mxu0
      %v1630 = vadd.f32 %v1405, %v1629
      %v1631 = vpop.f32.mrf.mxu0
      %1632 = vmatprep.mubr.f32.mxu0 %v560
      %1633 = vmatmul.mubr.f32.gmra.mxu0 %v559
      %v1634 = vpop.f32.mrf.mxu0
      %v1635 = vadd.f32 %v1410, %v1634
      %v1636 = vpop.f32.mrf.mxu0
      %1637 = vdwg.mxu0
      %1638 = vmatprep.subr.mxu0 0.0
      %1639 = vmatpush1.msra.mxu0 %v705
      %1640 = vmatprep.subr.mxu0 0.0
      %1641 = vmatpush1.msra.mxu0 %v704
      %1642 = vmatprep.subr.mxu0 0.0
      %1643 = vmatpush1.msra.mxu0 %v703
      %1644 = vmatprep.subr.mxu0 0.0
      %1645 = vmatpush1.msra.mxu0 %v702
      %1646 = vmatprep.subr.mxu0 0.0
      %1647 = vmatpush1.msra.mxu0 %v701
      %1648 = vmatprep.subr.mxu0 0.0
      %1649 = vmatpush1.msra.mxu0 %v700
      %1650 = vmatprep.subr.mxu0 0.0
      %1651 = vmatpush1.msra.mxu0 %v699
      %1652 = vmatprep.subr.mxu0 0.0
      %1653 = vmatpush1.msra.mxu0 %v698
      %1654 = vmatprep.subr.mxu0 0.0
      %1655 = vmatpush1.msra.mxu0 %v697
      %1656 = vmatprep.subr.mxu0 0.0
      %1657 = vmatpush1.msra.mxu0 %v696
      %1658 = vmatprep.subr.mxu0 0.0
      %1659 = vmatpush1.msra.mxu0 %v695
      %1660 = vmatprep.subr.mxu0 0.0
      %1661 = vmatpush1.msra.mxu0 %v694
      %1662 = vmatprep.subr.mxu0 0.0
      %1663 = vmatpush1.msra.mxu0 %v693
      %1664 = vmatprep.subr.mxu0 0.0
      %1665 = vmatpush1.msra.mxu0 %v692
      %1666 = vmatprep.subr.mxu0 0.0
      %1667 = vmatpush1.msra.mxu0 %v691
      %1668 = vmatprep.subr.mxu0 0.0
      %1669 = vmatpush1.msra.mxu0 %v690
      %1670 = vmatprep.subr.mxu0 0.0
      %1671 = vmatpush2.msra.mxu0 0.0
      %1672 = vmatprep.subr.mxu0 0.0
      %1673 = vmatpush2.msra.mxu0 0.0
      %1674 = vmatprep.subr.mxu0 0.0
      %1675 = vmatpush2.msra.mxu0 0.0
      %1676 = vmatprep.subr.mxu0 0.0
      %1677 = vmatpush2.msra.mxu0 0.0
      %1678 = vmatprep.subr.mxu0 0.0
      %1679 = vmatpush2.msra.mxu0 0.0
      %1680 = vmatprep.subr.mxu0 0.0
      %1681 = vmatpush2.msra.mxu0 0.0
      %1682 = vmatprep.subr.mxu0 0.0
      %1683 = vmatpush2.msra.mxu0 0.0
      %1684 = vmatprep.subr.mxu0 0.0
      %1685 = vmatpush2.msra.mxu0 0.0
      %1686 = vmatprep.subr.mxu0 0.0
      %1687 = vmatpush2.msra.mxu0 0.0
      %1688 = vmatprep.subr.mxu0 0.0
      %1689 = vmatpush2.msra.mxu0 0.0
      %1690 = vmatprep.subr.mxu0 0.0
      %1691 = vmatpush2.msra.mxu0 0.0
      %1692 = vmatprep.subr.mxu0 0.0
      %1693 = vmatpush2.msra.mxu0 0.0
      %1694 = vmatprep.subr.mxu0 0.0
      %1695 = vmatpush2.msra.mxu0 0.0
      %1696 = vmatprep.subr.mxu0 0.0
      %1697 = vmatpush2.msra.mxu0 0.0
      %1698 = vmatprep.subr.mxu0 0.0
      %1699 = vmatpush2.msra.mxu0 0.0
      %1700 = vmatprep.subr.mxu0 0.0
      %1701 = vmatpush2.msra.mxu0 0.0
      %1702 = vmatprep.mubr.f32.mxu0 0.0
      %1703 = vmatmul.mubr.f32.gmra.mxu0 %v282
      %v1704 = vpop.f32.mrf.mxu0
      %v1705 = vadd.f32 %v1480, %v1704
      %v1706 = vpop.f32.mrf.mxu0
      %1707 = vmatprep.mubr.f32.mxu0 0.0
      %1708 = vmatmul.mubr.f32.gmra.mxu0 %v291
      %v1709 = vpop.f32.mrf.mxu0
      %v1710 = vadd.f32 %v1485, %v1709
      %v1711 = vpop.f32.mrf.mxu0
      %1712 = vmatprep.mubr.f32.mxu0 0.0
      %1713 = vmatmul.mubr.f32.gmra.mxu0 %v300
      %v1714 = vpop.f32.mrf.mxu0
      %v1715 = vadd.f32 %v1490, %v1714
      %v1716 = vpop.f32.mrf.mxu0
      %1717 = vmatprep.mubr.f32.mxu0 0.0
      %1718 = vmatmul.mubr.f32.gmra.mxu0 %v309
      %v1719 = vpop.f32.mrf.mxu0
      %v1720 = vadd.f32 %v1495, %v1719
      %v1721 = vpop.f32.mrf.mxu0
      %1722 = vmatprep.mubr.f32.mxu0 0.0
      %1723 = vmatmul.mubr.f32.gmra.mxu0 %v318
      %v1724 = vpop.f32.mrf.mxu0
      %v1725 = vadd.f32 %v1500, %v1724
      %v1726 = vpop.f32.mrf.mxu0
      %1727 = vmatprep.mubr.f32.mxu0 0.0
      %1728 = vmatmul.mubr.f32.gmra.mxu0 %v327
      %v1729 = vpop.f32.mrf.mxu0
      %v1730 = vadd.f32 %v1505, %v1729
      %v1731 = vpop.f32.mrf.mxu0
      %1732 = vmatprep.mubr.f32.mxu0 0.0
      %1733 = vmatmul.mubr.f32.gmra.mxu0 %v336
      %v1734 = vpop.f32.mrf.mxu0
      %v1735 = vadd.f32 %v1510, %v1734
      %v1736 = vpop.f32.mrf.mxu0
      %1737 = vmatprep.mubr.f32.mxu0 0.0
      %1738 = vmatmul.mubr.f32.gmra.mxu0 %v345
      %v1739 = vpop.f32.mrf.mxu0
      %v1740 = vadd.f32 %v1515, %v1739
      %v1741 = vpop.f32.mrf.mxu0
      %1742 = vmatprep.mubr.f32.mxu0 0.0
      %1743 = vmatmul.mubr.f32.gmra.mxu0 %v354
      %v1744 = vpop.f32.mrf.mxu0
      %v1745 = vadd.f32 %v1520, %v1744
      %v1746 = vpop.f32.mrf.mxu0
      %1747 = vmatprep.mubr.f32.mxu0 0.0
      %1748 = vmatmul.mubr.f32.gmra.mxu0 %v363
      %v1749 = vpop.f32.mrf.mxu0
      %v1750 = vadd.f32 %v1525, %v1749
      %v1751 = vpop.f32.mrf.mxu0
      %1752 = vmatprep.mubr.f32.mxu0 0.0
      %1753 = vmatmul.mubr.f32.gmra.mxu0 %v372
      %v1754 = vpop.f32.mrf.mxu0
      %v1755 = vadd.f32 %v1530, %v1754
      %v1756 = vpop.f32.mrf.mxu0
      %1757 = vmatprep.mubr.f32.mxu0 0.0
      %1758 = vmatmul.mubr.f32.gmra.mxu0 %v381
      %v1759 = vpop.f32.mrf.mxu0
      %v1760 = vadd.f32 %v1535, %v1759
      %v1761 = vpop.f32.mrf.mxu0
      %1762 = vmatprep.mubr.f32.mxu0 0.0
      %1763 = vmatmul.mubr.f32.gmra.mxu0 %v390
      %v1764 = vpop.f32.mrf.mxu0
      %v1765 = vadd.f32 %v1540, %v1764
      %v1766 = vpop.f32.mrf.mxu0
      %1767 = vmatprep.mubr.f32.mxu0 0.0
      %1768 = vmatmul.mubr.f32.gmra.mxu0 %v399
      %v1769 = vpop.f32.mrf.mxu0
      %v1770 = vadd.f32 %v1545, %v1769
      %v1771 = vpop.f32.mrf.mxu0
      %1772 = vmatprep.mubr.f32.mxu0 0.0
      %1773 = vmatmul.mubr.f32.gmra.mxu0 %v408
      %v1774 = vpop.f32.mrf.mxu0
      %v1775 = vadd.f32 %v1550, %v1774
      %v1776 = vpop.f32.mrf.mxu0
      %1777 = vmatprep.mubr.f32.mxu0 0.0
      %1778 = vmatmul.mubr.f32.gmra.mxu0 %v417
      %v1779 = vpop.f32.mrf.mxu0
      %v1780 = vadd.f32 %v1555, %v1779
      %v1781 = vpop.f32.mrf.mxu0
      %1782 = vmatprep.mubr.f32.mxu0 0.0
      %1783 = vmatmul.mubr.f32.gmra.mxu0 %v426
      %v1784 = vpop.f32.mrf.mxu0
      %v1785 = vadd.f32 %v1560, %v1784
      %v1786 = vpop.f32.mrf.mxu0
      %1787 = vmatprep.mubr.f32.mxu0 0.0
      %1788 = vmatmul.mubr.f32.gmra.mxu0 %v435
      %v1789 = vpop.f32.mrf.mxu0
      %v1790 = vadd.f32 %v1565, %v1789
      %v1791 = vpop.f32.mrf.mxu0
      %1792 = vmatprep.mubr.f32.mxu0 0.0
      %1793 = vmatmul.mubr.f32.gmra.mxu0 %v444
      %v1794 = vpop.f32.mrf.mxu0
      %v1795 = vadd.f32 %v1570, %v1794
      %v1796 = vpop.f32.mrf.mxu0
      %1797 = vmatprep.mubr.f32.mxu0 0.0
      %1798 = vmatmul.mubr.f32.gmra.mxu0 %v453
      %v1799 = vpop.f32.mrf.mxu0
      %v1800 = vadd.f32 %v1575, %v1799
      %v1801 = vpop.f32.mrf.mxu0
      %1802 = vmatprep.mubr.f32.mxu0 0.0
      %1803 = vmatmul.mubr.f32.gmra.mxu0 %v462
      %v1804 = vpop.f32.mrf.mxu0
      %v1805 = vadd.f32 %v1580, %v1804
      %v1806 = vpop.f32.mrf.mxu0
      %1807 = vmatprep.mubr.f32.mxu0 0.0
      %1808 = vmatmul.mubr.f32.gmra.mxu0 %v471
      %v1809 = vpop.f32.mrf.mxu0
      %v1810 = vadd.f32 %v1585, %v1809
      %v1811 = vpop.f32.mrf.mxu0
      %1812 = vmatprep.mubr.f32.mxu0 0.0
      %1813 = vmatmul.mubr.f32.gmra.mxu0 %v480
      %v1814 = vpop.f32.mrf.mxu0
      %v1815 = vadd.f32 %v1590, %v1814
      %v1816 = vpop.f32.mrf.mxu0
      %1817 = vmatprep.mubr.f32.mxu0 0.0
      %1818 = vmatmul.mubr.f32.gmra.mxu0 %v489
      %v1819 = vpop.f32.mrf.mxu0
      %v1820 = vadd.f32 %v1595, %v1819
      %v1821 = vpop.f32.mrf.mxu0
      %1822 = vmatprep.mubr.f32.mxu0 0.0
      %1823 = vmatmul.mubr.f32.gmra.mxu0 %v498
      %v1824 = vpop.f32.mrf.mxu0
      %v1825 = vadd.f32 %v1600, %v1824
      %v1826 = vpop.f32.mrf.mxu0
      %1827 = vmatprep.mubr.f32.mxu0 0.0
      %1828 = vmatmul.mubr.f32.gmra.mxu0 %v507
      %v1829 = vpop.f32.mrf.mxu0
      %v1830 = vadd.f32 %v1605, %v1829
      %v1831 = vpop.f32.mrf.mxu0
      %1832 = vmatprep.mubr.f32.mxu0 0.0
      %1833 = vmatmul.mubr.f32.gmra.mxu0 %v516
      %v1834 = vpop.f32.mrf.mxu0
      %v1835 = vadd.f32 %v1610, %v1834
      %v1836 = vpop.f32.mrf.mxu0
      %1837 = vmatprep.mubr.f32.mxu0 0.0
      %1838 = vmatmul.mubr.f32.gmra.mxu0 %v525
      %v1839 = vpop.f32.mrf.mxu0
      %v1840 = vadd.f32 %v1615, %v1839
      %v1841 = vpop.f32.mrf.mxu0
      %1842 = vmatprep.mubr.f32.mxu0 0.0
      %1843 = vmatmul.mubr.f32.gmra.mxu0 %v534
      %v1844 = vpop.f32.mrf.mxu0
      %v1845 = vadd.f32 %v1620, %v1844
      %v1846 = vpop.f32.mrf.mxu0
      %1847 = vmatprep.mubr.f32.mxu0 0.0
      %1848 = vmatmul.mubr.f32.gmra.mxu0 %v543
      %v1849 = vpop.f32.mrf.mxu0
      %v1850 = vadd.f32 %v1625, %v1849
      %v1851 = vpop.f32.mrf.mxu0
      %1852 = vmatprep.mubr.f32.mxu0 0.0
      %1853 = vmatmul.mubr.f32.gmra.mxu0 %v552
      %v1854 = vpop.f32.mrf.mxu0
      %v1855 = vadd.f32 %v1630, %v1854
      %v1856 = vpop.f32.mrf.mxu0
      %1857 = vmatprep.mubr.f32.mxu0 0.0
      %1858 = vmatmul.mubr.f32.gmra.mxu0 %v561
      %v1859 = vpop.f32.mrf.mxu0
      %v1860 = vadd.f32 %v1635, %v1859
      %v1861 = vpop.f32.mrf.mxu0
      %1862 = vdwg.mxu0
      %1863 = vst [vmem:[%s264] sm:$0xff] %v1705
      %1864 = vst [vmem:[%s264 + $0x8] sm:$0xff] %v1710
      %1865 = vst [vmem:[%s264 + $0x10] sm:$0xff] %v1715
      %1866 = vst [vmem:[%s264 + $0x18] sm:$0xff] %v1720
      %1867 = vst [vmem:[%s264 + $0x20] sm:$0xff] %v1725
      %1868 = vst [vmem:[%s264 + $0x28] sm:$0xff] %v1730
      %1869 = vst [vmem:[%s264 + $0x30] sm:$0xff] %v1735
      %1870 = vst [vmem:[%s264 + $0x38] sm:$0xff] %v1740
      %1871 = vst [vmem:[%s264 + $0x40] sm:$0xff] %v1745
      %1872 = vst [vmem:[%s264 + $0x48] sm:$0xff] %v1750
      %1873 = vst [vmem:[%s264 + $0x50] sm:$0xff] %v1755
      %1874 = vst [vmem:[%s264 + $0x58] sm:$0xff] %v1760
      %1875 = vst [vmem:[%s264 + $0x60] sm:$0xff] %v1765
      %1876 = vst [vmem:[%s264 + $0x68] sm:$0xff] %v1770
      %1877 = vst [vmem:[%s264 + $0x70] sm:$0xff] %v1775
      %1878 = vst [vmem:[%s264 + $0x78] sm:$0xff] %v1780
      %1879 = vst [vmem:[%s264 + $0x80] sm:$0xff] %v1785
      %1880 = vst [vmem:[%s264 + $0x88] sm:$0xff] %v1790
      %1881 = vst [vmem:[%s264 + $0x90] sm:$0xff] %v1795
      %1882 = vst [vmem:[%s264 + $0x98] sm:$0xff] %v1800
      %1883 = vst [vmem:[%s264 + $0xa0] sm:$0xff] %v1805
      %1884 = vst [vmem:[%s264 + $0xa8] sm:$0xff] %v1810
      %1885 = vst [vmem:[%s264 + $0xb0] sm:$0xff] %v1815
      %1886 = vst [vmem:[%s264 + $0xb8] sm:$0xff] %v1820
      %1887 = vst [vmem:[%s264 + $0xc0] sm:$0xff] %v1825
      %1888 = vst [vmem:[%s264 + $0xc8] sm:$0xff] %v1830
      %1889 = vst [vmem:[%s264 + $0xd0] sm:$0xff] %v1835
      %1890 = vst [vmem:[%s264 + $0xd8] sm:$0xff] %v1840
      %1891 = vst [vmem:[%s264 + $0xe0] sm:$0xff] %v1845
      %1892 = vst [vmem:[%s264 + $0xe8] sm:$0xff] %v1850
      %1893 = vst [vmem:[%s264 + $0xf0] sm:$0xff] %v1855
      %1894 = vst [vmem:[%s264 + $0xf8] sm:$0xff] %v1860
      %v1895 = vadd.f32 %v1705, %v1710
      %v1896 = vadd.f32 %v1895, %v1715
      %v1897 = vadd.f32 %v1896, %v1720
      %v1898 = vadd.f32 %v1897, %v1725
      %v1899 = vadd.f32 %v1898, %v1730
      %v1900 = vadd.f32 %v1899, %v1735
      %v1901 = vadd.f32 %v1900, %v1740
      %v1902 = vadd.f32 %v1901, %v1745
      %v1903 = vadd.f32 %v1902, %v1750
      %v1904 = vadd.f32 %v1903, %v1755
      %v1905 = vadd.f32 %v1904, %v1760
      %v1906 = vadd.f32 %v1905, %v1765
      %v1907 = vadd.f32 %v1906, %v1770
      %v1908 = vadd.f32 %v1907, %v1775
      %v1909 = vadd.f32 %v1908, %v1780
      %v1910 = vadd.f32 %v1909, %v1785
      %v1911 = vadd.f32 %v1910, %v1790
      %v1912 = vadd.f32 %v1911, %v1795
      %v1913 = vadd.f32 %v1912, %v1800
      %v1914 = vadd.f32 %v1913, %v1805
      %v1915 = vadd.f32 %v1914, %v1810
      %v1916 = vadd.f32 %v1915, %v1815
      %v1917 = vadd.f32 %v1916, %v1820
      %v1918 = vadd.f32 %v1917, %v1825
      %v1919 = vadd.f32 %v1918, %v1830
      %v1920 = vadd.f32 %v1919, %v1835
      %v1921 = vadd.f32 %v1920, %v1840
      %v1922 = vadd.f32 %v1921, %v1845
      %v1923 = vadd.f32 %v1922, %v1850
      %v1924 = vadd.f32 %v1923, %v1855
      %v1925 = vadd.f32 %v1924, %v1860
      %v1926 = vrot.slane %v1925, 4
      %v1927 = vadd.f32 %v1925, %v1926
      %v1928 = vrot.slane %v1927, 2
      %v1929 = vadd.f32 %v1927, %v1928
      %v1930 = vrot.slane %v1929, 1
      %v1931 = vadd.f32 %v1929, %v1930
      %1932 = vst [vmem:[%s269] sm:$0xff] %v1931
      %v1933 = vmul.f32 %v1705, %v1705
      %v1934 = vmul.f32 %v1710, %v1710
      %v1935 = vmul.f32 %v1715, %v1715
      %v1936 = vmul.f32 %v1720, %v1720
      %v1937 = vmul.f32 %v1725, %v1725
      %v1938 = vmul.f32 %v1730, %v1730
      %v1939 = vmul.f32 %v1735, %v1735
      %v1940 = vmul.f32 %v1740, %v1740
      %v1941 = vmul.f32 %v1745, %v1745
      %v1942 = vmul.f32 %v1750, %v1750
      %v1943 = vmul.f32 %v1755, %v1755
      %v1944 = vmul.f32 %v1760, %v1760
      %v1945 = vmul.f32 %v1765, %v1765
      %v1946 = vmul.f32 %v1770, %v1770
      %v1947 = vmul.f32 %v1775, %v1775
      %v1948 = vmul.f32 %v1780, %v1780
      %v1949 = vmul.f32 %v1785, %v1785
      %v1950 = vmul.f32 %v1790, %v1790
      %v1951 = vmul.f32 %v1795, %v1795
      %v1952 = vmul.f32 %v1800, %v1800
      %v1953 = vmul.f32 %v1805, %v1805
      %v1954 = vmul.f32 %v1810, %v1810
      %v1955 = vmul.f32 %v1815, %v1815
      %v1956 = vmul.f32 %v1820, %v1820
      %v1957 = vmul.f32 %v1825, %v1825
      %v1958 = vmul.f32 %v1830, %v1830
      %v1959 = vmul.f32 %v1835, %v1835
      %v1960 = vmul.f32 %v1840, %v1840
      %v1961 = vmul.f32 %v1845, %v1845
      %v1962 = vmul.f32 %v1850, %v1850
      %v1963 = vmul.f32 %v1855, %v1855
      %v1964 = vmul.f32 %v1860, %v1860
      %v1965 = vadd.f32 %v1933, %v1934
      %v1966 = vadd.f32 %v1965, %v1935
      %v1967 = vadd.f32 %v1966, %v1936
      %v1968 = vadd.f32 %v1967, %v1937
      %v1969 = vadd.f32 %v1968, %v1938
      %v1970 = vadd.f32 %v1969, %v1939
      %v1971 = vadd.f32 %v1970, %v1940
      %v1972 = vadd.f32 %v1971, %v1941
      %v1973 = vadd.f32 %v1972, %v1942
      %v1974 = vadd.f32 %v1973, %v1943
      %v1975 = vadd.f32 %v1974, %v1944
      %v1976 = vadd.f32 %v1975, %v1945
      %v1977 = vadd.f32 %v1976, %v1946
      %v1978 = vadd.f32 %v1977, %v1947
      %v1979 = vadd.f32 %v1978, %v1948
      %v1980 = vadd.f32 %v1979, %v1949
      %v1981 = vadd.f32 %v1980, %v1950
      %v1982 = vadd.f32 %v1981, %v1951
      %v1983 = vadd.f32 %v1982, %v1952
      %v1984 = vadd.f32 %v1983, %v1953
      %v1985 = vadd.f32 %v1984, %v1954
      %v1986 = vadd.f32 %v1985, %v1955
      %v1987 = vadd.f32 %v1986, %v1956
      %v1988 = vadd.f32 %v1987, %v1957
      %v1989 = vadd.f32 %v1988, %v1958
      %v1990 = vadd.f32 %v1989, %v1959
      %v1991 = vadd.f32 %v1990, %v1960
      %v1992 = vadd.f32 %v1991, %v1961
      %v1993 = vadd.f32 %v1992, %v1962
      %v1994 = vadd.f32 %v1993, %v1963
      %v1995 = vadd.f32 %v1994, %v1964
      %v1996 = vrot.slane %v1995, 4
      %v1997 = vadd.f32 %v1995, %v1996
      %v1998 = vrot.slane %v1997, 2
      %v1999 = vadd.f32 %v1997, %v1998
      %v2000 = vrot.slane %v1999, 1
      %v2001 = vadd.f32 %v1999, %v2000
      %2002 = vst [vmem:[%s273] sm:$0xff] %v2001
      %s2003 = smul.u32 32, %s17
      %p2004 = scmp.lt.s32.totalorder %s2003, 63
      %s2005 = scalar_select %p2004, %s2003, 63
      %s2006 = smul.addr %s2005, 8
      %s2007 = scalar_lea.vmem %s3, %s2006
      %p2008 = scmp.lt.s32.totalorder %s17, 1
      %s2009 = scalar_select %p2008, %s17, 1
      %s2010 = smul.addr %s2009, 8
      %s2011 = scalar_lea.vmem %s4, %s2010
      %p2012 = scmp.lt.s32.totalorder %s17, 1
      %s2013 = scalar_select %p2012, %s17, 1
      %s2014 = smul.addr %s2013, 8
      %s2015 = scalar_lea.vmem %s5, %s2014
      // Predicated region
      $region33: #{_lambda_.23} parent=31 // pred_check
        %p2016 = pneg %p108
      $region34: #{_lambda_.23} parent=31 // pred_check_branch
        %2018 = sbr.rel (%p2016) target = $region36
      $region35: #{_lambda_.23} parent=31 // pred_region
        %s2019 = smul.u32 32, %s17
      $region36: #{_lambda_.23} parent=31 // pred_fallthru
        _
      // Predicated region
      $region37: #{_lambda_.23} parent=31 // pred_check
        %p2020 = pneg %p134
      $region38: #{_lambda_.23} parent=31 // pred_check_branch
        %2022 = sbr.rel (%p2020) target = $region40
      $region39: #{_lambda_.23} parent=31 // pred_region
        _
      $region40: #{_lambda_.23} parent=31 // pred_fallthru
        _
      // Predicated region
      $region41: #{_lambda_.23} parent=31 // pred_check
        %p2023 = pneg %p160
      $region42: #{_lambda_.23} parent=31 // pred_check_branch
        %2025 = sbr.rel (%p2023) target = $region44
      $region43: #{_lambda_.23} parent=31 // pred_region
        _
      $region44: #{_lambda_.23} parent=31 // pred_fallthru
        _
    $region32: #{_lambda_.23} parent=5 // pred_fallthru
      _
    %p2026 = scmp.le.s32.totalorder 2, %s12
    // Predicated region
    $region45: #{_lambda_.23} parent=5 // pred_check
      %p2027 = pneg %p2026
    $region46: #{_lambda_.23} parent=5 // pred_check_branch
      %2029 = sbr.rel (%p2027) target = $region48
    $region47: #{_lambda_.23} parent=5 // pred_region
      %s2030 = ssub.s32 %s12, 2
      // Predicated region
      $region49: #{_lambda_.23} parent=47 // pred_check
        %p2031 = pneg %p114
      $region50: #{_lambda_.23} parent=47 // pred_check_branch
        %2033 = sbr.rel (%p2031) target = $region52
      $region51: #{_lambda_.23} parent=47 // pred_region
        %s2034 = smul.u32 32, %s18
        %p2035 = scmp.lt.s32.totalorder %s2034, 63
        %s2036 = scalar_select %p2035, %s2034, 63
        %s2037 = smul.addr %s2036, 8
        %s2038 = scalar_lea.vmem %s3, %s2037
      $region52: #{_lambda_.23} parent=47 // pred_fallthru
        _
      // Predicated region
      $region53: #{_lambda_.23} parent=47 // pred_check
        %p2039 = pneg %p140
      $region54: #{_lambda_.23} parent=47 // pred_check_branch
        %2041 = sbr.rel (%p2039) target = $region56
      $region55: #{_lambda_.23} parent=47 // pred_region
        %p2042 = scmp.lt.s32.totalorder %s18, 1
        %s2043 = scalar_select %p2042, %s18, 1
        %s2044 = smul.addr %s2043, 8
        %s2045 = scalar_lea.vmem %s4, %s2044
      $region56: #{_lambda_.23} parent=47 // pred_fallthru
        _
      // Predicated region
      $region57: #{_lambda_.23} parent=47 // pred_check
        %p2046 = pneg %p166
      $region58: #{_lambda_.23} parent=47 // pred_check_branch
        %2048 = sbr.rel (%p2046) target = $region60
      $region59: #{_lambda_.23} parent=47 // pred_region
        %p2049 = scmp.lt.s32.totalorder %s18, 1
        %s2050 = scalar_select %p2049, %s18, 1
        %s2051 = smul.addr %s2050, 8
        %s2052 = scalar_lea.vmem %s5, %s2051
      $region60: #{_lambda_.23} parent=47 // pred_fallthru
        _
    $region48: #{_lambda_.23} parent=5 // pred_fallthru
      _
  $region6: #{_lambda_.23} parent=0 // loop_footer
    %s16 = sadd.s32 1, %s12
  $region7: #{_lambda_.23} parent=0 // loop_footer_branch
    %11 = sbr.rel target = $region3
  $region8: #{_lambda_.23} parent=0 // loop_exit
    _

// kernel: _lambda_.30
$region0: #{_lambda_.30}
  #allocation0 [shape = 'u32[]', space=smem, size = 0x4, offset = 0x4, fixed_abs, tag = 'smem constant byte address 0x4 - core index']
  #allocation1 [shape = 'u32[144,128]{1,0:T(1,128)}', space=vmem, size = 0x12000, scoped, tag = 'internal scratch']
  %s0 = inlined_call_operand.vmem [shape: f32[128,128], index: 0, kind: input, shape index: {}]
  %s1 = inlined_call_operand.vmem [shape: f32[1,128], index: 1, kind: input, shape index: {}]
  %s2 = inlined_call_operand.vmem [shape: f32[1,128], index: 2, kind: input, shape index: {}]
  %s3 = inlined_call_operand.vmem [shape: f32[128,128], index: 3, kind: output, shape index: {}]
  %s4 = sld [smem:[#allocation0]]
  $region22: #{_lambda_.30} parent=0
    _
  %s6 = ssub.s32 1, %s4
  %s7 = scalar_select 0, %s6, %s4
  // Predicated region
  $region2: #{_lambda_.30} parent=0 // pred_check
    _
  $region3: #{_lambda_.30} parent=0 // pred_check_branch
    %9 = sbr.rel (0) target = $region5
  $region4: #{_lambda_.30} parent=0 // pred_region
    _
  $region5: #{_lambda_.30} parent=0 // pred_fallthru
    _
  // Predicated region
  $region6: #{_lambda_.30} parent=0 // pred_check
    _
  $region7: #{_lambda_.30} parent=0 // pred_check_branch
    %11 = sbr.rel (0) target = $region9
  $region8: #{_lambda_.30} parent=0 // pred_region
    _
  $region9: #{_lambda_.30} parent=0 // pred_fallthru
    _
  // Predicated region
  $region10: #{_lambda_.30} parent=0 // pred_check
    _
  $region11: #{_lambda_.30} parent=0 // pred_check_branch
    %13 = sbr.rel (0) target = $region13
  $region12: #{_lambda_.30} parent=0 // pred_region
    _
  $region13: #{_lambda_.30} parent=0 // pred_fallthru
    _
  %v14 = vld [vmem:[%s0] sm:$0xff]
  %v15 = vld [vmem:[%s0 + $0x8] sm:$0xff]
  %v16 = vld [vmem:[%s0 + $0x10] sm:$0xff]
  %v17 = vld [vmem:[%s0 + $0x18] sm:$0xff]
  %v18 = vld [vmem:[%s0 + $0x20] sm:$0xff]
  %v19 = vld [vmem:[%s0 + $0x28] sm:$0xff]
  %v20 = vld [vmem:[%s0 + $0x30] sm:$0xff]
  %v21 = vld [vmem:[%s0 + $0x38] sm:$0xff]
  %v22 = vld [vmem:[%s0 + $0x40] sm:$0xff]
  %v23 = vld [vmem:[%s0 + $0x48] sm:$0xff]
  %v24 = vld [vmem:[%s0 + $0x50] sm:$0xff]
  %v25 = vld [vmem:[%s0 + $0x58] sm:$0xff]
  %v26 = vld [vmem:[%s0 + $0x60] sm:$0xff]
  %v27 = vld [vmem:[%s0 + $0x68] sm:$0xff]
  %v28 = vld [vmem:[%s0 + $0x70] sm:$0xff]
  %v29 = vld [vmem:[%s0 + $0x78] sm:$0xff]
  %v30 = vld [vmem:[%s1] sm:$0x1]
  %v32 = vlaneseq
  %v33 = vshrl.u32 %v32, 7
  %v34 = vsub.s32 0, %v33
  %v35 = vrot.slane %v30, %v34
  %v37 = vmul.f32 %v14, %v35
  %v38 = vmul.f32 %v15, %v35
  %v39 = vmul.f32 %v16, %v35
  %v40 = vmul.f32 %v17, %v35
  %v41 = vmul.f32 %v18, %v35
  %v42 = vmul.f32 %v19, %v35
  %v43 = vmul.f32 %v20, %v35
  %v44 = vmul.f32 %v21, %v35
  %v45 = vmul.f32 %v22, %v35
  %v46 = vmul.f32 %v23, %v35
  %v47 = vmul.f32 %v24, %v35
  %v48 = vmul.f32 %v25, %v35
  %v49 = vmul.f32 %v26, %v35
  %v50 = vmul.f32 %v27, %v35
  %v51 = vmul.f32 %v28, %v35
  %v52 = vmul.f32 %v29, %v35
  %v53 = vld [vmem:[%s2] sm:$0x1]
  %v55 = vlaneseq
  %v56 = vshrl.u32 %v55, 7
  %v57 = vsub.s32 0, %v56
  %v58 = vrot.slane %v53, %v57
  %v60 = vadd.f32 %v37, %v58
  %v61 = vadd.f32 %v38, %v58
  %v62 = vadd.f32 %v39, %v58
  %v63 = vadd.f32 %v40, %v58
  %v64 = vadd.f32 %v41, %v58
  %v65 = vadd.f32 %v42, %v58
  %v66 = vadd.f32 %v43, %v58
  %v67 = vadd.f32 %v44, %v58
  %v68 = vadd.f32 %v45, %v58
  %v69 = vadd.f32 %v46, %v58
  %v70 = vadd.f32 %v47, %v58
  %v71 = vadd.f32 %v48, %v58
  %v72 = vadd.f32 %v49, %v58
  %v73 = vadd.f32 %v50, %v58
  %v74 = vadd.f32 %v51, %v58
  %v75 = vadd.f32 %v52, %v58
  %v76 = vmax.f32 %v60, 0.0
  %v77 = vmax.f32 %v61, 0.0
  %v78 = vmax.f32 %v62, 0.0
  %v79 = vmax.f32 %v63, 0.0
  %v80 = vmax.f32 %v64, 0.0
  %v81 = vmax.f32 %v65, 0.0
  %v82 = vmax.f32 %v66, 0.0
  %v83 = vmax.f32 %v67, 0.0
  %v84 = vmax.f32 %v68, 0.0
  %v85 = vmax.f32 %v69, 0.0
  %v86 = vmax.f32 %v70, 0.0
  %v87 = vmax.f32 %v71, 0.0
  %v88 = vmax.f32 %v72, 0.0
  %v89 = vmax.f32 %v73, 0.0
  %v90 = vmax.f32 %v74, 0.0
  %v91 = vmax.f32 %v75, 0.0
  %92 = vst [vmem:[%s3] sm:$0xff] %v76
  %93 = vst [vmem:[%s3 + $0x8] sm:$0xff] %v77
  %94 = vst [vmem:[%s3 + $0x10] sm:$0xff] %v78
  %95 = vst [vmem:[%s3 + $0x18] sm:$0xff] %v79
  %96 = vst [vmem:[%s3 + $0x20] sm:$0xff] %v80
  %97 = vst [vmem:[%s3 + $0x28] sm:$0xff] %v81
  %98 = vst [vmem:[%s3 + $0x30] sm:$0xff] %v82
  %99 = vst [vmem:[%s3 + $0x38] sm:$0xff] %v83
  %100 = vst [vmem:[%s3 + $0x40] sm:$0xff] %v84
  %101 = vst [vmem:[%s3 + $0x48] sm:$0xff] %v85
  %102 = vst [vmem:[%s3 + $0x50] sm:$0xff] %v86
  %103 = vst [vmem:[%s3 + $0x58] sm:$0xff] %v87
  %104 = vst [vmem:[%s3 + $0x60] sm:$0xff] %v88
  %105 = vst [vmem:[%s3 + $0x68] sm:$0xff] %v89
  %106 = vst [vmem:[%s3 + $0x70] sm:$0xff] %v90
  %107 = vst [vmem:[%s3 + $0x78] sm:$0xff] %v91
  // Predicated region
  $region14: #{_lambda_.30} parent=0 // pred_check
    _
  $region15: #{_lambda_.30} parent=0 // pred_check_branch
    %109 = sbr.rel (0) target = $region17
  $region16: #{_lambda_.30} parent=0 // pred_region
    _
  $region17: #{_lambda_.30} parent=0 // pred_fallthru
    _
  // Predicated region
  $region18: #{_lambda_.30} parent=0 // pred_check
    _
  $region19: #{_lambda_.30} parent=0 // pred_check_branch
    %111 = sbr.rel (0) target = $region21
  $region20: #{_lambda_.30} parent=0 // pred_region
    _
  $region21: #{_lambda_.30} parent=0 // pred_fallthru
    _

// kernel: _lambda_.29
$region0: #{_lambda_.29}
  #allocation0 [shape = 'u32[]', space=smem, size = 0x4, offset = 0x4, fixed_abs, tag = 'smem constant byte address 0x4 - core index']
  #allocation1 [shape = 'u32[144,128]{1,0:T(1,128)}', space=vmem, size = 0x12000, scoped, tag = 'internal scratch']
  %s0 = inlined_call_operand.vmem [shape: f32[128,1152], index: 0, kind: input, shape index: {}]
  %s1 = inlined_call_operand.vmem [shape: f32[1152,128], index: 1, kind: input, shape index: {}]
  %s2 = inlined_call_operand.vmem [shape: f32[128,128], index: 2, kind: output, shape index: {0}]
  %s3 = inlined_call_operand.vmem [shape: f32[8,128], index: 3, kind: output, shape index: {1}]
  %s4 = inlined_call_operand.vmem [shape: f32[8,128], index: 4, kind: output, shape index: {2}]
  %5 = xla_tuple %s2, %s3, %s4
  %s6 = sld [smem:[#allocation0]]
  $region34: #{_lambda_.29} parent=0
    _
  %s8 = ssub.s32 1, %s6
  %s9 = scalar_select 0, %s8, %s6
  // Predicated region
  $region2: #{_lambda_.29} parent=0 // pred_check
    _
  $region3: #{_lambda_.29} parent=0 // pred_check_branch
    %11 = sbr.rel (0) target = $region5
  $region4: #{_lambda_.29} parent=0 // pred_region
    _
  $region5: #{_lambda_.29} parent=0 // pred_fallthru
    _
  // Predicated region
  $region6: #{_lambda_.29} parent=0 // pred_check
    _
  $region7: #{_lambda_.29} parent=0 // pred_check_branch
    %13 = sbr.rel (0) target = $region9
  $region8: #{_lambda_.29} parent=0 // pred_region
    _
  $region9: #{_lambda_.29} parent=0 // pred_fallthru
    _
  %v14 = vld [vmem:[%s0] sm:$0xff]
  %v15 = vld [vmem:[%s0 + $0x8] sm:$0xff]
  %v16 = vld [vmem:[%s0 + $0x10] sm:$0xff]
  %v17 = vld [vmem:[%s0 + $0x18] sm:$0xff]
  %v18 = vld [vmem:[%s0 + $0x20] sm:$0xff]
  %v19 = vld [vmem:[%s0 + $0x28] sm:$0xff]
  %v20 = vld [vmem:[%s0 + $0x30] sm:$0xff]
  %v21 = vld [vmem:[%s0 + $0x38] sm:$0xff]
  %v22 = vld [vmem:[%s0 + $0x40] sm:$0xff]
  %v23 = vld [vmem:[%s0 + $0x48] sm:$0xff]
  %v24 = vld [vmem:[%s0 + $0x50] sm:$0xff]
  %v25 = vld [vmem:[%s0 + $0x58] sm:$0xff]
  %v26 = vld [vmem:[%s0 + $0x60] sm:$0xff]
  %v27 = vld [vmem:[%s0 + $0x68] sm:$0xff]
  %v28 = vld [vmem:[%s0 + $0x70] sm:$0xff]
  %v29 = vld [vmem:[%s0 + $0x78] sm:$0xff]
  %v30 = vld [vmem:[%s0 + $0x80] sm:$0xff]
  %v31 = vld [vmem:[%s0 + $0x88] sm:$0xff]
  %v32 = vld [vmem:[%s0 + $0x90] sm:$0xff]
  %v33 = vld [vmem:[%s0 + $0x98] sm:$0xff]
  %v34 = vld [vmem:[%s0 + $0xa0] sm:$0xff]
  %v35 = vld [vmem:[%s0 + $0xa8] sm:$0xff]
  %v36 = vld [vmem:[%s0 + $0xb0] sm:$0xff]
  %v37 = vld [vmem:[%s0 + $0xb8] sm:$0xff]
  %v38 = vld [vmem:[%s0 + $0xc0] sm:$0xff]
  %v39 = vld [vmem:[%s0 + $0xc8] sm:$0xff]
  %v40 = vld [vmem:[%s0 + $0xd0] sm:$0xff]
  %v41 = vld [vmem:[%s0 + $0xd8] sm:$0xff]
  %v42 = vld [vmem:[%s0 + $0xe0] sm:$0xff]
  %v43 = vld [vmem:[%s0 + $0xe8] sm:$0xff]
  %v44 = vld [vmem:[%s0 + $0xf0] sm:$0xff]
  %v45 = vld [vmem:[%s0 + $0xf8] sm:$0xff]
  %v46 = vld [vmem:[%s0 + $0x100] sm:$0xff]
  %v47 = vld [vmem:[%s0 + $0x108] sm:$0xff]
  %v48 = vld [vmem:[%s0 + $0x110] sm:$0xff]
  %v49 = vld [vmem:[%s0 + $0x118] sm:$0xff]
  %v50 = vld [vmem:[%s0 + $0x120] sm:$0xff]
  %v51 = vld [vmem:[%s0 + $0x128] sm:$0xff]
  %v52 = vld [vmem:[%s0 + $0x130] sm:$0xff]
  %v53 = vld [vmem:[%s0 + $0x138] sm:$0xff]
  %v54 = vld [vmem:[%s0 + $0x140] sm:$0xff]
  %v55 = vld [vmem:[%s0 + $0x148] sm:$0xff]
  %v56 = vld [vmem:[%s0 + $0x150] sm:$0xff]
  %v57 = vld [vmem:[%s0 + $0x158] sm:$0xff]
  %v58 = vld [vmem:[%s0 + $0x160] sm:$0xff]
  %v59 = vld [vmem:[%s0 + $0x168] sm:$0xff]
  %v60 = vld [vmem:[%s0 + $0x170] sm:$0xff]
  %v61 = vld [vmem:[%s0 + $0x178] sm:$0xff]
  %v62 = vld [vmem:[%s0 + $0x180] sm:$0xff]
  %v63 = vld [vmem:[%s0 + $0x188] sm:$0xff]
  %v64 = vld [vmem:[%s0 + $0x190] sm:$0xff]
  %v65 = vld [vmem:[%s0 + $0x198] sm:$0xff]
  %v66 = vld [vmem:[%s0 + $0x1a0] sm:$0xff]
  %v67 = vld [vmem:[%s0 + $0x1a8] sm:$0xff]
  %v68 = vld [vmem:[%s0 + $0x1b0] sm:$0xff]
  %v69 = vld [vmem:[%s0 + $0x1b8] sm:$0xff]
  %v70 = vld [vmem:[%s0 + $0x1c0] sm:$0xff]
  %v71 = vld [vmem:[%s0 + $0x1c8] sm:$0xff]
  %v72 = vld [vmem:[%s0 + $0x1d0] sm:$0xff]
  %v73 = vld [vmem:[%s0 + $0x1d8] sm:$0xff]
  %v74 = vld [vmem:[%s0 + $0x1e0] sm:$0xff]
  %v75 = vld [vmem:[%s0 + $0x1e8] sm:$0xff]
  %v76 = vld [vmem:[%s0 + $0x1f0] sm:$0xff]
  %v77 = vld [vmem:[%s0 + $0x1f8] sm:$0xff]
  %v78 = vld [vmem:[%s0 + $0x200] sm:$0xff]
  %v79 = vld [vmem:[%s0 + $0x208] sm:$0xff]
  %v80 = vld [vmem:[%s0 + $0x210] sm:$0xff]
  %v81 = vld [vmem:[%s0 + $0x218] sm:$0xff]
  %v82 = vld [vmem:[%s0 + $0x220] sm:$0xff]
  %v83 = vld [vmem:[%s0 + $0x228] sm:$0xff]
  %v84 = vld [vmem:[%s0 + $0x230] sm:$0xff]
  %v85 = vld [vmem:[%s0 + $0x238] sm:$0xff]
  %v86 = vld [vmem:[%s0 + $0x240] sm:$0xff]
  %v87 = vld [vmem:[%s0 + $0x248] sm:$0xff]
  %v88 = vld [vmem:[%s0 + $0x250] sm:$0xff]
  %v89 = vld [vmem:[%s0 + $0x258] sm:$0xff]
  %v90 = vld [vmem:[%s0 + $0x260] sm:$0xff]
  %v91 = vld [vmem:[%s0 + $0x268] sm:$0xff]
  %v92 = vld [vmem:[%s0 + $0x270] sm:$0xff]
  %v93 = vld [vmem:[%s0 + $0x278] sm:$0xff]
  %v94 = vld [vmem:[%s0 + $0x280] sm:$0xff]
  %v95 = vld [vmem:[%s0 + $0x288] sm:$0xff]
  %v96 = vld [vmem:[%s0 + $0x290] sm:$0xff]
  %v97 = vld [vmem:[%s0 + $0x298] sm:$0xff]
  %v98 = vld [vmem:[%s0 + $0x2a0] sm:$0xff]
  %v99 = vld [vmem:[%s0 + $0x2a8] sm:$0xff]
  %v100 = vld [vmem:[%s0 + $0x2b0] sm:$0xff]
  %v101 = vld [vmem:[%s0 + $0x2b8] sm:$0xff]
  %v102 = vld [vmem:[%s0 + $0x2c0] sm:$0xff]
  %v103 = vld [vmem:[%s0 + $0x2c8] sm:$0xff]
  %v104 = vld [vmem:[%s0 + $0x2d0] sm:$0xff]
  %v105 = vld [vmem:[%s0 + $0x2d8] sm:$0xff]
  %v106 = vld [vmem:[%s0 + $0x2e0] sm:$0xff]
  %v107 = vld [vmem:[%s0 + $0x2e8] sm:$0xff]
  %v108 = vld [vmem:[%s0 + $0x2f0] sm:$0xff]
  %v109 = vld [vmem:[%s0 + $0x2f8] sm:$0xff]
  %v110 = vld [vmem:[%s0 + $0x300] sm:$0xff]
  %v111 = vld [vmem:[%s0 + $0x308] sm:$0xff]
  %v112 = vld [vmem:[%s0 + $0x310] sm:$0xff]
  %v113 = vld [vmem:[%s0 + $0x318] sm:$0xff]
  %v114 = vld [vmem:[%s0 + $0x320] sm:$0xff]
  %v115 = vld [vmem:[%s0 + $0x328] sm:$0xff]
  %v116 = vld [vmem:[%s0 + $0x330] sm:$0xff]
  %v117 = vld [vmem:[%s0 + $0x338] sm:$0xff]
  %v118 = vld [vmem:[%s0 + $0x340] sm:$0xff]
  %v119 = vld [vmem:[%s0 + $0x348] sm:$0xff]
  %v120 = vld [vmem:[%s0 + $0x350] sm:$0xff]
  %v121 = vld [vmem:[%s0 + $0x358] sm:$0xff]
  %v122 = vld [vmem:[%s0 + $0x360] sm:$0xff]
  %v123 = vld [vmem:[%s0 + $0x368] sm:$0xff]
  %v124 = vld [vmem:[%s0 + $0x370] sm:$0xff]
  %v125 = vld [vmem:[%s0 + $0x378] sm:$0xff]
  %v126 = vld [vmem:[%s0 + $0x380] sm:$0xff]
  %v127 = vld [vmem:[%s0 + $0x388] sm:$0xff]
  %v128 = vld [vmem:[%s0 + $0x390] sm:$0xff]
  %v129 = vld [vmem:[%s0 + $0x398] sm:$0xff]
  %v130 = vld [vmem:[%s0 + $0x3a0] sm:$0xff]
  %v131 = vld [vmem:[%s0 + $0x3a8] sm:$0xff]
  %v132 = vld [vmem:[%s0 + $0x3b0] sm:$0xff]
  %v133 = vld [vmem:[%s0 + $0x3b8] sm:$0xff]
  %v134 = vld [vmem:[%s0 + $0x3c0] sm:$0xff]
  %v135 = vld [vmem:[%s0 + $0x3c8] sm:$0xff]
  %v136 = vld [vmem:[%s0 + $0x3d0] sm:$0xff]
  %v137 = vld [vmem:[%s0 + $0x3d8] sm:$0xff]
  %v138 = vld [vmem:[%s0 + $0x3e0] sm:$0xff]
  %v139 = vld [vmem:[%s0 + $0x3e8] sm:$0xff]
  %v140 = vld [vmem:[%s0 + $0x3f0] sm:$0xff]
  %v141 = vld [vmem:[%s0 + $0x3f8] sm:$0xff]
  %v142 = vld [vmem:[%s0 + $0x400] sm:$0xff]
  %v143 = vld [vmem:[%s0 + $0x408] sm:$0xff]
  %v144 = vld [vmem:[%s0 + $0x410] sm:$0xff]
  %v145 = vld [vmem:[%s0 + $0x418] sm:$0xff]
  %v146 = vld [vmem:[%s0 + $0x420] sm:$0xff]
  %v147 = vld [vmem:[%s0 + $0x428] sm:$0xff]
  %v148 = vld [vmem:[%s0 + $0x430] sm:$0xff]
  %v149 = vld [vmem:[%s0 + $0x438] sm:$0xff]
  %v150 = vld [vmem:[%s0 + $0x440] sm:$0xff]
  %v151 = vld [vmem:[%s0 + $0x448] sm:$0xff]
  %v152 = vld [vmem:[%s0 + $0x450] sm:$0xff]
  %v153 = vld [vmem:[%s0 + $0x458] sm:$0xff]
  %v154 = vld [vmem:[%s0 + $0x460] sm:$0xff]
  %v155 = vld [vmem:[%s0 + $0x468] sm:$0xff]
  %v156 = vld [vmem:[%s0 + $0x470] sm:$0xff]
  %v157 = vld [vmem:[%s0 + $0x478] sm:$0xff]
  %v158 = vld [vmem:[%s1] sm:$0xff]
  %v159 = vld [vmem:[%s1 + $0x8] sm:$0xff]
  %v160 = vld [vmem:[%s1 + $0x10] sm:$0xff]
  %v161 = vld [vmem:[%s1 + $0x18] sm:$0xff]
  %v162 = vld [vmem:[%s1 + $0x20] sm:$0xff]
  %v163 = vld [vmem:[%s1 + $0x28] sm:$0xff]
  %v164 = vld [vmem:[%s1 + $0x30] sm:$0xff]
  %v165 = vld [vmem:[%s1 + $0x38] sm:$0xff]
  %v166 = vld [vmem:[%s1 + $0x40] sm:$0xff]
  %v167 = vld [vmem:[%s1 + $0x48] sm:$0xff]
  %v168 = vld [vmem:[%s1 + $0x50] sm:$0xff]
  %v169 = vld [vmem:[%s1 + $0x58] sm:$0xff]
  %v170 = vld [vmem:[%s1 + $0x60] sm:$0xff]
  %v171 = vld [vmem:[%s1 + $0x68] sm:$0xff]
  %v172 = vld [vmem:[%s1 + $0x70] sm:$0xff]
  %v173 = vld [vmem:[%s1 + $0x78] sm:$0xff]
  %v174 = vld [vmem:[%s1 + $0x80] sm:$0xff]
  %v175 = vld [vmem:[%s1 + $0x88] sm:$0xff]
  %v176 = vld [vmem:[%s1 + $0x90] sm:$0xff]
  %v177 = vld [vmem:[%s1 + $0x98] sm:$0xff]
  %v178 = vld [vmem:[%s1 + $0xa0] sm:$0xff]
  %v179 = vld [vmem:[%s1 + $0xa8] sm:$0xff]
  %v180 = vld [vmem:[%s1 + $0xb0] sm:$0xff]
  %v181 = vld [vmem:[%s1 + $0xb8] sm:$0xff]
  %v182 = vld [vmem:[%s1 + $0xc0] sm:$0xff]
  %v183 = vld [vmem:[%s1 + $0xc8] sm:$0xff]
  %v184 = vld [vmem:[%s1 + $0xd0] sm:$0xff]
  %v185 = vld [vmem:[%s1 + $0xd8] sm:$0xff]
  %v186 = vld [vmem:[%s1 + $0xe0] sm:$0xff]
  %v187 = vld [vmem:[%s1 + $0xe8] sm:$0xff]
  %v188 = vld [vmem:[%s1 + $0xf0] sm:$0xff]
  %v189 = vld [vmem:[%s1 + $0xf8] sm:$0xff]
  %v190 = vld [vmem:[%s1 + $0x100] sm:$0xff]
  %v191 = vld [vmem:[%s1 + $0x108] sm:$0xff]
  %v192 = vld [vmem:[%s1 + $0x110] sm:$0xff]
  %v193 = vld [vmem:[%s1 + $0x118] sm:$0xff]
  %v194 = vld [vmem:[%s1 + $0x120] sm:$0xff]
  %v195 = vld [vmem:[%s1 + $0x128] sm:$0xff]
  %v196 = vld [vmem:[%s1 + $0x130] sm:$0xff]
  %v197 = vld [vmem:[%s1 + $0x138] sm:$0xff]
  %v198 = vld [vmem:[%s1 + $0x140] sm:$0xff]
  %v199 = vld [vmem:[%s1 + $0x148] sm:$0xff]
  %v200 = vld [vmem:[%s1 + $0x150] sm:$0xff]
  %v201 = vld [vmem:[%s1 + $0x158] sm:$0xff]
  %v202 = vld [vmem:[%s1 + $0x160] sm:$0xff]
  %v203 = vld [vmem:[%s1 + $0x168] sm:$0xff]
  %v204 = vld [vmem:[%s1 + $0x170] sm:$0xff]
  %v205 = vld [vmem:[%s1 + $0x178] sm:$0xff]
  %v206 = vld [vmem:[%s1 + $0x180] sm:$0xff]
  %v207 = vld [vmem:[%s1 + $0x188] sm:$0xff]
  %v208 = vld [vmem:[%s1 + $0x190] sm:$0xff]
  %v209 = vld [vmem:[%s1 + $0x198] sm:$0xff]
  %v210 = vld [vmem:[%s1 + $0x1a0] sm:$0xff]
  %v211 = vld [vmem:[%s1 + $0x1a8] sm:$0xff]
  %v212 = vld [vmem:[%s1 + $0x1b0] sm:$0xff]
  %v213 = vld [vmem:[%s1 + $0x1b8] sm:$0xff]
  %v214 = vld [vmem:[%s1 + $0x1c0] sm:$0xff]
  %v215 = vld [vmem:[%s1 + $0x1c8] sm:$0xff]
  %v216 = vld [vmem:[%s1 + $0x1d0] sm:$0xff]
  %v217 = vld [vmem:[%s1 + $0x1d8] sm:$0xff]
  %v218 = vld [vmem:[%s1 + $0x1e0] sm:$0xff]
  %v219 = vld [vmem:[%s1 + $0x1e8] sm:$0xff]
  %v220 = vld [vmem:[%s1 + $0x1f0] sm:$0xff]
  %v221 = vld [vmem:[%s1 + $0x1f8] sm:$0xff]
  %v222 = vld [vmem:[%s1 + $0x200] sm:$0xff]
  %v223 = vld [vmem:[%s1 + $0x208] sm:$0xff]
  %v224 = vld [vmem:[%s1 + $0x210] sm:$0xff]
  %v225 = vld [vmem:[%s1 + $0x218] sm:$0xff]
  %v226 = vld [vmem:[%s1 + $0x220] sm:$0xff]
  %v227 = vld [vmem:[%s1 + $0x228] sm:$0xff]
  %v228 = vld [vmem:[%s1 + $0x230] sm:$0xff]
  %v229 = vld [vmem:[%s1 + $0x238] sm:$0xff]
  %v230 = vld [vmem:[%s1 + $0x240] sm:$0xff]
  %v231 = vld [vmem:[%s1 + $0x248] sm:$0xff]
  %v232 = vld [vmem:[%s1 + $0x250] sm:$0xff]
  %v233 = vld [vmem:[%s1 + $0x258] sm:$0xff]
  %v234 = vld [vmem:[%s1 + $0x260] sm:$0xff]
  %v235 = vld [vmem:[%s1 + $0x268] sm:$0xff]
  %v236 = vld [vmem:[%s1 + $0x270] sm:$0xff]
  %v237 = vld [vmem:[%s1 + $0x278] sm:$0xff]
  %v238 = vld [vmem:[%s1 + $0x280] sm:$0xff]
  %v239 = vld [vmem:[%s1 + $0x288] sm:$0xff]
  %v240 = vld [vmem:[%s1 + $0x290] sm:$0xff]
  %v241 = vld [vmem:[%s1 + $0x298] sm:$0xff]
  %v242 = vld [vmem:[%s1 + $0x2a0] sm:$0xff]
  %v243 = vld [vmem:[%s1 + $0x2a8] sm:$0xff]
  %v244 = vld [vmem:[%s1 + $0x2b0] sm:$0xff]
  %v245 = vld [vmem:[%s1 + $0x2b8] sm:$0xff]
  %v246 = vld [vmem:[%s1 + $0x2c0] sm:$0xff]
  %v247 = vld [vmem:[%s1 + $0x2c8] sm:$0xff]
  %v248 = vld [vmem:[%s1 + $0x2d0] sm:$0xff]
  %v249 = vld [vmem:[%s1 + $0x2d8] sm:$0xff]
  %v250 = vld [vmem:[%s1 + $0x2e0] sm:$0xff]
  %v251 = vld [vmem:[%s1 + $0x2e8] sm:$0xff]
  %v252 = vld [vmem:[%s1 + $0x2f0] sm:$0xff]
  %v253 = vld [vmem:[%s1 + $0x2f8] sm:$0xff]
  %v254 = vld [vmem:[%s1 + $0x300] sm:$0xff]
  %v255 = vld [vmem:[%s1 + $0x308] sm:$0xff]
  %v256 = vld [vmem:[%s1 + $0x310] sm:$0xff]
  %v257 = vld [vmem:[%s1 + $0x318] sm:$0xff]
  %v258 = vld [vmem:[%s1 + $0x320] sm:$0xff]
  %v259 = vld [vmem:[%s1 + $0x328] sm:$0xff]
  %v260 = vld [vmem:[%s1 + $0x330] sm:$0xff]
  %v261 = vld [vmem:[%s1 + $0x338] sm:$0xff]
  %v262 = vld [vmem:[%s1 + $0x340] sm:$0xff]
  %v263 = vld [vmem:[%s1 + $0x348] sm:$0xff]
  %v264 = vld [vmem:[%s1 + $0x350] sm:$0xff]
  %v265 = vld [vmem:[%s1 + $0x358] sm:$0xff]
  %v266 = vld [vmem:[%s1 + $0x360] sm:$0xff]
  %v267 = vld [vmem:[%s1 + $0x368] sm:$0xff]
  %v268 = vld [vmem:[%s1 + $0x370] sm:$0xff]
  %v269 = vld [vmem:[%s1 + $0x378] sm:$0xff]
  %v270 = vld [vmem:[%s1 + $0x380] sm:$0xff]
  %v271 = vld [vmem:[%s1 + $0x388] sm:$0xff]
  %v272 = vld [vmem:[%s1 + $0x390] sm:$0xff]
  %v273 = vld [vmem:[%s1 + $0x398] sm:$0xff]
  %v274 = vld [vmem:[%s1 + $0x3a0] sm:$0xff]
  %v275 = vld [vmem:[%s1 + $0x3a8] sm:$0xff]
  %v276 = vld [vmem:[%s1 + $0x3b0] sm:$0xff]
  %v277 = vld [vmem:[%s1 + $0x3b8] sm:$0xff]
  %v278 = vld [vmem:[%s1 + $0x3c0] sm:$0xff]
  %v279 = vld [vmem:[%s1 + $0x3c8] sm:$0xff]
  %v280 = vld [vmem:[%s1 + $0x3d0] sm:$0xff]
  %v281 = vld [vmem:[%s1 + $0x3d8] sm:$0xff]
  %v282 = vld [vmem:[%s1 + $0x3e0] sm:$0xff]
  %v283 = vld [vmem:[%s1 + $0x3e8] sm:$0xff]
  %v284 = vld [vmem:[%s1 + $0x3f0] sm:$0xff]
  %v285 = vld [vmem:[%s1 + $0x3f8] sm:$0xff]
  %v286 = vld [vmem:[%s1 + $0x400] sm:$0xff]
  %v287 = vld [vmem:[%s1 + $0x408] sm:$0xff]
  %v288 = vld [vmem:[%s1 + $0x410] sm:$0xff]
  %v289 = vld [vmem:[%s1 + $0x418] sm:$0xff]
  %v290 = vld [vmem:[%s1 + $0x420] sm:$0xff]
  %v291 = vld [vmem:[%s1 + $0x428] sm:$0xff]
  %v292 = vld [vmem:[%s1 + $0x430] sm:$0xff]
  %v293 = vld [vmem:[%s1 + $0x438] sm:$0xff]
  %v294 = vld [vmem:[%s1 + $0x440] sm:$0xff]
  %v295 = vld [vmem:[%s1 + $0x448] sm:$0xff]
  %v296 = vld [vmem:[%s1 + $0x450] sm:$0xff]
  %v297 = vld [vmem:[%s1 + $0x458] sm:$0xff]
  %v298 = vld [vmem:[%s1 + $0x460] sm:$0xff]
  %v299 = vld [vmem:[%s1 + $0x468] sm:$0xff]
  %v300 = vld [vmem:[%s1 + $0x470] sm:$0xff]
  %v301 = vld [vmem:[%s1 + $0x478] sm:$0xff]
  %302 = vmatprep.subr.mxu0 0.0
  %303 = vmatpush1.msra.mxu0 %v173
  %304 = vmatprep.subr.mxu0 0.0
  %305 = vmatpush1.msra.mxu0 %v172
  %306 = vmatprep.subr.mxu0 0.0
  %307 = vmatpush1.msra.mxu0 %v171
  %308 = vmatprep.subr.mxu0 0.0
  %309 = vmatpush1.msra.mxu0 %v170
  %310 = vmatprep.subr.mxu0 0.0
  %311 = vmatpush1.msra.mxu0 %v169
  %312 = vmatprep.subr.mxu0 0.0
  %313 = vmatpush1.msra.mxu0 %v168
  %314 = vmatprep.subr.mxu0 0.0
  %315 = vmatpush1.msra.mxu0 %v167
  %316 = vmatprep.subr.mxu0 0.0
  %317 = vmatpush1.msra.mxu0 %v166
  %318 = vmatprep.subr.mxu0 0.0
  %319 = vmatpush1.msra.mxu0 %v165
  %320 = vmatprep.subr.mxu0 0.0
  %321 = vmatpush1.msra.mxu0 %v164
  %322 = vmatprep.subr.mxu0 0.0
  %323 = vmatpush1.msra.mxu0 %v163
  %324 = vmatprep.subr.mxu0 0.0
  %325 = vmatpush1.msra.mxu0 %v162
  %326 = vmatprep.subr.mxu0 0.0
  %327 = vmatpush1.msra.mxu0 %v161
  %328 = vmatprep.subr.mxu0 0.0
  %329 = vmatpush1.msra.mxu0 %v160
  %330 = vmatprep.subr.mxu0 0.0
  %331 = vmatpush1.msra.mxu0 %v159
  %332 = vmatprep.subr.mxu0 0.0
  %333 = vmatpush1.msra.mxu0 %v158
  %334 = vmatprep.subr.mxu0 0.0
  %335 = vmatpush2.msra.mxu0 %v189
  %336 = vmatprep.subr.mxu0 0.0
  %337 = vmatpush2.msra.mxu0 %v188
  %338 = vmatprep.subr.mxu0 0.0
  %339 = vmatpush2.msra.mxu0 %v187
  %340 = vmatprep.subr.mxu0 0.0
  %341 = vmatpush2.msra.mxu0 %v186
  %342 = vmatprep.subr.mxu0 0.0
  %343 = vmatpush2.msra.mxu0 %v185
  %344 = vmatprep.subr.mxu0 0.0
  %345 = vmatpush2.msra.mxu0 %v184
  %346 = vmatprep.subr.mxu0 0.0
  %347 = vmatpush2.msra.mxu0 %v183
  %348 = vmatprep.subr.mxu0 0.0
  %349 = vmatpush2.msra.mxu0 %v182
  %350 = vmatprep.subr.mxu0 0.0
  %351 = vmatpush2.msra.mxu0 %v181
  %352 = vmatprep.subr.mxu0 0.0
  %353 = vmatpush2.msra.mxu0 %v180
  %354 = vmatprep.subr.mxu0 0.0
  %355 = vmatpush2.msra.mxu0 %v179
  %356 = vmatprep.subr.mxu0 0.0
  %357 = vmatpush2.msra.mxu0 %v178
  %358 = vmatprep.subr.mxu0 0.0
  %359 = vmatpush2.msra.mxu0 %v177
  %360 = vmatprep.subr.mxu0 0.0
  %361 = vmatpush2.msra.mxu0 %v176
  %362 = vmatprep.subr.mxu0 0.0
  %363 = vmatpush2.msra.mxu0 %v175
  %364 = vmatprep.subr.mxu0 0.0
  %365 = vmatpush2.msra.mxu0 %v174
  %366 = vmatprep.mubr.f32.mxu0 %v15
  %367 = vmatmul.mubr.f32.gmra.mxu0 %v14
  %v368 = vpop.f32.mrf.mxu0
  %v369 = vadd.f32 0.0, %v368
  %v370 = vpop.f32.mrf.mxu0
  %371 = vmatprep.mubr.f32.mxu0 %v24
  %372 = vmatmul.mubr.f32.gmra.mxu0 %v23
  %v373 = vpop.f32.mrf.mxu0
  %v374 = vadd.f32 0.0, %v373
  %v375 = vpop.f32.mrf.mxu0
  %376 = vmatprep.mubr.f32.mxu0 %v33
  %377 = vmatmul.mubr.f32.gmra.mxu0 %v32
  %v378 = vpop.f32.mrf.mxu0
  %v379 = vadd.f32 0.0, %v378
  %v380 = vpop.f32.mrf.mxu0
  %381 = vmatprep.mubr.f32.mxu0 %v42
  %382 = vmatmul.mubr.f32.gmra.mxu0 %v41
  %v383 = vpop.f32.mrf.mxu0
  %v384 = vadd.f32 0.0, %v383
  %v385 = vpop.f32.mrf.mxu0
  %386 = vmatprep.mubr.f32.mxu0 %v51
  %387 = vmatmul.mubr.f32.gmra.mxu0 %v50
  %v388 = vpop.f32.mrf.mxu0
  %v389 = vadd.f32 0.0, %v388
  %v390 = vpop.f32.mrf.mxu0
  %391 = vmatprep.mubr.f32.mxu0 %v60
  %392 = vmatmul.mubr.f32.gmra.mxu0 %v59
  %v393 = vpop.f32.mrf.mxu0
  %v394 = vadd.f32 0.0, %v393
  %v395 = vpop.f32.mrf.mxu0
  %396 = vmatprep.mubr.f32.mxu0 %v69
  %397 = vmatmul.mubr.f32.gmra.mxu0 %v68
  %v398 = vpop.f32.mrf.mxu0
  %v399 = vadd.f32 0.0, %v398
  %v400 = vpop.f32.mrf.mxu0
  %401 = vmatprep.mubr.f32.mxu0 %v78
  %402 = vmatmul.mubr.f32.gmra.mxu0 %v77
  %v403 = vpop.f32.mrf.mxu0
  %v404 = vadd.f32 0.0, %v403
  %v405 = vpop.f32.mrf.mxu0
  %406 = vmatprep.mubr.f32.mxu0 %v87
  %407 = vmatmul.mubr.f32.gmra.mxu0 %v86
  %v408 = vpop.f32.mrf.mxu0
  %v409 = vadd.f32 0.0, %v408
  %v410 = vpop.f32.mrf.mxu0
  %411 = vmatprep.mubr.f32.mxu0 %v96
  %412 = vmatmul.mubr.f32.gmra.mxu0 %v95
  %v413 = vpop.f32.mrf.mxu0
  %v414 = vadd.f32 0.0, %v413
  %v415 = vpop.f32.mrf.mxu0
  %416 = vmatprep.mubr.f32.mxu0 %v105
  %417 = vmatmul.mubr.f32.gmra.mxu0 %v104
  %v418 = vpop.f32.mrf.mxu0
  %v419 = vadd.f32 0.0, %v418
  %v420 = vpop.f32.mrf.mxu0
  %421 = vmatprep.mubr.f32.mxu0 %v114
  %422 = vmatmul.mubr.f32.gmra.mxu0 %v113
  %v423 = vpop.f32.mrf.mxu0
  %v424 = vadd.f32 0.0, %v423
  %v425 = vpop.f32.mrf.mxu0
  %426 = vmatprep.mubr.f32.mxu0 %v123
  %427 = vmatmul.mubr.f32.gmra.mxu0 %v122
  %v428 = vpop.f32.mrf.mxu0
  %v429 = vadd.f32 0.0, %v428
  %v430 = vpop.f32.mrf.mxu0
  %431 = vmatprep.mubr.f32.mxu0 %v132
  %432 = vmatmul.mubr.f32.gmra.mxu0 %v131
  %v433 = vpop.f32.mrf.mxu0
  %v434 = vadd.f32 0.0, %v433
  %v435 = vpop.f32.mrf.mxu0
  %436 = vmatprep.mubr.f32.mxu0 %v141
  %437 = vmatmul.mubr.f32.gmra.mxu0 %v140
  %v438 = vpop.f32.mrf.mxu0
  %v439 = vadd.f32 0.0, %v438
  %v440 = vpop.f32.mrf.mxu0
  %441 = vmatprep.mubr.f32.mxu0 %v150
  %442 = vmatmul.mubr.f32.gmra.mxu0 %v149
  %v443 = vpop.f32.mrf.mxu0
  %v444 = vadd.f32 0.0, %v443
  %v445 = vpop.f32.mrf.mxu0
  %446 = vdwg.mxu0
  %447 = vmatprep.subr.mxu0 0.0
  %448 = vmatpush1.msra.mxu0 %v205
  %449 = vmatprep.subr.mxu0 0.0
  %450 = vmatpush1.msra.mxu0 %v204
  %451 = vmatprep.subr.mxu0 0.0
  %452 = vmatpush1.msra.mxu0 %v203
  %453 = vmatprep.subr.mxu0 0.0
  %454 = vmatpush1.msra.mxu0 %v202
  %455 = vmatprep.subr.mxu0 0.0
  %456 = vmatpush1.msra.mxu0 %v201
  %457 = vmatprep.subr.mxu0 0.0
  %458 = vmatpush1.msra.mxu0 %v200
  %459 = vmatprep.subr.mxu0 0.0
  %460 = vmatpush1.msra.mxu0 %v199
  %461 = vmatprep.subr.mxu0 0.0
  %462 = vmatpush1.msra.mxu0 %v198
  %463 = vmatprep.subr.mxu0 0.0
  %464 = vmatpush1.msra.mxu0 %v197
  %465 = vmatprep.subr.mxu0 0.0
  %466 = vmatpush1.msra.mxu0 %v196
  %467 = vmatprep.subr.mxu0 0.0
  %468 = vmatpush1.msra.mxu0 %v195
  %469 = vmatprep.subr.mxu0 0.0
  %470 = vmatpush1.msra.mxu0 %v194
  %471 = vmatprep.subr.mxu0 0.0
  %472 = vmatpush1.msra.mxu0 %v193
  %473 = vmatprep.subr.mxu0 0.0
  %474 = vmatpush1.msra.mxu0 %v192
  %475 = vmatprep.subr.mxu0 0.0
  %476 = vmatpush1.msra.mxu0 %v191
  %477 = vmatprep.subr.mxu0 0.0
  %478 = vmatpush1.msra.mxu0 %v190
  %479 = vmatprep.subr.mxu0 0.0
  %480 = vmatpush2.msra.mxu0 %v221
  %481 = vmatprep.subr.mxu0 0.0
  %482 = vmatpush2.msra.mxu0 %v220
  %483 = vmatprep.subr.mxu0 0.0
  %484 = vmatpush2.msra.mxu0 %v219
  %485 = vmatprep.subr.mxu0 0.0
  %486 = vmatpush2.msra.mxu0 %v218
  %487 = vmatprep.subr.mxu0 0.0
  %488 = vmatpush2.msra.mxu0 %v217
  %489 = vmatprep.subr.mxu0 0.0
  %490 = vmatpush2.msra.mxu0 %v216
  %491 = vmatprep.subr.mxu0 0.0
  %492 = vmatpush2.msra.mxu0 %v215
  %493 = vmatprep.subr.mxu0 0.0
  %494 = vmatpush2.msra.mxu0 %v214
  %495 = vmatprep.subr.mxu0 0.0
  %496 = vmatpush2.msra.mxu0 %v213
  %497 = vmatprep.subr.mxu0 0.0
  %498 = vmatpush2.msra.mxu0 %v212
  %499 = vmatprep.subr.mxu0 0.0
  %500 = vmatpush2.msra.mxu0 %v211
  %501 = vmatprep.subr.mxu0 0.0
  %502 = vmatpush2.msra.mxu0 %v210
  %503 = vmatprep.subr.mxu0 0.0
  %504 = vmatpush2.msra.mxu0 %v209
  %505 = vmatprep.subr.mxu0 0.0
  %506 = vmatpush2.msra.mxu0 %v208
  %507 = vmatprep.subr.mxu0 0.0
  %508 = vmatpush2.msra.mxu0 %v207
  %509 = vmatprep.subr.mxu0 0.0
  %510 = vmatpush2.msra.mxu0 %v206
  %511 = vmatprep.mubr.f32.mxu0 %v17
  %512 = vmatmul.mubr.f32.gmra.mxu0 %v16
  %v513 = vpop.f32.mrf.mxu0
  %v514 = vadd.f32 %v369, %v513
  %v515 = vpop.f32.mrf.mxu0
  %516 = vmatprep.mubr.f32.mxu0 %v26
  %517 = vmatmul.mubr.f32.gmra.mxu0 %v25
  %v518 = vpop.f32.mrf.mxu0
  %v519 = vadd.f32 %v374, %v518
  %v520 = vpop.f32.mrf.mxu0
  %521 = vmatprep.mubr.f32.mxu0 %v35
  %522 = vmatmul.mubr.f32.gmra.mxu0 %v34
  %v523 = vpop.f32.mrf.mxu0
  %v524 = vadd.f32 %v379, %v523
  %v525 = vpop.f32.mrf.mxu0
  %526 = vmatprep.mubr.f32.mxu0 %v44
  %527 = vmatmul.mubr.f32.gmra.mxu0 %v43
  %v528 = vpop.f32.mrf.mxu0
  %v529 = vadd.f32 %v384, %v528
  %v530 = vpop.f32.mrf.mxu0
  %531 = vmatprep.mubr.f32.mxu0 %v53
  %532 = vmatmul.mubr.f32.gmra.mxu0 %v52
  %v533 = vpop.f32.mrf.mxu0
  %v534 = vadd.f32 %v389, %v533
  %v535 = vpop.f32.mrf.mxu0
  %536 = vmatprep.mubr.f32.mxu0 %v62
  %537 = vmatmul.mubr.f32.gmra.mxu0 %v61
  %v538 = vpop.f32.mrf.mxu0
  %v539 = vadd.f32 %v394, %v538
  %v540 = vpop.f32.mrf.mxu0
  %541 = vmatprep.mubr.f32.mxu0 %v71
  %542 = vmatmul.mubr.f32.gmra.mxu0 %v70
  %v543 = vpop.f32.mrf.mxu0
  %v544 = vadd.f32 %v399, %v543
  %v545 = vpop.f32.mrf.mxu0
  %546 = vmatprep.mubr.f32.mxu0 %v80
  %547 = vmatmul.mubr.f32.gmra.mxu0 %v79
  %v548 = vpop.f32.mrf.mxu0
  %v549 = vadd.f32 %v404, %v548
  %v550 = vpop.f32.mrf.mxu0
  %551 = vmatprep.mubr.f32.mxu0 %v89
  %552 = vmatmul.mubr.f32.gmra.mxu0 %v88
  %v553 = vpop.f32.mrf.mxu0
  %v554 = vadd.f32 %v409, %v553
  %v555 = vpop.f32.mrf.mxu0
  %556 = vmatprep.mubr.f32.mxu0 %v98
  %557 = vmatmul.mubr.f32.gmra.mxu0 %v97
  %v558 = vpop.f32.mrf.mxu0
  %v559 = vadd.f32 %v414, %v558
  %v560 = vpop.f32.mrf.mxu0
  %561 = vmatprep.mubr.f32.mxu0 %v107
  %562 = vmatmul.mubr.f32.gmra.mxu0 %v106
  %v563 = vpop.f32.mrf.mxu0
  %v564 = vadd.f32 %v419, %v563
  %v565 = vpop.f32.mrf.mxu0
  %566 = vmatprep.mubr.f32.mxu0 %v116
  %567 = vmatmul.mubr.f32.gmra.mxu0 %v115
  %v568 = vpop.f32.mrf.mxu0
  %v569 = vadd.f32 %v424, %v568
  %v570 = vpop.f32.mrf.mxu0
  %571 = vmatprep.mubr.f32.mxu0 %v125
  %572 = vmatmul.mubr.f32.gmra.mxu0 %v124
  %v573 = vpop.f32.mrf.mxu0
  %v574 = vadd.f32 %v429, %v573
  %v575 = vpop.f32.mrf.mxu0
  %576 = vmatprep.mubr.f32.mxu0 %v134
  %577 = vmatmul.mubr.f32.gmra.mxu0 %v133
  %v578 = vpop.f32.mrf.mxu0
  %v579 = vadd.f32 %v434, %v578
  %v580 = vpop.f32.mrf.mxu0
  %581 = vmatprep.mubr.f32.mxu0 %v143
  %582 = vmatmul.mubr.f32.gmra.mxu0 %v142
  %v583 = vpop.f32.mrf.mxu0
  %v584 = vadd.f32 %v439, %v583
  %v585 = vpop.f32.mrf.mxu0
  %586 = vmatprep.mubr.f32.mxu0 %v152
  %587 = vmatmul.mubr.f32.gmra.mxu0 %v151
  %v588 = vpop.f32.mrf.mxu0
  %v589 = vadd.f32 %v444, %v588
  %v590 = vpop.f32.mrf.mxu0
  %591 = vdwg.mxu0
  %592 = vmatprep.subr.mxu0 0.0
  %593 = vmatpush1.msra.mxu0 %v237
  %594 = vmatprep.subr.mxu0 0.0
  %595 = vmatpush1.msra.mxu0 %v236
  %596 = vmatprep.subr.mxu0 0.0
  %597 = vmatpush1.msra.mxu0 %v235
  %598 = vmatprep.subr.mxu0 0.0
  %599 = vmatpush1.msra.mxu0 %v234
  %600 = vmatprep.subr.mxu0 0.0
  %601 = vmatpush1.msra.mxu0 %v233
  %602 = vmatprep.subr.mxu0 0.0
  %603 = vmatpush1.msra.mxu0 %v232
  %604 = vmatprep.subr.mxu0 0.0
  %605 = vmatpush1.msra.mxu0 %v231
  %606 = vmatprep.subr.mxu0 0.0
  %607 = vmatpush1.msra.mxu0 %v230
  %608 = vmatprep.subr.mxu0 0.0
  %609 = vmatpush1.msra.mxu0 %v229
  %610 = vmatprep.subr.mxu0 0.0
  %611 = vmatpush1.msra.mxu0 %v228
  %612 = vmatprep.subr.mxu0 0.0
  %613 = vmatpush1.msra.mxu0 %v227
  %614 = vmatprep.subr.mxu0 0.0
  %615 = vmatpush1.msra.mxu0 %v226
  %616 = vmatprep.subr.mxu0 0.0
  %617 = vmatpush1.msra.mxu0 %v225
  %618 = vmatprep.subr.mxu0 0.0
  %619 = vmatpush1.msra.mxu0 %v224
  %620 = vmatprep.subr.mxu0 0.0
  %621 = vmatpush1.msra.mxu0 %v223
  %622 = vmatprep.subr.mxu0 0.0
  %623 = vmatpush1.msra.mxu0 %v222
  %624 = vmatprep.subr.mxu0 0.0
  %625 = vmatpush2.msra.mxu0 %v253
  %626 = vmatprep.subr.mxu0 0.0
  %627 = vmatpush2.msra.mxu0 %v252
  %628 = vmatprep.subr.mxu0 0.0
  %629 = vmatpush2.msra.mxu0 %v251
  %630 = vmatprep.subr.mxu0 0.0
  %631 = vmatpush2.msra.mxu0 %v250
  %632 = vmatprep.subr.mxu0 0.0
  %633 = vmatpush2.msra.mxu0 %v249
  %634 = vmatprep.subr.mxu0 0.0
  %635 = vmatpush2.msra.mxu0 %v248
  %636 = vmatprep.subr.mxu0 0.0
  %637 = vmatpush2.msra.mxu0 %v247
  %638 = vmatprep.subr.mxu0 0.0
  %639 = vmatpush2.msra.mxu0 %v246
  %640 = vmatprep.subr.mxu0 0.0
  %641 = vmatpush2.msra.mxu0 %v245
  %642 = vmatprep.subr.mxu0 0.0
  %643 = vmatpush2.msra.mxu0 %v244
  %644 = vmatprep.subr.mxu0 0.0
  %645 = vmatpush2.msra.mxu0 %v243
  %646 = vmatprep.subr.mxu0 0.0
  %647 = vmatpush2.msra.mxu0 %v242
  %648 = vmatprep.subr.mxu0 0.0
  %649 = vmatpush2.msra.mxu0 %v241
  %650 = vmatprep.subr.mxu0 0.0
  %651 = vmatpush2.msra.mxu0 %v240
  %652 = vmatprep.subr.mxu0 0.0
  %653 = vmatpush2.msra.mxu0 %v239
  %654 = vmatprep.subr.mxu0 0.0
  %655 = vmatpush2.msra.mxu0 %v238
  %656 = vmatprep.mubr.f32.mxu0 %v19
  %657 = vmatmul.mubr.f32.gmra.mxu0 %v18
  %v658 = vpop.f32.mrf.mxu0
  %v659 = vadd.f32 %v514, %v658
  %v660 = vpop.f32.mrf.mxu0
  %661 = vmatprep.mubr.f32.mxu0 %v28
  %662 = vmatmul.mubr.f32.gmra.mxu0 %v27
  %v663 = vpop.f32.mrf.mxu0
  %v664 = vadd.f32 %v519, %v663
  %v665 = vpop.f32.mrf.mxu0
  %666 = vmatprep.mubr.f32.mxu0 %v37
  %667 = vmatmul.mubr.f32.gmra.mxu0 %v36
  %v668 = vpop.f32.mrf.mxu0
  %v669 = vadd.f32 %v524, %v668
  %v670 = vpop.f32.mrf.mxu0
  %671 = vmatprep.mubr.f32.mxu0 %v46
  %672 = vmatmul.mubr.f32.gmra.mxu0 %v45
  %v673 = vpop.f32.mrf.mxu0
  %v674 = vadd.f32 %v529, %v673
  %v675 = vpop.f32.mrf.mxu0
  %676 = vmatprep.mubr.f32.mxu0 %v55
  %677 = vmatmul.mubr.f32.gmra.mxu0 %v54
  %v678 = vpop.f32.mrf.mxu0
  %v679 = vadd.f32 %v534, %v678
  %v680 = vpop.f32.mrf.mxu0
  %681 = vmatprep.mubr.f32.mxu0 %v64
  %682 = vmatmul.mubr.f32.gmra.mxu0 %v63
  %v683 = vpop.f32.mrf.mxu0
  %v684 = vadd.f32 %v539, %v683
  %v685 = vpop.f32.mrf.mxu0
  %686 = vmatprep.mubr.f32.mxu0 %v73
  %687 = vmatmul.mubr.f32.gmra.mxu0 %v72
  %v688 = vpop.f32.mrf.mxu0
  %v689 = vadd.f32 %v544, %v688
  %v690 = vpop.f32.mrf.mxu0
  %691 = vmatprep.mubr.f32.mxu0 %v82
  %692 = vmatmul.mubr.f32.gmra.mxu0 %v81
  %v693 = vpop.f32.mrf.mxu0
  %v694 = vadd.f32 %v549, %v693
  %v695 = vpop.f32.mrf.mxu0
  %696 = vmatprep.mubr.f32.mxu0 %v91
  %697 = vmatmul.mubr.f32.gmra.mxu0 %v90
  %v698 = vpop.f32.mrf.mxu0
  %v699 = vadd.f32 %v554, %v698
  %v700 = vpop.f32.mrf.mxu0
  %701 = vmatprep.mubr.f32.mxu0 %v100
  %702 = vmatmul.mubr.f32.gmra.mxu0 %v99
  %v703 = vpop.f32.mrf.mxu0
  %v704 = vadd.f32 %v559, %v703
  %v705 = vpop.f32.mrf.mxu0
  %706 = vmatprep.mubr.f32.mxu0 %v109
  %707 = vmatmul.mubr.f32.gmra.mxu0 %v108
  %v708 = vpop.f32.mrf.mxu0
  %v709 = vadd.f32 %v564, %v708
  %v710 = vpop.f32.mrf.mxu0
  %711 = vmatprep.mubr.f32.mxu0 %v118
  %712 = vmatmul.mubr.f32.gmra.mxu0 %v117
  %v713 = vpop.f32.mrf.mxu0
  %v714 = vadd.f32 %v569, %v713
  %v715 = vpop.f32.mrf.mxu0
  %716 = vmatprep.mubr.f32.mxu0 %v127
  %717 = vmatmul.mubr.f32.gmra.mxu0 %v126
  %v718 = vpop.f32.mrf.mxu0
  %v719 = vadd.f32 %v574, %v718
  %v720 = vpop.f32.mrf.mxu0
  %721 = vmatprep.mubr.f32.mxu0 %v136
  %722 = vmatmul.mubr.f32.gmra.mxu0 %v135
  %v723 = vpop.f32.mrf.mxu0
  %v724 = vadd.f32 %v579, %v723
  %v725 = vpop.f32.mrf.mxu0
  %726 = vmatprep.mubr.f32.mxu0 %v145
  %727 = vmatmul.mubr.f32.gmra.mxu0 %v144
  %v728 = vpop.f32.mrf.mxu0
  %v729 = vadd.f32 %v584, %v728
  %v730 = vpop.f32.mrf.mxu0
  %731 = vmatprep.mubr.f32.mxu0 %v154
  %732 = vmatmul.mubr.f32.gmra.mxu0 %v153
  %v733 = vpop.f32.mrf.mxu0
  %v734 = vadd.f32 %v589, %v733
  %v735 = vpop.f32.mrf.mxu0
  %736 = vdwg.mxu0
  %737 = vmatprep.subr.mxu0 0.0
  %738 = vmatpush1.msra.mxu0 %v269
  %739 = vmatprep.subr.mxu0 0.0
  %740 = vmatpush1.msra.mxu0 %v268
  %741 = vmatprep.subr.mxu0 0.0
  %742 = vmatpush1.msra.mxu0 %v267
  %743 = vmatprep.subr.mxu0 0.0
  %744 = vmatpush1.msra.mxu0 %v266
  %745 = vmatprep.subr.mxu0 0.0
  %746 = vmatpush1.msra.mxu0 %v265
  %747 = vmatprep.subr.mxu0 0.0
  %748 = vmatpush1.msra.mxu0 %v264
  %749 = vmatprep.subr.mxu0 0.0
  %750 = vmatpush1.msra.mxu0 %v263
  %751 = vmatprep.subr.mxu0 0.0
  %752 = vmatpush1.msra.mxu0 %v262
  %753 = vmatprep.subr.mxu0 0.0
  %754 = vmatpush1.msra.mxu0 %v261
  %755 = vmatprep.subr.mxu0 0.0
  %756 = vmatpush1.msra.mxu0 %v260
  %757 = vmatprep.subr.mxu0 0.0
  %758 = vmatpush1.msra.mxu0 %v259
  %759 = vmatprep.subr.mxu0 0.0
  %760 = vmatpush1.msra.mxu0 %v258
  %761 = vmatprep.subr.mxu0 0.0
  %762 = vmatpush1.msra.mxu0 %v257
  %763 = vmatprep.subr.mxu0 0.0
  %764 = vmatpush1.msra.mxu0 %v256
  %765 = vmatprep.subr.mxu0 0.0
  %766 = vmatpush1.msra.mxu0 %v255
  %767 = vmatprep.subr.mxu0 0.0
  %768 = vmatpush1.msra.mxu0 %v254
  %769 = vmatprep.subr.mxu0 0.0
  %770 = vmatpush2.msra.mxu0 %v285
  %771 = vmatprep.subr.mxu0 0.0
  %772 = vmatpush2.msra.mxu0 %v284
  %773 = vmatprep.subr.mxu0 0.0
  %774 = vmatpush2.msra.mxu0 %v283
  %775 = vmatprep.subr.mxu0 0.0
  %776 = vmatpush2.msra.mxu0 %v282
  %777 = vmatprep.subr.mxu0 0.0
  %778 = vmatpush2.msra.mxu0 %v281
  %779 = vmatprep.subr.mxu0 0.0
  %780 = vmatpush2.msra.mxu0 %v280
  %781 = vmatprep.subr.mxu0 0.0
  %782 = vmatpush2.msra.mxu0 %v279
  %783 = vmatprep.subr.mxu0 0.0
  %784 = vmatpush2.msra.mxu0 %v278
  %785 = vmatprep.subr.mxu0 0.0
  %786 = vmatpush2.msra.mxu0 %v277
  %787 = vmatprep.subr.mxu0 0.0
  %788 = vmatpush2.msra.mxu0 %v276
  %789 = vmatprep.subr.mxu0 0.0
  %790 = vmatpush2.msra.mxu0 %v275
  %791 = vmatprep.subr.mxu0 0.0
  %792 = vmatpush2.msra.mxu0 %v274
  %793 = vmatprep.subr.mxu0 0.0
  %794 = vmatpush2.msra.mxu0 %v273
  %795 = vmatprep.subr.mxu0 0.0
  %796 = vmatpush2.msra.mxu0 %v272
  %797 = vmatprep.subr.mxu0 0.0
  %798 = vmatpush2.msra.mxu0 %v271
  %799 = vmatprep.subr.mxu0 0.0
  %800 = vmatpush2.msra.mxu0 %v270
  %801 = vmatprep.mubr.f32.mxu0 %v21
  %802 = vmatmul.mubr.f32.gmra.mxu0 %v20
  %v803 = vpop.f32.mrf.mxu0
  %v804 = vadd.f32 %v659, %v803
  %v805 = vpop.f32.mrf.mxu0
  %806 = vmatprep.mubr.f32.mxu0 %v30
  %807 = vmatmul.mubr.f32.gmra.mxu0 %v29
  %v808 = vpop.f32.mrf.mxu0
  %v809 = vadd.f32 %v664, %v808
  %v810 = vpop.f32.mrf.mxu0
  %811 = vmatprep.mubr.f32.mxu0 %v39
  %812 = vmatmul.mubr.f32.gmra.mxu0 %v38
  %v813 = vpop.f32.mrf.mxu0
  %v814 = vadd.f32 %v669, %v813
  %v815 = vpop.f32.mrf.mxu0
  %816 = vmatprep.mubr.f32.mxu0 %v48
  %817 = vmatmul.mubr.f32.gmra.mxu0 %v47
  %v818 = vpop.f32.mrf.mxu0
  %v819 = vadd.f32 %v674, %v818
  %v820 = vpop.f32.mrf.mxu0
  %821 = vmatprep.mubr.f32.mxu0 %v57
  %822 = vmatmul.mubr.f32.gmra.mxu0 %v56
  %v823 = vpop.f32.mrf.mxu0
  %v824 = vadd.f32 %v679, %v823
  %v825 = vpop.f32.mrf.mxu0
  %826 = vmatprep.mubr.f32.mxu0 %v66
  %827 = vmatmul.mubr.f32.gmra.mxu0 %v65
  %v828 = vpop.f32.mrf.mxu0
  %v829 = vadd.f32 %v684, %v828
  %v830 = vpop.f32.mrf.mxu0
  %831 = vmatprep.mubr.f32.mxu0 %v75
  %832 = vmatmul.mubr.f32.gmra.mxu0 %v74
  %v833 = vpop.f32.mrf.mxu0
  %v834 = vadd.f32 %v689, %v833
  %v835 = vpop.f32.mrf.mxu0
  %836 = vmatprep.mubr.f32.mxu0 %v84
  %837 = vmatmul.mubr.f32.gmra.mxu0 %v83
  %v838 = vpop.f32.mrf.mxu0
  %v839 = vadd.f32 %v694, %v838
  %v840 = vpop.f32.mrf.mxu0
  %841 = vmatprep.mubr.f32.mxu0 %v93
  %842 = vmatmul.mubr.f32.gmra.mxu0 %v92
  %v843 = vpop.f32.mrf.mxu0
  %v844 = vadd.f32 %v699, %v843
  %v845 = vpop.f32.mrf.mxu0
  %846 = vmatprep.mubr.f32.mxu0 %v102
  %847 = vmatmul.mubr.f32.gmra.mxu0 %v101
  %v848 = vpop.f32.mrf.mxu0
  %v849 = vadd.f32 %v704, %v848
  %v850 = vpop.f32.mrf.mxu0
  %851 = vmatprep.mubr.f32.mxu0 %v111
  %852 = vmatmul.mubr.f32.gmra.mxu0 %v110
  %v853 = vpop.f32.mrf.mxu0
  %v854 = vadd.f32 %v709, %v853
  %v855 = vpop.f32.mrf.mxu0
  %856 = vmatprep.mubr.f32.mxu0 %v120
  %857 = vmatmul.mubr.f32.gmra.mxu0 %v119
  %v858 = vpop.f32.mrf.mxu0
  %v859 = vadd.f32 %v714, %v858
  %v860 = vpop.f32.mrf.mxu0
  %861 = vmatprep.mubr.f32.mxu0 %v129
  %862 = vmatmul.mubr.f32.gmra.mxu0 %v128
  %v863 = vpop.f32.mrf.mxu0
  %v864 = vadd.f32 %v719, %v863
  %v865 = vpop.f32.mrf.mxu0
  %866 = vmatprep.mubr.f32.mxu0 %v138
  %867 = vmatmul.mubr.f32.gmra.mxu0 %v137
  %v868 = vpop.f32.mrf.mxu0
  %v869 = vadd.f32 %v724, %v868
  %v870 = vpop.f32.mrf.mxu0
  %871 = vmatprep.mubr.f32.mxu0 %v147
  %872 = vmatmul.mubr.f32.gmra.mxu0 %v146
  %v873 = vpop.f32.mrf.mxu0
  %v874 = vadd.f32 %v729, %v873
  %v875 = vpop.f32.mrf.mxu0
  %876 = vmatprep.mubr.f32.mxu0 %v156
  %877 = vmatmul.mubr.f32.gmra.mxu0 %v155
  %v878 = vpop.f32.mrf.mxu0
  %v879 = vadd.f32 %v734, %v878
  %v880 = vpop.f32.mrf.mxu0
  %881 = vdwg.mxu0
  %882 = vmatprep.subr.mxu0 0.0
  %883 = vmatpush1.msra.mxu0 %v301
  %884 = vmatprep.subr.mxu0 0.0
  %885 = vmatpush1.msra.mxu0 %v300
  %886 = vmatprep.subr.mxu0 0.0
  %887 = vmatpush1.msra.mxu0 %v299
  %888 = vmatprep.subr.mxu0 0.0
  %889 = vmatpush1.msra.mxu0 %v298
  %890 = vmatprep.subr.mxu0 0.0
  %891 = vmatpush1.msra.mxu0 %v297
  %892 = vmatprep.subr.mxu0 0.0
  %893 = vmatpush1.msra.mxu0 %v296
  %894 = vmatprep.subr.mxu0 0.0
  %895 = vmatpush1.msra.mxu0 %v295
  %896 = vmatprep.subr.mxu0 0.0
  %897 = vmatpush1.msra.mxu0 %v294
  %898 = vmatprep.subr.mxu0 0.0
  %899 = vmatpush1.msra.mxu0 %v293
  %900 = vmatprep.subr.mxu0 0.0
  %901 = vmatpush1.msra.mxu0 %v292
  %902 = vmatprep.subr.mxu0 0.0
  %903 = vmatpush1.msra.mxu0 %v291
  %904 = vmatprep.subr.mxu0 0.0
  %905 = vmatpush1.msra.mxu0 %v290
  %906 = vmatprep.subr.mxu0 0.0
  %907 = vmatpush1.msra.mxu0 %v289
  %908 = vmatprep.subr.mxu0 0.0
  %909 = vmatpush1.msra.mxu0 %v288
  %910 = vmatprep.subr.mxu0 0.0
  %911 = vmatpush1.msra.mxu0 %v287
  %912 = vmatprep.subr.mxu0 0.0
  %913 = vmatpush1.msra.mxu0 %v286
  %914 = vmatprep.subr.mxu0 0.0
  %915 = vmatpush2.msra.mxu0 0.0
  %916 = vmatprep.subr.mxu0 0.0
  %917 = vmatpush2.msra.mxu0 0.0
  %918 = vmatprep.subr.mxu0 0.0
  %919 = vmatpush2.msra.mxu0 0.0
  %920 = vmatprep.subr.mxu0 0.0
  %921 = vmatpush2.msra.mxu0 0.0
  %922 = vmatprep.subr.mxu0 0.0
  %923 = vmatpush2.msra.mxu0 0.0
  %924 = vmatprep.subr.mxu0 0.0
  %925 = vmatpush2.msra.mxu0 0.0
  %926 = vmatprep.subr.mxu0 0.0
  %927 = vmatpush2.msra.mxu0 0.0
  %928 = vmatprep.subr.mxu0 0.0
  %929 = vmatpush2.msra.mxu0 0.0
  %930 = vmatprep.subr.mxu0 0.0
  %931 = vmatpush2.msra.mxu0 0.0
  %932 = vmatprep.subr.mxu0 0.0
  %933 = vmatpush2.msra.mxu0 0.0
  %934 = vmatprep.subr.mxu0 0.0
  %935 = vmatpush2.msra.mxu0 0.0
  %936 = vmatprep.subr.mxu0 0.0
  %937 = vmatpush2.msra.mxu0 0.0
  %938 = vmatprep.subr.mxu0 0.0
  %939 = vmatpush2.msra.mxu0 0.0
  %940 = vmatprep.subr.mxu0 0.0
  %941 = vmatpush2.msra.mxu0 0.0
  %942 = vmatprep.subr.mxu0 0.0
  %943 = vmatpush2.msra.mxu0 0.0
  %944 = vmatprep.subr.mxu0 0.0
  %945 = vmatpush2.msra.mxu0 0.0
  %946 = vmatprep.mubr.f32.mxu0 0.0
  %947 = vmatmul.mubr.f32.gmra.mxu0 %v22
  %v948 = vpop.f32.mrf.mxu0
  %v949 = vadd.f32 %v804, %v948
  %v950 = vpop.f32.mrf.mxu0
  %951 = vmatprep.mubr.f32.mxu0 0.0
  %952 = vmatmul.mubr.f32.gmra.mxu0 %v31
  %v953 = vpop.f32.mrf.mxu0
  %v954 = vadd.f32 %v809, %v953
  %v955 = vpop.f32.mrf.mxu0
  %956 = vmatprep.mubr.f32.mxu0 0.0
  %957 = vmatmul.mubr.f32.gmra.mxu0 %v40
  %v958 = vpop.f32.mrf.mxu0
  %v959 = vadd.f32 %v814, %v958
  %v960 = vpop.f32.mrf.mxu0
  %961 = vmatprep.mubr.f32.mxu0 0.0
  %962 = vmatmul.mubr.f32.gmra.mxu0 %v49
  %v963 = vpop.f32.mrf.mxu0
  %v964 = vadd.f32 %v819, %v963
  %v965 = vpop.f32.mrf.mxu0
  %966 = vmatprep.mubr.f32.mxu0 0.0
  %967 = vmatmul.mubr.f32.gmra.mxu0 %v58
  %v968 = vpop.f32.mrf.mxu0
  %v969 = vadd.f32 %v824, %v968
  %v970 = vpop.f32.mrf.mxu0
  %971 = vmatprep.mubr.f32.mxu0 0.0
  %972 = vmatmul.mubr.f32.gmra.mxu0 %v67
  %v973 = vpop.f32.mrf.mxu0
  %v974 = vadd.f32 %v829, %v973
  %v975 = vpop.f32.mrf.mxu0
  %976 = vmatprep.mubr.f32.mxu0 0.0
  %977 = vmatmul.mubr.f32.gmra.mxu0 %v76
  %v978 = vpop.f32.mrf.mxu0
  %v979 = vadd.f32 %v834, %v978
  %v980 = vpop.f32.mrf.mxu0
  %981 = vmatprep.mubr.f32.mxu0 0.0
  %982 = vmatmul.mubr.f32.gmra.mxu0 %v85
  %v983 = vpop.f32.mrf.mxu0
  %v984 = vadd.f32 %v839, %v983
  %v985 = vpop.f32.mrf.mxu0
  %986 = vmatprep.mubr.f32.mxu0 0.0
  %987 = vmatmul.mubr.f32.gmra.mxu0 %v94
  %v988 = vpop.f32.mrf.mxu0
  %v989 = vadd.f32 %v844, %v988
  %v990 = vpop.f32.mrf.mxu0
  %991 = vmatprep.mubr.f32.mxu0 0.0
  %992 = vmatmul.mubr.f32.gmra.mxu0 %v103
  %v993 = vpop.f32.mrf.mxu0
  %v994 = vadd.f32 %v849, %v993
  %v995 = vpop.f32.mrf.mxu0
  %996 = vmatprep.mubr.f32.mxu0 0.0
  %997 = vmatmul.mubr.f32.gmra.mxu0 %v112
  %v998 = vpop.f32.mrf.mxu0
  %v999 = vadd.f32 %v854, %v998
  %v1000 = vpop.f32.mrf.mxu0
  %1001 = vmatprep.mubr.f32.mxu0 0.0
  %1002 = vmatmul.mubr.f32.gmra.mxu0 %v121
  %v1003 = vpop.f32.mrf.mxu0
  %v1004 = vadd.f32 %v859, %v1003
  %v1005 = vpop.f32.mrf.mxu0
  %1006 = vmatprep.mubr.f32.mxu0 0.0
  %1007 = vmatmul.mubr.f32.gmra.mxu0 %v130
  %v1008 = vpop.f32.mrf.mxu0
  %v1009 = vadd.f32 %v864, %v1008
  %v1010 = vpop.f32.mrf.mxu0
  %1011 = vmatprep.mubr.f32.mxu0 0.0
  %1012 = vmatmul.mubr.f32.gmra.mxu0 %v139
  %v1013 = vpop.f32.mrf.mxu0
  %v1014 = vadd.f32 %v869, %v1013
  %v1015 = vpop.f32.mrf.mxu0
  %1016 = vmatprep.mubr.f32.mxu0 0.0
  %1017 = vmatmul.mubr.f32.gmra.mxu0 %v148
  %v1018 = vpop.f32.mrf.mxu0
  %v1019 = vadd.f32 %v874, %v1018
  %v1020 = vpop.f32.mrf.mxu0
  %1021 = vmatprep.mubr.f32.mxu0 0.0
  %1022 = vmatmul.mubr.f32.gmra.mxu0 %v157
  %v1023 = vpop.f32.mrf.mxu0
  %v1024 = vadd.f32 %v879, %v1023
  %v1025 = vpop.f32.mrf.mxu0
  %1026 = vdwg.mxu0
  %1027 = vst [vmem:[%s2] sm:$0xff] %v949
  %1028 = vst [vmem:[%s2 + $0x8] sm:$0xff] %v954
  %1029 = vst [vmem:[%s2 + $0x10] sm:$0xff] %v959
  %1030 = vst [vmem:[%s2 + $0x18] sm:$0xff] %v964
  %1031 = vst [vmem:[%s2 + $0x20] sm:$0xff] %v969
  %1032 = vst [vmem:[%s2 + $0x28] sm:$0xff] %v974
  %1033 = vst [vmem:[%s2 + $0x30] sm:$0xff] %v979
  %1034 = vst [vmem:[%s2 + $0x38] sm:$0xff] %v984
  %1035 = vst [vmem:[%s2 + $0x40] sm:$0xff] %v989
  %1036 = vst [vmem:[%s2 + $0x48] sm:$0xff] %v994
  %1037 = vst [vmem:[%s2 + $0x50] sm:$0xff] %v999
  %1038 = vst [vmem:[%s2 + $0x58] sm:$0xff] %v1004
  %1039 = vst [vmem:[%s2 + $0x60] sm:$0xff] %v1009
  %1040 = vst [vmem:[%s2 + $0x68] sm:$0xff] %v1014
  %1041 = vst [vmem:[%s2 + $0x70] sm:$0xff] %v1019
  %1042 = vst [vmem:[%s2 + $0x78] sm:$0xff] %v1024
  %v1043 = vadd.f32 %v949, %v954
  %v1044 = vadd.f32 %v1043, %v959
  %v1045 = vadd.f32 %v1044, %v964
  %v1046 = vadd.f32 %v1045, %v969
  %v1047 = vadd.f32 %v1046, %v974
  %v1048 = vadd.f32 %v1047, %v979
  %v1049 = vadd.f32 %v1048, %v984
  %v1050 = vadd.f32 %v1049, %v989
  %v1051 = vadd.f32 %v1050, %v994
  %v1052 = vadd.f32 %v1051, %v999
  %v1053 = vadd.f32 %v1052, %v1004
  %v1054 = vadd.f32 %v1053, %v1009
  %v1055 = vadd.f32 %v1054, %v1014
  %v1056 = vadd.f32 %v1055, %v1019
  %v1057 = vadd.f32 %v1056, %v1024
  %v1058 = vrot.slane %v1057, 4
  %v1059 = vadd.f32 %v1057, %v1058
  %v1060 = vrot.slane %v1059, 2
  %v1061 = vadd.f32 %v1059, %v1060
  %v1062 = vrot.slane %v1061, 1
  %v1063 = vadd.f32 %v1061, %v1062
  %1064 = vst [vmem:[%s3] sm:$0xff] %v1063
  %v1065 = vmul.f32 %v949, %v949
  %v1066 = vmul.f32 %v954, %v954
  %v1067 = vmul.f32 %v959, %v959
  %v1068 = vmul.f32 %v964, %v964
  %v1069 = vmul.f32 %v969, %v969
  %v1070 = vmul.f32 %v974, %v974
  %v1071 = vmul.f32 %v979, %v979
  %v1072 = vmul.f32 %v984, %v984
  %v1073 = vmul.f32 %v989, %v989
  %v1074 = vmul.f32 %v994, %v994
  %v1075 = vmul.f32 %v999, %v999
  %v1076 = vmul.f32 %v1004, %v1004
  %v1077 = vmul.f32 %v1009, %v1009
  %v1078 = vmul.f32 %v1014, %v1014
  %v1079 = vmul.f32 %v1019, %v1019
  %v1080 = vmul.f32 %v1024, %v1024
  %v1081 = vadd.f32 %v1065, %v1066
  %v1082 = vadd.f32 %v1081, %v1067
  %v1083 = vadd.f32 %v1082, %v1068
  %v1084 = vadd.f32 %v1083, %v1069
  %v1085 = vadd.f32 %v1084, %v1070
  %v1086 = vadd.f32 %v1085, %v1071
  %v1087 = vadd.f32 %v1086, %v1072
  %v1088 = vadd.f32 %v1087, %v1073
  %v1089 = vadd.f32 %v1088, %v1074
  %v1090 = vadd.f32 %v1089, %v1075
  %v1091 = vadd.f32 %v1090, %v1076
  %v1092 = vadd.f32 %v1091, %v1077
  %v1093 = vadd.f32 %v1092, %v1078
  %v1094 = vadd.f32 %v1093, %v1079
  %v1095 = vadd.f32 %v1094, %v1080
  %v1096 = vrot.slane %v1095, 4
  %v1097 = vadd.f32 %v1095, %v1096
  %v1098 = vrot.slane %v1097, 2
  %v1099 = vadd.f32 %v1097, %v1098
  %v1100 = vrot.slane %v1099, 1
  %v1101 = vadd.f32 %v1099, %v1100
  %1102 = vst [vmem:[%s4] sm:$0xff] %v1101
  // Predicated region
  $region10: #{_lambda_.29} parent=0 // pred_check
    _
  $region11: #{_lambda_.29} parent=0 // pred_check_branch
    %1104 = sbr.rel (0) target = $region13
  $region12: #{_lambda_.29} parent=0 // pred_region
    _
  $region13: #{_lambda_.29} parent=0 // pred_fallthru
    _
  // Predicated region
  $region14: #{_lambda_.29} parent=0 // pred_check
    _
  $region15: #{_lambda_.29} parent=0 // pred_check_branch
    %1106 = sbr.rel (0) target = $region17
  $region16: #{_lambda_.29} parent=0 // pred_region
    _
  $region17: #{_lambda_.29} parent=0 // pred_fallthru
    _
  // Predicated region
  $region18: #{_lambda_.29} parent=0 // pred_check
    _
  $region19: #{_lambda_.29} parent=0 // pred_check_branch
    %1108 = sbr.rel (0) target = $region21
  $region20: #{_lambda_.29} parent=0 // pred_region
    _
  $region21: #{_lambda_.29} parent=0 // pred_fallthru
    _
  // Predicated region
  $region22: #{_lambda_.29} parent=0 // pred_check
    _
  $region23: #{_lambda_.29} parent=0 // pred_check_branch
    %1110 = sbr.rel (0) target = $region25
  $region24: #{_lambda_.29} parent=0 // pred_region
    _
  $region25: #{_lambda_.29} parent=0 // pred_fallthru
    _
  // Predicated region
  $region26: #{_lambda_.29} parent=0 // pred_check
    _
  $region27: #{_lambda_.29} parent=0 // pred_check_branch
    %1112 = sbr.rel (0) target = $region29
  $region28: #{_lambda_.29} parent=0 // pred_region
    _
  $region29: #{_lambda_.29} parent=0 // pred_fallthru
    _
  // Predicated region
  $region30: #{_lambda_.29} parent=0 // pred_check
    _
  $region31: #{_lambda_.29} parent=0 // pred_check_branch
    %1114 = sbr.rel (0) target = $region33
  $region32: #{_lambda_.29} parent=0 // pred_region
    _
  $region33: #{_lambda_.29} parent=0 // pred_fallthru
    _

// kernel: _lambda_.32
$region0: #{_lambda_.32}
  #allocation0 [shape = 'u32[]', space=smem, size = 0x4, offset = 0x4, fixed_abs, tag = 'smem constant byte address 0x4 - core index']
  #allocation1 [shape = 'u32[144,128]{1,0:T(1,128)}', space=vmem, size = 0x12000, scoped, tag = 'internal scratch']
  %s0 = inlined_call_operand.vmem [shape: f32[32,128], index: 0, kind: input, shape index: {}]
  %s1 = inlined_call_operand.vmem [shape: f32[128,128], index: 1, kind: input, shape index: {}]
  %s2 = inlined_call_operand.vmem [shape: f32[32,128], index: 2, kind: output, shape index: {0}]
  %s3 = inlined_call_operand.vmem [shape: f32[8,128], index: 3, kind: output, shape index: {1}]
  %s4 = inlined_call_operand.vmem [shape: f32[8,128], index: 4, kind: output, shape index: {2}]
  %5 = xla_tuple %s2, %s3, %s4
  %s6 = sld [smem:[#allocation0]]
  $region34: #{_lambda_.32} parent=0
    _
  %s8 = ssub.s32 1, %s6
  %s9 = scalar_select 0, %s8, %s6
  // Predicated region
  $region2: #{_lambda_.32} parent=0 // pred_check
    _
  $region3: #{_lambda_.32} parent=0 // pred_check_branch
    %11 = sbr.rel (0) target = $region5
  $region4: #{_lambda_.32} parent=0 // pred_region
    _
  $region5: #{_lambda_.32} parent=0 // pred_fallthru
    _
  // Predicated region
  $region6: #{_lambda_.32} parent=0 // pred_check
    _
  $region7: #{_lambda_.32} parent=0 // pred_check_branch
    %13 = sbr.rel (0) target = $region9
  $region8: #{_lambda_.32} parent=0 // pred_region
    _
  $region9: #{_lambda_.32} parent=0 // pred_fallthru
    _
  %v14 = vld [vmem:[%s0] sm:$0xff]
  %v15 = vld [vmem:[%s0 + $0x8] sm:$0xff]
  %v16 = vld [vmem:[%s0 + $0x10] sm:$0xff]
  %v17 = vld [vmem:[%s0 + $0x18] sm:$0xff]
  %v18 = vld [vmem:[%s1] sm:$0xff]
  %v19 = vld [vmem:[%s1 + $0x8] sm:$0xff]
  %v20 = vld [vmem:[%s1 + $0x10] sm:$0xff]
  %v21 = vld [vmem:[%s1 + $0x18] sm:$0xff]
  %v22 = vld [vmem:[%s1 + $0x20] sm:$0xff]
  %v23 = vld [vmem:[%s1 + $0x28] sm:$0xff]
  %v24 = vld [vmem:[%s1 + $0x30] sm:$0xff]
  %v25 = vld [vmem:[%s1 + $0x38] sm:$0xff]
  %v26 = vld [vmem:[%s1 + $0x40] sm:$0xff]
  %v27 = vld [vmem:[%s1 + $0x48] sm:$0xff]
  %v28 = vld [vmem:[%s1 + $0x50] sm:$0xff]
  %v29 = vld [vmem:[%s1 + $0x58] sm:$0xff]
  %v30 = vld [vmem:[%s1 + $0x60] sm:$0xff]
  %v31 = vld [vmem:[%s1 + $0x68] sm:$0xff]
  %v32 = vld [vmem:[%s1 + $0x70] sm:$0xff]
  %v33 = vld [vmem:[%s1 + $0x78] sm:$0xff]
  %34 = vmatprep.subr.mxu0 0.0
  %35 = vmatpush1.msra.mxu0 %v33
  %36 = vmatprep.subr.mxu0 0.0
  %37 = vmatpush1.msra.mxu0 %v32
  %38 = vmatprep.subr.mxu0 0.0
  %39 = vmatpush1.msra.mxu0 %v31
  %40 = vmatprep.subr.mxu0 0.0
  %41 = vmatpush1.msra.mxu0 %v30
  %42 = vmatprep.subr.mxu0 0.0
  %43 = vmatpush1.msra.mxu0 %v29
  %44 = vmatprep.subr.mxu0 0.0
  %45 = vmatpush1.msra.mxu0 %v28
  %46 = vmatprep.subr.mxu0 0.0
  %47 = vmatpush1.msra.mxu0 %v27
  %48 = vmatprep.subr.mxu0 0.0
  %49 = vmatpush1.msra.mxu0 %v26
  %50 = vmatprep.subr.mxu0 0.0
  %51 = vmatpush1.msra.mxu0 %v25
  %52 = vmatprep.subr.mxu0 0.0
  %53 = vmatpush1.msra.mxu0 %v24
  %54 = vmatprep.subr.mxu0 0.0
  %55 = vmatpush1.msra.mxu0 %v23
  %56 = vmatprep.subr.mxu0 0.0
  %57 = vmatpush1.msra.mxu0 %v22
  %58 = vmatprep.subr.mxu0 0.0
  %59 = vmatpush1.msra.mxu0 %v21
  %60 = vmatprep.subr.mxu0 0.0
  %61 = vmatpush1.msra.mxu0 %v20
  %62 = vmatprep.subr.mxu0 0.0
  %63 = vmatpush1.msra.mxu0 %v19
  %64 = vmatprep.subr.mxu0 0.0
  %65 = vmatpush1.msra.mxu0 %v18
  %66 = vmatprep.subr.mxu0 0.0
  %67 = vmatpush2.msra.mxu0 0.0
  %68 = vmatprep.subr.mxu0 0.0
  %69 = vmatpush2.msra.mxu0 0.0
  %70 = vmatprep.subr.mxu0 0.0
  %71 = vmatpush2.msra.mxu0 0.0
  %72 = vmatprep.subr.mxu0 0.0
  %73 = vmatpush2.msra.mxu0 0.0
  %74 = vmatprep.subr.mxu0 0.0
  %75 = vmatpush2.msra.mxu0 0.0
  %76 = vmatprep.subr.mxu0 0.0
  %77 = vmatpush2.msra.mxu0 0.0
  %78 = vmatprep.subr.mxu0 0.0
  %79 = vmatpush2.msra.mxu0 0.0
  %80 = vmatprep.subr.mxu0 0.0
  %81 = vmatpush2.msra.mxu0 0.0
  %82 = vmatprep.subr.mxu0 0.0
  %83 = vmatpush2.msra.mxu0 0.0
  %84 = vmatprep.subr.mxu0 0.0
  %85 = vmatpush2.msra.mxu0 0.0
  %86 = vmatprep.subr.mxu0 0.0
  %87 = vmatpush2.msra.mxu0 0.0
  %88 = vmatprep.subr.mxu0 0.0
  %89 = vmatpush2.msra.mxu0 0.0
  %90 = vmatprep.subr.mxu0 0.0
  %91 = vmatpush2.msra.mxu0 0.0
  %92 = vmatprep.subr.mxu0 0.0
  %93 = vmatpush2.msra.mxu0 0.0
  %94 = vmatprep.subr.mxu0 0.0
  %95 = vmatpush2.msra.mxu0 0.0
  %96 = vmatprep.subr.mxu0 0.0
  %97 = vmatpush2.msra.mxu0 0.0
  %98 = vmatprep.mubr.f32.mxu0 0.0
  %99 = vmatmul.mubr.f32.gmra.mxu0 %v14
  %v100 = vpop.f32.mrf.mxu0
  %v101 = vadd.f32 0.0, %v100
  %v102 = vpop.f32.mrf.mxu0
  %103 = vmatprep.mubr.f32.mxu0 0.0
  %104 = vmatmul.mubr.f32.gmra.mxu0 %v15
  %v105 = vpop.f32.mrf.mxu0
  %v106 = vadd.f32 0.0, %v105
  %v107 = vpop.f32.mrf.mxu0
  %108 = vmatprep.mubr.f32.mxu0 0.0
  %109 = vmatmul.mubr.f32.gmra.mxu0 %v16
  %v110 = vpop.f32.mrf.mxu0
  %v111 = vadd.f32 0.0, %v110
  %v112 = vpop.f32.mrf.mxu0
  %113 = vmatprep.mubr.f32.mxu0 0.0
  %114 = vmatmul.mubr.f32.gmra.mxu0 %v17
  %v115 = vpop.f32.mrf.mxu0
  %v116 = vadd.f32 0.0, %v115
  %v117 = vpop.f32.mrf.mxu0
  %118 = vdwg.mxu0
  %119 = vst [vmem:[%s2] sm:$0xff] %v101
  %120 = vst [vmem:[%s2 + $0x8] sm:$0xff] %v106
  %121 = vst [vmem:[%s2 + $0x10] sm:$0xff] %v111
  %122 = vst [vmem:[%s2 + $0x18] sm:$0xff] %v116
  %v123 = vadd.f32 %v101, %v106
  %v124 = vadd.f32 %v123, %v111
  %v125 = vadd.f32 %v124, %v116
  %v126 = vrot.slane %v125, 4
  %v127 = vadd.f32 %v125, %v126
  %v128 = vrot.slane %v127, 2
  %v129 = vadd.f32 %v127, %v128
  %v130 = vrot.slane %v129, 1
  %v131 = vadd.f32 %v129, %v130
  %132 = vst [vmem:[%s3] sm:$0xff] %v131
  %v133 = vmul.f32 %v101, %v101
  %v134 = vmul.f32 %v106, %v106
  %v135 = vmul.f32 %v111, %v111
  %v136 = vmul.f32 %v116, %v116
  %v137 = vadd.f32 %v133, %v134
  %v138 = vadd.f32 %v137, %v135
  %v139 = vadd.f32 %v138, %v136
  %v140 = vrot.slane %v139, 4
  %v141 = vadd.f32 %v139, %v140
  %v142 = vrot.slane %v141, 2
  %v143 = vadd.f32 %v141, %v142
  %v144 = vrot.slane %v143, 1
  %v145 = vadd.f32 %v143, %v144
  %146 = vst [vmem:[%s4] sm:$0xff] %v145
  // Predicated region
  $region10: #{_lambda_.32} parent=0 // pred_check
    _
  $region11: #{_lambda_.32} parent=0 // pred_check_branch
    %148 = sbr.rel (0) target = $region13
  $region12: #{_lambda_.32} parent=0 // pred_region
    _
  $region13: #{_lambda_.32} parent=0 // pred_fallthru
    _
  // Predicated region
  $region14: #{_lambda_.32} parent=0 // pred_check
    _
  $region15: #{_lambda_.32} parent=0 // pred_check_branch
    %150 = sbr.rel (0) target = $region17
  $region16: #{_lambda_.32} parent=0 // pred_region
    _
  $region17: #{_lambda_.32} parent=0 // pred_fallthru
    _
  // Predicated region
  $region18: #{_lambda_.32} parent=0 // pred_check
    _
  $region19: #{_lambda_.32} parent=0 // pred_check_branch
    %152 = sbr.rel (0) target = $region21
  $region20: #{_lambda_.32} parent=0 // pred_region
    _
  $region21: #{_lambda_.32} parent=0 // pred_fallthru
    _
  // Predicated region
  $region22: #{_lambda_.32} parent=0 // pred_check
    _
  $region23: #{_lambda_.32} parent=0 // pred_check_branch
    %154 = sbr.rel (0) target = $region25
  $region24: #{_lambda_.32} parent=0 // pred_region
    _
  $region25: #{_lambda_.32} parent=0 // pred_fallthru
    _
  // Predicated region
  $region26: #{_lambda_.32} parent=0 // pred_check
    _
  $region27: #{_lambda_.32} parent=0 // pred_check_branch
    %156 = sbr.rel (0) target = $region29
  $region28: #{_lambda_.32} parent=0 // pred_region
    _
  $region29: #{_lambda_.32} parent=0 // pred_fallthru
    _
  // Predicated region
  $region30: #{_lambda_.32} parent=0 // pred_check
    _
  $region31: #{_lambda_.32} parent=0 // pred_check_branch
    %158 = sbr.rel (0) target = $region33
  $region32: #{_lambda_.32} parent=0 // pred_region
    _
  $region33: #{_lambda_.32} parent=0 // pred_fallthru
    _

// kernel: _lambda_.31
$region0: #{_lambda_.31}
  #allocation0 [shape = 'u32[]', space=smem, size = 0x4, offset = 0x4, fixed_abs, tag = 'smem constant byte address 0x4 - core index']
  #allocation1 [shape = 'u32[144,128]{1,0:T(1,128)}', space=vmem, size = 0x12000, scoped, tag = 'internal scratch']
  %s0 = inlined_call_operand.vmem [shape: f32[128,1152], index: 0, kind: input, shape index: {}]
  %s1 = inlined_call_operand.vmem [shape: f32[1152,128], index: 1, kind: input, shape index: {}]
  %s2 = inlined_call_operand.vmem [shape: f32[128,128], index: 2, kind: input, shape index: {}]
  %s3 = inlined_call_operand.vmem [shape: f32[1,128], index: 3, kind: input, shape index: {}]
  %s4 = inlined_call_operand.vmem [shape: f32[1,128], index: 4, kind: input, shape index: {}]
  %s5 = inlined_call_operand.vmem [shape: f32[128,128], index: 5, kind: output, shape index: {0}]
  %s6 = inlined_call_operand.vmem [shape: f32[8,128], index: 6, kind: output, shape index: {1}]
  %s7 = inlined_call_operand.vmem [shape: f32[8,128], index: 7, kind: output, shape index: {2}]
  %8 = xla_tuple %s5, %s6, %s7
  %s9 = sld [smem:[#allocation0]]
  $region46: #{_lambda_.31} parent=0
    _
  %s11 = ssub.s32 1, %s9
  %s12 = scalar_select 0, %s11, %s9
  // Predicated region
  $region2: #{_lambda_.31} parent=0 // pred_check
    _
  $region3: #{_lambda_.31} parent=0 // pred_check_branch
    %14 = sbr.rel (0) target = $region5
  $region4: #{_lambda_.31} parent=0 // pred_region
    _
  $region5: #{_lambda_.31} parent=0 // pred_fallthru
    _
  // Predicated region
  $region6: #{_lambda_.31} parent=0 // pred_check
    _
  $region7: #{_lambda_.31} parent=0 // pred_check_branch
    %16 = sbr.rel (0) target = $region9
  $region8: #{_lambda_.31} parent=0 // pred_region
    _
  $region9: #{_lambda_.31} parent=0 // pred_fallthru
    _
  // Predicated region
  $region10: #{_lambda_.31} parent=0 // pred_check
    _
  $region11: #{_lambda_.31} parent=0 // pred_check_branch
    %18 = sbr.rel (0) target = $region13
  $region12: #{_lambda_.31} parent=0 // pred_region
    _
  $region13: #{_lambda_.31} parent=0 // pred_fallthru
    _
  // Predicated region
  $region14: #{_lambda_.31} parent=0 // pred_check
    _
  $region15: #{_lambda_.31} parent=0 // pred_check_branch
    %20 = sbr.rel (0) target = $region17
  $region16: #{_lambda_.31} parent=0 // pred_region
    _
  $region17: #{_lambda_.31} parent=0 // pred_fallthru
    _
  // Predicated region
  $region18: #{_lambda_.31} parent=0 // pred_check
    _
  $region19: #{_lambda_.31} parent=0 // pred_check_branch
    %22 = sbr.rel (0) target = $region21
  $region20: #{_lambda_.31} parent=0 // pred_region
    _
  $region21: #{_lambda_.31} parent=0 // pred_fallthru
    _
  %v23 = vld [vmem:[%s0] sm:$0xff]
  %v24 = vld [vmem:[%s0 + $0x8] sm:$0xff]
  %v25 = vld [vmem:[%s0 + $0x10] sm:$0xff]
  %v26 = vld [vmem:[%s0 + $0x18] sm:$0xff]
  %v27 = vld [vmem:[%s0 + $0x20] sm:$0xff]
  %v28 = vld [vmem:[%s0 + $0x28] sm:$0xff]
  %v29 = vld [vmem:[%s0 + $0x30] sm:$0xff]
  %v30 = vld [vmem:[%s0 + $0x38] sm:$0xff]
  %v31 = vld [vmem:[%s0 + $0x40] sm:$0xff]
  %v32 = vld [vmem:[%s0 + $0x48] sm:$0xff]
  %v33 = vld [vmem:[%s0 + $0x50] sm:$0xff]
  %v34 = vld [vmem:[%s0 + $0x58] sm:$0xff]
  %v35 = vld [vmem:[%s0 + $0x60] sm:$0xff]
  %v36 = vld [vmem:[%s0 + $0x68] sm:$0xff]
  %v37 = vld [vmem:[%s0 + $0x70] sm:$0xff]
  %v38 = vld [vmem:[%s0 + $0x78] sm:$0xff]
  %v39 = vld [vmem:[%s0 + $0x80] sm:$0xff]
  %v40 = vld [vmem:[%s0 + $0x88] sm:$0xff]
  %v41 = vld [vmem:[%s0 + $0x90] sm:$0xff]
  %v42 = vld [vmem:[%s0 + $0x98] sm:$0xff]
  %v43 = vld [vmem:[%s0 + $0xa0] sm:$0xff]
  %v44 = vld [vmem:[%s0 + $0xa8] sm:$0xff]
  %v45 = vld [vmem:[%s0 + $0xb0] sm:$0xff]
  %v46 = vld [vmem:[%s0 + $0xb8] sm:$0xff]
  %v47 = vld [vmem:[%s0 + $0xc0] sm:$0xff]
  %v48 = vld [vmem:[%s0 + $0xc8] sm:$0xff]
  %v49 = vld [vmem:[%s0 + $0xd0] sm:$0xff]
  %v50 = vld [vmem:[%s0 + $0xd8] sm:$0xff]
  %v51 = vld [vmem:[%s0 + $0xe0] sm:$0xff]
  %v52 = vld [vmem:[%s0 + $0xe8] sm:$0xff]
  %v53 = vld [vmem:[%s0 + $0xf0] sm:$0xff]
  %v54 = vld [vmem:[%s0 + $0xf8] sm:$0xff]
  %v55 = vld [vmem:[%s0 + $0x100] sm:$0xff]
  %v56 = vld [vmem:[%s0 + $0x108] sm:$0xff]
  %v57 = vld [vmem:[%s0 + $0x110] sm:$0xff]
  %v58 = vld [vmem:[%s0 + $0x118] sm:$0xff]
  %v59 = vld [vmem:[%s0 + $0x120] sm:$0xff]
  %v60 = vld [vmem:[%s0 + $0x128] sm:$0xff]
  %v61 = vld [vmem:[%s0 + $0x130] sm:$0xff]
  %v62 = vld [vmem:[%s0 + $0x138] sm:$0xff]
  %v63 = vld [vmem:[%s0 + $0x140] sm:$0xff]
  %v64 = vld [vmem:[%s0 + $0x148] sm:$0xff]
  %v65 = vld [vmem:[%s0 + $0x150] sm:$0xff]
  %v66 = vld [vmem:[%s0 + $0x158] sm:$0xff]
  %v67 = vld [vmem:[%s0 + $0x160] sm:$0xff]
  %v68 = vld [vmem:[%s0 + $0x168] sm:$0xff]
  %v69 = vld [vmem:[%s0 + $0x170] sm:$0xff]
  %v70 = vld [vmem:[%s0 + $0x178] sm:$0xff]
  %v71 = vld [vmem:[%s0 + $0x180] sm:$0xff]
  %v72 = vld [vmem:[%s0 + $0x188] sm:$0xff]
  %v73 = vld [vmem:[%s0 + $0x190] sm:$0xff]
  %v74 = vld [vmem:[%s0 + $0x198] sm:$0xff]
  %v75 = vld [vmem:[%s0 + $0x1a0] sm:$0xff]
  %v76 = vld [vmem:[%s0 + $0x1a8] sm:$0xff]
  %v77 = vld [vmem:[%s0 + $0x1b0] sm:$0xff]
  %v78 = vld [vmem:[%s0 + $0x1b8] sm:$0xff]
  %v79 = vld [vmem:[%s0 + $0x1c0] sm:$0xff]
  %v80 = vld [vmem:[%s0 + $0x1c8] sm:$0xff]
  %v81 = vld [vmem:[%s0 + $0x1d0] sm:$0xff]
  %v82 = vld [vmem:[%s0 + $0x1d8] sm:$0xff]
  %v83 = vld [vmem:[%s0 + $0x1e0] sm:$0xff]
  %v84 = vld [vmem:[%s0 + $0x1e8] sm:$0xff]
  %v85 = vld [vmem:[%s0 + $0x1f0] sm:$0xff]
  %v86 = vld [vmem:[%s0 + $0x1f8] sm:$0xff]
  %v87 = vld [vmem:[%s0 + $0x200] sm:$0xff]
  %v88 = vld [vmem:[%s0 + $0x208] sm:$0xff]
  %v89 = vld [vmem:[%s0 + $0x210] sm:$0xff]
  %v90 = vld [vmem:[%s0 + $0x218] sm:$0xff]
  %v91 = vld [vmem:[%s0 + $0x220] sm:$0xff]
  %v92 = vld [vmem:[%s0 + $0x228] sm:$0xff]
  %v93 = vld [vmem:[%s0 + $0x230] sm:$0xff]
  %v94 = vld [vmem:[%s0 + $0x238] sm:$0xff]
  %v95 = vld [vmem:[%s0 + $0x240] sm:$0xff]
  %v96 = vld [vmem:[%s0 + $0x248] sm:$0xff]
  %v97 = vld [vmem:[%s0 + $0x250] sm:$0xff]
  %v98 = vld [vmem:[%s0 + $0x258] sm:$0xff]
  %v99 = vld [vmem:[%s0 + $0x260] sm:$0xff]
  %v100 = vld [vmem:[%s0 + $0x268] sm:$0xff]
  %v101 = vld [vmem:[%s0 + $0x270] sm:$0xff]
  %v102 = vld [vmem:[%s0 + $0x278] sm:$0xff]
  %v103 = vld [vmem:[%s0 + $0x280] sm:$0xff]
  %v104 = vld [vmem:[%s0 + $0x288] sm:$0xff]
  %v105 = vld [vmem:[%s0 + $0x290] sm:$0xff]
  %v106 = vld [vmem:[%s0 + $0x298] sm:$0xff]
  %v107 = vld [vmem:[%s0 + $0x2a0] sm:$0xff]
  %v108 = vld [vmem:[%s0 + $0x2a8] sm:$0xff]
  %v109 = vld [vmem:[%s0 + $0x2b0] sm:$0xff]
  %v110 = vld [vmem:[%s0 + $0x2b8] sm:$0xff]
  %v111 = vld [vmem:[%s0 + $0x2c0] sm:$0xff]
  %v112 = vld [vmem:[%s0 + $0x2c8] sm:$0xff]
  %v113 = vld [vmem:[%s0 + $0x2d0] sm:$0xff]
  %v114 = vld [vmem:[%s0 + $0x2d8] sm:$0xff]
  %v115 = vld [vmem:[%s0 + $0x2e0] sm:$0xff]
  %v116 = vld [vmem:[%s0 + $0x2e8] sm:$0xff]
  %v117 = vld [vmem:[%s0 + $0x2f0] sm:$0xff]
  %v118 = vld [vmem:[%s0 + $0x2f8] sm:$0xff]
  %v119 = vld [vmem:[%s0 + $0x300] sm:$0xff]
  %v120 = vld [vmem:[%s0 + $0x308] sm:$0xff]
  %v121 = vld [vmem:[%s0 + $0x310] sm:$0xff]
  %v122 = vld [vmem:[%s0 + $0x318] sm:$0xff]
  %v123 = vld [vmem:[%s0 + $0x320] sm:$0xff]
  %v124 = vld [vmem:[%s0 + $0x328] sm:$0xff]
  %v125 = vld [vmem:[%s0 + $0x330] sm:$0xff]
  %v126 = vld [vmem:[%s0 + $0x338] sm:$0xff]
  %v127 = vld [vmem:[%s0 + $0x340] sm:$0xff]
  %v128 = vld [vmem:[%s0 + $0x348] sm:$0xff]
  %v129 = vld [vmem:[%s0 + $0x350] sm:$0xff]
  %v130 = vld [vmem:[%s0 + $0x358] sm:$0xff]
  %v131 = vld [vmem:[%s0 + $0x360] sm:$0xff]
  %v132 = vld [vmem:[%s0 + $0x368] sm:$0xff]
  %v133 = vld [vmem:[%s0 + $0x370] sm:$0xff]
  %v134 = vld [vmem:[%s0 + $0x378] sm:$0xff]
  %v135 = vld [vmem:[%s0 + $0x380] sm:$0xff]
  %v136 = vld [vmem:[%s0 + $0x388] sm:$0xff]
  %v137 = vld [vmem:[%s0 + $0x390] sm:$0xff]
  %v138 = vld [vmem:[%s0 + $0x398] sm:$0xff]
  %v139 = vld [vmem:[%s0 + $0x3a0] sm:$0xff]
  %v140 = vld [vmem:[%s0 + $0x3a8] sm:$0xff]
  %v141 = vld [vmem:[%s0 + $0x3b0] sm:$0xff]
  %v142 = vld [vmem:[%s0 + $0x3b8] sm:$0xff]
  %v143 = vld [vmem:[%s0 + $0x3c0] sm:$0xff]
  %v144 = vld [vmem:[%s0 + $0x3c8] sm:$0xff]
  %v145 = vld [vmem:[%s0 + $0x3d0] sm:$0xff]
  %v146 = vld [vmem:[%s0 + $0x3d8] sm:$0xff]
  %v147 = vld [vmem:[%s0 + $0x3e0] sm:$0xff]
  %v148 = vld [vmem:[%s0 + $0x3e8] sm:$0xff]
  %v149 = vld [vmem:[%s0 + $0x3f0] sm:$0xff]
  %v150 = vld [vmem:[%s0 + $0x3f8] sm:$0xff]
  %v151 = vld [vmem:[%s0 + $0x400] sm:$0xff]
  %v152 = vld [vmem:[%s0 + $0x408] sm:$0xff]
  %v153 = vld [vmem:[%s0 + $0x410] sm:$0xff]
  %v154 = vld [vmem:[%s0 + $0x418] sm:$0xff]
  %v155 = vld [vmem:[%s0 + $0x420] sm:$0xff]
  %v156 = vld [vmem:[%s0 + $0x428] sm:$0xff]
  %v157 = vld [vmem:[%s0 + $0x430] sm:$0xff]
  %v158 = vld [vmem:[%s0 + $0x438] sm:$0xff]
  %v159 = vld [vmem:[%s0 + $0x440] sm:$0xff]
  %v160 = vld [vmem:[%s0 + $0x448] sm:$0xff]
  %v161 = vld [vmem:[%s0 + $0x450] sm:$0xff]
  %v162 = vld [vmem:[%s0 + $0x458] sm:$0xff]
  %v163 = vld [vmem:[%s0 + $0x460] sm:$0xff]
  %v164 = vld [vmem:[%s0 + $0x468] sm:$0xff]
  %v165 = vld [vmem:[%s0 + $0x470] sm:$0xff]
  %v166 = vld [vmem:[%s0 + $0x478] sm:$0xff]
  %v167 = vld [vmem:[%s1] sm:$0xff]
  %v168 = vld [vmem:[%s1 + $0x8] sm:$0xff]
  %v169 = vld [vmem:[%s1 + $0x10] sm:$0xff]
  %v170 = vld [vmem:[%s1 + $0x18] sm:$0xff]
  %v171 = vld [vmem:[%s1 + $0x20] sm:$0xff]
  %v172 = vld [vmem:[%s1 + $0x28] sm:$0xff]
  %v173 = vld [vmem:[%s1 + $0x30] sm:$0xff]
  %v174 = vld [vmem:[%s1 + $0x38] sm:$0xff]
  %v175 = vld [vmem:[%s1 + $0x40] sm:$0xff]
  %v176 = vld [vmem:[%s1 + $0x48] sm:$0xff]
  %v177 = vld [vmem:[%s1 + $0x50] sm:$0xff]
  %v178 = vld [vmem:[%s1 + $0x58] sm:$0xff]
  %v179 = vld [vmem:[%s1 + $0x60] sm:$0xff]
  %v180 = vld [vmem:[%s1 + $0x68] sm:$0xff]
  %v181 = vld [vmem:[%s1 + $0x70] sm:$0xff]
  %v182 = vld [vmem:[%s1 + $0x78] sm:$0xff]
  %v183 = vld [vmem:[%s1 + $0x80] sm:$0xff]
  %v184 = vld [vmem:[%s1 + $0x88] sm:$0xff]
  %v185 = vld [vmem:[%s1 + $0x90] sm:$0xff]
  %v186 = vld [vmem:[%s1 + $0x98] sm:$0xff]
  %v187 = vld [vmem:[%s1 + $0xa0] sm:$0xff]
  %v188 = vld [vmem:[%s1 + $0xa8] sm:$0xff]
  %v189 = vld [vmem:[%s1 + $0xb0] sm:$0xff]
  %v190 = vld [vmem:[%s1 + $0xb8] sm:$0xff]
  %v191 = vld [vmem:[%s1 + $0xc0] sm:$0xff]
  %v192 = vld [vmem:[%s1 + $0xc8] sm:$0xff]
  %v193 = vld [vmem:[%s1 + $0xd0] sm:$0xff]
  %v194 = vld [vmem:[%s1 + $0xd8] sm:$0xff]
  %v195 = vld [vmem:[%s1 + $0xe0] sm:$0xff]
  %v196 = vld [vmem:[%s1 + $0xe8] sm:$0xff]
  %v197 = vld [vmem:[%s1 + $0xf0] sm:$0xff]
  %v198 = vld [vmem:[%s1 + $0xf8] sm:$0xff]
  %v199 = vld [vmem:[%s1 + $0x100] sm:$0xff]
  %v200 = vld [vmem:[%s1 + $0x108] sm:$0xff]
  %v201 = vld [vmem:[%s1 + $0x110] sm:$0xff]
  %v202 = vld [vmem:[%s1 + $0x118] sm:$0xff]
  %v203 = vld [vmem:[%s1 + $0x120] sm:$0xff]
  %v204 = vld [vmem:[%s1 + $0x128] sm:$0xff]
  %v205 = vld [vmem:[%s1 + $0x130] sm:$0xff]
  %v206 = vld [vmem:[%s1 + $0x138] sm:$0xff]
  %v207 = vld [vmem:[%s1 + $0x140] sm:$0xff]
  %v208 = vld [vmem:[%s1 + $0x148] sm:$0xff]
  %v209 = vld [vmem:[%s1 + $0x150] sm:$0xff]
  %v210 = vld [vmem:[%s1 + $0x158] sm:$0xff]
  %v211 = vld [vmem:[%s1 + $0x160] sm:$0xff]
  %v212 = vld [vmem:[%s1 + $0x168] sm:$0xff]
  %v213 = vld [vmem:[%s1 + $0x170] sm:$0xff]
  %v214 = vld [vmem:[%s1 + $0x178] sm:$0xff]
  %v215 = vld [vmem:[%s1 + $0x180] sm:$0xff]
  %v216 = vld [vmem:[%s1 + $0x188] sm:$0xff]
  %v217 = vld [vmem:[%s1 + $0x190] sm:$0xff]
  %v218 = vld [vmem:[%s1 + $0x198] sm:$0xff]
  %v219 = vld [vmem:[%s1 + $0x1a0] sm:$0xff]
  %v220 = vld [vmem:[%s1 + $0x1a8] sm:$0xff]
  %v221 = vld [vmem:[%s1 + $0x1b0] sm:$0xff]
  %v222 = vld [vmem:[%s1 + $0x1b8] sm:$0xff]
  %v223 = vld [vmem:[%s1 + $0x1c0] sm:$0xff]
  %v224 = vld [vmem:[%s1 + $0x1c8] sm:$0xff]
  %v225 = vld [vmem:[%s1 + $0x1d0] sm:$0xff]
  %v226 = vld [vmem:[%s1 + $0x1d8] sm:$0xff]
  %v227 = vld [vmem:[%s1 + $0x1e0] sm:$0xff]
  %v228 = vld [vmem:[%s1 + $0x1e8] sm:$0xff]
  %v229 = vld [vmem:[%s1 + $0x1f0] sm:$0xff]
  %v230 = vld [vmem:[%s1 + $0x1f8] sm:$0xff]
  %v231 = vld [vmem:[%s1 + $0x200] sm:$0xff]
  %v232 = vld [vmem:[%s1 + $0x208] sm:$0xff]
  %v233 = vld [vmem:[%s1 + $0x210] sm:$0xff]
  %v234 = vld [vmem:[%s1 + $0x218] sm:$0xff]
  %v235 = vld [vmem:[%s1 + $0x220] sm:$0xff]
  %v236 = vld [vmem:[%s1 + $0x228] sm:$0xff]
  %v237 = vld [vmem:[%s1 + $0x230] sm:$0xff]
  %v238 = vld [vmem:[%s1 + $0x238] sm:$0xff]
  %v239 = vld [vmem:[%s1 + $0x240] sm:$0xff]
  %v240 = vld [vmem:[%s1 + $0x248] sm:$0xff]
  %v241 = vld [vmem:[%s1 + $0x250] sm:$0xff]
  %v242 = vld [vmem:[%s1 + $0x258] sm:$0xff]
  %v243 = vld [vmem:[%s1 + $0x260] sm:$0xff]
  %v244 = vld [vmem:[%s1 + $0x268] sm:$0xff]
  %v245 = vld [vmem:[%s1 + $0x270] sm:$0xff]
  %v246 = vld [vmem:[%s1 + $0x278] sm:$0xff]
  %v247 = vld [vmem:[%s1 + $0x280] sm:$0xff]
  %v248 = vld [vmem:[%s1 + $0x288] sm:$0xff]
  %v249 = vld [vmem:[%s1 + $0x290] sm:$0xff]
  %v250 = vld [vmem:[%s1 + $0x298] sm:$0xff]
  %v251 = vld [vmem:[%s1 + $0x2a0] sm:$0xff]
  %v252 = vld [vmem:[%s1 + $0x2a8] sm:$0xff]
  %v253 = vld [vmem:[%s1 + $0x2b0] sm:$0xff]
  %v254 = vld [vmem:[%s1 + $0x2b8] sm:$0xff]
  %v255 = vld [vmem:[%s1 + $0x2c0] sm:$0xff]
  %v256 = vld [vmem:[%s1 + $0x2c8] sm:$0xff]
  %v257 = vld [vmem:[%s1 + $0x2d0] sm:$0xff]
  %v258 = vld [vmem:[%s1 + $0x2d8] sm:$0xff]
  %v259 = vld [vmem:[%s1 + $0x2e0] sm:$0xff]
  %v260 = vld [vmem:[%s1 + $0x2e8] sm:$0xff]
  %v261 = vld [vmem:[%s1 + $0x2f0] sm:$0xff]
  %v262 = vld [vmem:[%s1 + $0x2f8] sm:$0xff]
  %v263 = vld [vmem:[%s1 + $0x300] sm:$0xff]
  %v264 = vld [vmem:[%s1 + $0x308] sm:$0xff]
  %v265 = vld [vmem:[%s1 + $0x310] sm:$0xff]
  %v266 = vld [vmem:[%s1 + $0x318] sm:$0xff]
  %v267 = vld [vmem:[%s1 + $0x320] sm:$0xff]
  %v268 = vld [vmem:[%s1 + $0x328] sm:$0xff]
  %v269 = vld [vmem:[%s1 + $0x330] sm:$0xff]
  %v270 = vld [vmem:[%s1 + $0x338] sm:$0xff]
  %v271 = vld [vmem:[%s1 + $0x340] sm:$0xff]
  %v272 = vld [vmem:[%s1 + $0x348] sm:$0xff]
  %v273 = vld [vmem:[%s1 + $0x350] sm:$0xff]
  %v274 = vld [vmem:[%s1 + $0x358] sm:$0xff]
  %v275 = vld [vmem:[%s1 + $0x360] sm:$0xff]
  %v276 = vld [vmem:[%s1 + $0x368] sm:$0xff]
  %v277 = vld [vmem:[%s1 + $0x370] sm:$0xff]
  %v278 = vld [vmem:[%s1 + $0x378] sm:$0xff]
  %v279 = vld [vmem:[%s1 + $0x380] sm:$0xff]
  %v280 = vld [vmem:[%s1 + $0x388] sm:$0xff]
  %v281 = vld [vmem:[%s1 + $0x390] sm:$0xff]
  %v282 = vld [vmem:[%s1 + $0x398] sm:$0xff]
  %v283 = vld [vmem:[%s1 + $0x3a0] sm:$0xff]
  %v284 = vld [vmem:[%s1 + $0x3a8] sm:$0xff]
  %v285 = vld [vmem:[%s1 + $0x3b0] sm:$0xff]
  %v286 = vld [vmem:[%s1 + $0x3b8] sm:$0xff]
  %v287 = vld [vmem:[%s1 + $0x3c0] sm:$0xff]
  %v288 = vld [vmem:[%s1 + $0x3c8] sm:$0xff]
  %v289 = vld [vmem:[%s1 + $0x3d0] sm:$0xff]
  %v290 = vld [vmem:[%s1 + $0x3d8] sm:$0xff]
  %v291 = vld [vmem:[%s1 + $0x3e0] sm:$0xff]
  %v292 = vld [vmem:[%s1 + $0x3e8] sm:$0xff]
  %v293 = vld [vmem:[%s1 + $0x3f0] sm:$0xff]
  %v294 = vld [vmem:[%s1 + $0x3f8] sm:$0xff]
  %v295 = vld [vmem:[%s1 + $0x400] sm:$0xff]
  %v296 = vld [vmem:[%s1 + $0x408] sm:$0xff]
  %v297 = vld [vmem:[%s1 + $0x410] sm:$0xff]
  %v298 = vld [vmem:[%s1 + $0x418] sm:$0xff]
  %v299 = vld [vmem:[%s1 + $0x420] sm:$0xff]
  %v300 = vld [vmem:[%s1 + $0x428] sm:$0xff]
  %v301 = vld [vmem:[%s1 + $0x430] sm:$0xff]
  %v302 = vld [vmem:[%s1 + $0x438] sm:$0xff]
  %v303 = vld [vmem:[%s1 + $0x440] sm:$0xff]
  %v304 = vld [vmem:[%s1 + $0x448] sm:$0xff]
  %v305 = vld [vmem:[%s1 + $0x450] sm:$0xff]
  %v306 = vld [vmem:[%s1 + $0x458] sm:$0xff]
  %v307 = vld [vmem:[%s1 + $0x460] sm:$0xff]
  %v308 = vld [vmem:[%s1 + $0x468] sm:$0xff]
  %v309 = vld [vmem:[%s1 + $0x470] sm:$0xff]
  %v310 = vld [vmem:[%s1 + $0x478] sm:$0xff]
  %v311 = vld [vmem:[%s2] sm:$0xff]
  %v312 = vld [vmem:[%s2 + $0x8] sm:$0xff]
  %v313 = vld [vmem:[%s2 + $0x10] sm:$0xff]
  %v314 = vld [vmem:[%s2 + $0x18] sm:$0xff]
  %v315 = vld [vmem:[%s2 + $0x20] sm:$0xff]
  %v316 = vld [vmem:[%s2 + $0x28] sm:$0xff]
  %v317 = vld [vmem:[%s2 + $0x30] sm:$0xff]
  %v318 = vld [vmem:[%s2 + $0x38] sm:$0xff]
  %v319 = vld [vmem:[%s2 + $0x40] sm:$0xff]
  %v320 = vld [vmem:[%s2 + $0x48] sm:$0xff]
  %v321 = vld [vmem:[%s2 + $0x50] sm:$0xff]
  %v322 = vld [vmem:[%s2 + $0x58] sm:$0xff]
  %v323 = vld [vmem:[%s2 + $0x60] sm:$0xff]
  %v324 = vld [vmem:[%s2 + $0x68] sm:$0xff]
  %v325 = vld [vmem:[%s2 + $0x70] sm:$0xff]
  %v326 = vld [vmem:[%s2 + $0x78] sm:$0xff]
  %v327 = vld [vmem:[%s3] sm:$0x1]
  %v329 = vlaneseq
  %v330 = vshrl.u32 %v329, 7
  %v331 = vsub.s32 0, %v330
  %v332 = vrot.slane %v327, %v331
  %v334 = vmul.f32 %v311, %v332
  %v335 = vmul.f32 %v312, %v332
  %v336 = vmul.f32 %v313, %v332
  %v337 = vmul.f32 %v314, %v332
  %v338 = vmul.f32 %v315, %v332
  %v339 = vmul.f32 %v316, %v332
  %v340 = vmul.f32 %v317, %v332
  %v341 = vmul.f32 %v318, %v332
  %v342 = vmul.f32 %v319, %v332
  %v343 = vmul.f32 %v320, %v332
  %v344 = vmul.f32 %v321, %v332
  %v345 = vmul.f32 %v322, %v332
  %v346 = vmul.f32 %v323, %v332
  %v347 = vmul.f32 %v324, %v332
  %v348 = vmul.f32 %v325, %v332
  %v349 = vmul.f32 %v326, %v332
  %v350 = vld [vmem:[%s4] sm:$0x1]
  %v352 = vlaneseq
  %v353 = vshrl.u32 %v352, 7
  %v354 = vsub.s32 0, %v353
  %v355 = vrot.slane %v350, %v354
  %v357 = vadd.f32 %v334, %v355
  %v358 = vadd.f32 %v335, %v355
  %v359 = vadd.f32 %v336, %v355
  %v360 = vadd.f32 %v337, %v355
  %v361 = vadd.f32 %v338, %v355
  %v362 = vadd.f32 %v339, %v355
  %v363 = vadd.f32 %v340, %v355
  %v364 = vadd.f32 %v341, %v355
  %v365 = vadd.f32 %v342, %v355
  %v366 = vadd.f32 %v343, %v355
  %v367 = vadd.f32 %v344, %v355
  %v368 = vadd.f32 %v345, %v355
  %v369 = vadd.f32 %v346, %v355
  %v370 = vadd.f32 %v347, %v355
  %v371 = vadd.f32 %v348, %v355
  %v372 = vadd.f32 %v349, %v355
  %373 = vmatprep.subr.mxu0 0.0
  %374 = vmatpush1.msra.mxu0 %v182
  %375 = vmatprep.subr.mxu0 0.0
  %376 = vmatpush1.msra.mxu0 %v181
  %377 = vmatprep.subr.mxu0 0.0
  %378 = vmatpush1.msra.mxu0 %v180
  %379 = vmatprep.subr.mxu0 0.0
  %380 = vmatpush1.msra.mxu0 %v179
  %381 = vmatprep.subr.mxu0 0.0
  %382 = vmatpush1.msra.mxu0 %v178
  %383 = vmatprep.subr.mxu0 0.0
  %384 = vmatpush1.msra.mxu0 %v177
  %385 = vmatprep.subr.mxu0 0.0
  %386 = vmatpush1.msra.mxu0 %v176
  %387 = vmatprep.subr.mxu0 0.0
  %388 = vmatpush1.msra.mxu0 %v175
  %389 = vmatprep.subr.mxu0 0.0
  %390 = vmatpush1.msra.mxu0 %v174
  %391 = vmatprep.subr.mxu0 0.0
  %392 = vmatpush1.msra.mxu0 %v173
  %393 = vmatprep.subr.mxu0 0.0
  %394 = vmatpush1.msra.mxu0 %v172
  %395 = vmatprep.subr.mxu0 0.0
  %396 = vmatpush1.msra.mxu0 %v171
  %397 = vmatprep.subr.mxu0 0.0
  %398 = vmatpush1.msra.mxu0 %v170
  %399 = vmatprep.subr.mxu0 0.0
  %400 = vmatpush1.msra.mxu0 %v169
  %401 = vmatprep.subr.mxu0 0.0
  %402 = vmatpush1.msra.mxu0 %v168
  %403 = vmatprep.subr.mxu0 0.0
  %404 = vmatpush1.msra.mxu0 %v167
  %405 = vmatprep.subr.mxu0 0.0
  %406 = vmatpush2.msra.mxu0 %v198
  %407 = vmatprep.subr.mxu0 0.0
  %408 = vmatpush2.msra.mxu0 %v197
  %409 = vmatprep.subr.mxu0 0.0
  %410 = vmatpush2.msra.mxu0 %v196
  %411 = vmatprep.subr.mxu0 0.0
  %412 = vmatpush2.msra.mxu0 %v195
  %413 = vmatprep.subr.mxu0 0.0
  %414 = vmatpush2.msra.mxu0 %v194
  %415 = vmatprep.subr.mxu0 0.0
  %416 = vmatpush2.msra.mxu0 %v193
  %417 = vmatprep.subr.mxu0 0.0
  %418 = vmatpush2.msra.mxu0 %v192
  %419 = vmatprep.subr.mxu0 0.0
  %420 = vmatpush2.msra.mxu0 %v191
  %421 = vmatprep.subr.mxu0 0.0
  %422 = vmatpush2.msra.mxu0 %v190
  %423 = vmatprep.subr.mxu0 0.0
  %424 = vmatpush2.msra.mxu0 %v189
  %425 = vmatprep.subr.mxu0 0.0
  %426 = vmatpush2.msra.mxu0 %v188
  %427 = vmatprep.subr.mxu0 0.0
  %428 = vmatpush2.msra.mxu0 %v187
  %429 = vmatprep.subr.mxu0 0.0
  %430 = vmatpush2.msra.mxu0 %v186
  %431 = vmatprep.subr.mxu0 0.0
  %432 = vmatpush2.msra.mxu0 %v185
  %433 = vmatprep.subr.mxu0 0.0
  %434 = vmatpush2.msra.mxu0 %v184
  %435 = vmatprep.subr.mxu0 0.0
  %436 = vmatpush2.msra.mxu0 %v183
  %437 = vmatprep.mubr.f32.mxu0 %v24
  %438 = vmatmul.mubr.f32.gmra.mxu0 %v23
  %v439 = vpop.f32.mrf.mxu0
  %v440 = vadd.f32 %v357, %v439
  %v441 = vpop.f32.mrf.mxu0
  %442 = vmatprep.mubr.f32.mxu0 %v33
  %443 = vmatmul.mubr.f32.gmra.mxu0 %v32
  %v444 = vpop.f32.mrf.mxu0
  %v445 = vadd.f32 %v358, %v444
  %v446 = vpop.f32.mrf.mxu0
  %447 = vmatprep.mubr.f32.mxu0 %v42
  %448 = vmatmul.mubr.f32.gmra.mxu0 %v41
  %v449 = vpop.f32.mrf.mxu0
  %v450 = vadd.f32 %v359, %v449
  %v451 = vpop.f32.mrf.mxu0
  %452 = vmatprep.mubr.f32.mxu0 %v51
  %453 = vmatmul.mubr.f32.gmra.mxu0 %v50
  %v454 = vpop.f32.mrf.mxu0
  %v455 = vadd.f32 %v360, %v454
  %v456 = vpop.f32.mrf.mxu0
  %457 = vmatprep.mubr.f32.mxu0 %v60
  %458 = vmatmul.mubr.f32.gmra.mxu0 %v59
  %v459 = vpop.f32.mrf.mxu0
  %v460 = vadd.f32 %v361, %v459
  %v461 = vpop.f32.mrf.mxu0
  %462 = vmatprep.mubr.f32.mxu0 %v69
  %463 = vmatmul.mubr.f32.gmra.mxu0 %v68
  %v464 = vpop.f32.mrf.mxu0
  %v465 = vadd.f32 %v362, %v464
  %v466 = vpop.f32.mrf.mxu0
  %467 = vmatprep.mubr.f32.mxu0 %v78
  %468 = vmatmul.mubr.f32.gmra.mxu0 %v77
  %v469 = vpop.f32.mrf.mxu0
  %v470 = vadd.f32 %v363, %v469
  %v471 = vpop.f32.mrf.mxu0
  %472 = vmatprep.mubr.f32.mxu0 %v87
  %473 = vmatmul.mubr.f32.gmra.mxu0 %v86
  %v474 = vpop.f32.mrf.mxu0
  %v475 = vadd.f32 %v364, %v474
  %v476 = vpop.f32.mrf.mxu0
  %477 = vmatprep.mubr.f32.mxu0 %v96
  %478 = vmatmul.mubr.f32.gmra.mxu0 %v95
  %v479 = vpop.f32.mrf.mxu0
  %v480 = vadd.f32 %v365, %v479
  %v481 = vpop.f32.mrf.mxu0
  %482 = vmatprep.mubr.f32.mxu0 %v105
  %483 = vmatmul.mubr.f32.gmra.mxu0 %v104
  %v484 = vpop.f32.mrf.mxu0
  %v485 = vadd.f32 %v366, %v484
  %v486 = vpop.f32.mrf.mxu0
  %487 = vmatprep.mubr.f32.mxu0 %v114
  %488 = vmatmul.mubr.f32.gmra.mxu0 %v113
  %v489 = vpop.f32.mrf.mxu0
  %v490 = vadd.f32 %v367, %v489
  %v491 = vpop.f32.mrf.mxu0
  %492 = vmatprep.mubr.f32.mxu0 %v123
  %493 = vmatmul.mubr.f32.gmra.mxu0 %v122
  %v494 = vpop.f32.mrf.mxu0
  %v495 = vadd.f32 %v368, %v494
  %v496 = vpop.f32.mrf.mxu0
  %497 = vmatprep.mubr.f32.mxu0 %v132
  %498 = vmatmul.mubr.f32.gmra.mxu0 %v131
  %v499 = vpop.f32.mrf.mxu0
  %v500 = vadd.f32 %v369, %v499
  %v501 = vpop.f32.mrf.mxu0
  %502 = vmatprep.mubr.f32.mxu0 %v141
  %503 = vmatmul.mubr.f32.gmra.mxu0 %v140
  %v504 = vpop.f32.mrf.mxu0
  %v505 = vadd.f32 %v370, %v504
  %v506 = vpop.f32.mrf.mxu0
  %507 = vmatprep.mubr.f32.mxu0 %v150
  %508 = vmatmul.mubr.f32.gmra.mxu0 %v149
  %v509 = vpop.f32.mrf.mxu0
  %v510 = vadd.f32 %v371, %v509
  %v511 = vpop.f32.mrf.mxu0
  %512 = vmatprep.mubr.f32.mxu0 %v159
  %513 = vmatmul.mubr.f32.gmra.mxu0 %v158
  %v514 = vpop.f32.mrf.mxu0
  %v515 = vadd.f32 %v372, %v514
  %v516 = vpop.f32.mrf.mxu0
  %517 = vdwg.mxu0
  %518 = vmatprep.subr.mxu0 0.0
  %519 = vmatpush1.msra.mxu0 %v214
  %520 = vmatprep.subr.mxu0 0.0
  %521 = vmatpush1.msra.mxu0 %v213
  %522 = vmatprep.subr.mxu0 0.0
  %523 = vmatpush1.msra.mxu0 %v212
  %524 = vmatprep.subr.mxu0 0.0
  %525 = vmatpush1.msra.mxu0 %v211
  %526 = vmatprep.subr.mxu0 0.0
  %527 = vmatpush1.msra.mxu0 %v210
  %528 = vmatprep.subr.mxu0 0.0
  %529 = vmatpush1.msra.mxu0 %v209
  %530 = vmatprep.subr.mxu0 0.0
  %531 = vmatpush1.msra.mxu0 %v208
  %532 = vmatprep.subr.mxu0 0.0
  %533 = vmatpush1.msra.mxu0 %v207
  %534 = vmatprep.subr.mxu0 0.0
  %535 = vmatpush1.msra.mxu0 %v206
  %536 = vmatprep.subr.mxu0 0.0
  %537 = vmatpush1.msra.mxu0 %v205
  %538 = vmatprep.subr.mxu0 0.0
  %539 = vmatpush1.msra.mxu0 %v204
  %540 = vmatprep.subr.mxu0 0.0
  %541 = vmatpush1.msra.mxu0 %v203
  %542 = vmatprep.subr.mxu0 0.0
  %543 = vmatpush1.msra.mxu0 %v202
  %544 = vmatprep.subr.mxu0 0.0
  %545 = vmatpush1.msra.mxu0 %v201
  %546 = vmatprep.subr.mxu0 0.0
  %547 = vmatpush1.msra.mxu0 %v200
  %548 = vmatprep.subr.mxu0 0.0
  %549 = vmatpush1.msra.mxu0 %v199
  %550 = vmatprep.subr.mxu0 0.0
  %551 = vmatpush2.msra.mxu0 %v230
  %552 = vmatprep.subr.mxu0 0.0
  %553 = vmatpush2.msra.mxu0 %v229
  %554 = vmatprep.subr.mxu0 0.0
  %555 = vmatpush2.msra.mxu0 %v228
  %556 = vmatprep.subr.mxu0 0.0
  %557 = vmatpush2.msra.mxu0 %v227
  %558 = vmatprep.subr.mxu0 0.0
  %559 = vmatpush2.msra.mxu0 %v226
  %560 = vmatprep.subr.mxu0 0.0
  %561 = vmatpush2.msra.mxu0 %v225
  %562 = vmatprep.subr.mxu0 0.0
  %563 = vmatpush2.msra.mxu0 %v224
  %564 = vmatprep.subr.mxu0 0.0
  %565 = vmatpush2.msra.mxu0 %v223
  %566 = vmatprep.subr.mxu0 0.0
  %567 = vmatpush2.msra.mxu0 %v222
  %568 = vmatprep.subr.mxu0 0.0
  %569 = vmatpush2.msra.mxu0 %v221
  %570 = vmatprep.subr.mxu0 0.0
  %571 = vmatpush2.msra.mxu0 %v220
  %572 = vmatprep.subr.mxu0 0.0
  %573 = vmatpush2.msra.mxu0 %v219
  %574 = vmatprep.subr.mxu0 0.0
  %575 = vmatpush2.msra.mxu0 %v218
  %576 = vmatprep.subr.mxu0 0.0
  %577 = vmatpush2.msra.mxu0 %v217
  %578 = vmatprep.subr.mxu0 0.0
  %579 = vmatpush2.msra.mxu0 %v216
  %580 = vmatprep.subr.mxu0 0.0
  %581 = vmatpush2.msra.mxu0 %v215
  %582 = vmatprep.mubr.f32.mxu0 %v26
  %583 = vmatmul.mubr.f32.gmra.mxu0 %v25
  %v584 = vpop.f32.mrf.mxu0
  %v585 = vadd.f32 %v440, %v584
  %v586 = vpop.f32.mrf.mxu0
  %587 = vmatprep.mubr.f32.mxu0 %v35
  %588 = vmatmul.mubr.f32.gmra.mxu0 %v34
  %v589 = vpop.f32.mrf.mxu0
  %v590 = vadd.f32 %v445, %v589
  %v591 = vpop.f32.mrf.mxu0
  %592 = vmatprep.mubr.f32.mxu0 %v44
  %593 = vmatmul.mubr.f32.gmra.mxu0 %v43
  %v594 = vpop.f32.mrf.mxu0
  %v595 = vadd.f32 %v450, %v594
  %v596 = vpop.f32.mrf.mxu0
  %597 = vmatprep.mubr.f32.mxu0 %v53
  %598 = vmatmul.mubr.f32.gmra.mxu0 %v52
  %v599 = vpop.f32.mrf.mxu0
  %v600 = vadd.f32 %v455, %v599
  %v601 = vpop.f32.mrf.mxu0
  %602 = vmatprep.mubr.f32.mxu0 %v62
  %603 = vmatmul.mubr.f32.gmra.mxu0 %v61
  %v604 = vpop.f32.mrf.mxu0
  %v605 = vadd.f32 %v460, %v604
  %v606 = vpop.f32.mrf.mxu0
  %607 = vmatprep.mubr.f32.mxu0 %v71
  %608 = vmatmul.mubr.f32.gmra.mxu0 %v70
  %v609 = vpop.f32.mrf.mxu0
  %v610 = vadd.f32 %v465, %v609
  %v611 = vpop.f32.mrf.mxu0
  %612 = vmatprep.mubr.f32.mxu0 %v80
  %613 = vmatmul.mubr.f32.gmra.mxu0 %v79
  %v614 = vpop.f32.mrf.mxu0
  %v615 = vadd.f32 %v470, %v614
  %v616 = vpop.f32.mrf.mxu0
  %617 = vmatprep.mubr.f32.mxu0 %v89
  %618 = vmatmul.mubr.f32.gmra.mxu0 %v88
  %v619 = vpop.f32.mrf.mxu0
  %v620 = vadd.f32 %v475, %v619
  %v621 = vpop.f32.mrf.mxu0
  %622 = vmatprep.mubr.f32.mxu0 %v98
  %623 = vmatmul.mubr.f32.gmra.mxu0 %v97
  %v624 = vpop.f32.mrf.mxu0
  %v625 = vadd.f32 %v480, %v624
  %v626 = vpop.f32.mrf.mxu0
  %627 = vmatprep.mubr.f32.mxu0 %v107
  %628 = vmatmul.mubr.f32.gmra.mxu0 %v106
  %v629 = vpop.f32.mrf.mxu0
  %v630 = vadd.f32 %v485, %v629
  %v631 = vpop.f32.mrf.mxu0
  %632 = vmatprep.mubr.f32.mxu0 %v116
  %633 = vmatmul.mubr.f32.gmra.mxu0 %v115
  %v634 = vpop.f32.mrf.mxu0
  %v635 = vadd.f32 %v490, %v634
  %v636 = vpop.f32.mrf.mxu0
  %637 = vmatprep.mubr.f32.mxu0 %v125
  %638 = vmatmul.mubr.f32.gmra.mxu0 %v124
  %v639 = vpop.f32.mrf.mxu0
  %v640 = vadd.f32 %v495, %v639
  %v641 = vpop.f32.mrf.mxu0
  %642 = vmatprep.mubr.f32.mxu0 %v134
  %643 = vmatmul.mubr.f32.gmra.mxu0 %v133
  %v644 = vpop.f32.mrf.mxu0
  %v645 = vadd.f32 %v500, %v644
  %v646 = vpop.f32.mrf.mxu0
  %647 = vmatprep.mubr.f32.mxu0 %v143
  %648 = vmatmul.mubr.f32.gmra.mxu0 %v142
  %v649 = vpop.f32.mrf.mxu0
  %v650 = vadd.f32 %v505, %v649
  %v651 = vpop.f32.mrf.mxu0
  %652 = vmatprep.mubr.f32.mxu0 %v152
  %653 = vmatmul.mubr.f32.gmra.mxu0 %v151
  %v654 = vpop.f32.mrf.mxu0
  %v655 = vadd.f32 %v510, %v654
  %v656 = vpop.f32.mrf.mxu0
  %657 = vmatprep.mubr.f32.mxu0 %v161
  %658 = vmatmul.mubr.f32.gmra.mxu0 %v160
  %v659 = vpop.f32.mrf.mxu0
  %v660 = vadd.f32 %v515, %v659
  %v661 = vpop.f32.mrf.mxu0
  %662 = vdwg.mxu0
  %663 = vmatprep.subr.mxu0 0.0
  %664 = vmatpush1.msra.mxu0 %v246
  %665 = vmatprep.subr.mxu0 0.0
  %666 = vmatpush1.msra.mxu0 %v245
  %667 = vmatprep.subr.mxu0 0.0
  %668 = vmatpush1.msra.mxu0 %v244
  %669 = vmatprep.subr.mxu0 0.0
  %670 = vmatpush1.msra.mxu0 %v243
  %671 = vmatprep.subr.mxu0 0.0
  %672 = vmatpush1.msra.mxu0 %v242
  %673 = vmatprep.subr.mxu0 0.0
  %674 = vmatpush1.msra.mxu0 %v241
  %675 = vmatprep.subr.mxu0 0.0
  %676 = vmatpush1.msra.mxu0 %v240
  %677 = vmatprep.subr.mxu0 0.0
  %678 = vmatpush1.msra.mxu0 %v239
  %679 = vmatprep.subr.mxu0 0.0
  %680 = vmatpush1.msra.mxu0 %v238
  %681 = vmatprep.subr.mxu0 0.0
  %682 = vmatpush1.msra.mxu0 %v237
  %683 = vmatprep.subr.mxu0 0.0
  %684 = vmatpush1.msra.mxu0 %v236
  %685 = vmatprep.subr.mxu0 0.0
  %686 = vmatpush1.msra.mxu0 %v235
  %687 = vmatprep.subr.mxu0 0.0
  %688 = vmatpush1.msra.mxu0 %v234
  %689 = vmatprep.subr.mxu0 0.0
  %690 = vmatpush1.msra.mxu0 %v233
  %691 = vmatprep.subr.mxu0 0.0
  %692 = vmatpush1.msra.mxu0 %v232
  %693 = vmatprep.subr.mxu0 0.0
  %694 = vmatpush1.msra.mxu0 %v231
  %695 = vmatprep.subr.mxu0 0.0
  %696 = vmatpush2.msra.mxu0 %v262
  %697 = vmatprep.subr.mxu0 0.0
  %698 = vmatpush2.msra.mxu0 %v261
  %699 = vmatprep.subr.mxu0 0.0
  %700 = vmatpush2.msra.mxu0 %v260
  %701 = vmatprep.subr.mxu0 0.0
  %702 = vmatpush2.msra.mxu0 %v259
  %703 = vmatprep.subr.mxu0 0.0
  %704 = vmatpush2.msra.mxu0 %v258
  %705 = vmatprep.subr.mxu0 0.0
  %706 = vmatpush2.msra.mxu0 %v257
  %707 = vmatprep.subr.mxu0 0.0
  %708 = vmatpush2.msra.mxu0 %v256
  %709 = vmatprep.subr.mxu0 0.0
  %710 = vmatpush2.msra.mxu0 %v255
  %711 = vmatprep.subr.mxu0 0.0
  %712 = vmatpush2.msra.mxu0 %v254
  %713 = vmatprep.subr.mxu0 0.0
  %714 = vmatpush2.msra.mxu0 %v253
  %715 = vmatprep.subr.mxu0 0.0
  %716 = vmatpush2.msra.mxu0 %v252
  %717 = vmatprep.subr.mxu0 0.0
  %718 = vmatpush2.msra.mxu0 %v251
  %719 = vmatprep.subr.mxu0 0.0
  %720 = vmatpush2.msra.mxu0 %v250
  %721 = vmatprep.subr.mxu0 0.0
  %722 = vmatpush2.msra.mxu0 %v249
  %723 = vmatprep.subr.mxu0 0.0
  %724 = vmatpush2.msra.mxu0 %v248
  %725 = vmatprep.subr.mxu0 0.0
  %726 = vmatpush2.msra.mxu0 %v247
  %727 = vmatprep.mubr.f32.mxu0 %v28
  %728 = vmatmul.mubr.f32.gmra.mxu0 %v27
  %v729 = vpop.f32.mrf.mxu0
  %v730 = vadd.f32 %v585, %v729
  %v731 = vpop.f32.mrf.mxu0
  %732 = vmatprep.mubr.f32.mxu0 %v37
  %733 = vmatmul.mubr.f32.gmra.mxu0 %v36
  %v734 = vpop.f32.mrf.mxu0
  %v735 = vadd.f32 %v590, %v734
  %v736 = vpop.f32.mrf.mxu0
  %737 = vmatprep.mubr.f32.mxu0 %v46
  %738 = vmatmul.mubr.f32.gmra.mxu0 %v45
  %v739 = vpop.f32.mrf.mxu0
  %v740 = vadd.f32 %v595, %v739
  %v741 = vpop.f32.mrf.mxu0
  %742 = vmatprep.mubr.f32.mxu0 %v55
  %743 = vmatmul.mubr.f32.gmra.mxu0 %v54
  %v744 = vpop.f32.mrf.mxu0
  %v745 = vadd.f32 %v600, %v744
  %v746 = vpop.f32.mrf.mxu0
  %747 = vmatprep.mubr.f32.mxu0 %v64
  %748 = vmatmul.mubr.f32.gmra.mxu0 %v63
  %v749 = vpop.f32.mrf.mxu0
  %v750 = vadd.f32 %v605, %v749
  %v751 = vpop.f32.mrf.mxu0
  %752 = vmatprep.mubr.f32.mxu0 %v73
  %753 = vmatmul.mubr.f32.gmra.mxu0 %v72
  %v754 = vpop.f32.mrf.mxu0
  %v755 = vadd.f32 %v610, %v754
  %v756 = vpop.f32.mrf.mxu0
  %757 = vmatprep.mubr.f32.mxu0 %v82
  %758 = vmatmul.mubr.f32.gmra.mxu0 %v81
  %v759 = vpop.f32.mrf.mxu0
  %v760 = vadd.f32 %v615, %v759
  %v761 = vpop.f32.mrf.mxu0
  %762 = vmatprep.mubr.f32.mxu0 %v91
  %763 = vmatmul.mubr.f32.gmra.mxu0 %v90
  %v764 = vpop.f32.mrf.mxu0
  %v765 = vadd.f32 %v620, %v764
  %v766 = vpop.f32.mrf.mxu0
  %767 = vmatprep.mubr.f32.mxu0 %v100
  %768 = vmatmul.mubr.f32.gmra.mxu0 %v99
  %v769 = vpop.f32.mrf.mxu0
  %v770 = vadd.f32 %v625, %v769
  %v771 = vpop.f32.mrf.mxu0
  %772 = vmatprep.mubr.f32.mxu0 %v109
  %773 = vmatmul.mubr.f32.gmra.mxu0 %v108
  %v774 = vpop.f32.mrf.mxu0
  %v775 = vadd.f32 %v630, %v774
  %v776 = vpop.f32.mrf.mxu0
  %777 = vmatprep.mubr.f32.mxu0 %v118
  %778 = vmatmul.mubr.f32.gmra.mxu0 %v117
  %v779 = vpop.f32.mrf.mxu0
  %v780 = vadd.f32 %v635, %v779
  %v781 = vpop.f32.mrf.mxu0
  %782 = vmatprep.mubr.f32.mxu0 %v127
  %783 = vmatmul.mubr.f32.gmra.mxu0 %v126
  %v784 = vpop.f32.mrf.mxu0
  %v785 = vadd.f32 %v640, %v784
  %v786 = vpop.f32.mrf.mxu0
  %787 = vmatprep.mubr.f32.mxu0 %v136
  %788 = vmatmul.mubr.f32.gmra.mxu0 %v135
  %v789 = vpop.f32.mrf.mxu0
  %v790 = vadd.f32 %v645, %v789
  %v791 = vpop.f32.mrf.mxu0
  %792 = vmatprep.mubr.f32.mxu0 %v145
  %793 = vmatmul.mubr.f32.gmra.mxu0 %v144
  %v794 = vpop.f32.mrf.mxu0
  %v795 = vadd.f32 %v650, %v794
  %v796 = vpop.f32.mrf.mxu0
  %797 = vmatprep.mubr.f32.mxu0 %v154
  %798 = vmatmul.mubr.f32.gmra.mxu0 %v153
  %v799 = vpop.f32.mrf.mxu0
  %v800 = vadd.f32 %v655, %v799
  %v801 = vpop.f32.mrf.mxu0
  %802 = vmatprep.mubr.f32.mxu0 %v163
  %803 = vmatmul.mubr.f32.gmra.mxu0 %v162
  %v804 = vpop.f32.mrf.mxu0
  %v805 = vadd.f32 %v660, %v804
  %v806 = vpop.f32.mrf.mxu0
  %807 = vdwg.mxu0
  %808 = vmatprep.subr.mxu0 0.0
  %809 = vmatpush1.msra.mxu0 %v278
  %810 = vmatprep.subr.mxu0 0.0
  %811 = vmatpush1.msra.mxu0 %v277
  %812 = vmatprep.subr.mxu0 0.0
  %813 = vmatpush1.msra.mxu0 %v276
  %814 = vmatprep.subr.mxu0 0.0
  %815 = vmatpush1.msra.mxu0 %v275
  %816 = vmatprep.subr.mxu0 0.0
  %817 = vmatpush1.msra.mxu0 %v274
  %818 = vmatprep.subr.mxu0 0.0
  %819 = vmatpush1.msra.mxu0 %v273
  %820 = vmatprep.subr.mxu0 0.0
  %821 = vmatpush1.msra.mxu0 %v272
  %822 = vmatprep.subr.mxu0 0.0
  %823 = vmatpush1.msra.mxu0 %v271
  %824 = vmatprep.subr.mxu0 0.0
  %825 = vmatpush1.msra.mxu0 %v270
  %826 = vmatprep.subr.mxu0 0.0
  %827 = vmatpush1.msra.mxu0 %v269
  %828 = vmatprep.subr.mxu0 0.0
  %829 = vmatpush1.msra.mxu0 %v268
  %830 = vmatprep.subr.mxu0 0.0
  %831 = vmatpush1.msra.mxu0 %v267
  %832 = vmatprep.subr.mxu0 0.0
  %833 = vmatpush1.msra.mxu0 %v266
  %834 = vmatprep.subr.mxu0 0.0
  %835 = vmatpush1.msra.mxu0 %v265
  %836 = vmatprep.subr.mxu0 0.0
  %837 = vmatpush1.msra.mxu0 %v264
  %838 = vmatprep.subr.mxu0 0.0
  %839 = vmatpush1.msra.mxu0 %v263
  %840 = vmatprep.subr.mxu0 0.0
  %841 = vmatpush2.msra.mxu0 %v294
  %842 = vmatprep.subr.mxu0 0.0
  %843 = vmatpush2.msra.mxu0 %v293
  %844 = vmatprep.subr.mxu0 0.0
  %845 = vmatpush2.msra.mxu0 %v292
  %846 = vmatprep.subr.mxu0 0.0
  %847 = vmatpush2.msra.mxu0 %v291
  %848 = vmatprep.subr.mxu0 0.0
  %849 = vmatpush2.msra.mxu0 %v290
  %850 = vmatprep.subr.mxu0 0.0
  %851 = vmatpush2.msra.mxu0 %v289
  %852 = vmatprep.subr.mxu0 0.0
  %853 = vmatpush2.msra.mxu0 %v288
  %854 = vmatprep.subr.mxu0 0.0
  %855 = vmatpush2.msra.mxu0 %v287
  %856 = vmatprep.subr.mxu0 0.0
  %857 = vmatpush2.msra.mxu0 %v286
  %858 = vmatprep.subr.mxu0 0.0
  %859 = vmatpush2.msra.mxu0 %v285
  %860 = vmatprep.subr.mxu0 0.0
  %861 = vmatpush2.msra.mxu0 %v284
  %862 = vmatprep.subr.mxu0 0.0
  %863 = vmatpush2.msra.mxu0 %v283
  %864 = vmatprep.subr.mxu0 0.0
  %865 = vmatpush2.msra.mxu0 %v282
  %866 = vmatprep.subr.mxu0 0.0
  %867 = vmatpush2.msra.mxu0 %v281
  %868 = vmatprep.subr.mxu0 0.0
  %869 = vmatpush2.msra.mxu0 %v280
  %870 = vmatprep.subr.mxu0 0.0
  %871 = vmatpush2.msra.mxu0 %v279
  %872 = vmatprep.mubr.f32.mxu0 %v30
  %873 = vmatmul.mubr.f32.gmra.mxu0 %v29
  %v874 = vpop.f32.mrf.mxu0
  %v875 = vadd.f32 %v730, %v874
  %v876 = vpop.f32.mrf.mxu0
  %877 = vmatprep.mubr.f32.mxu0 %v39
  %878 = vmatmul.mubr.f32.gmra.mxu0 %v38
  %v879 = vpop.f32.mrf.mxu0
  %v880 = vadd.f32 %v735, %v879
  %v881 = vpop.f32.mrf.mxu0
  %882 = vmatprep.mubr.f32.mxu0 %v48
  %883 = vmatmul.mubr.f32.gmra.mxu0 %v47
  %v884 = vpop.f32.mrf.mxu0
  %v885 = vadd.f32 %v740, %v884
  %v886 = vpop.f32.mrf.mxu0
  %887 = vmatprep.mubr.f32.mxu0 %v57
  %888 = vmatmul.mubr.f32.gmra.mxu0 %v56
  %v889 = vpop.f32.mrf.mxu0
  %v890 = vadd.f32 %v745, %v889
  %v891 = vpop.f32.mrf.mxu0
  %892 = vmatprep.mubr.f32.mxu0 %v66
  %893 = vmatmul.mubr.f32.gmra.mxu0 %v65
  %v894 = vpop.f32.mrf.mxu0
  %v895 = vadd.f32 %v750, %v894
  %v896 = vpop.f32.mrf.mxu0
  %897 = vmatprep.mubr.f32.mxu0 %v75
  %898 = vmatmul.mubr.f32.gmra.mxu0 %v74
  %v899 = vpop.f32.mrf.mxu0
  %v900 = vadd.f32 %v755, %v899
  %v901 = vpop.f32.mrf.mxu0
  %902 = vmatprep.mubr.f32.mxu0 %v84
  %903 = vmatmul.mubr.f32.gmra.mxu0 %v83
  %v904 = vpop.f32.mrf.mxu0
  %v905 = vadd.f32 %v760, %v904
  %v906 = vpop.f32.mrf.mxu0
  %907 = vmatprep.mubr.f32.mxu0 %v93
  %908 = vmatmul.mubr.f32.gmra.mxu0 %v92
  %v909 = vpop.f32.mrf.mxu0
  %v910 = vadd.f32 %v765, %v909
  %v911 = vpop.f32.mrf.mxu0
  %912 = vmatprep.mubr.f32.mxu0 %v102
  %913 = vmatmul.mubr.f32.gmra.mxu0 %v101
  %v914 = vpop.f32.mrf.mxu0
  %v915 = vadd.f32 %v770, %v914
  %v916 = vpop.f32.mrf.mxu0
  %917 = vmatprep.mubr.f32.mxu0 %v111
  %918 = vmatmul.mubr.f32.gmra.mxu0 %v110
  %v919 = vpop.f32.mrf.mxu0
  %v920 = vadd.f32 %v775, %v919
  %v921 = vpop.f32.mrf.mxu0
  %922 = vmatprep.mubr.f32.mxu0 %v120
  %923 = vmatmul.mubr.f32.gmra.mxu0 %v119
  %v924 = vpop.f32.mrf.mxu0
  %v925 = vadd.f32 %v780, %v924
  %v926 = vpop.f32.mrf.mxu0
  %927 = vmatprep.mubr.f32.mxu0 %v129
  %928 = vmatmul.mubr.f32.gmra.mxu0 %v128
  %v929 = vpop.f32.mrf.mxu0
  %v930 = vadd.f32 %v785, %v929
  %v931 = vpop.f32.mrf.mxu0
  %932 = vmatprep.mubr.f32.mxu0 %v138
  %933 = vmatmul.mubr.f32.gmra.mxu0 %v137
  %v934 = vpop.f32.mrf.mxu0
  %v935 = vadd.f32 %v790, %v934
  %v936 = vpop.f32.mrf.mxu0
  %937 = vmatprep.mubr.f32.mxu0 %v147
  %938 = vmatmul.mubr.f32.gmra.mxu0 %v146
  %v939 = vpop.f32.mrf.mxu0
  %v940 = vadd.f32 %v795, %v939
  %v941 = vpop.f32.mrf.mxu0
  %942 = vmatprep.mubr.f32.mxu0 %v156
  %943 = vmatmul.mubr.f32.gmra.mxu0 %v155
  %v944 = vpop.f32.mrf.mxu0
  %v945 = vadd.f32 %v800, %v944
  %v946 = vpop.f32.mrf.mxu0
  %947 = vmatprep.mubr.f32.mxu0 %v165
  %948 = vmatmul.mubr.f32.gmra.mxu0 %v164
  %v949 = vpop.f32.mrf.mxu0
  %v950 = vadd.f32 %v805, %v949
  %v951 = vpop.f32.mrf.mxu0
  %952 = vdwg.mxu0
  %953 = vmatprep.subr.mxu0 0.0
  %954 = vmatpush1.msra.mxu0 %v310
  %955 = vmatprep.subr.mxu0 0.0
  %956 = vmatpush1.msra.mxu0 %v309
  %957 = vmatprep.subr.mxu0 0.0
  %958 = vmatpush1.msra.mxu0 %v308
  %959 = vmatprep.subr.mxu0 0.0
  %960 = vmatpush1.msra.mxu0 %v307
  %961 = vmatprep.subr.mxu0 0.0
  %962 = vmatpush1.msra.mxu0 %v306
  %963 = vmatprep.subr.mxu0 0.0
  %964 = vmatpush1.msra.mxu0 %v305
  %965 = vmatprep.subr.mxu0 0.0
  %966 = vmatpush1.msra.mxu0 %v304
  %967 = vmatprep.subr.mxu0 0.0
  %968 = vmatpush1.msra.mxu0 %v303
  %969 = vmatprep.subr.mxu0 0.0
  %970 = vmatpush1.msra.mxu0 %v302
  %971 = vmatprep.subr.mxu0 0.0
  %972 = vmatpush1.msra.mxu0 %v301
  %973 = vmatprep.subr.mxu0 0.0
  %974 = vmatpush1.msra.mxu0 %v300
  %975 = vmatprep.subr.mxu0 0.0
  %976 = vmatpush1.msra.mxu0 %v299
  %977 = vmatprep.subr.mxu0 0.0
  %978 = vmatpush1.msra.mxu0 %v298
  %979 = vmatprep.subr.mxu0 0.0
  %980 = vmatpush1.msra.mxu0 %v297
  %981 = vmatprep.subr.mxu0 0.0
  %982 = vmatpush1.msra.mxu0 %v296
  %983 = vmatprep.subr.mxu0 0.0
  %984 = vmatpush1.msra.mxu0 %v295
  %985 = vmatprep.subr.mxu0 0.0
  %986 = vmatpush2.msra.mxu0 0.0
  %987 = vmatprep.subr.mxu0 0.0
  %988 = vmatpush2.msra.mxu0 0.0
  %989 = vmatprep.subr.mxu0 0.0
  %990 = vmatpush2.msra.mxu0 0.0
  %991 = vmatprep.subr.mxu0 0.0
  %992 = vmatpush2.msra.mxu0 0.0
  %993 = vmatprep.subr.mxu0 0.0
  %994 = vmatpush2.msra.mxu0 0.0
  %995 = vmatprep.subr.mxu0 0.0
  %996 = vmatpush2.msra.mxu0 0.0
  %997 = vmatprep.subr.mxu0 0.0
  %998 = vmatpush2.msra.mxu0 0.0
  %999 = vmatprep.subr.mxu0 0.0
  %1000 = vmatpush2.msra.mxu0 0.0
  %1001 = vmatprep.subr.mxu0 0.0
  %1002 = vmatpush2.msra.mxu0 0.0
  %1003 = vmatprep.subr.mxu0 0.0
  %1004 = vmatpush2.msra.mxu0 0.0
  %1005 = vmatprep.subr.mxu0 0.0
  %1006 = vmatpush2.msra.mxu0 0.0
  %1007 = vmatprep.subr.mxu0 0.0
  %1008 = vmatpush2.msra.mxu0 0.0
  %1009 = vmatprep.subr.mxu0 0.0
  %1010 = vmatpush2.msra.mxu0 0.0
  %1011 = vmatprep.subr.mxu0 0.0
  %1012 = vmatpush2.msra.mxu0 0.0
  %1013 = vmatprep.subr.mxu0 0.0
  %1014 = vmatpush2.msra.mxu0 0.0
  %1015 = vmatprep.subr.mxu0 0.0
  %1016 = vmatpush2.msra.mxu0 0.0
  %1017 = vmatprep.mubr.f32.mxu0 0.0
  %1018 = vmatmul.mubr.f32.gmra.mxu0 %v31
  %v1019 = vpop.f32.mrf.mxu0
  %v1020 = vadd.f32 %v875, %v1019
  %v1021 = vpop.f32.mrf.mxu0
  %1022 = vmatprep.mubr.f32.mxu0 0.0
  %1023 = vmatmul.mubr.f32.gmra.mxu0 %v40
  %v1024 = vpop.f32.mrf.mxu0
  %v1025 = vadd.f32 %v880, %v1024
  %v1026 = vpop.f32.mrf.mxu0
  %1027 = vmatprep.mubr.f32.mxu0 0.0
  %1028 = vmatmul.mubr.f32.gmra.mxu0 %v49
  %v1029 = vpop.f32.mrf.mxu0
  %v1030 = vadd.f32 %v885, %v1029
  %v1031 = vpop.f32.mrf.mxu0
  %1032 = vmatprep.mubr.f32.mxu0 0.0
  %1033 = vmatmul.mubr.f32.gmra.mxu0 %v58
  %v1034 = vpop.f32.mrf.mxu0
  %v1035 = vadd.f32 %v890, %v1034
  %v1036 = vpop.f32.mrf.mxu0
  %1037 = vmatprep.mubr.f32.mxu0 0.0
  %1038 = vmatmul.mubr.f32.gmra.mxu0 %v67
  %v1039 = vpop.f32.mrf.mxu0
  %v1040 = vadd.f32 %v895, %v1039
  %v1041 = vpop.f32.mrf.mxu0
  %1042 = vmatprep.mubr.f32.mxu0 0.0
  %1043 = vmatmul.mubr.f32.gmra.mxu0 %v76
  %v1044 = vpop.f32.mrf.mxu0
  %v1045 = vadd.f32 %v900, %v1044
  %v1046 = vpop.f32.mrf.mxu0
  %1047 = vmatprep.mubr.f32.mxu0 0.0
  %1048 = vmatmul.mubr.f32.gmra.mxu0 %v85
  %v1049 = vpop.f32.mrf.mxu0
  %v1050 = vadd.f32 %v905, %v1049
  %v1051 = vpop.f32.mrf.mxu0
  %1052 = vmatprep.mubr.f32.mxu0 0.0
  %1053 = vmatmul.mubr.f32.gmra.mxu0 %v94
  %v1054 = vpop.f32.mrf.mxu0
  %v1055 = vadd.f32 %v910, %v1054
  %v1056 = vpop.f32.mrf.mxu0
  %1057 = vmatprep.mubr.f32.mxu0 0.0
  %1058 = vmatmul.mubr.f32.gmra.mxu0 %v103
  %v1059 = vpop.f32.mrf.mxu0
  %v1060 = vadd.f32 %v915, %v1059
  %v1061 = vpop.f32.mrf.mxu0
  %1062 = vmatprep.mubr.f32.mxu0 0.0
  %1063 = vmatmul.mubr.f32.gmra.mxu0 %v112
  %v1064 = vpop.f32.mrf.mxu0
  %v1065 = vadd.f32 %v920, %v1064
  %v1066 = vpop.f32.mrf.mxu0
  %1067 = vmatprep.mubr.f32.mxu0 0.0
  %1068 = vmatmul.mubr.f32.gmra.mxu0 %v121
  %v1069 = vpop.f32.mrf.mxu0
  %v1070 = vadd.f32 %v925, %v1069
  %v1071 = vpop.f32.mrf.mxu0
  %1072 = vmatprep.mubr.f32.mxu0 0.0
  %1073 = vmatmul.mubr.f32.gmra.mxu0 %v130
  %v1074 = vpop.f32.mrf.mxu0
  %v1075 = vadd.f32 %v930, %v1074
  %v1076 = vpop.f32.mrf.mxu0
  %1077 = vmatprep.mubr.f32.mxu0 0.0
  %1078 = vmatmul.mubr.f32.gmra.mxu0 %v139
  %v1079 = vpop.f32.mrf.mxu0
  %v1080 = vadd.f32 %v935, %v1079
  %v1081 = vpop.f32.mrf.mxu0
  %1082 = vmatprep.mubr.f32.mxu0 0.0
  %1083 = vmatmul.mubr.f32.gmra.mxu0 %v148
  %v1084 = vpop.f32.mrf.mxu0
  %v1085 = vadd.f32 %v940, %v1084
  %v1086 = vpop.f32.mrf.mxu0
  %1087 = vmatprep.mubr.f32.mxu0 0.0
  %1088 = vmatmul.mubr.f32.gmra.mxu0 %v157
  %v1089 = vpop.f32.mrf.mxu0
  %v1090 = vadd.f32 %v945, %v1089
  %v1091 = vpop.f32.mrf.mxu0
  %1092 = vmatprep.mubr.f32.mxu0 0.0
  %1093 = vmatmul.mubr.f32.gmra.mxu0 %v166
  %v1094 = vpop.f32.mrf.mxu0
  %v1095 = vadd.f32 %v950, %v1094
  %v1096 = vpop.f32.mrf.mxu0
  %1097 = vdwg.mxu0
  %1098 = vst [vmem:[%s5] sm:$0xff] %v1020
  %1099 = vst [vmem:[%s5 + $0x8] sm:$0xff] %v1025
  %1100 = vst [vmem:[%s5 + $0x10] sm:$0xff] %v1030
  %1101 = vst [vmem:[%s5 + $0x18] sm:$0xff] %v1035
  %1102 = vst [vmem:[%s5 + $0x20] sm:$0xff] %v1040
  %1103 = vst [vmem:[%s5 + $0x28] sm:$0xff] %v1045
  %1104 = vst [vmem:[%s5 + $0x30] sm:$0xff] %v1050
  %1105 = vst [vmem:[%s5 + $0x38] sm:$0xff] %v1055
  %1106 = vst [vmem:[%s5 + $0x40] sm:$0xff] %v1060
  %1107 = vst [vmem:[%s5 + $0x48] sm:$0xff] %v1065
  %1108 = vst [vmem:[%s5 + $0x50] sm:$0xff] %v1070
  %1109 = vst [vmem:[%s5 + $0x58] sm:$0xff] %v1075
  %1110 = vst [vmem:[%s5 + $0x60] sm:$0xff] %v1080
  %1111 = vst [vmem:[%s5 + $0x68] sm:$0xff] %v1085
  %1112 = vst [vmem:[%s5 + $0x70] sm:$0xff] %v1090
  %1113 = vst [vmem:[%s5 + $0x78] sm:$0xff] %v1095
  %v1114 = vadd.f32 %v1020, %v1025
  %v1115 = vadd.f32 %v1114, %v1030
  %v1116 = vadd.f32 %v1115, %v1035
  %v1117 = vadd.f32 %v1116, %v1040
  %v1118 = vadd.f32 %v1117, %v1045
  %v1119 = vadd.f32 %v1118, %v1050
  %v1120 = vadd.f32 %v1119, %v1055
  %v1121 = vadd.f32 %v1120, %v1060
  %v1122 = vadd.f32 %v1121, %v1065
  %v1123 = vadd.f32 %v1122, %v1070
  %v1124 = vadd.f32 %v1123, %v1075
  %v1125 = vadd.f32 %v1124, %v1080
  %v1126 = vadd.f32 %v1125, %v1085
  %v1127 = vadd.f32 %v1126, %v1090
  %v1128 = vadd.f32 %v1127, %v1095
  %v1129 = vrot.slane %v1128, 4
  %v1130 = vadd.f32 %v1128, %v1129
  %v1131 = vrot.slane %v1130, 2
  %v1132 = vadd.f32 %v1130, %v1131
  %v1133 = vrot.slane %v1132, 1
  %v1134 = vadd.f32 %v1132, %v1133
  %1135 = vst [vmem:[%s6] sm:$0xff] %v1134
  %v1136 = vmul.f32 %v1020, %v1020
  %v1137 = vmul.f32 %v1025, %v1025
  %v1138 = vmul.f32 %v1030, %v1030
  %v1139 = vmul.f32 %v1035, %v1035
  %v1140 = vmul.f32 %v1040, %v1040
  %v1141 = vmul.f32 %v1045, %v1045
  %v1142 = vmul.f32 %v1050, %v1050
  %v1143 = vmul.f32 %v1055, %v1055
  %v1144 = vmul.f32 %v1060, %v1060
  %v1145 = vmul.f32 %v1065, %v1065
  %v1146 = vmul.f32 %v1070, %v1070
  %v1147 = vmul.f32 %v1075, %v1075
  %v1148 = vmul.f32 %v1080, %v1080
  %v1149 = vmul.f32 %v1085, %v1085
  %v1150 = vmul.f32 %v1090, %v1090
  %v1151 = vmul.f32 %v1095, %v1095
  %v1152 = vadd.f32 %v1136, %v1137
  %v1153 = vadd.f32 %v1152, %v1138
  %v1154 = vadd.f32 %v1153, %v1139
  %v1155 = vadd.f32 %v1154, %v1140
  %v1156 = vadd.f32 %v1155, %v1141
  %v1157 = vadd.f32 %v1156, %v1142
  %v1158 = vadd.f32 %v1157, %v1143
  %v1159 = vadd.f32 %v1158, %v1144
  %v1160 = vadd.f32 %v1159, %v1145
  %v1161 = vadd.f32 %v1160, %v1146
  %v1162 = vadd.f32 %v1161, %v1147
  %v1163 = vadd.f32 %v1162, %v1148
  %v1164 = vadd.f32 %v1163, %v1149
  %v1165 = vadd.f32 %v1164, %v1150
  %v1166 = vadd.f32 %v1165, %v1151
  %v1167 = vrot.slane %v1166, 4
  %v1168 = vadd.f32 %v1166, %v1167
  %v1169 = vrot.slane %v1168, 2
  %v1170 = vadd.f32 %v1168, %v1169
  %v1171 = vrot.slane %v1170, 1
  %v1172 = vadd.f32 %v1170, %v1171
  %1173 = vst [vmem:[%s7] sm:$0xff] %v1172
  // Predicated region
  $region22: #{_lambda_.31} parent=0 // pred_check
    _
  $region23: #{_lambda_.31} parent=0 // pred_check_branch
    %1175 = sbr.rel (0) target = $region25
  $region24: #{_lambda_.31} parent=0 // pred_region
    _
  $region25: #{_lambda_.31} parent=0 // pred_fallthru
    _
  // Predicated region
  $region26: #{_lambda_.31} parent=0 // pred_check
    _
  $region27: #{_lambda_.31} parent=0 // pred_check_branch
    %1177 = sbr.rel (0) target = $region29
  $region28: #{_lambda_.31} parent=0 // pred_region
    _
  $region29: #{_lambda_.31} parent=0 // pred_fallthru
    _
  // Predicated region
  $region30: #{_lambda_.31} parent=0 // pred_check
    _
  $region31: #{_lambda_.31} parent=0 // pred_check_branch
    %1179 = sbr.rel (0) target = $region33
  $region32: #{_lambda_.31} parent=0 // pred_region
    _
  $region33: #{_lambda_.31} parent=0 // pred_fallthru
    _
  // Predicated region
  $region34: #{_lambda_.31} parent=0 // pred_check
    _
  $region35: #{_lambda_.31} parent=0 // pred_check_branch
    %1181 = sbr.rel (0) target = $region37
  $region36: #{_lambda_.31} parent=0 // pred_region
    _
  $region37: #{_lambda_.31} parent=0 // pred_fallthru
    _
  // Predicated region
  $region38: #{_lambda_.31} parent=0 // pred_check
    _
  $region39: #{_lambda_.31} parent=0 // pred_check_branch
    %1183 = sbr.rel (0) target = $region41
  $region40: #{_lambda_.31} parent=0 // pred_region
    _
  $region41: #{_lambda_.31} parent=0 // pred_fallthru
    _
  // Predicated region
  $region42: #{_lambda_.31} parent=0 // pred_check
    _
  $region43: #{_lambda_.31} parent=0 // pred_check_branch
    %1185 = sbr.rel (0) target = $region45
  $region44: #{_lambda_.31} parent=0 // pred_region
    _
  $region45: #{_lambda_.31} parent=0 // pred_fallthru
    _

// kernel: _lambda_.35
$region0: #{_lambda_.35}
  #allocation0 [shape = 'u32[]', space=smem, size = 0x4, offset = 0x4, fixed_abs, tag = 'smem constant byte address 0x4 - core index']
  #allocation1 [shape = 'u32[144,128]{1,0:T(1,128)}', space=vmem, size = 0x12000, scoped, tag = 'internal scratch']
  %s0 = inlined_call_operand.vmem [shape: f32[32,128], index: 0, kind: input, shape index: {}]
  %s1 = inlined_call_operand.vmem [shape: f32[1,128], index: 1, kind: input, shape index: {}]
  %s2 = inlined_call_operand.vmem [shape: f32[1,128], index: 2, kind: input, shape index: {}]
  %s3 = inlined_call_operand.vmem [shape: f32[32,128], index: 3, kind: output, shape index: {}]
  %s4 = sld [smem:[#allocation0]]
  $region22: #{_lambda_.35} parent=0
    _
  %s6 = ssub.s32 1, %s4
  %s7 = scalar_select 0, %s6, %s4
  // Predicated region
  $region2: #{_lambda_.35} parent=0 // pred_check
    _
  $region3: #{_lambda_.35} parent=0 // pred_check_branch
    %9 = sbr.rel (0) target = $region5
  $region4: #{_lambda_.35} parent=0 // pred_region
    _
  $region5: #{_lambda_.35} parent=0 // pred_fallthru
    _
  // Predicated region
  $region6: #{_lambda_.35} parent=0 // pred_check
    _
  $region7: #{_lambda_.35} parent=0 // pred_check_branch
    %11 = sbr.rel (0) target = $region9
  $region8: #{_lambda_.35} parent=0 // pred_region
    _
  $region9: #{_lambda_.35} parent=0 // pred_fallthru
    _
  // Predicated region
  $region10: #{_lambda_.35} parent=0 // pred_check
    _
  $region11: #{_lambda_.35} parent=0 // pred_check_branch
    %13 = sbr.rel (0) target = $region13
  $region12: #{_lambda_.35} parent=0 // pred_region
    _
  $region13: #{_lambda_.35} parent=0 // pred_fallthru
    _
  %v14 = vld [vmem:[%s0] sm:$0xff]
  %v15 = vld [vmem:[%s0 + $0x8] sm:$0xff]
  %v16 = vld [vmem:[%s0 + $0x10] sm:$0xff]
  %v17 = vld [vmem:[%s0 + $0x18] sm:$0xff]
  %v18 = vld [vmem:[%s1] sm:$0x1]
  %v20 = vlaneseq
  %v21 = vshrl.u32 %v20, 7
  %v22 = vsub.s32 0, %v21
  %v23 = vrot.slane %v18, %v22
  %v25 = vmul.f32 %v14, %v23
  %v26 = vmul.f32 %v15, %v23
  %v27 = vmul.f32 %v16, %v23
  %v28 = vmul.f32 %v17, %v23
  %v29 = vld [vmem:[%s2] sm:$0x1]
  %v31 = vlaneseq
  %v32 = vshrl.u32 %v31, 7
  %v33 = vsub.s32 0, %v32
  %v34 = vrot.slane %v29, %v33
  %v36 = vadd.f32 %v25, %v34
  %v37 = vadd.f32 %v26, %v34
  %v38 = vadd.f32 %v27, %v34
  %v39 = vadd.f32 %v28, %v34
  %v40 = vmax.f32 %v36, 0.0
  %v41 = vmax.f32 %v37, 0.0
  %v42 = vmax.f32 %v38, 0.0
  %v43 = vmax.f32 %v39, 0.0
  %44 = vst [vmem:[%s3] sm:$0xff] %v40
  %45 = vst [vmem:[%s3 + $0x8] sm:$0xff] %v41
  %46 = vst [vmem:[%s3 + $0x10] sm:$0xff] %v42
  %47 = vst [vmem:[%s3 + $0x18] sm:$0xff] %v43
  // Predicated region
  $region14: #{_lambda_.35} parent=0 // pred_check
    _
  $region15: #{_lambda_.35} parent=0 // pred_check_branch
    %49 = sbr.rel (0) target = $region17
  $region16: #{_lambda_.35} parent=0 // pred_region
    _
  $region17: #{_lambda_.35} parent=0 // pred_fallthru
    _
  // Predicated region
  $region18: #{_lambda_.35} parent=0 // pred_check
    _
  $region19: #{_lambda_.35} parent=0 // pred_check_branch
    %51 = sbr.rel (0) target = $region21
  $region20: #{_lambda_.35} parent=0 // pred_region
    _
  $region21: #{_lambda_.35} parent=0 // pred_fallthru
    _

// kernel: _lambda_.34
$region0: #{_lambda_.34}
  #allocation0 [shape = 'u32[]', space=smem, size = 0x4, offset = 0x4, fixed_abs, tag = 'smem constant byte address 0x4 - core index']
  #allocation1 [shape = 'u32[144,128]{1,0:T(1,128)}', space=vmem, size = 0x12000, scoped, tag = 'internal scratch']
  %s0 = inlined_call_operand.vmem [shape: f32[32,1152], index: 0, kind: input, shape index: {}]
  %s1 = inlined_call_operand.vmem [shape: f32[1152,128], index: 1, kind: input, shape index: {}]
  %s2 = inlined_call_operand.vmem [shape: f32[32,128], index: 2, kind: output, shape index: {0}]
  %s3 = inlined_call_operand.vmem [shape: f32[8,128], index: 3, kind: output, shape index: {1}]
  %s4 = inlined_call_operand.vmem [shape: f32[8,128], index: 4, kind: output, shape index: {2}]
  %5 = xla_tuple %s2, %s3, %s4
  %s6 = sld [smem:[#allocation0]]
  $region34: #{_lambda_.34} parent=0
    _
  %s8 = ssub.s32 1, %s6
  %s9 = scalar_select 0, %s8, %s6
  // Predicated region
  $region2: #{_lambda_.34} parent=0 // pred_check
    _
  $region3: #{_lambda_.34} parent=0 // pred_check_branch
    %11 = sbr.rel (0) target = $region5
  $region4: #{_lambda_.34} parent=0 // pred_region
    _
  $region5: #{_lambda_.34} parent=0 // pred_fallthru
    _
  // Predicated region
  $region6: #{_lambda_.34} parent=0 // pred_check
    _
  $region7: #{_lambda_.34} parent=0 // pred_check_branch
    %13 = sbr.rel (0) target = $region9
  $region8: #{_lambda_.34} parent=0 // pred_region
    _
  $region9: #{_lambda_.34} parent=0 // pred_fallthru
    _
  %v14 = vld [vmem:[%s0] sm:$0xff]
  %v15 = vld [vmem:[%s0 + $0x8] sm:$0xff]
  %v16 = vld [vmem:[%s0 + $0x10] sm:$0xff]
  %v17 = vld [vmem:[%s0 + $0x18] sm:$0xff]
  %v18 = vld [vmem:[%s0 + $0x20] sm:$0xff]
  %v19 = vld [vmem:[%s0 + $0x28] sm:$0xff]
  %v20 = vld [vmem:[%s0 + $0x30] sm:$0xff]
  %v21 = vld [vmem:[%s0 + $0x38] sm:$0xff]
  %v22 = vld [vmem:[%s0 + $0x40] sm:$0xff]
  %v23 = vld [vmem:[%s0 + $0x48] sm:$0xff]
  %v24 = vld [vmem:[%s0 + $0x50] sm:$0xff]
  %v25 = vld [vmem:[%s0 + $0x58] sm:$0xff]
  %v26 = vld [vmem:[%s0 + $0x60] sm:$0xff]
  %v27 = vld [vmem:[%s0 + $0x68] sm:$0xff]
  %v28 = vld [vmem:[%s0 + $0x70] sm:$0xff]
  %v29 = vld [vmem:[%s0 + $0x78] sm:$0xff]
  %v30 = vld [vmem:[%s0 + $0x80] sm:$0xff]
  %v31 = vld [vmem:[%s0 + $0x88] sm:$0xff]
  %v32 = vld [vmem:[%s0 + $0x90] sm:$0xff]
  %v33 = vld [vmem:[%s0 + $0x98] sm:$0xff]
  %v34 = vld [vmem:[%s0 + $0xa0] sm:$0xff]
  %v35 = vld [vmem:[%s0 + $0xa8] sm:$0xff]
  %v36 = vld [vmem:[%s0 + $0xb0] sm:$0xff]
  %v37 = vld [vmem:[%s0 + $0xb8] sm:$0xff]
  %v38 = vld [vmem:[%s0 + $0xc0] sm:$0xff]
  %v39 = vld [vmem:[%s0 + $0xc8] sm:$0xff]
  %v40 = vld [vmem:[%s0 + $0xd0] sm:$0xff]
  %v41 = vld [vmem:[%s0 + $0xd8] sm:$0xff]
  %v42 = vld [vmem:[%s0 + $0xe0] sm:$0xff]
  %v43 = vld [vmem:[%s0 + $0xe8] sm:$0xff]
  %v44 = vld [vmem:[%s0 + $0xf0] sm:$0xff]
  %v45 = vld [vmem:[%s0 + $0xf8] sm:$0xff]
  %v46 = vld [vmem:[%s0 + $0x100] sm:$0xff]
  %v47 = vld [vmem:[%s0 + $0x108] sm:$0xff]
  %v48 = vld [vmem:[%s0 + $0x110] sm:$0xff]
  %v49 = vld [vmem:[%s0 + $0x118] sm:$0xff]
  %v50 = vld [vmem:[%s1] sm:$0xff]
  %v51 = vld [vmem:[%s1 + $0x8] sm:$0xff]
  %v52 = vld [vmem:[%s1 + $0x10] sm:$0xff]
  %v53 = vld [vmem:[%s1 + $0x18] sm:$0xff]
  %v54 = vld [vmem:[%s1 + $0x20] sm:$0xff]
  %v55 = vld [vmem:[%s1 + $0x28] sm:$0xff]
  %v56 = vld [vmem:[%s1 + $0x30] sm:$0xff]
  %v57 = vld [vmem:[%s1 + $0x38] sm:$0xff]
  %v58 = vld [vmem:[%s1 + $0x40] sm:$0xff]
  %v59 = vld [vmem:[%s1 + $0x48] sm:$0xff]
  %v60 = vld [vmem:[%s1 + $0x50] sm:$0xff]
  %v61 = vld [vmem:[%s1 + $0x58] sm:$0xff]
  %v62 = vld [vmem:[%s1 + $0x60] sm:$0xff]
  %v63 = vld [vmem:[%s1 + $0x68] sm:$0xff]
  %v64 = vld [vmem:[%s1 + $0x70] sm:$0xff]
  %v65 = vld [vmem:[%s1 + $0x78] sm:$0xff]
  %v66 = vld [vmem:[%s1 + $0x80] sm:$0xff]
  %v67 = vld [vmem:[%s1 + $0x88] sm:$0xff]
  %v68 = vld [vmem:[%s1 + $0x90] sm:$0xff]
  %v69 = vld [vmem:[%s1 + $0x98] sm:$0xff]
  %v70 = vld [vmem:[%s1 + $0xa0] sm:$0xff]
  %v71 = vld [vmem:[%s1 + $0xa8] sm:$0xff]
  %v72 = vld [vmem:[%s1 + $0xb0] sm:$0xff]
  %v73 = vld [vmem:[%s1 + $0xb8] sm:$0xff]
  %v74 = vld [vmem:[%s1 + $0xc0] sm:$0xff]
  %v75 = vld [vmem:[%s1 + $0xc8] sm:$0xff]
  %v76 = vld [vmem:[%s1 + $0xd0] sm:$0xff]
  %v77 = vld [vmem:[%s1 + $0xd8] sm:$0xff]
  %v78 = vld [vmem:[%s1 + $0xe0] sm:$0xff]
  %v79 = vld [vmem:[%s1 + $0xe8] sm:$0xff]
  %v80 = vld [vmem:[%s1 + $0xf0] sm:$0xff]
  %v81 = vld [vmem:[%s1 + $0xf8] sm:$0xff]
  %v82 = vld [vmem:[%s1 + $0x100] sm:$0xff]
  %v83 = vld [vmem:[%s1 + $0x108] sm:$0xff]
  %v84 = vld [vmem:[%s1 + $0x110] sm:$0xff]
  %v85 = vld [vmem:[%s1 + $0x118] sm:$0xff]
  %v86 = vld [vmem:[%s1 + $0x120] sm:$0xff]
  %v87 = vld [vmem:[%s1 + $0x128] sm:$0xff]
  %v88 = vld [vmem:[%s1 + $0x130] sm:$0xff]
  %v89 = vld [vmem:[%s1 + $0x138] sm:$0xff]
  %v90 = vld [vmem:[%s1 + $0x140] sm:$0xff]
  %v91 = vld [vmem:[%s1 + $0x148] sm:$0xff]
  %v92 = vld [vmem:[%s1 + $0x150] sm:$0xff]
  %v93 = vld [vmem:[%s1 + $0x158] sm:$0xff]
  %v94 = vld [vmem:[%s1 + $0x160] sm:$0xff]
  %v95 = vld [vmem:[%s1 + $0x168] sm:$0xff]
  %v96 = vld [vmem:[%s1 + $0x170] sm:$0xff]
  %v97 = vld [vmem:[%s1 + $0x178] sm:$0xff]
  %v98 = vld [vmem:[%s1 + $0x180] sm:$0xff]
  %v99 = vld [vmem:[%s1 + $0x188] sm:$0xff]
  %v100 = vld [vmem:[%s1 + $0x190] sm:$0xff]
  %v101 = vld [vmem:[%s1 + $0x198] sm:$0xff]
  %v102 = vld [vmem:[%s1 + $0x1a0] sm:$0xff]
  %v103 = vld [vmem:[%s1 + $0x1a8] sm:$0xff]
  %v104 = vld [vmem:[%s1 + $0x1b0] sm:$0xff]
  %v105 = vld [vmem:[%s1 + $0x1b8] sm:$0xff]
  %v106 = vld [vmem:[%s1 + $0x1c0] sm:$0xff]
  %v107 = vld [vmem:[%s1 + $0x1c8] sm:$0xff]
  %v108 = vld [vmem:[%s1 + $0x1d0] sm:$0xff]
  %v109 = vld [vmem:[%s1 + $0x1d8] sm:$0xff]
  %v110 = vld [vmem:[%s1 + $0x1e0] sm:$0xff]
  %v111 = vld [vmem:[%s1 + $0x1e8] sm:$0xff]
  %v112 = vld [vmem:[%s1 + $0x1f0] sm:$0xff]
  %v113 = vld [vmem:[%s1 + $0x1f8] sm:$0xff]
  %v114 = vld [vmem:[%s1 + $0x200] sm:$0xff]
  %v115 = vld [vmem:[%s1 + $0x208] sm:$0xff]
  %v116 = vld [vmem:[%s1 + $0x210] sm:$0xff]
  %v117 = vld [vmem:[%s1 + $0x218] sm:$0xff]
  %v118 = vld [vmem:[%s1 + $0x220] sm:$0xff]
  %v119 = vld [vmem:[%s1 + $0x228] sm:$0xff]
  %v120 = vld [vmem:[%s1 + $0x230] sm:$0xff]
  %v121 = vld [vmem:[%s1 + $0x238] sm:$0xff]
  %v122 = vld [vmem:[%s1 + $0x240] sm:$0xff]
  %v123 = vld [vmem:[%s1 + $0x248] sm:$0xff]
  %v124 = vld [vmem:[%s1 + $0x250] sm:$0xff]
  %v125 = vld [vmem:[%s1 + $0x258] sm:$0xff]
  %v126 = vld [vmem:[%s1 + $0x260] sm:$0xff]
  %v127 = vld [vmem:[%s1 + $0x268] sm:$0xff]
  %v128 = vld [vmem:[%s1 + $0x270] sm:$0xff]
  %v129 = vld [vmem:[%s1 + $0x278] sm:$0xff]
  %v130 = vld [vmem:[%s1 + $0x280] sm:$0xff]
  %v131 = vld [vmem:[%s1 + $0x288] sm:$0xff]
  %v132 = vld [vmem:[%s1 + $0x290] sm:$0xff]
  %v133 = vld [vmem:[%s1 + $0x298] sm:$0xff]
  %v134 = vld [vmem:[%s1 + $0x2a0] sm:$0xff]
  %v135 = vld [vmem:[%s1 + $0x2a8] sm:$0xff]
  %v136 = vld [vmem:[%s1 + $0x2b0] sm:$0xff]
  %v137 = vld [vmem:[%s1 + $0x2b8] sm:$0xff]
  %v138 = vld [vmem:[%s1 + $0x2c0] sm:$0xff]
  %v139 = vld [vmem:[%s1 + $0x2c8] sm:$0xff]
  %v140 = vld [vmem:[%s1 + $0x2d0] sm:$0xff]
  %v141 = vld [vmem:[%s1 + $0x2d8] sm:$0xff]
  %v142 = vld [vmem:[%s1 + $0x2e0] sm:$0xff]
  %v143 = vld [vmem:[%s1 + $0x2e8] sm:$0xff]
  %v144 = vld [vmem:[%s1 + $0x2f0] sm:$0xff]
  %v145 = vld [vmem:[%s1 + $0x2f8] sm:$0xff]
  %v146 = vld [vmem:[%s1 + $0x300] sm:$0xff]
  %v147 = vld [vmem:[%s1 + $0x308] sm:$0xff]
  %v148 = vld [vmem:[%s1 + $0x310] sm:$0xff]
  %v149 = vld [vmem:[%s1 + $0x318] sm:$0xff]
  %v150 = vld [vmem:[%s1 + $0x320] sm:$0xff]
  %v151 = vld [vmem:[%s1 + $0x328] sm:$0xff]
  %v152 = vld [vmem:[%s1 + $0x330] sm:$0xff]
  %v153 = vld [vmem:[%s1 + $0x338] sm:$0xff]
  %v154 = vld [vmem:[%s1 + $0x340] sm:$0xff]
  %v155 = vld [vmem:[%s1 + $0x348] sm:$0xff]
  %v156 = vld [vmem:[%s1 + $0x350] sm:$0xff]
  %v157 = vld [vmem:[%s1 + $0x358] sm:$0xff]
  %v158 = vld [vmem:[%s1 + $0x360] sm:$0xff]
  %v159 = vld [vmem:[%s1 + $0x368] sm:$0xff]
  %v160 = vld [vmem:[%s1 + $0x370] sm:$0xff]
  %v161 = vld [vmem:[%s1 + $0x378] sm:$0xff]
  %v162 = vld [vmem:[%s1 + $0x380] sm:$0xff]
  %v163 = vld [vmem:[%s1 + $0x388] sm:$0xff]
  %v164 = vld [vmem:[%s1 + $0x390] sm:$0xff]
  %v165 = vld [vmem:[%s1 + $0x398] sm:$0xff]
  %v166 = vld [vmem:[%s1 + $0x3a0] sm:$0xff]
  %v167 = vld [vmem:[%s1 + $0x3a8] sm:$0xff]
  %v168 = vld [vmem:[%s1 + $0x3b0] sm:$0xff]
  %v169 = vld [vmem:[%s1 + $0x3b8] sm:$0xff]
  %v170 = vld [vmem:[%s1 + $0x3c0] sm:$0xff]
  %v171 = vld [vmem:[%s1 + $0x3c8] sm:$0xff]
  %v172 = vld [vmem:[%s1 + $0x3d0] sm:$0xff]
  %v173 = vld [vmem:[%s1 + $0x3d8] sm:$0xff]
  %v174 = vld [vmem:[%s1 + $0x3e0] sm:$0xff]
  %v175 = vld [vmem:[%s1 + $0x3e8] sm:$0xff]
  %v176 = vld [vmem:[%s1 + $0x3f0] sm:$0xff]
  %v177 = vld [vmem:[%s1 + $0x3f8] sm:$0xff]
  %v178 = vld [vmem:[%s1 + $0x400] sm:$0xff]
  %v179 = vld [vmem:[%s1 + $0x408] sm:$0xff]
  %v180 = vld [vmem:[%s1 + $0x410] sm:$0xff]
  %v181 = vld [vmem:[%s1 + $0x418] sm:$0xff]
  %v182 = vld [vmem:[%s1 + $0x420] sm:$0xff]
  %v183 = vld [vmem:[%s1 + $0x428] sm:$0xff]
  %v184 = vld [vmem:[%s1 + $0x430] sm:$0xff]
  %v185 = vld [vmem:[%s1 + $0x438] sm:$0xff]
  %v186 = vld [vmem:[%s1 + $0x440] sm:$0xff]
  %v187 = vld [vmem:[%s1 + $0x448] sm:$0xff]
  %v188 = vld [vmem:[%s1 + $0x450] sm:$0xff]
  %v189 = vld [vmem:[%s1 + $0x458] sm:$0xff]
  %v190 = vld [vmem:[%s1 + $0x460] sm:$0xff]
  %v191 = vld [vmem:[%s1 + $0x468] sm:$0xff]
  %v192 = vld [vmem:[%s1 + $0x470] sm:$0xff]
  %v193 = vld [vmem:[%s1 + $0x478] sm:$0xff]
  %194 = vmatprep.subr.mxu0 0.0
  %195 = vmatpush1.msra.mxu0 %v65
  %196 = vmatprep.subr.mxu0 0.0
  %197 = vmatpush1.msra.mxu0 %v64
  %198 = vmatprep.subr.mxu0 0.0
  %199 = vmatpush1.msra.mxu0 %v63
  %200 = vmatprep.subr.mxu0 0.0
  %201 = vmatpush1.msra.mxu0 %v62
  %202 = vmatprep.subr.mxu0 0.0
  %203 = vmatpush1.msra.mxu0 %v61
  %204 = vmatprep.subr.mxu0 0.0
  %205 = vmatpush1.msra.mxu0 %v60
  %206 = vmatprep.subr.mxu0 0.0
  %207 = vmatpush1.msra.mxu0 %v59
  %208 = vmatprep.subr.mxu0 0.0
  %209 = vmatpush1.msra.mxu0 %v58
  %210 = vmatprep.subr.mxu0 0.0
  %211 = vmatpush1.msra.mxu0 %v57
  %212 = vmatprep.subr.mxu0 0.0
  %213 = vmatpush1.msra.mxu0 %v56
  %214 = vmatprep.subr.mxu0 0.0
  %215 = vmatpush1.msra.mxu0 %v55
  %216 = vmatprep.subr.mxu0 0.0
  %217 = vmatpush1.msra.mxu0 %v54
  %218 = vmatprep.subr.mxu0 0.0
  %219 = vmatpush1.msra.mxu0 %v53
  %220 = vmatprep.subr.mxu0 0.0
  %221 = vmatpush1.msra.mxu0 %v52
  %222 = vmatprep.subr.mxu0 0.0
  %223 = vmatpush1.msra.mxu0 %v51
  %224 = vmatprep.subr.mxu0 0.0
  %225 = vmatpush1.msra.mxu0 %v50
  %226 = vmatprep.subr.mxu0 0.0
  %227 = vmatpush2.msra.mxu0 %v81
  %228 = vmatprep.subr.mxu0 0.0
  %229 = vmatpush2.msra.mxu0 %v80
  %230 = vmatprep.subr.mxu0 0.0
  %231 = vmatpush2.msra.mxu0 %v79
  %232 = vmatprep.subr.mxu0 0.0
  %233 = vmatpush2.msra.mxu0 %v78
  %234 = vmatprep.subr.mxu0 0.0
  %235 = vmatpush2.msra.mxu0 %v77
  %236 = vmatprep.subr.mxu0 0.0
  %237 = vmatpush2.msra.mxu0 %v76
  %238 = vmatprep.subr.mxu0 0.0
  %239 = vmatpush2.msra.mxu0 %v75
  %240 = vmatprep.subr.mxu0 0.0
  %241 = vmatpush2.msra.mxu0 %v74
  %242 = vmatprep.subr.mxu0 0.0
  %243 = vmatpush2.msra.mxu0 %v73
  %244 = vmatprep.subr.mxu0 0.0
  %245 = vmatpush2.msra.mxu0 %v72
  %246 = vmatprep.subr.mxu0 0.0
  %247 = vmatpush2.msra.mxu0 %v71
  %248 = vmatprep.subr.mxu0 0.0
  %249 = vmatpush2.msra.mxu0 %v70
  %250 = vmatprep.subr.mxu0 0.0
  %251 = vmatpush2.msra.mxu0 %v69
  %252 = vmatprep.subr.mxu0 0.0
  %253 = vmatpush2.msra.mxu0 %v68
  %254 = vmatprep.subr.mxu0 0.0
  %255 = vmatpush2.msra.mxu0 %v67
  %256 = vmatprep.subr.mxu0 0.0
  %257 = vmatpush2.msra.mxu0 %v66
  %258 = vmatprep.mubr.f32.mxu0 %v15
  %259 = vmatmul.mubr.f32.gmra.mxu0 %v14
  %v260 = vpop.f32.mrf.mxu0
  %v261 = vadd.f32 0.0, %v260
  %v262 = vpop.f32.mrf.mxu0
  %263 = vmatprep.mubr.f32.mxu0 %v24
  %264 = vmatmul.mubr.f32.gmra.mxu0 %v23
  %v265 = vpop.f32.mrf.mxu0
  %v266 = vadd.f32 0.0, %v265
  %v267 = vpop.f32.mrf.mxu0
  %268 = vmatprep.mubr.f32.mxu0 %v33
  %269 = vmatmul.mubr.f32.gmra.mxu0 %v32
  %v270 = vpop.f32.mrf.mxu0
  %v271 = vadd.f32 0.0, %v270
  %v272 = vpop.f32.mrf.mxu0
  %273 = vmatprep.mubr.f32.mxu0 %v42
  %274 = vmatmul.mubr.f32.gmra.mxu0 %v41
  %v275 = vpop.f32.mrf.mxu0
  %v276 = vadd.f32 0.0, %v275
  %v277 = vpop.f32.mrf.mxu0
  %278 = vdwg.mxu0
  %279 = vmatprep.subr.mxu0 0.0
  %280 = vmatpush1.msra.mxu0 %v97
  %281 = vmatprep.subr.mxu0 0.0
  %282 = vmatpush1.msra.mxu0 %v96
  %283 = vmatprep.subr.mxu0 0.0
  %284 = vmatpush1.msra.mxu0 %v95
  %285 = vmatprep.subr.mxu0 0.0
  %286 = vmatpush1.msra.mxu0 %v94
  %287 = vmatprep.subr.mxu0 0.0
  %288 = vmatpush1.msra.mxu0 %v93
  %289 = vmatprep.subr.mxu0 0.0
  %290 = vmatpush1.msra.mxu0 %v92
  %291 = vmatprep.subr.mxu0 0.0
  %292 = vmatpush1.msra.mxu0 %v91
  %293 = vmatprep.subr.mxu0 0.0
  %294 = vmatpush1.msra.mxu0 %v90
  %295 = vmatprep.subr.mxu0 0.0
  %296 = vmatpush1.msra.mxu0 %v89
  %297 = vmatprep.subr.mxu0 0.0
  %298 = vmatpush1.msra.mxu0 %v88
  %299 = vmatprep.subr.mxu0 0.0
  %300 = vmatpush1.msra.mxu0 %v87
  %301 = vmatprep.subr.mxu0 0.0
  %302 = vmatpush1.msra.mxu0 %v86
  %303 = vmatprep.subr.mxu0 0.0
  %304 = vmatpush1.msra.mxu0 %v85
  %305 = vmatprep.subr.mxu0 0.0
  %306 = vmatpush1.msra.mxu0 %v84
  %307 = vmatprep.subr.mxu0 0.0
  %308 = vmatpush1.msra.mxu0 %v83
  %309 = vmatprep.subr.mxu0 0.0
  %310 = vmatpush1.msra.mxu0 %v82
  %311 = vmatprep.subr.mxu0 0.0
  %312 = vmatpush2.msra.mxu0 %v113
  %313 = vmatprep.subr.mxu0 0.0
  %314 = vmatpush2.msra.mxu0 %v112
  %315 = vmatprep.subr.mxu0 0.0
  %316 = vmatpush2.msra.mxu0 %v111
  %317 = vmatprep.subr.mxu0 0.0
  %318 = vmatpush2.msra.mxu0 %v110
  %319 = vmatprep.subr.mxu0 0.0
  %320 = vmatpush2.msra.mxu0 %v109
  %321 = vmatprep.subr.mxu0 0.0
  %322 = vmatpush2.msra.mxu0 %v108
  %323 = vmatprep.subr.mxu0 0.0
  %324 = vmatpush2.msra.mxu0 %v107
  %325 = vmatprep.subr.mxu0 0.0
  %326 = vmatpush2.msra.mxu0 %v106
  %327 = vmatprep.subr.mxu0 0.0
  %328 = vmatpush2.msra.mxu0 %v105
  %329 = vmatprep.subr.mxu0 0.0
  %330 = vmatpush2.msra.mxu0 %v104
  %331 = vmatprep.subr.mxu0 0.0
  %332 = vmatpush2.msra.mxu0 %v103
  %333 = vmatprep.subr.mxu0 0.0
  %334 = vmatpush2.msra.mxu0 %v102
  %335 = vmatprep.subr.mxu0 0.0
  %336 = vmatpush2.msra.mxu0 %v101
  %337 = vmatprep.subr.mxu0 0.0
  %338 = vmatpush2.msra.mxu0 %v100
  %339 = vmatprep.subr.mxu0 0.0
  %340 = vmatpush2.msra.mxu0 %v99
  %341 = vmatprep.subr.mxu0 0.0
  %342 = vmatpush2.msra.mxu0 %v98
  %343 = vmatprep.mubr.f32.mxu0 %v17
  %344 = vmatmul.mubr.f32.gmra.mxu0 %v16
  %v345 = vpop.f32.mrf.mxu0
  %v346 = vadd.f32 %v261, %v345
  %v347 = vpop.f32.mrf.mxu0
  %348 = vmatprep.mubr.f32.mxu0 %v26
  %349 = vmatmul.mubr.f32.gmra.mxu0 %v25
  %v350 = vpop.f32.mrf.mxu0
  %v351 = vadd.f32 %v266, %v350
  %v352 = vpop.f32.mrf.mxu0
  %353 = vmatprep.mubr.f32.mxu0 %v35
  %354 = vmatmul.mubr.f32.gmra.mxu0 %v34
  %v355 = vpop.f32.mrf.mxu0
  %v356 = vadd.f32 %v271, %v355
  %v357 = vpop.f32.mrf.mxu0
  %358 = vmatprep.mubr.f32.mxu0 %v44
  %359 = vmatmul.mubr.f32.gmra.mxu0 %v43
  %v360 = vpop.f32.mrf.mxu0
  %v361 = vadd.f32 %v276, %v360
  %v362 = vpop.f32.mrf.mxu0
  %363 = vdwg.mxu0
  %364 = vmatprep.subr.mxu0 0.0
  %365 = vmatpush1.msra.mxu0 %v129
  %366 = vmatprep.subr.mxu0 0.0
  %367 = vmatpush1.msra.mxu0 %v128
  %368 = vmatprep.subr.mxu0 0.0
  %369 = vmatpush1.msra.mxu0 %v127
  %370 = vmatprep.subr.mxu0 0.0
  %371 = vmatpush1.msra.mxu0 %v126
  %372 = vmatprep.subr.mxu0 0.0
  %373 = vmatpush1.msra.mxu0 %v125
  %374 = vmatprep.subr.mxu0 0.0
  %375 = vmatpush1.msra.mxu0 %v124
  %376 = vmatprep.subr.mxu0 0.0
  %377 = vmatpush1.msra.mxu0 %v123
  %378 = vmatprep.subr.mxu0 0.0
  %379 = vmatpush1.msra.mxu0 %v122
  %380 = vmatprep.subr.mxu0 0.0
  %381 = vmatpush1.msra.mxu0 %v121
  %382 = vmatprep.subr.mxu0 0.0
  %383 = vmatpush1.msra.mxu0 %v120
  %384 = vmatprep.subr.mxu0 0.0
  %385 = vmatpush1.msra.mxu0 %v119
  %386 = vmatprep.subr.mxu0 0.0
  %387 = vmatpush1.msra.mxu0 %v118
  %388 = vmatprep.subr.mxu0 0.0
  %389 = vmatpush1.msra.mxu0 %v117
  %390 = vmatprep.subr.mxu0 0.0
  %391 = vmatpush1.msra.mxu0 %v116
  %392 = vmatprep.subr.mxu0 0.0
  %393 = vmatpush1.msra.mxu0 %v115
  %394 = vmatprep.subr.mxu0 0.0
  %395 = vmatpush1.msra.mxu0 %v114
  %396 = vmatprep.subr.mxu0 0.0
  %397 = vmatpush2.msra.mxu0 %v145
  %398 = vmatprep.subr.mxu0 0.0
  %399 = vmatpush2.msra.mxu0 %v144
  %400 = vmatprep.subr.mxu0 0.0
  %401 = vmatpush2.msra.mxu0 %v143
  %402 = vmatprep.subr.mxu0 0.0
  %403 = vmatpush2.msra.mxu0 %v142
  %404 = vmatprep.subr.mxu0 0.0
  %405 = vmatpush2.msra.mxu0 %v141
  %406 = vmatprep.subr.mxu0 0.0
  %407 = vmatpush2.msra.mxu0 %v140
  %408 = vmatprep.subr.mxu0 0.0
  %409 = vmatpush2.msra.mxu0 %v139
  %410 = vmatprep.subr.mxu0 0.0
  %411 = vmatpush2.msra.mxu0 %v138
  %412 = vmatprep.subr.mxu0 0.0
  %413 = vmatpush2.msra.mxu0 %v137
  %414 = vmatprep.subr.mxu0 0.0
  %415 = vmatpush2.msra.mxu0 %v136
  %416 = vmatprep.subr.mxu0 0.0
  %417 = vmatpush2.msra.mxu0 %v135
  %418 = vmatprep.subr.mxu0 0.0
  %419 = vmatpush2.msra.mxu0 %v134
  %420 = vmatprep.subr.mxu0 0.0
  %421 = vmatpush2.msra.mxu0 %v133
  %422 = vmatprep.subr.mxu0 0.0
  %423 = vmatpush2.msra.mxu0 %v132
  %424 = vmatprep.subr.mxu0 0.0
  %425 = vmatpush2.msra.mxu0 %v131
  %426 = vmatprep.subr.mxu0 0.0
  %427 = vmatpush2.msra.mxu0 %v130
  %428 = vmatprep.mubr.f32.mxu0 %v19
  %429 = vmatmul.mubr.f32.gmra.mxu0 %v18
  %v430 = vpop.f32.mrf.mxu0
  %v431 = vadd.f32 %v346, %v430
  %v432 = vpop.f32.mrf.mxu0
  %433 = vmatprep.mubr.f32.mxu0 %v28
  %434 = vmatmul.mubr.f32.gmra.mxu0 %v27
  %v435 = vpop.f32.mrf.mxu0
  %v436 = vadd.f32 %v351, %v435
  %v437 = vpop.f32.mrf.mxu0
  %438 = vmatprep.mubr.f32.mxu0 %v37
  %439 = vmatmul.mubr.f32.gmra.mxu0 %v36
  %v440 = vpop.f32.mrf.mxu0
  %v441 = vadd.f32 %v356, %v440
  %v442 = vpop.f32.mrf.mxu0
  %443 = vmatprep.mubr.f32.mxu0 %v46
  %444 = vmatmul.mubr.f32.gmra.mxu0 %v45
  %v445 = vpop.f32.mrf.mxu0
  %v446 = vadd.f32 %v361, %v445
  %v447 = vpop.f32.mrf.mxu0
  %448 = vdwg.mxu0
  %449 = vmatprep.subr.mxu0 0.0
  %450 = vmatpush1.msra.mxu0 %v161
  %451 = vmatprep.subr.mxu0 0.0
  %452 = vmatpush1.msra.mxu0 %v160
  %453 = vmatprep.subr.mxu0 0.0
  %454 = vmatpush1.msra.mxu0 %v159
  %455 = vmatprep.subr.mxu0 0.0
  %456 = vmatpush1.msra.mxu0 %v158
  %457 = vmatprep.subr.mxu0 0.0
  %458 = vmatpush1.msra.mxu0 %v157
  %459 = vmatprep.subr.mxu0 0.0
  %460 = vmatpush1.msra.mxu0 %v156
  %461 = vmatprep.subr.mxu0 0.0
  %462 = vmatpush1.msra.mxu0 %v155
  %463 = vmatprep.subr.mxu0 0.0
  %464 = vmatpush1.msra.mxu0 %v154
  %465 = vmatprep.subr.mxu0 0.0
  %466 = vmatpush1.msra.mxu0 %v153
  %467 = vmatprep.subr.mxu0 0.0
  %468 = vmatpush1.msra.mxu0 %v152
  %469 = vmatprep.subr.mxu0 0.0
  %470 = vmatpush1.msra.mxu0 %v151
  %471 = vmatprep.subr.mxu0 0.0
  %472 = vmatpush1.msra.mxu0 %v150
  %473 = vmatprep.subr.mxu0 0.0
  %474 = vmatpush1.msra.mxu0 %v149
  %475 = vmatprep.subr.mxu0 0.0
  %476 = vmatpush1.msra.mxu0 %v148
  %477 = vmatprep.subr.mxu0 0.0
  %478 = vmatpush1.msra.mxu0 %v147
  %479 = vmatprep.subr.mxu0 0.0
  %480 = vmatpush1.msra.mxu0 %v146
  %481 = vmatprep.subr.mxu0 0.0
  %482 = vmatpush2.msra.mxu0 %v177
  %483 = vmatprep.subr.mxu0 0.0
  %484 = vmatpush2.msra.mxu0 %v176
  %485 = vmatprep.subr.mxu0 0.0
  %486 = vmatpush2.msra.mxu0 %v175
  %487 = vmatprep.subr.mxu0 0.0
  %488 = vmatpush2.msra.mxu0 %v174
  %489 = vmatprep.subr.mxu0 0.0
  %490 = vmatpush2.msra.mxu0 %v173
  %491 = vmatprep.subr.mxu0 0.0
  %492 = vmatpush2.msra.mxu0 %v172
  %493 = vmatprep.subr.mxu0 0.0
  %494 = vmatpush2.msra.mxu0 %v171
  %495 = vmatprep.subr.mxu0 0.0
  %496 = vmatpush2.msra.mxu0 %v170
  %497 = vmatprep.subr.mxu0 0.0
  %498 = vmatpush2.msra.mxu0 %v169
  %499 = vmatprep.subr.mxu0 0.0
  %500 = vmatpush2.msra.mxu0 %v168
  %501 = vmatprep.subr.mxu0 0.0
  %502 = vmatpush2.msra.mxu0 %v167
  %503 = vmatprep.subr.mxu0 0.0
  %504 = vmatpush2.msra.mxu0 %v166
  %505 = vmatprep.subr.mxu0 0.0
  %506 = vmatpush2.msra.mxu0 %v165
  %507 = vmatprep.subr.mxu0 0.0
  %508 = vmatpush2.msra.mxu0 %v164
  %509 = vmatprep.subr.mxu0 0.0
  %510 = vmatpush2.msra.mxu0 %v163
  %511 = vmatprep.subr.mxu0 0.0
  %512 = vmatpush2.msra.mxu0 %v162
  %513 = vmatprep.mubr.f32.mxu0 %v21
  %514 = vmatmul.mubr.f32.gmra.mxu0 %v20
  %v515 = vpop.f32.mrf.mxu0
  %v516 = vadd.f32 %v431, %v515
  %v517 = vpop.f32.mrf.mxu0
  %518 = vmatprep.mubr.f32.mxu0 %v30
  %519 = vmatmul.mubr.f32.gmra.mxu0 %v29
  %v520 = vpop.f32.mrf.mxu0
  %v521 = vadd.f32 %v436, %v520
  %v522 = vpop.f32.mrf.mxu0
  %523 = vmatprep.mubr.f32.mxu0 %v39
  %524 = vmatmul.mubr.f32.gmra.mxu0 %v38
  %v525 = vpop.f32.mrf.mxu0
  %v526 = vadd.f32 %v441, %v525
  %v527 = vpop.f32.mrf.mxu0
  %528 = vmatprep.mubr.f32.mxu0 %v48
  %529 = vmatmul.mubr.f32.gmra.mxu0 %v47
  %v530 = vpop.f32.mrf.mxu0
  %v531 = vadd.f32 %v446, %v530
  %v532 = vpop.f32.mrf.mxu0
  %533 = vdwg.mxu0
  %534 = vmatprep.subr.mxu0 0.0
  %535 = vmatpush1.msra.mxu0 %v193
  %536 = vmatprep.subr.mxu0 0.0
  %537 = vmatpush1.msra.mxu0 %v192
  %538 = vmatprep.subr.mxu0 0.0
  %539 = vmatpush1.msra.mxu0 %v191
  %540 = vmatprep.subr.mxu0 0.0
  %541 = vmatpush1.msra.mxu0 %v190
  %542 = vmatprep.subr.mxu0 0.0
  %543 = vmatpush1.msra.mxu0 %v189
  %544 = vmatprep.subr.mxu0 0.0
  %545 = vmatpush1.msra.mxu0 %v188
  %546 = vmatprep.subr.mxu0 0.0
  %547 = vmatpush1.msra.mxu0 %v187
  %548 = vmatprep.subr.mxu0 0.0
  %549 = vmatpush1.msra.mxu0 %v186
  %550 = vmatprep.subr.mxu0 0.0
  %551 = vmatpush1.msra.mxu0 %v185
  %552 = vmatprep.subr.mxu0 0.0
  %553 = vmatpush1.msra.mxu0 %v184
  %554 = vmatprep.subr.mxu0 0.0
  %555 = vmatpush1.msra.mxu0 %v183
  %556 = vmatprep.subr.mxu0 0.0
  %557 = vmatpush1.msra.mxu0 %v182
  %558 = vmatprep.subr.mxu0 0.0
  %559 = vmatpush1.msra.mxu0 %v181
  %560 = vmatprep.subr.mxu0 0.0
  %561 = vmatpush1.msra.mxu0 %v180
  %562 = vmatprep.subr.mxu0 0.0
  %563 = vmatpush1.msra.mxu0 %v179
  %564 = vmatprep.subr.mxu0 0.0
  %565 = vmatpush1.msra.mxu0 %v178
  %566 = vmatprep.subr.mxu0 0.0
  %567 = vmatpush2.msra.mxu0 0.0
  %568 = vmatprep.subr.mxu0 0.0
  %569 = vmatpush2.msra.mxu0 0.0
  %570 = vmatprep.subr.mxu0 0.0
  %571 = vmatpush2.msra.mxu0 0.0
  %572 = vmatprep.subr.mxu0 0.0
  %573 = vmatpush2.msra.mxu0 0.0
  %574 = vmatprep.subr.mxu0 0.0
  %575 = vmatpush2.msra.mxu0 0.0
  %576 = vmatprep.subr.mxu0 0.0
  %577 = vmatpush2.msra.mxu0 0.0
  %578 = vmatprep.subr.mxu0 0.0
  %579 = vmatpush2.msra.mxu0 0.0
  %580 = vmatprep.subr.mxu0 0.0
  %581 = vmatpush2.msra.mxu0 0.0
  %582 = vmatprep.subr.mxu0 0.0
  %583 = vmatpush2.msra.mxu0 0.0
  %584 = vmatprep.subr.mxu0 0.0
  %585 = vmatpush2.msra.mxu0 0.0
  %586 = vmatprep.subr.mxu0 0.0
  %587 = vmatpush2.msra.mxu0 0.0
  %588 = vmatprep.subr.mxu0 0.0
  %589 = vmatpush2.msra.mxu0 0.0
  %590 = vmatprep.subr.mxu0 0.0
  %591 = vmatpush2.msra.mxu0 0.0
  %592 = vmatprep.subr.mxu0 0.0
  %593 = vmatpush2.msra.mxu0 0.0
  %594 = vmatprep.subr.mxu0 0.0
  %595 = vmatpush2.msra.mxu0 0.0
  %596 = vmatprep.subr.mxu0 0.0
  %597 = vmatpush2.msra.mxu0 0.0
  %598 = vmatprep.mubr.f32.mxu0 0.0
  %599 = vmatmul.mubr.f32.gmra.mxu0 %v22
  %v600 = vpop.f32.mrf.mxu0
  %v601 = vadd.f32 %v516, %v600
  %v602 = vpop.f32.mrf.mxu0
  %603 = vmatprep.mubr.f32.mxu0 0.0
  %604 = vmatmul.mubr.f32.gmra.mxu0 %v31
  %v605 = vpop.f32.mrf.mxu0
  %v606 = vadd.f32 %v521, %v605
  %v607 = vpop.f32.mrf.mxu0
  %608 = vmatprep.mubr.f32.mxu0 0.0
  %609 = vmatmul.mubr.f32.gmra.mxu0 %v40
  %v610 = vpop.f32.mrf.mxu0
  %v611 = vadd.f32 %v526, %v610
  %v612 = vpop.f32.mrf.mxu0
  %613 = vmatprep.mubr.f32.mxu0 0.0
  %614 = vmatmul.mubr.f32.gmra.mxu0 %v49
  %v615 = vpop.f32.mrf.mxu0
  %v616 = vadd.f32 %v531, %v615
  %v617 = vpop.f32.mrf.mxu0
  %618 = vdwg.mxu0
  %619 = vst [vmem:[%s2] sm:$0xff] %v601
  %620 = vst [vmem:[%s2 + $0x8] sm:$0xff] %v606
  %621 = vst [vmem:[%s2 + $0x10] sm:$0xff] %v611
  %622 = vst [vmem:[%s2 + $0x18] sm:$0xff] %v616
  %v623 = vadd.f32 %v601, %v606
  %v624 = vadd.f32 %v623, %v611
  %v625 = vadd.f32 %v624, %v616
  %v626 = vrot.slane %v625, 4
  %v627 = vadd.f32 %v625, %v626
  %v628 = vrot.slane %v627, 2
  %v629 = vadd.f32 %v627, %v628
  %v630 = vrot.slane %v629, 1
  %v631 = vadd.f32 %v629, %v630
  %632 = vst [vmem:[%s3] sm:$0xff] %v631
  %v633 = vmul.f32 %v601, %v601
  %v634 = vmul.f32 %v606, %v606
  %v635 = vmul.f32 %v611, %v611
  %v636 = vmul.f32 %v616, %v616
  %v637 = vadd.f32 %v633, %v634
  %v638 = vadd.f32 %v637, %v635
  %v639 = vadd.f32 %v638, %v636
  %v640 = vrot.slane %v639, 4
  %v641 = vadd.f32 %v639, %v640
  %v642 = vrot.slane %v641, 2
  %v643 = vadd.f32 %v641, %v642
  %v644 = vrot.slane %v643, 1
  %v645 = vadd.f32 %v643, %v644
  %646 = vst [vmem:[%s4] sm:$0xff] %v645
  // Predicated region
  $region10: #{_lambda_.34} parent=0 // pred_check
    _
  $region11: #{_lambda_.34} parent=0 // pred_check_branch
    %648 = sbr.rel (0) target = $region13
  $region12: #{_lambda_.34} parent=0 // pred_region
    _
  $region13: #{_lambda_.34} parent=0 // pred_fallthru
    _
  // Predicated region
  $region14: #{_lambda_.34} parent=0 // pred_check
    _
  $region15: #{_lambda_.34} parent=0 // pred_check_branch
    %650 = sbr.rel (0) target = $region17
  $region16: #{_lambda_.34} parent=0 // pred_region
    _
  $region17: #{_lambda_.34} parent=0 // pred_fallthru
    _
  // Predicated region
  $region18: #{_lambda_.34} parent=0 // pred_check
    _
  $region19: #{_lambda_.34} parent=0 // pred_check_branch
    %652 = sbr.rel (0) target = $region21
  $region20: #{_lambda_.34} parent=0 // pred_region
    _
  $region21: #{_lambda_.34} parent=0 // pred_fallthru
    _
  // Predicated region
  $region22: #{_lambda_.34} parent=0 // pred_check
    _
  $region23: #{_lambda_.34} parent=0 // pred_check_branch
    %654 = sbr.rel (0) target = $region25
  $region24: #{_lambda_.34} parent=0 // pred_region
    _
  $region25: #{_lambda_.34} parent=0 // pred_fallthru
    _
  // Predicated region
  $region26: #{_lambda_.34} parent=0 // pred_check
    _
  $region27: #{_lambda_.34} parent=0 // pred_check_branch
    %656 = sbr.rel (0) target = $region29
  $region28: #{_lambda_.34} parent=0 // pred_region
    _
  $region29: #{_lambda_.34} parent=0 // pred_fallthru
    _
  // Predicated region
  $region30: #{_lambda_.34} parent=0 // pred_check
    _
  $region31: #{_lambda_.34} parent=0 // pred_check_branch
    %658 = sbr.rel (0) target = $region33
  $region32: #{_lambda_.34} parent=0 // pred_region
    _
  $region33: #{_lambda_.34} parent=0 // pred_fallthru
    _

// kernel: _lambda_.37
$region0: #{_lambda_.37}
  #allocation0 [shape = 'u32[]', space=smem, size = 0x4, offset = 0x4, fixed_abs, tag = 'smem constant byte address 0x4 - core index']
  #allocation1 [shape = 'u32[144,128]{1,0:T(1,128)}', space=vmem, size = 0x12000, scoped, tag = 'internal scratch']
  %s0 = inlined_call_operand.vmem [shape: f32[2,16,128], index: 0, kind: input, shape index: {}]
  %s1 = inlined_call_operand.vmem [shape: f32[1,1,128], index: 1, kind: input, shape index: {}]
  %s2 = inlined_call_operand.vmem [shape: f32[1,1,128], index: 2, kind: input, shape index: {}]
  %s3 = inlined_call_operand.vmem [shape: f32[128,128], index: 3, kind: input, shape index: {}]
  %s4 = inlined_call_operand.vmem [shape: f32[1,128], index: 4, kind: input, shape index: {}]
  %s5 = inlined_call_operand.hbm [shape: f32[2,128], index: 5, kind: output, shape index: {}]
  %s6 = sld [smem:[#allocation0]]
  $region30: #{_lambda_.37} parent=0
    _
  %s8 = ssub.s32 1, %s6
  %s9 = scalar_select 0, %s8, %s6
  $region1: #{_lambda_.37} parent=0
    #allocation2 [shape = 'u8[1024]{0}', space=vmem, size = 0x400, scoped, tag = 'output window, operand 0, single buffered']
    #allocation3 [shape = 's32[1]{0}', space=sflag, size = 0x4, scoped, tag = 'scoped memory for _lambda_.37']
    %10 = vsyncpa [#allocation3], 0
    // Predicated region
    $region2: #{_lambda_.37} parent=1 // pred_check
      _
    $region3: #{_lambda_.37} parent=1 // pred_check_branch
      %12 = sbr.rel (0) target = $region5
    $region4: #{_lambda_.37} parent=1 // pred_region
      _
    $region5: #{_lambda_.37} parent=1 // pred_fallthru
      _
    // Predicated region
    $region6: #{_lambda_.37} parent=1 // pred_check
      _
    $region7: #{_lambda_.37} parent=1 // pred_check_branch
      %14 = sbr.rel (0) target = $region9
    $region8: #{_lambda_.37} parent=1 // pred_region
      _
    $region9: #{_lambda_.37} parent=1 // pred_fallthru
      _
    // Predicated region
    $region10: #{_lambda_.37} parent=1 // pred_check
      _
    $region11: #{_lambda_.37} parent=1 // pred_check_branch
      %16 = sbr.rel (0) target = $region13
    $region12: #{_lambda_.37} parent=1 // pred_region
      _
    $region13: #{_lambda_.37} parent=1 // pred_fallthru
      _
    // Predicated region
    $region14: #{_lambda_.37} parent=1 // pred_check
      _
    $region15: #{_lambda_.37} parent=1 // pred_check_branch
      %18 = sbr.rel (0) target = $region17
    $region16: #{_lambda_.37} parent=1 // pred_region
      _
    $region17: #{_lambda_.37} parent=1 // pred_fallthru
      _
    // Predicated region
    $region18: #{_lambda_.37} parent=1 // pred_check
      _
    $region19: #{_lambda_.37} parent=1 // pred_check_branch
      %20 = sbr.rel (0) target = $region21
    $region20: #{_lambda_.37} parent=1 // pred_region
      _
    $region21: #{_lambda_.37} parent=1 // pred_fallthru
      _
    %v21 = vld [vmem:[%s0] sm:$0xff]
    %v22 = vld [vmem:[%s0 + $0x8] sm:$0xff]
    %v23 = vld [vmem:[%s0 + $0x10] sm:$0xff]
    %v24 = vld [vmem:[%s0 + $0x18] sm:$0xff]
    %v25 = vld [vmem:[%s1] sm:$0x1]
    %v27 = vlaneseq
    %v28 = vshrl.u32 %v27, 7
    %v29 = vsub.s32 0, %v28
    %v30 = vrot.slane %v25, %v29
    %v32 = vmul.f32 %v21, %v30
    %v33 = vmul.f32 %v22, %v30
    %v34 = vmul.f32 %v23, %v30
    %v35 = vmul.f32 %v24, %v30
    %v36 = vld [vmem:[%s2] sm:$0x1]
    %v38 = vlaneseq
    %v39 = vshrl.u32 %v38, 7
    %v40 = vsub.s32 0, %v39
    %v41 = vrot.slane %v36, %v40
    %v43 = vadd.f32 %v32, %v41
    %v44 = vadd.f32 %v33, %v41
    %v45 = vadd.f32 %v34, %v41
    %v46 = vadd.f32 %v35, %v41
    %v47 = vmax.f32 %v43, 0.0
    %v48 = vmax.f32 %v44, 0.0
    %v49 = vmax.f32 %v45, 0.0
    %v50 = vmax.f32 %v46, 0.0
    %v51 = vadd.f32 %v47, %v48
    %v52 = vrot.slane %v51, 4
    %v53 = vadd.f32 %v51, %v52
    %v54 = vrot.slane %v53, 2
    %v55 = vadd.f32 %v53, %v54
    %v56 = vrot.slane %v55, 1
    %v57 = vadd.f32 %v55, %v56
    %v58 = vadd.f32 %v49, %v50
    %v59 = vrot.slane %v58, 4
    %v60 = vadd.f32 %v58, %v59
    %v61 = vrot.slane %v60, 2
    %v62 = vadd.f32 %v60, %v61
    %v63 = vrot.slane %v62, 1
    %v64 = vadd.f32 %v62, %v63
    %v65 = vrcp.pop 16.0
    %v66 = vmul.f32 %v57, %v65
    %v67 = vmul.f32 %v64, %v65
    %v68 = vld [vmem:[%s3] sm:$0xff]
    %v69 = vld [vmem:[%s3 + $0x8] sm:$0xff]
    %v70 = vld [vmem:[%s3 + $0x10] sm:$0xff]
    %v71 = vld [vmem:[%s3 + $0x18] sm:$0xff]
    %v72 = vld [vmem:[%s3 + $0x20] sm:$0xff]
    %v73 = vld [vmem:[%s3 + $0x28] sm:$0xff]
    %v74 = vld [vmem:[%s3 + $0x30] sm:$0xff]
    %v75 = vld [vmem:[%s3 + $0x38] sm:$0xff]
    %v76 = vld [vmem:[%s3 + $0x40] sm:$0xff]
    %v77 = vld [vmem:[%s3 + $0x48] sm:$0xff]
    %v78 = vld [vmem:[%s3 + $0x50] sm:$0xff]
    %v79 = vld [vmem:[%s3 + $0x58] sm:$0xff]
    %v80 = vld [vmem:[%s3 + $0x60] sm:$0xff]
    %v81 = vld [vmem:[%s3 + $0x68] sm:$0xff]
    %v82 = vld [vmem:[%s3 + $0x70] sm:$0xff]
    %v83 = vld [vmem:[%s3 + $0x78] sm:$0xff]
    %v84 = vld [vmem:[%s4] sm:$0x1]
    %v86 = vlaneseq
    %v87 = vshrl.u32 %v86, 7
    %v88 = vsub.s32 0, %v87
    %v89 = vrot.slane %v84, %v88
    %vm93 = vcmask 1041409
    %v94 = vsel %vm93, %v67, %v66
    %96 = vmatprep.subr.mxu0 0.0
    %97 = vmatpush1.msra.mxu0 %v83
    %98 = vmatprep.subr.mxu0 0.0
    %99 = vmatpush1.msra.mxu0 %v82
    %100 = vmatprep.subr.mxu0 0.0
    %101 = vmatpush1.msra.mxu0 %v81
    %102 = vmatprep.subr.mxu0 0.0
    %103 = vmatpush1.msra.mxu0 %v80
    %104 = vmatprep.subr.mxu0 0.0
    %105 = vmatpush1.msra.mxu0 %v79
    %106 = vmatprep.subr.mxu0 0.0
    %107 = vmatpush1.msra.mxu0 %v78
    %108 = vmatprep.subr.mxu0 0.0
    %109 = vmatpush1.msra.mxu0 %v77
    %110 = vmatprep.subr.mxu0 0.0
    %111 = vmatpush1.msra.mxu0 %v76
    %112 = vmatprep.subr.mxu0 0.0
    %113 = vmatpush1.msra.mxu0 %v75
    %114 = vmatprep.subr.mxu0 0.0
    %115 = vmatpush1.msra.mxu0 %v74
    %116 = vmatprep.subr.mxu0 0.0
    %117 = vmatpush1.msra.mxu0 %v73
    %118 = vmatprep.subr.mxu0 0.0
    %119 = vmatpush1.msra.mxu0 %v72
    %120 = vmatprep.subr.mxu0 0.0
    %121 = vmatpush1.msra.mxu0 %v71
    %122 = vmatprep.subr.mxu0 0.0
    %123 = vmatpush1.msra.mxu0 %v70
    %124 = vmatprep.subr.mxu0 0.0
    %125 = vmatpush1.msra.mxu0 %v69
    %126 = vmatprep.subr.mxu0 0.0
    %127 = vmatpush1.msra.mxu0 %v68
    %128 = vmatprep.subr.mxu0 0.0
    %129 = vmatpush2.msra.mxu0 0.0
    %130 = vmatprep.subr.mxu0 0.0
    %131 = vmatpush2.msra.mxu0 0.0
    %132 = vmatprep.subr.mxu0 0.0
    %133 = vmatpush2.msra.mxu0 0.0
    %134 = vmatprep.subr.mxu0 0.0
    %135 = vmatpush2.msra.mxu0 0.0
    %136 = vmatprep.subr.mxu0 0.0
    %137 = vmatpush2.msra.mxu0 0.0
    %138 = vmatprep.subr.mxu0 0.0
    %139 = vmatpush2.msra.mxu0 0.0
    %140 = vmatprep.subr.mxu0 0.0
    %141 = vmatpush2.msra.mxu0 0.0
    %142 = vmatprep.subr.mxu0 0.0
    %143 = vmatpush2.msra.mxu0 0.0
    %144 = vmatprep.subr.mxu0 0.0
    %145 = vmatpush2.msra.mxu0 0.0
    %146 = vmatprep.subr.mxu0 0.0
    %147 = vmatpush2.msra.mxu0 0.0
    %148 = vmatprep.subr.mxu0 0.0
    %149 = vmatpush2.msra.mxu0 0.0
    %150 = vmatprep.subr.mxu0 0.0
    %151 = vmatpush2.msra.mxu0 0.0
    %152 = vmatprep.subr.mxu0 0.0
    %153 = vmatpush2.msra.mxu0 0.0
    %154 = vmatprep.subr.mxu0 0.0
    %155 = vmatpush2.msra.mxu0 0.0
    %156 = vmatprep.subr.mxu0 0.0
    %157 = vmatpush2.msra.mxu0 0.0
    %158 = vmatprep.subr.mxu0 0.0
    %159 = vmatpush2.msra.mxu0 0.0
    %160 = vmatprep.mubr.f32.mxu0 0.0
    %161 = vmatmul.mubr.f32.gmra.mxu0 %v94
    %v162 = vpop.f32.mrf.mxu0
    %v163 = vadd.f32 %v89, %v162
    %v164 = vpop.f32.mrf.mxu0
    %165 = vdwg.mxu0
    %166 = vst [vmem:[#allocation2] sm:$0x3] %v163
    // Predicated region
    $region22: #{_lambda_.37} parent=1 // pred_check
      _
    $region23: #{_lambda_.37} parent=1 // pred_check_branch
      %168 = sbr.rel (0) target = $region25
    $region24: #{_lambda_.37} parent=1 // pred_region
      %s170 = ssub.s32 32, 32
      %171 = vsyncadd [#allocation3], %s170
      %s173 = sshll.u32 [#allocation2], 4
      %s174 = int_to_ptr.vmem [resolvable:$true] %s173
      %176 = dma.vmem_to_hbm [thread:$0]  %s174, 32, %s5, [#allocation3]
    $region25: #{_lambda_.37} parent=1 // pred_fallthru
      _
    // Predicated region
    $region26: #{_lambda_.37} parent=1 // pred_check
      _
    $region27: #{_lambda_.37} parent=1 // pred_check_branch
      %178 = sbr.rel (0) target = $region29
    $region28: #{_lambda_.37} parent=1 // pred_region
      %179 = dma.done [#allocation3], 32
    $region29: #{_lambda_.37} parent=1 // pred_fallthru
      _
    %180 = vsyncpa [#allocation3], 1

// kernel: _lambda_.36
$region0: #{_lambda_.36}
  #allocation0 [shape = 'u32[]', space=smem, size = 0x4, offset = 0x4, fixed_abs, tag = 'smem constant byte address 0x4 - core index']
  #allocation1 [shape = 'u32[144,128]{1,0:T(1,128)}', space=vmem, size = 0x12000, scoped, tag = 'internal scratch']
  %s0 = inlined_call_operand.vmem [shape: f32[32,1152], index: 0, kind: input, shape index: {}]
  %s1 = inlined_call_operand.vmem [shape: f32[1152,128], index: 1, kind: input, shape index: {}]
  %s2 = inlined_call_operand.vmem [shape: f32[32,128], index: 2, kind: input, shape index: {}]
  %s3 = inlined_call_operand.vmem [shape: f32[1,128], index: 3, kind: input, shape index: {}]
  %s4 = inlined_call_operand.vmem [shape: f32[1,128], index: 4, kind: input, shape index: {}]
  %s5 = inlined_call_operand.vmem [shape: f32[32,128], index: 5, kind: output, shape index: {0}]
  %s6 = inlined_call_operand.vmem [shape: f32[8,128], index: 6, kind: output, shape index: {1}]
  %s7 = inlined_call_operand.vmem [shape: f32[8,128], index: 7, kind: output, shape index: {2}]
  %8 = xla_tuple %s5, %s6, %s7
  %s9 = sld [smem:[#allocation0]]
  $region46: #{_lambda_.36} parent=0
    _
  %s11 = ssub.s32 1, %s9
  %s12 = scalar_select 0, %s11, %s9
  // Predicated region
  $region2: #{_lambda_.36} parent=0 // pred_check
    _
  $region3: #{_lambda_.36} parent=0 // pred_check_branch
    %14 = sbr.rel (0) target = $region5
  $region4: #{_lambda_.36} parent=0 // pred_region
    _
  $region5: #{_lambda_.36} parent=0 // pred_fallthru
    _
  // Predicated region
  $region6: #{_lambda_.36} parent=0 // pred_check
    _
  $region7: #{_lambda_.36} parent=0 // pred_check_branch
    %16 = sbr.rel (0) target = $region9
  $region8: #{_lambda_.36} parent=0 // pred_region
    _
  $region9: #{_lambda_.36} parent=0 // pred_fallthru
    _
  // Predicated region
  $region10: #{_lambda_.36} parent=0 // pred_check
    _
  $region11: #{_lambda_.36} parent=0 // pred_check_branch
    %18 = sbr.rel (0) target = $region13
  $region12: #{_lambda_.36} parent=0 // pred_region
    _
  $region13: #{_lambda_.36} parent=0 // pred_fallthru
    _
  // Predicated region
  $region14: #{_lambda_.36} parent=0 // pred_check
    _
  $region15: #{_lambda_.36} parent=0 // pred_check_branch
    %20 = sbr.rel (0) target = $region17
  $region16: #{_lambda_.36} parent=0 // pred_region
    _
  $region17: #{_lambda_.36} parent=0 // pred_fallthru
    _
  // Predicated region
  $region18: #{_lambda_.36} parent=0 // pred_check
    _
  $region19: #{_lambda_.36} parent=0 // pred_check_branch
    %22 = sbr.rel (0) target = $region21
  $region20: #{_lambda_.36} parent=0 // pred_region
    _
  $region21: #{_lambda_.36} parent=0 // pred_fallthru
    _
  %v23 = vld [vmem:[%s0] sm:$0xff]
  %v24 = vld [vmem:[%s0 + $0x8] sm:$0xff]
  %v25 = vld [vmem:[%s0 + $0x10] sm:$0xff]
  %v26 = vld [vmem:[%s0 + $0x18] sm:$0xff]
  %v27 = vld [vmem:[%s0 + $0x20] sm:$0xff]
  %v28 = vld [vmem:[%s0 + $0x28] sm:$0xff]
  %v29 = vld [vmem:[%s0 + $0x30] sm:$0xff]
  %v30 = vld [vmem:[%s0 + $0x38] sm:$0xff]
  %v31 = vld [vmem:[%s0 + $0x40] sm:$0xff]
  %v32 = vld [vmem:[%s0 + $0x48] sm:$0xff]
  %v33 = vld [vmem:[%s0 + $0x50] sm:$0xff]
  %v34 = vld [vmem:[%s0 + $0x58] sm:$0xff]
  %v35 = vld [vmem:[%s0 + $0x60] sm:$0xff]
  %v36 = vld [vmem:[%s0 + $0x68] sm:$0xff]
  %v37 = vld [vmem:[%s0 + $0x70] sm:$0xff]
  %v38 = vld [vmem:[%s0 + $0x78] sm:$0xff]
  %v39 = vld [vmem:[%s0 + $0x80] sm:$0xff]
  %v40 = vld [vmem:[%s0 + $0x88] sm:$0xff]
  %v41 = vld [vmem:[%s0 + $0x90] sm:$0xff]
  %v42 = vld [vmem:[%s0 + $0x98] sm:$0xff]
  %v43 = vld [vmem:[%s0 + $0xa0] sm:$0xff]
  %v44 = vld [vmem:[%s0 + $0xa8] sm:$0xff]
  %v45 = vld [vmem:[%s0 + $0xb0] sm:$0xff]
  %v46 = vld [vmem:[%s0 + $0xb8] sm:$0xff]
  %v47 = vld [vmem:[%s0 + $0xc0] sm:$0xff]
  %v48 = vld [vmem:[%s0 + $0xc8] sm:$0xff]
  %v49 = vld [vmem:[%s0 + $0xd0] sm:$0xff]
  %v50 = vld [vmem:[%s0 + $0xd8] sm:$0xff]
  %v51 = vld [vmem:[%s0 + $0xe0] sm:$0xff]
  %v52 = vld [vmem:[%s0 + $0xe8] sm:$0xff]
  %v53 = vld [vmem:[%s0 + $0xf0] sm:$0xff]
  %v54 = vld [vmem:[%s0 + $0xf8] sm:$0xff]
  %v55 = vld [vmem:[%s0 + $0x100] sm:$0xff]
  %v56 = vld [vmem:[%s0 + $0x108] sm:$0xff]
  %v57 = vld [vmem:[%s0 + $0x110] sm:$0xff]
  %v58 = vld [vmem:[%s0 + $0x118] sm:$0xff]
  %v59 = vld [vmem:[%s1] sm:$0xff]
  %v60 = vld [vmem:[%s1 + $0x8] sm:$0xff]
  %v61 = vld [vmem:[%s1 + $0x10] sm:$0xff]
  %v62 = vld [vmem:[%s1 + $0x18] sm:$0xff]
  %v63 = vld [vmem:[%s1 + $0x20] sm:$0xff]
  %v64 = vld [vmem:[%s1 + $0x28] sm:$0xff]
  %v65 = vld [vmem:[%s1 + $0x30] sm:$0xff]
  %v66 = vld [vmem:[%s1 + $0x38] sm:$0xff]
  %v67 = vld [vmem:[%s1 + $0x40] sm:$0xff]
  %v68 = vld [vmem:[%s1 + $0x48] sm:$0xff]
  %v69 = vld [vmem:[%s1 + $0x50] sm:$0xff]
  %v70 = vld [vmem:[%s1 + $0x58] sm:$0xff]
  %v71 = vld [vmem:[%s1 + $0x60] sm:$0xff]
  %v72 = vld [vmem:[%s1 + $0x68] sm:$0xff]
  %v73 = vld [vmem:[%s1 + $0x70] sm:$0xff]
  %v74 = vld [vmem:[%s1 + $0x78] sm:$0xff]
  %v75 = vld [vmem:[%s1 + $0x80] sm:$0xff]
  %v76 = vld [vmem:[%s1 + $0x88] sm:$0xff]
  %v77 = vld [vmem:[%s1 + $0x90] sm:$0xff]
  %v78 = vld [vmem:[%s1 + $0x98] sm:$0xff]
  %v79 = vld [vmem:[%s1 + $0xa0] sm:$0xff]
  %v80 = vld [vmem:[%s1 + $0xa8] sm:$0xff]
  %v81 = vld [vmem:[%s1 + $0xb0] sm:$0xff]
  %v82 = vld [vmem:[%s1 + $0xb8] sm:$0xff]
  %v83 = vld [vmem:[%s1 + $0xc0] sm:$0xff]
  %v84 = vld [vmem:[%s1 + $0xc8] sm:$0xff]
  %v85 = vld [vmem:[%s1 + $0xd0] sm:$0xff]
  %v86 = vld [vmem:[%s1 + $0xd8] sm:$0xff]
  %v87 = vld [vmem:[%s1 + $0xe0] sm:$0xff]
  %v88 = vld [vmem:[%s1 + $0xe8] sm:$0xff]
  %v89 = vld [vmem:[%s1 + $0xf0] sm:$0xff]
  %v90 = vld [vmem:[%s1 + $0xf8] sm:$0xff]
  %v91 = vld [vmem:[%s1 + $0x100] sm:$0xff]
  %v92 = vld [vmem:[%s1 + $0x108] sm:$0xff]
  %v93 = vld [vmem:[%s1 + $0x110] sm:$0xff]
  %v94 = vld [vmem:[%s1 + $0x118] sm:$0xff]
  %v95 = vld [vmem:[%s1 + $0x120] sm:$0xff]
  %v96 = vld [vmem:[%s1 + $0x128] sm:$0xff]
  %v97 = vld [vmem:[%s1 + $0x130] sm:$0xff]
  %v98 = vld [vmem:[%s1 + $0x138] sm:$0xff]
  %v99 = vld [vmem:[%s1 + $0x140] sm:$0xff]
  %v100 = vld [vmem:[%s1 + $0x148] sm:$0xff]
  %v101 = vld [vmem:[%s1 + $0x150] sm:$0xff]
  %v102 = vld [vmem:[%s1 + $0x158] sm:$0xff]
  %v103 = vld [vmem:[%s1 + $0x160] sm:$0xff]
  %v104 = vld [vmem:[%s1 + $0x168] sm:$0xff]
  %v105 = vld [vmem:[%s1 + $0x170] sm:$0xff]
  %v106 = vld [vmem:[%s1 + $0x178] sm:$0xff]
  %v107 = vld [vmem:[%s1 + $0x180] sm:$0xff]
  %v108 = vld [vmem:[%s1 + $0x188] sm:$0xff]
  %v109 = vld [vmem:[%s1 + $0x190] sm:$0xff]
  %v110 = vld [vmem:[%s1 + $0x198] sm:$0xff]
  %v111 = vld [vmem:[%s1 + $0x1a0] sm:$0xff]
  %v112 = vld [vmem:[%s1 + $0x1a8] sm:$0xff]
  %v113 = vld [vmem:[%s1 + $0x1b0] sm:$0xff]
  %v114 = vld [vmem:[%s1 + $0x1b8] sm:$0xff]
  %v115 = vld [vmem:[%s1 + $0x1c0] sm:$0xff]
  %v116 = vld [vmem:[%s1 + $0x1c8] sm:$0xff]
  %v117 = vld [vmem:[%s1 + $0x1d0] sm:$0xff]
  %v118 = vld [vmem:[%s1 + $0x1d8] sm:$0xff]
  %v119 = vld [vmem:[%s1 + $0x1e0] sm:$0xff]
  %v120 = vld [vmem:[%s1 + $0x1e8] sm:$0xff]
  %v121 = vld [vmem:[%s1 + $0x1f0] sm:$0xff]
  %v122 = vld [vmem:[%s1 + $0x1f8] sm:$0xff]
  %v123 = vld [vmem:[%s1 + $0x200] sm:$0xff]
  %v124 = vld [vmem:[%s1 + $0x208] sm:$0xff]
  %v125 = vld [vmem:[%s1 + $0x210] sm:$0xff]
  %v126 = vld [vmem:[%s1 + $0x218] sm:$0xff]
  %v127 = vld [vmem:[%s1 + $0x220] sm:$0xff]
  %v128 = vld [vmem:[%s1 + $0x228] sm:$0xff]
  %v129 = vld [vmem:[%s1 + $0x230] sm:$0xff]
  %v130 = vld [vmem:[%s1 + $0x238] sm:$0xff]
  %v131 = vld [vmem:[%s1 + $0x240] sm:$0xff]
  %v132 = vld [vmem:[%s1 + $0x248] sm:$0xff]
  %v133 = vld [vmem:[%s1 + $0x250] sm:$0xff]
  %v134 = vld [vmem:[%s1 + $0x258] sm:$0xff]
  %v135 = vld [vmem:[%s1 + $0x260] sm:$0xff]
  %v136 = vld [vmem:[%s1 + $0x268] sm:$0xff]
  %v137 = vld [vmem:[%s1 + $0x270] sm:$0xff]
  %v138 = vld [vmem:[%s1 + $0x278] sm:$0xff]
  %v139 = vld [vmem:[%s1 + $0x280] sm:$0xff]
  %v140 = vld [vmem:[%s1 + $0x288] sm:$0xff]
  %v141 = vld [vmem:[%s1 + $0x290] sm:$0xff]
  %v142 = vld [vmem:[%s1 + $0x298] sm:$0xff]
  %v143 = vld [vmem:[%s1 + $0x2a0] sm:$0xff]
  %v144 = vld [vmem:[%s1 + $0x2a8] sm:$0xff]
  %v145 = vld [vmem:[%s1 + $0x2b0] sm:$0xff]
  %v146 = vld [vmem:[%s1 + $0x2b8] sm:$0xff]
  %v147 = vld [vmem:[%s1 + $0x2c0] sm:$0xff]
  %v148 = vld [vmem:[%s1 + $0x2c8] sm:$0xff]
  %v149 = vld [vmem:[%s1 + $0x2d0] sm:$0xff]
  %v150 = vld [vmem:[%s1 + $0x2d8] sm:$0xff]
  %v151 = vld [vmem:[%s1 + $0x2e0] sm:$0xff]
  %v152 = vld [vmem:[%s1 + $0x2e8] sm:$0xff]
  %v153 = vld [vmem:[%s1 + $0x2f0] sm:$0xff]
  %v154 = vld [vmem:[%s1 + $0x2f8] sm:$0xff]
  %v155 = vld [vmem:[%s1 + $0x300] sm:$0xff]
  %v156 = vld [vmem:[%s1 + $0x308] sm:$0xff]
  %v157 = vld [vmem:[%s1 + $0x310] sm:$0xff]
  %v158 = vld [vmem:[%s1 + $0x318] sm:$0xff]
  %v159 = vld [vmem:[%s1 + $0x320] sm:$0xff]
  %v160 = vld [vmem:[%s1 + $0x328] sm:$0xff]
  %v161 = vld [vmem:[%s1 + $0x330] sm:$0xff]
  %v162 = vld [vmem:[%s1 + $0x338] sm:$0xff]
  %v163 = vld [vmem:[%s1 + $0x340] sm:$0xff]
  %v164 = vld [vmem:[%s1 + $0x348] sm:$0xff]
  %v165 = vld [vmem:[%s1 + $0x350] sm:$0xff]
  %v166 = vld [vmem:[%s1 + $0x358] sm:$0xff]
  %v167 = vld [vmem:[%s1 + $0x360] sm:$0xff]
  %v168 = vld [vmem:[%s1 + $0x368] sm:$0xff]
  %v169 = vld [vmem:[%s1 + $0x370] sm:$0xff]
  %v170 = vld [vmem:[%s1 + $0x378] sm:$0xff]
  %v171 = vld [vmem:[%s1 + $0x380] sm:$0xff]
  %v172 = vld [vmem:[%s1 + $0x388] sm:$0xff]
  %v173 = vld [vmem:[%s1 + $0x390] sm:$0xff]
  %v174 = vld [vmem:[%s1 + $0x398] sm:$0xff]
  %v175 = vld [vmem:[%s1 + $0x3a0] sm:$0xff]
  %v176 = vld [vmem:[%s1 + $0x3a8] sm:$0xff]
  %v177 = vld [vmem:[%s1 + $0x3b0] sm:$0xff]
  %v178 = vld [vmem:[%s1 + $0x3b8] sm:$0xff]
  %v179 = vld [vmem:[%s1 + $0x3c0] sm:$0xff]
  %v180 = vld [vmem:[%s1 + $0x3c8] sm:$0xff]
  %v181 = vld [vmem:[%s1 + $0x3d0] sm:$0xff]
  %v182 = vld [vmem:[%s1 + $0x3d8] sm:$0xff]
  %v183 = vld [vmem:[%s1 + $0x3e0] sm:$0xff]
  %v184 = vld [vmem:[%s1 + $0x3e8] sm:$0xff]
  %v185 = vld [vmem:[%s1 + $0x3f0] sm:$0xff]
  %v186 = vld [vmem:[%s1 + $0x3f8] sm:$0xff]
  %v187 = vld [vmem:[%s1 + $0x400] sm:$0xff]
  %v188 = vld [vmem:[%s1 + $0x408] sm:$0xff]
  %v189 = vld [vmem:[%s1 + $0x410] sm:$0xff]
  %v190 = vld [vmem:[%s1 + $0x418] sm:$0xff]
  %v191 = vld [vmem:[%s1 + $0x420] sm:$0xff]
  %v192 = vld [vmem:[%s1 + $0x428] sm:$0xff]
  %v193 = vld [vmem:[%s1 + $0x430] sm:$0xff]
  %v194 = vld [vmem:[%s1 + $0x438] sm:$0xff]
  %v195 = vld [vmem:[%s1 + $0x440] sm:$0xff]
  %v196 = vld [vmem:[%s1 + $0x448] sm:$0xff]
  %v197 = vld [vmem:[%s1 + $0x450] sm:$0xff]
  %v198 = vld [vmem:[%s1 + $0x458] sm:$0xff]
  %v199 = vld [vmem:[%s1 + $0x460] sm:$0xff]
  %v200 = vld [vmem:[%s1 + $0x468] sm:$0xff]
  %v201 = vld [vmem:[%s1 + $0x470] sm:$0xff]
  %v202 = vld [vmem:[%s1 + $0x478] sm:$0xff]
  %v203 = vld [vmem:[%s2] sm:$0xff]
  %v204 = vld [vmem:[%s2 + $0x8] sm:$0xff]
  %v205 = vld [vmem:[%s2 + $0x10] sm:$0xff]
  %v206 = vld [vmem:[%s2 + $0x18] sm:$0xff]
  %v207 = vld [vmem:[%s3] sm:$0x1]
  %v209 = vlaneseq
  %v210 = vshrl.u32 %v209, 7
  %v211 = vsub.s32 0, %v210
  %v212 = vrot.slane %v207, %v211
  %v214 = vmul.f32 %v203, %v212
  %v215 = vmul.f32 %v204, %v212
  %v216 = vmul.f32 %v205, %v212
  %v217 = vmul.f32 %v206, %v212
  %v218 = vld [vmem:[%s4] sm:$0x1]
  %v220 = vlaneseq
  %v221 = vshrl.u32 %v220, 7
  %v222 = vsub.s32 0, %v221
  %v223 = vrot.slane %v218, %v222
  %v225 = vadd.f32 %v214, %v223
  %v226 = vadd.f32 %v215, %v223
  %v227 = vadd.f32 %v216, %v223
  %v228 = vadd.f32 %v217, %v223
  %229 = vmatprep.subr.mxu0 0.0
  %230 = vmatpush1.msra.mxu0 %v74
  %231 = vmatprep.subr.mxu0 0.0
  %232 = vmatpush1.msra.mxu0 %v73
  %233 = vmatprep.subr.mxu0 0.0
  %234 = vmatpush1.msra.mxu0 %v72
  %235 = vmatprep.subr.mxu0 0.0
  %236 = vmatpush1.msra.mxu0 %v71
  %237 = vmatprep.subr.mxu0 0.0
  %238 = vmatpush1.msra.mxu0 %v70
  %239 = vmatprep.subr.mxu0 0.0
  %240 = vmatpush1.msra.mxu0 %v69
  %241 = vmatprep.subr.mxu0 0.0
  %242 = vmatpush1.msra.mxu0 %v68
  %243 = vmatprep.subr.mxu0 0.0
  %244 = vmatpush1.msra.mxu0 %v67
  %245 = vmatprep.subr.mxu0 0.0
  %246 = vmatpush1.msra.mxu0 %v66
  %247 = vmatprep.subr.mxu0 0.0
  %248 = vmatpush1.msra.mxu0 %v65
  %249 = vmatprep.subr.mxu0 0.0
  %250 = vmatpush1.msra.mxu0 %v64
  %251 = vmatprep.subr.mxu0 0.0
  %252 = vmatpush1.msra.mxu0 %v63
  %253 = vmatprep.subr.mxu0 0.0
  %254 = vmatpush1.msra.mxu0 %v62
  %255 = vmatprep.subr.mxu0 0.0
  %256 = vmatpush1.msra.mxu0 %v61
  %257 = vmatprep.subr.mxu0 0.0
  %258 = vmatpush1.msra.mxu0 %v60
  %259 = vmatprep.subr.mxu0 0.0
  %260 = vmatpush1.msra.mxu0 %v59
  %261 = vmatprep.subr.mxu0 0.0
  %262 = vmatpush2.msra.mxu0 %v90
  %263 = vmatprep.subr.mxu0 0.0
  %264 = vmatpush2.msra.mxu0 %v89
  %265 = vmatprep.subr.mxu0 0.0
  %266 = vmatpush2.msra.mxu0 %v88
  %267 = vmatprep.subr.mxu0 0.0
  %268 = vmatpush2.msra.mxu0 %v87
  %269 = vmatprep.subr.mxu0 0.0
  %270 = vmatpush2.msra.mxu0 %v86
  %271 = vmatprep.subr.mxu0 0.0
  %272 = vmatpush2.msra.mxu0 %v85
  %273 = vmatprep.subr.mxu0 0.0
  %274 = vmatpush2.msra.mxu0 %v84
  %275 = vmatprep.subr.mxu0 0.0
  %276 = vmatpush2.msra.mxu0 %v83
  %277 = vmatprep.subr.mxu0 0.0
  %278 = vmatpush2.msra.mxu0 %v82
  %279 = vmatprep.subr.mxu0 0.0
  %280 = vmatpush2.msra.mxu0 %v81
  %281 = vmatprep.subr.mxu0 0.0
  %282 = vmatpush2.msra.mxu0 %v80
  %283 = vmatprep.subr.mxu0 0.0
  %284 = vmatpush2.msra.mxu0 %v79
  %285 = vmatprep.subr.mxu0 0.0
  %286 = vmatpush2.msra.mxu0 %v78
  %287 = vmatprep.subr.mxu0 0.0
  %288 = vmatpush2.msra.mxu0 %v77
  %289 = vmatprep.subr.mxu0 0.0
  %290 = vmatpush2.msra.mxu0 %v76
  %291 = vmatprep.subr.mxu0 0.0
  %292 = vmatpush2.msra.mxu0 %v75
  %293 = vmatprep.mubr.f32.mxu0 %v24
  %294 = vmatmul.mubr.f32.gmra.mxu0 %v23
  %v295 = vpop.f32.mrf.mxu0
  %v296 = vadd.f32 %v225, %v295
  %v297 = vpop.f32.mrf.mxu0
  %298 = vmatprep.mubr.f32.mxu0 %v33
  %299 = vmatmul.mubr.f32.gmra.mxu0 %v32
  %v300 = vpop.f32.mrf.mxu0
  %v301 = vadd.f32 %v226, %v300
  %v302 = vpop.f32.mrf.mxu0
  %303 = vmatprep.mubr.f32.mxu0 %v42
  %304 = vmatmul.mubr.f32.gmra.mxu0 %v41
  %v305 = vpop.f32.mrf.mxu0
  %v306 = vadd.f32 %v227, %v305
  %v307 = vpop.f32.mrf.mxu0
  %308 = vmatprep.mubr.f32.mxu0 %v51
  %309 = vmatmul.mubr.f32.gmra.mxu0 %v50
  %v310 = vpop.f32.mrf.mxu0
  %v311 = vadd.f32 %v228, %v310
  %v312 = vpop.f32.mrf.mxu0
  %313 = vdwg.mxu0
  %314 = vmatprep.subr.mxu0 0.0
  %315 = vmatpush1.msra.mxu0 %v106
  %316 = vmatprep.subr.mxu0 0.0
  %317 = vmatpush1.msra.mxu0 %v105
  %318 = vmatprep.subr.mxu0 0.0
  %319 = vmatpush1.msra.mxu0 %v104
  %320 = vmatprep.subr.mxu0 0.0
  %321 = vmatpush1.msra.mxu0 %v103
  %322 = vmatprep.subr.mxu0 0.0
  %323 = vmatpush1.msra.mxu0 %v102
  %324 = vmatprep.subr.mxu0 0.0
  %325 = vmatpush1.msra.mxu0 %v101
  %326 = vmatprep.subr.mxu0 0.0
  %327 = vmatpush1.msra.mxu0 %v100
  %328 = vmatprep.subr.mxu0 0.0
  %329 = vmatpush1.msra.mxu0 %v99
  %330 = vmatprep.subr.mxu0 0.0
  %331 = vmatpush1.msra.mxu0 %v98
  %332 = vmatprep.subr.mxu0 0.0
  %333 = vmatpush1.msra.mxu0 %v97
  %334 = vmatprep.subr.mxu0 0.0
  %335 = vmatpush1.msra.mxu0 %v96
  %336 = vmatprep.subr.mxu0 0.0
  %337 = vmatpush1.msra.mxu0 %v95
  %338 = vmatprep.subr.mxu0 0.0
  %339 = vmatpush1.msra.mxu0 %v94
  %340 = vmatprep.subr.mxu0 0.0
  %341 = vmatpush1.msra.mxu0 %v93
  %342 = vmatprep.subr.mxu0 0.0
  %343 = vmatpush1.msra.mxu0 %v92
  %344 = vmatprep.subr.mxu0 0.0
  %345 = vmatpush1.msra.mxu0 %v91
  %346 = vmatprep.subr.mxu0 0.0
  %347 = vmatpush2.msra.mxu0 %v122
  %348 = vmatprep.subr.mxu0 0.0
  %349 = vmatpush2.msra.mxu0 %v121
  %350 = vmatprep.subr.mxu0 0.0
  %351 = vmatpush2.msra.mxu0 %v120
  %352 = vmatprep.subr.mxu0 0.0
  %353 = vmatpush2.msra.mxu0 %v119
  %354 = vmatprep.subr.mxu0 0.0
  %355 = vmatpush2.msra.mxu0 %v118
  %356 = vmatprep.subr.mxu0 0.0
  %357 = vmatpush2.msra.mxu0 %v117
  %358 = vmatprep.subr.mxu0 0.0
  %359 = vmatpush2.msra.mxu0 %v116
  %360 = vmatprep.subr.mxu0 0.0
  %361 = vmatpush2.msra.mxu0 %v115
  %362 = vmatprep.subr.mxu0 0.0
  %363 = vmatpush2.msra.mxu0 %v114
  %364 = vmatprep.subr.mxu0 0.0
  %365 = vmatpush2.msra.mxu0 %v113
  %366 = vmatprep.subr.mxu0 0.0
  %367 = vmatpush2.msra.mxu0 %v112
  %368 = vmatprep.subr.mxu0 0.0
  %369 = vmatpush2.msra.mxu0 %v111
  %370 = vmatprep.subr.mxu0 0.0
  %371 = vmatpush2.msra.mxu0 %v110
  %372 = vmatprep.subr.mxu0 0.0
  %373 = vmatpush2.msra.mxu0 %v109
  %374 = vmatprep.subr.mxu0 0.0
  %375 = vmatpush2.msra.mxu0 %v108
  %376 = vmatprep.subr.mxu0 0.0
  %377 = vmatpush2.msra.mxu0 %v107
  %378 = vmatprep.mubr.f32.mxu0 %v26
  %379 = vmatmul.mubr.f32.gmra.mxu0 %v25
  %v380 = vpop.f32.mrf.mxu0
  %v381 = vadd.f32 %v296, %v380
  %v382 = vpop.f32.mrf.mxu0
  %383 = vmatprep.mubr.f32.mxu0 %v35
  %384 = vmatmul.mubr.f32.gmra.mxu0 %v34
  %v385 = vpop.f32.mrf.mxu0
  %v386 = vadd.f32 %v301, %v385
  %v387 = vpop.f32.mrf.mxu0
  %388 = vmatprep.mubr.f32.mxu0 %v44
  %389 = vmatmul.mubr.f32.gmra.mxu0 %v43
  %v390 = vpop.f32.mrf.mxu0
  %v391 = vadd.f32 %v306, %v390
  %v392 = vpop.f32.mrf.mxu0
  %393 = vmatprep.mubr.f32.mxu0 %v53
  %394 = vmatmul.mubr.f32.gmra.mxu0 %v52
  %v395 = vpop.f32.mrf.mxu0
  %v396 = vadd.f32 %v311, %v395
  %v397 = vpop.f32.mrf.mxu0
  %398 = vdwg.mxu0
  %399 = vmatprep.subr.mxu0 0.0
  %400 = vmatpush1.msra.mxu0 %v138
  %401 = vmatprep.subr.mxu0 0.0
  %402 = vmatpush1.msra.mxu0 %v137
  %403 = vmatprep.subr.mxu0 0.0
  %404 = vmatpush1.msra.mxu0 %v136
  %405 = vmatprep.subr.mxu0 0.0
  %406 = vmatpush1.msra.mxu0 %v135
  %407 = vmatprep.subr.mxu0 0.0
  %408 = vmatpush1.msra.mxu0 %v134
  %409 = vmatprep.subr.mxu0 0.0
  %410 = vmatpush1.msra.mxu0 %v133
  %411 = vmatprep.subr.mxu0 0.0
  %412 = vmatpush1.msra.mxu0 %v132
  %413 = vmatprep.subr.mxu0 0.0
  %414 = vmatpush1.msra.mxu0 %v131
  %415 = vmatprep.subr.mxu0 0.0
  %416 = vmatpush1.msra.mxu0 %v130
  %417 = vmatprep.subr.mxu0 0.0
  %418 = vmatpush1.msra.mxu0 %v129
  %419 = vmatprep.subr.mxu0 0.0
  %420 = vmatpush1.msra.mxu0 %v128
  %421 = vmatprep.subr.mxu0 0.0
  %422 = vmatpush1.msra.mxu0 %v127
  %423 = vmatprep.subr.mxu0 0.0
  %424 = vmatpush1.msra.mxu0 %v126
  %425 = vmatprep.subr.mxu0 0.0
  %426 = vmatpush1.msra.mxu0 %v125
  %427 = vmatprep.subr.mxu0 0.0
  %428 = vmatpush1.msra.mxu0 %v124
  %429 = vmatprep.subr.mxu0 0.0
  %430 = vmatpush1.msra.mxu0 %v123
  %431 = vmatprep.subr.mxu0 0.0
  %432 = vmatpush2.msra.mxu0 %v154
  %433 = vmatprep.subr.mxu0 0.0
  %434 = vmatpush2.msra.mxu0 %v153
  %435 = vmatprep.subr.mxu0 0.0
  %436 = vmatpush2.msra.mxu0 %v152
  %437 = vmatprep.subr.mxu0 0.0
  %438 = vmatpush2.msra.mxu0 %v151
  %439 = vmatprep.subr.mxu0 0.0
  %440 = vmatpush2.msra.mxu0 %v150
  %441 = vmatprep.subr.mxu0 0.0
  %442 = vmatpush2.msra.mxu0 %v149
  %443 = vmatprep.subr.mxu0 0.0
  %444 = vmatpush2.msra.mxu0 %v148
  %445 = vmatprep.subr.mxu0 0.0
  %446 = vmatpush2.msra.mxu0 %v147
  %447 = vmatprep.subr.mxu0 0.0
  %448 = vmatpush2.msra.mxu0 %v146
  %449 = vmatprep.subr.mxu0 0.0
  %450 = vmatpush2.msra.mxu0 %v145
  %451 = vmatprep.subr.mxu0 0.0
  %452 = vmatpush2.msra.mxu0 %v144
  %453 = vmatprep.subr.mxu0 0.0
  %454 = vmatpush2.msra.mxu0 %v143
  %455 = vmatprep.subr.mxu0 0.0
  %456 = vmatpush2.msra.mxu0 %v142
  %457 = vmatprep.subr.mxu0 0.0
  %458 = vmatpush2.msra.mxu0 %v141
  %459 = vmatprep.subr.mxu0 0.0
  %460 = vmatpush2.msra.mxu0 %v140
  %461 = vmatprep.subr.mxu0 0.0
  %462 = vmatpush2.msra.mxu0 %v139
  %463 = vmatprep.mubr.f32.mxu0 %v28
  %464 = vmatmul.mubr.f32.gmra.mxu0 %v27
  %v465 = vpop.f32.mrf.mxu0
  %v466 = vadd.f32 %v381, %v465
  %v467 = vpop.f32.mrf.mxu0
  %468 = vmatprep.mubr.f32.mxu0 %v37
  %469 = vmatmul.mubr.f32.gmra.mxu0 %v36
  %v470 = vpop.f32.mrf.mxu0
  %v471 = vadd.f32 %v386, %v470
  %v472 = vpop.f32.mrf.mxu0
  %473 = vmatprep.mubr.f32.mxu0 %v46
  %474 = vmatmul.mubr.f32.gmra.mxu0 %v45
  %v475 = vpop.f32.mrf.mxu0
  %v476 = vadd.f32 %v391, %v475
  %v477 = vpop.f32.mrf.mxu0
  %478 = vmatprep.mubr.f32.mxu0 %v55
  %479 = vmatmul.mubr.f32.gmra.mxu0 %v54
  %v480 = vpop.f32.mrf.mxu0
  %v481 = vadd.f32 %v396, %v480
  %v482 = vpop.f32.mrf.mxu0
  %483 = vdwg.mxu0
  %484 = vmatprep.subr.mxu0 0.0
  %485 = vmatpush1.msra.mxu0 %v170
  %486 = vmatprep.subr.mxu0 0.0
  %487 = vmatpush1.msra.mxu0 %v169
  %488 = vmatprep.subr.mxu0 0.0
  %489 = vmatpush1.msra.mxu0 %v168
  %490 = vmatprep.subr.mxu0 0.0
  %491 = vmatpush1.msra.mxu0 %v167
  %492 = vmatprep.subr.mxu0 0.0
  %493 = vmatpush1.msra.mxu0 %v166
  %494 = vmatprep.subr.mxu0 0.0
  %495 = vmatpush1.msra.mxu0 %v165
  %496 = vmatprep.subr.mxu0 0.0
  %497 = vmatpush1.msra.mxu0 %v164
  %498 = vmatprep.subr.mxu0 0.0
  %499 = vmatpush1.msra.mxu0 %v163
  %500 = vmatprep.subr.mxu0 0.0
  %501 = vmatpush1.msra.mxu0 %v162
  %502 = vmatprep.subr.mxu0 0.0
  %503 = vmatpush1.msra.mxu0 %v161
  %504 = vmatprep.subr.mxu0 0.0
  %505 = vmatpush1.msra.mxu0 %v160
  %506 = vmatprep.subr.mxu0 0.0
  %507 = vmatpush1.msra.mxu0 %v159
  %508 = vmatprep.subr.mxu0 0.0
  %509 = vmatpush1.msra.mxu0 %v158
  %510 = vmatprep.subr.mxu0 0.0
  %511 = vmatpush1.msra.mxu0 %v157
  %512 = vmatprep.subr.mxu0 0.0
  %513 = vmatpush1.msra.mxu0 %v156
  %514 = vmatprep.subr.mxu0 0.0
  %515 = vmatpush1.msra.mxu0 %v155
  %516 = vmatprep.subr.mxu0 0.0
  %517 = vmatpush2.msra.mxu0 %v186
  %518 = vmatprep.subr.mxu0 0.0
  %519 = vmatpush2.msra.mxu0 %v185
  %520 = vmatprep.subr.mxu0 0.0
  %521 = vmatpush2.msra.mxu0 %v184
  %522 = vmatprep.subr.mxu0 0.0
  %523 = vmatpush2.msra.mxu0 %v183
  %524 = vmatprep.subr.mxu0 0.0
  %525 = vmatpush2.msra.mxu0 %v182
  %526 = vmatprep.subr.mxu0 0.0
  %527 = vmatpush2.msra.mxu0 %v181
  %528 = vmatprep.subr.mxu0 0.0
  %529 = vmatpush2.msra.mxu0 %v180
  %530 = vmatprep.subr.mxu0 0.0
  %531 = vmatpush2.msra.mxu0 %v179
  %532 = vmatprep.subr.mxu0 0.0
  %533 = vmatpush2.msra.mxu0 %v178
  %534 = vmatprep.subr.mxu0 0.0
  %535 = vmatpush2.msra.mxu0 %v177
  %536 = vmatprep.subr.mxu0 0.0
  %537 = vmatpush2.msra.mxu0 %v176
  %538 = vmatprep.subr.mxu0 0.0
  %539 = vmatpush2.msra.mxu0 %v175
  %540 = vmatprep.subr.mxu0 0.0
  %541 = vmatpush2.msra.mxu0 %v174
  %542 = vmatprep.subr.mxu0 0.0
  %543 = vmatpush2.msra.mxu0 %v173
  %544 = vmatprep.subr.mxu0 0.0
  %545 = vmatpush2.msra.mxu0 %v172
  %546 = vmatprep.subr.mxu0 0.0
  %547 = vmatpush2.msra.mxu0 %v171
  %548 = vmatprep.mubr.f32.mxu0 %v30
  %549 = vmatmul.mubr.f32.gmra.mxu0 %v29
  %v550 = vpop.f32.mrf.mxu0
  %v551 = vadd.f32 %v466, %v550
  %v552 = vpop.f32.mrf.mxu0
  %553 = vmatprep.mubr.f32.mxu0 %v39
  %554 = vmatmul.mubr.f32.gmra.mxu0 %v38
  %v555 = vpop.f32.mrf.mxu0
  %v556 = vadd.f32 %v471, %v555
  %v557 = vpop.f32.mrf.mxu0
  %558 = vmatprep.mubr.f32.mxu0 %v48
  %559 = vmatmul.mubr.f32.gmra.mxu0 %v47
  %v560 = vpop.f32.mrf.mxu0
  %v561 = vadd.f32 %v476, %v560
  %v562 = vpop.f32.mrf.mxu0
  %563 = vmatprep.mubr.f32.mxu0 %v57
  %564 = vmatmul.mubr.f32.gmra.mxu0 %v56
  %v565 = vpop.f32.mrf.mxu0
  %v566 = vadd.f32 %v481, %v565
  %v567 = vpop.f32.mrf.mxu0
  %568 = vdwg.mxu0
  %569 = vmatprep.subr.mxu0 0.0
  %570 = vmatpush1.msra.mxu0 %v202
  %571 = vmatprep.subr.mxu0 0.0
  %572 = vmatpush1.msra.mxu0 %v201
  %573 = vmatprep.subr.mxu0 0.0
  %574 = vmatpush1.msra.mxu0 %v200
  %575 = vmatprep.subr.mxu0 0.0
  %576 = vmatpush1.msra.mxu0 %v199
  %577 = vmatprep.subr.mxu0 0.0
  %578 = vmatpush1.msra.mxu0 %v198
  %579 = vmatprep.subr.mxu0 0.0
  %580 = vmatpush1.msra.mxu0 %v197
  %581 = vmatprep.subr.mxu0 0.0
  %582 = vmatpush1.msra.mxu0 %v196
  %583 = vmatprep.subr.mxu0 0.0
  %584 = vmatpush1.msra.mxu0 %v195
  %585 = vmatprep.subr.mxu0 0.0
  %586 = vmatpush1.msra.mxu0 %v194
  %587 = vmatprep.subr.mxu0 0.0
  %588 = vmatpush1.msra.mxu0 %v193
  %589 = vmatprep.subr.mxu0 0.0
  %590 = vmatpush1.msra.mxu0 %v192
  %591 = vmatprep.subr.mxu0 0.0
  %592 = vmatpush1.msra.mxu0 %v191
  %593 = vmatprep.subr.mxu0 0.0
  %594 = vmatpush1.msra.mxu0 %v190
  %595 = vmatprep.subr.mxu0 0.0
  %596 = vmatpush1.msra.mxu0 %v189
  %597 = vmatprep.subr.mxu0 0.0
  %598 = vmatpush1.msra.mxu0 %v188
  %599 = vmatprep.subr.mxu0 0.0
  %600 = vmatpush1.msra.mxu0 %v187
  %601 = vmatprep.subr.mxu0 0.0
  %602 = vmatpush2.msra.mxu0 0.0
  %603 = vmatprep.subr.mxu0 0.0
  %604 = vmatpush2.msra.mxu0 0.0
  %605 = vmatprep.subr.mxu0 0.0
  %606 = vmatpush2.msra.mxu0 0.0
  %607 = vmatprep.subr.mxu0 0.0
  %608 = vmatpush2.msra.mxu0 0.0
  %609 = vmatprep.subr.mxu0 0.0
  %610 = vmatpush2.msra.mxu0 0.0
  %611 = vmatprep.subr.mxu0 0.0
  %612 = vmatpush2.msra.mxu0 0.0
  %613 = vmatprep.subr.mxu0 0.0
  %614 = vmatpush2.msra.mxu0 0.0
  %615 = vmatprep.subr.mxu0 0.0
  %616 = vmatpush2.msra.mxu0 0.0
  %617 = vmatprep.subr.mxu0 0.0
  %618 = vmatpush2.msra.mxu0 0.0
  %619 = vmatprep.subr.mxu0 0.0
  %620 = vmatpush2.msra.mxu0 0.0
  %621 = vmatprep.subr.mxu0 0.0
  %622 = vmatpush2.msra.mxu0 0.0
  %623 = vmatprep.subr.mxu0 0.0
  %624 = vmatpush2.msra.mxu0 0.0
  %625 = vmatprep.subr.mxu0 0.0
  %626 = vmatpush2.msra.mxu0 0.0
  %627 = vmatprep.subr.mxu0 0.0
  %628 = vmatpush2.msra.mxu0 0.0
  %629 = vmatprep.subr.mxu0 0.0
  %630 = vmatpush2.msra.mxu0 0.0
  %631 = vmatprep.subr.mxu0 0.0
  %632 = vmatpush2.msra.mxu0 0.0
  %633 = vmatprep.mubr.f32.mxu0 0.0
  %634 = vmatmul.mubr.f32.gmra.mxu0 %v31
  %v635 = vpop.f32.mrf.mxu0
  %v636 = vadd.f32 %v551, %v635
  %v637 = vpop.f32.mrf.mxu0
  %638 = vmatprep.mubr.f32.mxu0 0.0
  %639 = vmatmul.mubr.f32.gmra.mxu0 %v40
  %v640 = vpop.f32.mrf.mxu0
  %v641 = vadd.f32 %v556, %v640
  %v642 = vpop.f32.mrf.mxu0
  %643 = vmatprep.mubr.f32.mxu0 0.0
  %644 = vmatmul.mubr.f32.gmra.mxu0 %v49
  %v645 = vpop.f32.mrf.mxu0
  %v646 = vadd.f32 %v561, %v645
  %v647 = vpop.f32.mrf.mxu0
  %648 = vmatprep.mubr.f32.mxu0 0.0
  %649 = vmatmul.mubr.f32.gmra.mxu0 %v58
  %v650 = vpop.f32.mrf.mxu0
  %v651 = vadd.f32 %v566, %v650
  %v652 = vpop.f32.mrf.mxu0
  %653 = vdwg.mxu0
  %654 = vst [vmem:[%s5] sm:$0xff] %v636
  %655 = vst [vmem:[%s5 + $0x8] sm:$0xff] %v641
  %656 = vst [vmem:[%s5 + $0x10] sm:$0xff] %v646
  %657 = vst [vmem:[%s5 + $0x18] sm:$0xff] %v651
  %v658 = vadd.f32 %v636, %v641
  %v659 = vadd.f32 %v658, %v646
  %v660 = vadd.f32 %v659, %v651
  %v661 = vrot.slane %v660, 4
  %v662 = vadd.f32 %v660, %v661
  %v663 = vrot.slane %v662, 2
  %v664 = vadd.f32 %v662, %v663
  %v665 = vrot.slane %v664, 1
  %v666 = vadd.f32 %v664, %v665
  %667 = vst [vmem:[%s6] sm:$0xff] %v666
  %v668 = vmul.f32 %v636, %v636
  %v669 = vmul.f32 %v641, %v641
  %v670 = vmul.f32 %v646, %v646
  %v671 = vmul.f32 %v651, %v651
  %v672 = vadd.f32 %v668, %v669
  %v673 = vadd.f32 %v672, %v670
  %v674 = vadd.f32 %v673, %v671
  %v675 = vrot.slane %v674, 4
  %v676 = vadd.f32 %v674, %v675
  %v677 = vrot.slane %v676, 2
  %v678 = vadd.f32 %v676, %v677
  %v679 = vrot.slane %v678, 1
  %v680 = vadd.f32 %v678, %v679
  %681 = vst [vmem:[%s7] sm:$0xff] %v680
  // Predicated region
  $region22: #{_lambda_.36} parent=0 // pred_check
    _
  $region23: #{_lambda_.36} parent=0 // pred_check_branch
    %683 = sbr.rel (0) target = $region25
  $region24: #{_lambda_.36} parent=0 // pred_region
    _
  $region25: #{_lambda_.36} parent=0 // pred_fallthru
    _
  // Predicated region
  $region26: #{_lambda_.36} parent=0 // pred_check
    _
  $region27: #{_lambda_.36} parent=0 // pred_check_branch
    %685 = sbr.rel (0) target = $region29
  $region28: #{_lambda_.36} parent=0 // pred_region
    _
  $region29: #{_lambda_.36} parent=0 // pred_fallthru
    _
  // Predicated region
  $region30: #{_lambda_.36} parent=0 // pred_check
    _
  $region31: #{_lambda_.36} parent=0 // pred_check_branch
    %687 = sbr.rel (0) target = $region33
  $region32: #{_lambda_.36} parent=0 // pred_region
    _
  $region33: #{_lambda_.36} parent=0 // pred_fallthru
    _
  // Predicated region
  $region34: #{_lambda_.36} parent=0 // pred_check
    _
  $region35: #{_lambda_.36} parent=0 // pred_check_branch
    %689 = sbr.rel (0) target = $region37
  $region36: #{_lambda_.36} parent=0 // pred_region
    _
  $region37: #{_lambda_.36} parent=0 // pred_fallthru
    _
  // Predicated region
  $region38: #{_lambda_.36} parent=0 // pred_check
    _
  $region39: #{_lambda_.36} parent=0 // pred_check_branch
    %691 = sbr.rel (0) target = $region41
  $region40: #{_lambda_.36} parent=0 // pred_region
    _
  $region41: #{_lambda_.36} parent=0 // pred_fallthru
    _
  // Predicated region
  $region42: #{_lambda_.36} parent=0 // pred_check
    _
  $region43: #{_lambda_.36} parent=0 // pred_check_branch
    %693 = sbr.rel (0) target = $region45
  $region44: #{_lambda_.36} parent=0 // pred_region
    _
  $region45: #{_lambda_.36} parent=0 // pred_fallthru
    _

</llo_original>
